<compile_context>
chip_gen: v7x
topology: tpu7x:2x2x1
jax: 0.10.0
libtpu: 0.0.40
codegen_flags: <defaults>
</compile_context>

<pallas_src>
import functools

import jax
import jax.numpy as jnp
from jax.experimental import pallas as pl
from jax.experimental.pallas import tpu as pltpu


_CONV_TILE_M = 2048   # rows per grid step for the conv (im2col) GEMMs
_HEAD_TILE_M = 512    # rows per grid step for the fused MLP head (VMEM-bounded)
_LANE = 128


def _round_up(x, m):
    return ((x + m - 1) // m) * m


def _choose_tile_m(m, tile_m):
    """M tile: multiple of 16 (bf16 sublane packing), <= tile_m, and small
    enough that the grid has >= 2 steps whenever m allows (so the "parallel"
    grid axis can use both TensorCores on v7x)."""
    if m <= 16:
        return 16
    return max(16, min(tile_m, _round_up((m + 1) // 2, 16)))


def _vmem_limit(buf_bytes, extra_bytes=0):
    """Per-call scoped-VMEM budget: double-buffered pipeline blocks plus
    in-kernel intermediates plus headroom, clamped to stay safe on v7x
    (64 MiB physical VMEM; v5e/v6e have 128 MiB)."""
    need = 2 * buf_bytes + extra_bytes
    return int(max(32 << 20, min(int(need * 1.5) + (4 << 20), 48 << 20)))


# ---------------------------------------------------------------------------
# Pallas kernels
# ---------------------------------------------------------------------------
def _matmul_bias_kernel(x_ref, w_ref, b_ref, o_ref, *, relu):
    """o = maybe_relu(x @ w + b); bf16 operands, f32 MXU accumulation."""
    y = jnp.dot(x_ref[...], w_ref[...], preferred_element_type=jnp.float32)
    y = y + b_ref[...]
    if relu:
        y = jnp.maximum(y, 0.0)
    o_ref[...] = y.astype(o_ref.dtype)


def _mlp_head_kernel(x_ref, w1_ref, b1_ref, w2_ref, b2_ref, o_ref):
    """o = relu(x @ w1 + b1) @ w2 + b2 fused in one kernel: the 512/1024-wide
    hidden never leaves VMEM and the narrow second matmul shares the launch."""
    h = jnp.dot(x_ref[...], w1_ref[...], preferred_element_type=jnp.float32)
    h = jnp.maximum(h + b1_ref[...], 0.0)
    y = jnp.dot(h.astype(w2_ref.dtype), w2_ref[...],
                preferred_element_type=jnp.float32)
    o_ref[...] = (y + b2_ref[...]).astype(o_ref.dtype)


# ---------------------------------------------------------------------------
# pallas_call wrappers: tile M with a parallel grid, keep weights one block
# ---------------------------------------------------------------------------
def pallas_matmul_bias(x, w, b, *, relu, out_dtype, tile_m):
    """y = maybe_relu(x @ w + b); x:(M,K) bf16, w:(K,N) bf16, b:(1,N) f32."""
    m, k = x.shape
    n = w.shape[1]
    tm = _choose_tile_m(m, tile_m)
    out_bytes = jnp.dtype(out_dtype).itemsize
    buf_bytes = tm * k * 2 + k * n * 2 + n * 4 + tm * n * out_bytes
    cost = pl.CostEstimate(
        flops=2 * m * k * n,
        transcendentals=0,
        bytes_accessed=m * k * 2 + k * n * 2 + n * 4 + m * n * out_bytes,
    )
    return pl.pallas_call(
        functools.partial(_matmul_bias_kernel, relu=relu),
        out_shape=jax.ShapeDtypeStruct((m, n), out_dtype),
        grid_spec=pltpu.PrefetchScalarGridSpec(
            num_scalar_prefetch=0,
            grid=(pl.cdiv(m, tm),),
            in_specs=[
                pl.BlockSpec((tm, k), lambda i: (i, 0)),   # activation tile
                pl.BlockSpec((k, n), lambda i: (0, 0)),    # full weight
                pl.BlockSpec((1, n), lambda i: (0, 0)),    # bias
            ],
            out_specs=pl.BlockSpec((tm, n), lambda i: (i, 0)),
        ),
        compiler_params=pltpu.CompilerParams(
            dimension_semantics=("parallel",),
            vmem_limit_bytes=_vmem_limit(buf_bytes, extra_bytes=tm * n * 4),
        ),
        cost_estimate=cost,
    )(x, w, b)


def pallas_mlp_head(x, w1, b1, w2, b2, *, tile_m=_HEAD_TILE_M):
    """Fused fc1(+ReLU)+fc2: x:(M,K) bf16 -> (M, 128) f32 (lane-dense)."""
    m, k = x.shape
    h = w1.shape[1]
    n = w2.shape[1]
    tm = _choose_tile_m(m, tile_m)
    buf_bytes = tm * k * 2 + k * h * 2 + h * 4 + h * n * 2 + n * 4 + tm * n * 4
    cost = pl.CostEstimate(
        flops=2 * m * k * h + 2 * m * h * n,
        transcendentals=0,
        bytes_accessed=m * k * 2 + k * h * 2 + h * n * 2 + (h + n) * 4 + m * n * 4,
    )
    return pl.pallas_call(
        _mlp_head_kernel,
        out_shape=jax.ShapeDtypeStruct((m, n), jnp.float32),
        grid_spec=pltpu.PrefetchScalarGridSpec(
            num_scalar_prefetch=0,
            grid=(pl.cdiv(m, tm),),
            in_specs=[
                pl.BlockSpec((tm, k), lambda i: (i, 0)),   # flat activations
                pl.BlockSpec((k, h), lambda i: (0, 0)),    # fc1 (+v_fc1) weight
                pl.BlockSpec((1, h), lambda i: (0, 0)),    # fc1 (+v_fc1) bias
                pl.BlockSpec((h, n), lambda i: (0, 0)),    # fc2 (+v_fc2) weight
                pl.BlockSpec((1, n), lambda i: (0, 0)),    # fc2 (+v_fc2) bias
            ],
            out_specs=pl.BlockSpec((tm, n), lambda i: (i, 0)),
        ),
        compiler_params=pltpu.CompilerParams(
            dimension_semantics=("parallel",),
            vmem_limit_bytes=_vmem_limit(
                buf_bytes, extra_bytes=tm * h * 4 + tm * n * 4),
        ),
        cost_estimate=cost,
    )(x, w1, b1, w2, b2)


# ---------------------------------------------------------------------------
# Conv via NHWC im2col + Pallas GEMM
# ---------------------------------------------------------------------------
def _im2col_nhwc(x, k, stride):
    """x: (B, H, W, C) -> patches (B*OH*OW, k*k*C); column order (ki, kj, c)
    matches the prepared conv weight matrices.
    # TODO(synk): build the patches inside the Pallas kernel (implicit GEMM)
    # from a VMEM-resident NHWC tile instead of materializing the k^2-
    # duplicated patch matrix in HBM via XLA.
    """
    b, hh, ww, c = x.shape
    oh = (hh - k) // stride + 1
    ow = (ww - k) // stride + 1
    cols = []
    for di in range(k):
        for dj in range(k):
            cols.append(x[:, di:di + (oh - 1) * stride + 1:stride,
                             dj:dj + (ow - 1) * stride + 1:stride, :])
    p = jnp.concatenate(cols, axis=-1)             # (B, OH, OW, k*k*C)
    return p.reshape(b * oh * ow, k * k * c), oh, ow


def conv2d_relu_nhwc(x, wmat, bias, k, stride, *, tile_m=_CONV_TILE_M):
    """NHWC valid conv + ReLU via im2col + Pallas matmul.  The kernel writes
    only the real output channels, so no post-conv channel slice is needed."""
    b = x.shape[0]
    out_channels = wmat.shape[1]
    patches, oh, ow = _im2col_nhwc(x, k, stride)
    y = pallas_matmul_bias(patches, wmat, bias, relu=True,
                           out_dtype=jnp.bfloat16, tile_m=tile_m)
    return y.reshape(b, oh, ow, out_channels)


# ---------------------------------------------------------------------------
# Parameters: torch-layout init + one-time conversion to kernel layout
# ---------------------------------------------------------------------------
def init_torch_params(key, in_channels, n_actions, dueling=False, high_reso=False):
    """Random params in PyTorch layouts (conv: (O,C,kh,kw); fc: (out,in))."""
    linear_size = 12 * 12 * 64 if high_reso else 7 * 7 * 64

    def uni(k, shape, fan_in):
        bound = 1.0 / jnp.sqrt(jnp.float32(fan_in))
        return jax.random.uniform(k, shape, jnp.float32, -bound, bound)

    ks = jax.random.split(key, 14)
    p = {
        "conv1_w": uni(ks[0], (32, in_channels, 8, 8), in_channels * 64),
        "conv1_b": uni(ks[1], (32,), in_channels * 64),
        "conv2_w": uni(ks[2], (64, 32, 4, 4), 32 * 16),
        "conv2_b": uni(ks[3], (64,), 32 * 16),
        "conv3_w": uni(ks[4], (64, 64, 3, 3), 64 * 9),
        "conv3_b": uni(ks[5], (64,), 64 * 9),
        "fc1_w": uni(ks[6], (512, linear_size), linear_size),
        "fc1_b": uni(ks[7], (512,), linear_size),
        "fc2_w": uni(ks[8], (n_actions, 512), 512),
        "fc2_b": uni(ks[9], (n_actions,), 512),
    }
    if dueling:
        p.update({
            "v_fc1_w": uni(ks[10], (512, linear_size), linear_size),
            "v_fc1_b": uni(ks[11], (512,), linear_size),
            "v_fc2_w": uni(ks[12], (1, 512), 512),
            "v_fc2_b": uni(ks[13], (1,), 512),
        })
    return p


def prepare_params(tp, dueling=False, high_reso=False):
    """One-time host-side conversion to the kernel-friendly layout:
      * conv weights -> im2col matrices (kh*kw*C, O), bf16; conv1 pre-scaled
        by 1/255 (folds x/255 into the first GEMM),
      * fc1 (and v_fc1) rows permuted from torch's NCHW flatten to NHWC,
      * dueling heads fused: fc1|v_fc1 concatenated along N, fc2|v_fc2 packed
        block-diagonally; second-matmul N zero-padded to 128 (lane-dense)."""
    side = 12 if high_reso else 7

    def conv_mat(w, b, scale=1.0):
        o, c, kh, kw = w.shape
        wm = (w * scale).transpose(2, 3, 1, 0).reshape(kh * kw * c, o)
        return wm.astype(jnp.bfloat16), b.astype(jnp.float32).reshape(1, -1)

    def permute_fc1(w):
        # torch flatten order is (c, h, w); ours is (h, w, c) -> permute rows.
        out = w.shape[0]
        return w.reshape(out, 64, side, side).transpose(0, 2, 3, 1).reshape(out, -1)

    p = {}
    p["conv1_w"], p["conv1_b"] = conv_mat(tp["conv1_w"], tp["conv1_b"], 1.0 / 255.0)
    p["conv2_w"], p["conv2_b"] = conv_mat(tp["conv2_w"], tp["conv2_b"])
    p["conv3_w"], p["conv3_b"] = conv_mat(tp["conv3_w"], tp["conv3_b"])

    n_actions = tp["fc2_w"].shape[0]
    hidden = tp["fc1_w"].shape[0]                      # 512
    if not dueling:
        w1 = permute_fc1(tp["fc1_w"]).T                # (linear, 512)
        b1 = tp["fc1_b"].reshape(1, -1)
        w2 = tp["fc2_w"].T                             # (512, A)
        b2 = tp["fc2_b"].reshape(1, -1)
        n_out = n_actions
    else:
        w1 = jnp.concatenate([permute_fc1(tp["fc1_w"]).T,
                              permute_fc1(tp["v_fc1_w"]).T], axis=1)   # (linear, 1024)
        b1 = jnp.concatenate([tp["fc1_b"], tp["v_fc1_b"]]).reshape(1, -1)
        n_out = n_actions + 1
        w2 = jnp.zeros((2 * hidden, n_out), jnp.float32)
        w2 = w2.at[:hidden, :n_actions].set(tp["fc2_w"].T)     # adv columns
        w2 = w2.at[hidden:, n_actions:].set(tp["v_fc2_w"].T)   # value column
        b2 = jnp.concatenate([tp["fc2_b"], tp["v_fc2_b"]]).reshape(1, -1)

    n_pad = _round_up(n_out, _LANE) - n_out            # lane-dense output stores
    w2 = jnp.pad(w2, ((0, 0), (0, n_pad)))
    b2 = jnp.pad(b2, ((0, 0), (0, n_pad)))

    p["head_w1"] = w1.astype(jnp.bfloat16)
    p["head_b1"] = b1.astype(jnp.float32)
    p["head_w2"] = w2.astype(jnp.bfloat16)
    p["head_b2"] = b2.astype(jnp.float32)
    return p


# ---------------------------------------------------------------------------
# Forward pass
# ---------------------------------------------------------------------------
@functools.partial(jax.jit, static_argnames=("n_actions", "dueling"))
def net_forward(params, x, n_actions, dueling=False):
    """x: (B, C, 84, 84) float, values in [0, 255] (torch-style NCHW input).
    NOTE: x is cast to bf16 and 1/255 is folded into conv1's bf16 weights —
    exact for integer Atari frames, ~1e-3 relative error for arbitrary floats."""
    x = x.astype(jnp.bfloat16).transpose(0, 2, 3, 1)   # NHWC
    h = conv2d_relu_nhwc(x, params["conv1_w"], params["conv1_b"], 8, 4)
    h = conv2d_relu_nhwc(h, params["conv2_w"], params["conv2_b"], 4, 2)
    h = conv2d_relu_nhwc(h, params["conv3_w"], params["conv3_b"], 3, 1)
    flat = h.reshape(h.shape[0], -1)                   # NHWC flatten (head_w1 rows permuted)
    q = pallas_mlp_head(flat, params["head_w1"], params["head_b1"],
                        params["head_w2"], params["head_b2"])   # (B, 128) f32
    adv = q[:, :n_actions]
    if not dueling:
        return adv
    v = q[:, n_actions:n_actions + 1]
    return v + adv - adv.mean(axis=1, keepdims=True)


def net_forward_reference(tp, x, dueling=False):
    """Pure-JAX f32 reference matching the torch module exactly."""
    x = x.astype(jnp.float32) / 255.0

    def conv(x, w, b, s):
        y = jax.lax.conv_general_dilated(
            x, w, (s, s), "VALID", dimension_numbers=("NCHW", "OIHW", "NCHW"))
        return jax.nn.relu(y + b[None, :, None, None])

    h = conv(x, tp["conv1_w"], tp["conv1_b"], 4)
    h = conv(h, tp["conv2_w"], tp["conv2_b"], 2)
    h = conv(h, tp["conv3_w"], tp["conv3_b"], 1)
    flat = h.reshape(h.shape[0], -1)
    adv = jax.nn.relu(flat @ tp["fc1_w"].T + tp["fc1_b"]) @ tp["fc2_w"].T + tp["fc2_b"]
    if not dueling:
        return adv
    v = jax.nn.relu(flat @ tp["v_fc1_w"].T + tp["v_fc1_b"]) @ tp["v_fc2_w"].T + tp["v_fc2_b"]
    return v + adv - adv.mean(axis=1, keepdims=True)


if __name__ == "__main__":
    key = jax.random.PRNGKey(0)
    k_param, k_x = jax.random.split(key)

    B, C, H, W = 2, 4, 84, 84          # 84x84 so conv3 yields 7x7 (matches fc1)
    n_actions = 6

    x = jax.random.uniform(k_x, (B, C, H, W), jnp.float32, 0.0, 255.0)

    for dueling in (False, True):
        tparams = init_torch_params(k_param, C, n_actions, dueling=dueling)
        kparams = prepare_params(tparams, dueling=dueling)

        q = jax.block_until_ready(
            net_forward(kparams, x, n_actions, dueling=dueling))
        assert q.shape == (B, n_actions), q.shape
        assert q.dtype == jnp.float32

        ref = jax.block_until_ready(net_forward_reference(tparams, x, dueling=dueling))
        scale = jnp.maximum(jnp.max(jnp.abs(ref)), 1e-3)
        rel_err = float(jnp.max(jnp.abs(q - ref)) / scale)
        assert rel_err < 0.1, f"dueling={dueling}: relative error too large: {rel_err}"

    print("KERNEL_OK")
</pallas_src>

<mosaic_0001>
module attributes {stable_mosaic.version = 11 : i64} {
  func.func @_matmul_bias_kernel(%arg0: i32, %arg1: memref<400x256xbf16, #tpu.memory_space<vmem>>, %arg2: memref<256x32xbf16, #tpu.memory_space<vmem>>, %arg3: memref<1x32xf32, #tpu.memory_space<vmem>>, %arg4: memref<400x32xbf16, #tpu.memory_space<vmem>>) attributes {dimension_semantics = [#tpu.dimension_semantics<parallel>], iteration_bounds = array<i64: 2>, scalar_prefetch = 0 : i64, scratch_operands = 0 : i64, tpu.core_type = #tpu.core_type<tc>, window_params = [{transform_indices = @transform_0, window_bounds = array<i64: 400, 256>}, {pipeline_mode = #tpu.pipeline_mode<synchronous>, transform_indices = @transform_1, window_bounds = array<i64: 256, 32>}, {pipeline_mode = #tpu.pipeline_mode<synchronous>, transform_indices = @transform_2, window_bounds = array<i64: 1, 32>}, {transform_indices = @transform_3, window_bounds = array<i64: 400, 32>}]} {
    %c0 = arith.constant 0 : index
    %c0_0 = arith.constant 0 : index
    %0 = vector.load %arg1[%c0, %c0_0] : memref<400x256xbf16, #tpu.memory_space<vmem>>, vector<400x256xbf16>
    %c0_1 = arith.constant 0 : index
    %c0_2 = arith.constant 0 : index
    %1 = vector.load %arg2[%c0_1, %c0_2] : memref<256x32xbf16, #tpu.memory_space<vmem>>, vector<256x32xbf16>
    %cst = arith.constant dense<0.000000e+00> : vector<400x32xf32>
    %2 = tpu.matmul %0, %1, %cst {dimension_numbers = #tpu.dot_dimension_numbers<[1], [0], [0], [1], [0, 0, 1, 1], [], []>} : vector<400x256xbf16>, vector<256x32xbf16>, vector<400x32xf32> -> vector<400x32xf32>
    %c0_3 = arith.constant 0 : index
    %c0_4 = arith.constant 0 : index
    %3 = vector.load %arg3[%c0_3, %c0_4] : memref<1x32xf32, #tpu.memory_space<vmem>>, vector<1x32xf32>
    %4 = vector.broadcast %3 : vector<1x32xf32> to vector<400x32xf32>
    %5 = arith.addf %2, %4 : vector<400x32xf32>
    %cst_5 = arith.constant 0.000000e+00 : f32
    %6 = vector.broadcast %cst_5 : f32 to vector<400x32xf32>
    %7 = arith.maximumf %5, %6 : vector<400x32xf32>
    %8 = arith.truncf %7 : vector<400x32xf32> to vector<400x32xbf16>
    %c0_6 = arith.constant 0 : index
    %c0_7 = arith.constant 0 : index
    %9 = vector.load %arg4[%c0_6, %c0_7] : memref<400x32xbf16, #tpu.memory_space<vmem>>, vector<400x32xbf16>
    tpu.vector_store %arg4[%c0_6, %c0_7], %8 {strides = array<i32>} : memref<400x32xbf16, #tpu.memory_space<vmem>>, vector<400x32xbf16>,
    return
  }
  func.func @transform_0(%arg0: i32) -> (i32, i32) {
    %c0_i32 = arith.constant 0 : i32
    %c0_i32_0 = arith.constant 0 : i32
    return %arg0, %c0_i32 : i32, i32
  }
  func.func @transform_1(%arg0: i32) -> (i32, i32) {
    %c0_i32 = arith.constant 0 : i32
    %c0_i32_0 = arith.constant 0 : i32
    %c0_i32_1 = arith.constant 0 : i32
    return %c0_i32, %c0_i32_0 : i32, i32
  }
  func.func @transform_2(%arg0: i32) -> (i32, i32) {
    %c0_i32 = arith.constant 0 : i32
    %c0_i32_0 = arith.constant 0 : i32
    %c0_i32_1 = arith.constant 0 : i32
    return %c0_i32, %c0_i32_0 : i32, i32
  }
  func.func @transform_3(%arg0: i32) -> (i32, i32) {
    %c0_i32 = arith.constant 0 : i32
    %c0_i32_0 = arith.constant 0 : i32
    return %arg0, %c0_i32 : i32, i32
  }
}

module attributes {stable_mosaic.version = 11 : i64} {
  func.func @_matmul_bias_kernel(%arg0: i32, %arg1: memref<96x512xbf16, #tpu.memory_space<vmem>>, %arg2: memref<512x64xbf16, #tpu.memory_space<vmem>>, %arg3: memref<1x64xf32, #tpu.memory_space<vmem>>, %arg4: memref<96x64xbf16, #tpu.memory_space<vmem>>) attributes {dimension_semantics = [#tpu.dimension_semantics<parallel>], iteration_bounds = array<i64: 2>, scalar_prefetch = 0 : i64, scratch_operands = 0 : i64, tpu.core_type = #tpu.core_type<tc>, window_params = [{transform_indices = @transform_0, window_bounds = array<i64: 96, 512>}, {pipeline_mode = #tpu.pipeline_mode<synchronous>, transform_indices = @transform_1, window_bounds = array<i64: 512, 64>}, {pipeline_mode = #tpu.pipeline_mode<synchronous>, transform_indices = @transform_2, window_bounds = array<i64: 1, 64>}, {transform_indices = @transform_3, window_bounds = array<i64: 96, 64>}]} {
    %c0 = arith.constant 0 : index
    %c0_0 = arith.constant 0 : index
    %0 = vector.load %arg1[%c0, %c0_0] : memref<96x512xbf16, #tpu.memory_space<vmem>>, vector<96x512xbf16>
    %c0_1 = arith.constant 0 : index
    %c0_2 = arith.constant 0 : index
    %1 = vector.load %arg2[%c0_1, %c0_2] : memref<512x64xbf16, #tpu.memory_space<vmem>>, vector<512x64xbf16>
    %cst = arith.constant dense<0.000000e+00> : vector<96x64xf32>
    %2 = tpu.matmul %0, %1, %cst {dimension_numbers = #tpu.dot_dimension_numbers<[1], [0], [0], [1], [0, 0, 1, 1], [], []>} : vector<96x512xbf16>, vector<512x64xbf16>, vector<96x64xf32> -> vector<96x64xf32>
    %c0_3 = arith.constant 0 : index
    %c0_4 = arith.constant 0 : index
    %3 = vector.load %arg3[%c0_3, %c0_4] : memref<1x64xf32, #tpu.memory_space<vmem>>, vector<1x64xf32>
    %4 = vector.broadcast %3 : vector<1x64xf32> to vector<96x64xf32>
    %5 = arith.addf %2, %4 : vector<96x64xf32>
    %cst_5 = arith.constant 0.000000e+00 : f32
    %6 = vector.broadcast %cst_5 : f32 to vector<96x64xf32>
    %7 = arith.maximumf %5, %6 : vector<96x64xf32>
    %8 = arith.truncf %7 : vector<96x64xf32> to vector<96x64xbf16>
    %c0_6 = arith.constant 0 : index
    %c0_7 = arith.constant 0 : index
    %9 = vector.load %arg4[%c0_6, %c0_7] : memref<96x64xbf16, #tpu.memory_space<vmem>>, vector<96x64xbf16>
    tpu.vector_store %arg4[%c0_6, %c0_7], %8 {strides = array<i32>} : memref<96x64xbf16, #tpu.memory_space<vmem>>, vector<96x64xbf16>,
    return
  }
  func.func @transform_0(%arg0: i32) -> (i32, i32) {
    %c0_i32 = arith.constant 0 : i32
    %c0_i32_0 = arith.constant 0 : i32
    return %arg0, %c0_i32 : i32, i32
  }
  func.func @transform_1(%arg0: i32) -> (i32, i32) {
    %c0_i32 = arith.constant 0 : i32
    %c0_i32_0 = arith.constant 0 : i32
    %c0_i32_1 = arith.constant 0 : i32
    return %c0_i32, %c0_i32_0 : i32, i32
  }
  func.func @transform_2(%arg0: i32) -> (i32, i32) {
    %c0_i32 = arith.constant 0 : i32
    %c0_i32_0 = arith.constant 0 : i32
    %c0_i32_1 = arith.constant 0 : i32
    return %c0_i32, %c0_i32_0 : i32, i32
  }
  func.func @transform_3(%arg0: i32) -> (i32, i32) {
    %c0_i32 = arith.constant 0 : i32
    %c0_i32_0 = arith.constant 0 : i32
    return %arg0, %c0_i32 : i32, i32
  }
}

module attributes {stable_mosaic.version = 11 : i64} {
  func.func @_matmul_bias_kernel(%arg0: i32, %arg1: memref<64x576xbf16, #tpu.memory_space<vmem>>, %arg2: memref<576x64xbf16, #tpu.memory_space<vmem>>, %arg3: memref<1x64xf32, #tpu.memory_space<vmem>>, %arg4: memref<64x64xbf16, #tpu.memory_space<vmem>>) attributes {dimension_semantics = [#tpu.dimension_semantics<parallel>], iteration_bounds = array<i64: 2>, scalar_prefetch = 0 : i64, scratch_operands = 0 : i64, tpu.core_type = #tpu.core_type<tc>, window_params = [{transform_indices = @transform_0, window_bounds = array<i64: 64, 576>}, {pipeline_mode = #tpu.pipeline_mode<synchronous>, transform_indices = @transform_1, window_bounds = array<i64: 576, 64>}, {pipeline_mode = #tpu.pipeline_mode<synchronous>, transform_indices = @transform_2, window_bounds = array<i64: 1, 64>}, {transform_indices = @transform_3, window_bounds = array<i64: 64, 64>}]} {
    %c0 = arith.constant 0 : index
    %c0_0 = arith.constant 0 : index
    %0 = vector.load %arg1[%c0, %c0_0] : memref<64x576xbf16, #tpu.memory_space<vmem>>, vector<64x576xbf16>
    %c0_1 = arith.constant 0 : index
    %c0_2 = arith.constant 0 : index
    %1 = vector.load %arg2[%c0_1, %c0_2] : memref<576x64xbf16, #tpu.memory_space<vmem>>, vector<576x64xbf16>
    %cst = arith.constant dense<0.000000e+00> : vector<64x64xf32>
    %2 = tpu.matmul %0, %1, %cst {dimension_numbers = #tpu.dot_dimension_numbers<[1], [0], [0], [1], [0, 0, 1, 1], [], []>} : vector<64x576xbf16>, vector<576x64xbf16>, vector<64x64xf32> -> vector<64x64xf32>
    %c0_3 = arith.constant 0 : index
    %c0_4 = arith.constant 0 : index
    %3 = vector.load %arg3[%c0_3, %c0_4] : memref<1x64xf32, #tpu.memory_space<vmem>>, vector<1x64xf32>
    %4 = vector.broadcast %3 : vector<1x64xf32> to vector<64x64xf32>
    %5 = arith.addf %2, %4 : vector<64x64xf32>
    %cst_5 = arith.constant 0.000000e+00 : f32
    %6 = vector.broadcast %cst_5 : f32 to vector<64x64xf32>
    %7 = arith.maximumf %5, %6 : vector<64x64xf32>
    %8 = arith.truncf %7 : vector<64x64xf32> to vector<64x64xbf16>
    %c0_6 = arith.constant 0 : index
    %c0_7 = arith.constant 0 : index
    %9 = vector.load %arg4[%c0_6, %c0_7] : memref<64x64xbf16, #tpu.memory_space<vmem>>, vector<64x64xbf16>
    tpu.vector_store %arg4[%c0_6, %c0_7], %8 {strides = array<i32>} : memref<64x64xbf16, #tpu.memory_space<vmem>>, vector<64x64xbf16>,
    return
  }
  func.func @transform_0(%arg0: i32) -> (i32, i32) {
    %c0_i32 = arith.constant 0 : i32
    %c0_i32_0 = arith.constant 0 : i32
    return %arg0, %c0_i32 : i32, i32
  }
  func.func @transform_1(%arg0: i32) -> (i32, i32) {
    %c0_i32 = arith.constant 0 : i32
    %c0_i32_0 = arith.constant 0 : i32
    %c0_i32_1 = arith.constant 0 : i32
    return %c0_i32, %c0_i32_0 : i32, i32
  }
  func.func @transform_2(%arg0: i32) -> (i32, i32) {
    %c0_i32 = arith.constant 0 : i32
    %c0_i32_0 = arith.constant 0 : i32
    %c0_i32_1 = arith.constant 0 : i32
    return %c0_i32, %c0_i32_0 : i32, i32
  }
  func.func @transform_3(%arg0: i32) -> (i32, i32) {
    %c0_i32 = arith.constant 0 : i32
    %c0_i32_0 = arith.constant 0 : i32
    return %arg0, %c0_i32 : i32, i32
  }
}

module attributes {stable_mosaic.version = 11 : i64} {
  func.func @_mlp_head_kernel(%arg0: i32, %arg1: memref<16x3136xbf16, #tpu.memory_space<vmem>>, %arg2: memref<3136x512xbf16, #tpu.memory_space<vmem>>, %arg3: memref<1x512xf32, #tpu.memory_space<vmem>>, %arg4: memref<512x128xbf16, #tpu.memory_space<vmem>>, %arg5: memref<1x128xf32, #tpu.memory_space<vmem>>, %arg6: memref<16x128xf32, #tpu.memory_space<vmem>>) attributes {dimension_semantics = [#tpu.dimension_semantics<parallel>], iteration_bounds = array<i64: 1>, scalar_prefetch = 0 : i64, scratch_operands = 0 : i64, tpu.core_type = #tpu.core_type<tc>, window_params = [{transform_indices = @transform_0, window_bounds = array<i64: 16, 3136>}, {pipeline_mode = #tpu.pipeline_mode<synchronous>, transform_indices = @transform_1, window_bounds = array<i64: 3136, 512>}, {pipeline_mode = #tpu.pipeline_mode<synchronous>, transform_indices = @transform_2, window_bounds = array<i64: 1, 512>}, {pipeline_mode = #tpu.pipeline_mode<synchronous>, transform_indices = @transform_3, window_bounds = array<i64: 512, 128>}, {pipeline_mode = #tpu.pipeline_mode<synchronous>, transform_indices = @transform_4, window_bounds = array<i64: 1, 128>}, {transform_indices = @transform_5, window_bounds = array<i64: 16, 128>}]} {
    %c0 = arith.constant 0 : index
    %c0_0 = arith.constant 0 : index
    %0 = vector.load %arg1[%c0, %c0_0] : memref<16x3136xbf16, #tpu.memory_space<vmem>>, vector<16x3136xbf16>
    %c0_1 = arith.constant 0 : index
    %c0_2 = arith.constant 0 : index
    %1 = vector.load %arg2[%c0_1, %c0_2] : memref<3136x512xbf16, #tpu.memory_space<vmem>>, vector<3136x512xbf16>
    %cst = arith.constant dense<0.000000e+00> : vector<16x512xf32>
    %2 = tpu.matmul %0, %1, %cst {dimension_numbers = #tpu.dot_dimension_numbers<[1], [0], [0], [1], [0, 0, 1, 1], [], []>} : vector<16x3136xbf16>, vector<3136x512xbf16>, vector<16x512xf32> -> vector<16x512xf32>
    %c0_3 = arith.constant 0 : index
    %c0_4 = arith.constant 0 : index
    %3 = vector.load %arg3[%c0_3, %c0_4] : memref<1x512xf32, #tpu.memory_space<vmem>>, vector<1x512xf32>
    %4 = vector.broadcast %3 : vector<1x512xf32> to vector<16x512xf32>
    %5 = arith.addf %2, %4 : vector<16x512xf32>
    %cst_5 = arith.constant 0.000000e+00 : f32
    %6 = vector.broadcast %cst_5 : f32 to vector<16x512xf32>
    %7 = arith.maximumf %5, %6 : vector<16x512xf32>
    %8 = arith.truncf %7 : vector<16x512xf32> to vector<16x512xbf16>
    %c0_6 = arith.constant 0 : index
    %c0_7 = arith.constant 0 : index
    %9 = vector.load %arg4[%c0_6, %c0_7] : memref<512x128xbf16, #tpu.memory_space<vmem>>, vector<512x128xbf16>
    %cst_8 = arith.constant dense<0.000000e+00> : vector<16x128xf32>
    %10 = tpu.matmul %8, %9, %cst_8 {dimension_numbers = #tpu.dot_dimension_numbers<[1], [0], [0], [1], [0, 0, 1, 1], [], []>} : vector<16x512xbf16>, vector<512x128xbf16>, vector<16x128xf32> -> vector<16x128xf32>
    %c0_9 = arith.constant 0 : index
    %c0_10 = arith.constant 0 : index
    %11 = vector.load %arg5[%c0_9, %c0_10] : memref<1x128xf32, #tpu.memory_space<vmem>>, vector<1x128xf32>
    %12 = vector.broadcast %11 : vector<1x128xf32> to vector<16x128xf32>
    %13 = arith.addf %10, %12 : vector<16x128xf32>
    %c0_11 = arith.constant 0 : index
    %c0_12 = arith.constant 0 : index
    %14 = vector.load %arg6[%c0_11, %c0_12] : memref<16x128xf32, #tpu.memory_space<vmem>>, vector<16x128xf32>
    tpu.vector_store %arg6[%c0_11, %c0_12], %13 {strides = array<i32>} : memref<16x128xf32, #tpu.memory_space<vmem>>, vector<16x128xf32>,
    return
  }
  func.func @transform_0(%arg0: i32) -> (i32, i32) {
    %c0_i32 = arith.constant 0 : i32
    %c0_i32_0 = arith.constant 0 : i32
    return %arg0, %c0_i32 : i32, i32
  }
  func.func @transform_1(%arg0: i32) -> (i32, i32) {
    %c0_i32 = arith.constant 0 : i32
    %c0_i32_0 = arith.constant 0 : i32
    %c0_i32_1 = arith.constant 0 : i32
    return %c0_i32, %c0_i32_0 : i32, i32
  }
  func.func @transform_2(%arg0: i32) -> (i32, i32) {
    %c0_i32 = arith.constant 0 : i32
    %c0_i32_0 = arith.constant 0 : i32
    %c0_i32_1 = arith.constant 0 : i32
    return %c0_i32, %c0_i32_0 : i32, i32
  }
  func.func @transform_3(%arg0: i32) -> (i32, i32) {
    %c0_i32 = arith.constant 0 : i32
    %c0_i32_0 = arith.constant 0 : i32
    %c0_i32_1 = arith.constant 0 : i32
    return %c0_i32, %c0_i32_0 : i32, i32
  }
  func.func @transform_4(%arg0: i32) -> (i32, i32) {
    %c0_i32 = arith.constant 0 : i32
    %c0_i32_0 = arith.constant 0 : i32
    %c0_i32_1 = arith.constant 0 : i32
    return %c0_i32, %c0_i32_0 : i32, i32
  }
  func.func @transform_5(%arg0: i32) -> (i32, i32) {
    %c0_i32 = arith.constant 0 : i32
    %c0_i32_0 = arith.constant 0 : i32
    return %arg0, %c0_i32 : i32, i32
  }
}

</mosaic_0001>

<llo_original>
// kernel: net_forward.4
$region0: #{net_forward.4}
  #allocation0 [shape = 'u32[]', space=smem, size = 0x4, offset = 0x4, fixed_abs, tag = 'smem constant byte address 0x4 - core index']
  #allocation1 [shape = 'u32[144,128]{1,0:T(1,128)}', space=vmem, size = 0x12000, scoped, tag = 'internal scratch']
  %s0 = inlined_call_operand.vmem [shape: bf16[800,256], index: 0, kind: input, shape index: {}]
  %s1 = inlined_call_operand.vmem [shape: bf16[256,32], index: 1, kind: input, shape index: {}]
  %s2 = inlined_call_operand.vmem [shape: f32[1,32], index: 2, kind: input, shape index: {}]
  %s3 = inlined_call_operand.vmem [shape: bf16[800,32], index: 3, kind: output, shape index: {}]
  %s4 = sld [smem:[#allocation0]]
  $region45: #{net_forward.4} parent=0
    _
  %s6 = ssub.s32 1, %s4
  %s7 = scalar_select 0, %s6, %s4
  loop: start=0, step=1, limit=4
  $region2: #{net_forward.4} parent=0 // loop_pre_header
    _
  $region3: #{net_forward.4} parent=0 // loop_header
    %s9 = sphi 0, %s13
    %p10 = scmp.ge.s32.totalorder %s9, 4
    %s19 = sphi 0, %s21
    %s22 = sphi 0, %s19
    %s23 = sphi 0, %s22
    %s39 = sphi 0, %s23
    %s43 = sphi 0, %s43
    %s45 = sphi 0, %s43
    %s46 = sphi 0, %s45
    %s60 = sphi 0, %s46
    %s64 = sphi 0, %s64
    %s66 = sphi 0, %s64
    %s67 = sphi 0, %s66
    %s81 = sphi 0, %s67
    %s87 = sphi 0, %s89
    %s90 = sphi 0, %s87
    %s91 = sphi 0, %s90
    %s107 = sphi 0, %s91
  $region4: #{net_forward.4} parent=0 // loop_header_branch
    %12 = sbr.rel (%p10) target = $region8
  $region5: #{net_forward.4} parent=0 // loop_body
    %s14 = ssub.s32 %s9, 1
    %s15 = ssub.s32 %s9, 2
    %s16 = sadd.s32 %s9, 1
    %s17 = ssub.s32 %s9, %s16
    %p18 = scmp.eq.s32.totalorder %s17, 0
    %s20 = sadd.s32 %s19, 1
    %s21 = scalar_select %p18, %s19, %s20
    %p24 = pneg %p18
    %p25 = scmp.eq.s32.totalorder %s9, 1
    %p26 = por %p24, %p25
    %p27 = scmp.ne.s32.totalorder %s19, %s22
    %p28 = scmp.eq.s32.totalorder %s9, 0
    %p29 = por %p27, %p28
    %p30 = scmp.ne.s32.totalorder %s19, %s22
    %p31 = scmp.eq.s32.totalorder %s14, 1
    %p32 = por %p30, %p31
    %p33 = scmp.ne.s32.totalorder %s22, %s23
    %p34 = scmp.eq.s32.totalorder %s14, 0
    %p35 = por %p33, %p34
    %p36 = scmp.ne.s32.totalorder %s22, %s23
    %p37 = scmp.eq.s32.totalorder %s15, 1
    %p38 = por %p36, %p37
    %p40 = scmp.ne.s32.totalorder %s23, %s39
    %p41 = scmp.eq.s32.totalorder %s15, 0
    %p42 = por %p40, %p41
    %s44 = sadd.s32 %s43, 1
    %p47 = scmp.eq.s32.totalorder %s9, 1
    %p48 = scmp.ne.s32.totalorder %s43, %s45
    %p49 = scmp.eq.s32.totalorder %s9, 0
    %p50 = por %p48, %p49
    %p51 = scmp.ne.s32.totalorder %s43, %s45
    %p52 = scmp.eq.s32.totalorder %s14, 1
    %p53 = por %p51, %p52
    %p54 = scmp.ne.s32.totalorder %s45, %s46
    %p55 = scmp.eq.s32.totalorder %s14, 0
    %p56 = por %p54, %p55
    %p57 = scmp.ne.s32.totalorder %s45, %s46
    %p58 = scmp.eq.s32.totalorder %s15, 1
    %p59 = por %p57, %p58
    %p61 = scmp.ne.s32.totalorder %s46, %s60
    %p62 = scmp.eq.s32.totalorder %s15, 0
    %p63 = por %p61, %p62
    %s65 = sadd.s32 %s64, 1
    %p68 = scmp.eq.s32.totalorder %s9, 1
    %p69 = scmp.ne.s32.totalorder %s64, %s66
    %p70 = scmp.eq.s32.totalorder %s9, 0
    %p71 = por %p69, %p70
    %p72 = scmp.ne.s32.totalorder %s64, %s66
    %p73 = scmp.eq.s32.totalorder %s14, 1
    %p74 = por %p72, %p73
    %p75 = scmp.ne.s32.totalorder %s66, %s67
    %p76 = scmp.eq.s32.totalorder %s14, 0
    %p77 = por %p75, %p76
    %p78 = scmp.ne.s32.totalorder %s66, %s67
    %p79 = scmp.eq.s32.totalorder %s15, 1
    %p80 = por %p78, %p79
    %p82 = scmp.ne.s32.totalorder %s67, %s81
    %p83 = scmp.eq.s32.totalorder %s15, 0
    %p84 = por %p82, %p83
    %s85 = ssub.s32 %s9, %s16
    %p86 = scmp.eq.s32.totalorder %s85, 0
    %s88 = sadd.s32 %s87, 1
    %s89 = scalar_select %p86, %s87, %s88
    %p92 = pneg %p86
    %p93 = scmp.eq.s32.totalorder %s9, 1
    %p94 = por %p92, %p93
    %p95 = scmp.ne.s32.totalorder %s87, %s90
    %p96 = scmp.eq.s32.totalorder %s9, 0
    %p97 = por %p95, %p96
    %p98 = scmp.ne.s32.totalorder %s87, %s90
    %p99 = scmp.eq.s32.totalorder %s14, 1
    %p100 = por %p98, %p99
    %p101 = scmp.ne.s32.totalorder %s90, %s91
    %p102 = scmp.eq.s32.totalorder %s14, 0
    %p103 = por %p101, %p102
    %p104 = scmp.ne.s32.totalorder %s90, %s91
    %p105 = scmp.eq.s32.totalorder %s15, 1
    %p106 = por %p104, %p105
    %p108 = scmp.ne.s32.totalorder %s91, %s107
    %p109 = scmp.eq.s32.totalorder %s15, 0
    %p110 = por %p108, %p109
    %p111 = scmp.le.s32.totalorder 1, %s9
    %p112 = scmp.lt.s32.totalorder %s9, 3
    %p113 = pnand %p111, %p112
    %p114 = pneg %p113
    // Predicated region
    $region9: #{net_forward.4} parent=5 // pred_check
      _
    $region10: #{net_forward.4} parent=5 // pred_check_branch
      %116 = sbr.rel (%p113) target = $region12
    $region11: #{net_forward.4} parent=5 // pred_region
      %s117 = ssub.s32 %s9, 1
      // Predicated region
      $region13: #{net_forward.4} parent=11 // pred_check
        %p118 = pneg %p56
      $region14: #{net_forward.4} parent=11 // pred_check_branch
        %120 = sbr.rel (%p118) target = $region16
      $region15: #{net_forward.4} parent=11 // pred_region
        _
      $region16: #{net_forward.4} parent=11 // pred_fallthru
        _
      // Predicated region
      $region17: #{net_forward.4} parent=11 // pred_check
        %p121 = pneg %p77
      $region18: #{net_forward.4} parent=11 // pred_check_branch
        %123 = sbr.rel (%p121) target = $region20
      $region19: #{net_forward.4} parent=11 // pred_region
        _
      $region20: #{net_forward.4} parent=11 // pred_fallthru
        _
    $region12: #{net_forward.4} parent=5 // pred_fallthru
      _
    %p124 = scmp.lt.s32.totalorder %s9, 2
    // Predicated region
    $region21: #{net_forward.4} parent=5 // pred_check
      %p125 = pneg %p124
    $region22: #{net_forward.4} parent=5 // pred_check_branch
      %127 = sbr.rel (%p125) target = $region24
    $region23: #{net_forward.4} parent=5 // pred_region
      // Predicated region
      $region25: #{net_forward.4} parent=23 // pred_check
        %p128 = pneg %p29
      $region26: #{net_forward.4} parent=23 // pred_check_branch
        %130 = sbr.rel (%p128) target = $region28
      $region27: #{net_forward.4} parent=23 // pred_region
        %s131 = smul.u32 50, %s9
        %p132 = scmp.lt.s32.totalorder %s131, 99
        %s133 = scalar_select %p132, %s131, 99
        %s134 = smul.addr %s133, 2
        %s135 = smul.addr %s134, 4
        %s136 = scalar_lea.vmem %s0, %s135
        %s137 = smul.u32 50, %s9
      $region28: #{net_forward.4} parent=23 // pred_fallthru
        _
    $region24: #{net_forward.4} parent=5 // pred_fallthru
      _
    %p138 = scmp.le.s32.totalorder 1, %s9
    %p139 = scmp.lt.s32.totalorder %s9, 3
    %p140 = pnand %p138, %p139
    %p141 = pneg %p140
    // Predicated region
    $region29: #{net_forward.4} parent=5 // pred_check
      _
    $region30: #{net_forward.4} parent=5 // pred_check_branch
      %143 = sbr.rel (%p140) target = $region32
    $region31: #{net_forward.4} parent=5 // pred_region
      %s144 = ssub.s32 %s9, 1
      %s145 = smul.u32 50, %s14
      %p146 = scmp.lt.s32.totalorder %s145, 99
      %s147 = scalar_select %p146, %s145, 99
      %s148 = smul.addr %s147, 2
      %s149 = smul.addr %s148, 4
      %s150 = scalar_lea.vmem %s0, %s149
      %p151 = pneg %p35
      %p152 = pneg %p32
      %p153 = pneg %p56
      %p154 = pneg %p53
      %p155 = pneg %p77
      %p156 = pneg %p74
      %p157 = pneg %p103
      %p158 = pneg %p100
      %s159 = smul.u32 50, %s14
      %p160 = scmp.lt.s32.totalorder %s159, 99
      %s161 = scalar_select %p160, %s159, 99
      %s162 = smul.addr %s161, 4
      %s163 = scalar_lea.vmem %s3, %s162
      %s164 = smul.u32 50, %s14
      %p165 = scmp.lt.s32.totalorder %s164, 99
      %s166 = scalar_select %p165, %s164, 99
      %s167 = smul.addr %s166, 2
      %s168 = smul.addr %s167, 4
      %s169 = scalar_lea.vmem %s0, %s168
      %s170 = smul.u32 50, %s14
      %s171 = smul.u32 50, %s14
      %p172 = scmp.lt.s32.totalorder %s171, 99
      %s173 = scalar_select %p172, %s171, 99
      %s174 = smul.addr %s173, 4
      %s175 = scalar_lea.vmem %s3, %s174
      %s176 = smul.u32 50, %s14
      %v178 = vld [vmem:[%s169] sm:$0xff]
      %v179 = vld [vmem:[%s169 + $0x8] sm:$0xff]
      %v180 = vld [vmem:[%s169 + $0x10] sm:$0xff]
      %v181 = vld [vmem:[%s169 + $0x18] sm:$0xff]
      %v182 = vld [vmem:[%s169 + $0x20] sm:$0xff]
      %v183 = vld [vmem:[%s169 + $0x28] sm:$0xff]
      %v184 = vld [vmem:[%s169 + $0x30] sm:$0xff]
      %v185 = vld [vmem:[%s169 + $0x38] sm:$0xff]
      %v186 = vld [vmem:[%s169 + $0x40] sm:$0xff]
      %v187 = vld [vmem:[%s169 + $0x48] sm:$0xff]
      %v188 = vld [vmem:[%s169 + $0x50] sm:$0xff]
      %v189 = vld [vmem:[%s169 + $0x58] sm:$0xff]
      %v190 = vld [vmem:[%s169 + $0x60] sm:$0xff]
      %v191 = vld [vmem:[%s169 + $0x68] sm:$0xff]
      %v192 = vld [vmem:[%s169 + $0x70] sm:$0xff]
      %v193 = vld [vmem:[%s169 + $0x78] sm:$0xff]
      %v194 = vld [vmem:[%s169 + $0x80] sm:$0xff]
      %v195 = vld [vmem:[%s169 + $0x88] sm:$0xff]
      %v196 = vld [vmem:[%s169 + $0x90] sm:$0xff]
      %v197 = vld [vmem:[%s169 + $0x98] sm:$0xff]
      %v198 = vld [vmem:[%s169 + $0xa0] sm:$0xff]
      %v199 = vld [vmem:[%s169 + $0xa8] sm:$0xff]
      %v200 = vld [vmem:[%s169 + $0xb0] sm:$0xff]
      %v201 = vld [vmem:[%s169 + $0xb8] sm:$0xff]
      %v202 = vld [vmem:[%s169 + $0xc0] sm:$0xff]
      %v203 = vld [vmem:[%s169 + $0xc8] sm:$0xff]
      %v204 = vld [vmem:[%s169 + $0xd0] sm:$0xff]
      %v205 = vld [vmem:[%s169 + $0xd8] sm:$0xff]
      %v206 = vld [vmem:[%s169 + $0xe0] sm:$0xff]
      %v207 = vld [vmem:[%s169 + $0xe8] sm:$0xff]
      %v208 = vld [vmem:[%s169 + $0xf0] sm:$0xff]
      %v209 = vld [vmem:[%s169 + $0xf8] sm:$0xff]
      %v210 = vld [vmem:[%s169 + $0x100] sm:$0xff]
      %v211 = vld [vmem:[%s169 + $0x108] sm:$0xff]
      %v212 = vld [vmem:[%s169 + $0x110] sm:$0xff]
      %v213 = vld [vmem:[%s169 + $0x118] sm:$0xff]
      %v214 = vld [vmem:[%s169 + $0x120] sm:$0xff]
      %v215 = vld [vmem:[%s169 + $0x128] sm:$0xff]
      %v216 = vld [vmem:[%s169 + $0x130] sm:$0xff]
      %v217 = vld [vmem:[%s169 + $0x138] sm:$0xff]
      %v218 = vld [vmem:[%s169 + $0x140] sm:$0xff]
      %v219 = vld [vmem:[%s169 + $0x148] sm:$0xff]
      %v220 = vld [vmem:[%s169 + $0x150] sm:$0xff]
      %v221 = vld [vmem:[%s169 + $0x158] sm:$0xff]
      %v222 = vld [vmem:[%s169 + $0x160] sm:$0xff]
      %v223 = vld [vmem:[%s169 + $0x168] sm:$0xff]
      %v224 = vld [vmem:[%s169 + $0x170] sm:$0xff]
      %v225 = vld [vmem:[%s169 + $0x178] sm:$0xff]
      %v226 = vld [vmem:[%s169 + $0x180] sm:$0xff]
      %v227 = vld [vmem:[%s169 + $0x188] sm:$0xff]
      %v228 = vld [vmem:[%s1] sm:$0xf]
      %v229 = vld [vmem:[%s1 + $0x4] sm:$0xf]
      %v230 = vld [vmem:[%s1 + $0x8] sm:$0xf]
      %v231 = vld [vmem:[%s1 + $0xc] sm:$0xf]
      %v232 = vld [vmem:[%s1 + $0x10] sm:$0xf]
      %v233 = vld [vmem:[%s1 + $0x14] sm:$0xf]
      %v234 = vld [vmem:[%s1 + $0x18] sm:$0xf]
      %v235 = vld [vmem:[%s1 + $0x1c] sm:$0xf]
      %v236 = vld [vmem:[%s1 + $0x20] sm:$0xf]
      %v237 = vld [vmem:[%s1 + $0x24] sm:$0xf]
      %v238 = vld [vmem:[%s1 + $0x28] sm:$0xf]
      %v239 = vld [vmem:[%s1 + $0x2c] sm:$0xf]
      %v240 = vld [vmem:[%s1 + $0x30] sm:$0xf]
      %v241 = vld [vmem:[%s1 + $0x34] sm:$0xf]
      %v242 = vld [vmem:[%s1 + $0x38] sm:$0xf]
      %v243 = vld [vmem:[%s1 + $0x3c] sm:$0xf]
      %v244 = vld [vmem:[%s1 + $0x40] sm:$0xf]
      %v245 = vld [vmem:[%s1 + $0x44] sm:$0xf]
      %v246 = vld [vmem:[%s1 + $0x48] sm:$0xf]
      %v247 = vld [vmem:[%s1 + $0x4c] sm:$0xf]
      %v248 = vld [vmem:[%s1 + $0x50] sm:$0xf]
      %v249 = vld [vmem:[%s1 + $0x54] sm:$0xf]
      %v250 = vld [vmem:[%s1 + $0x58] sm:$0xf]
      %v251 = vld [vmem:[%s1 + $0x5c] sm:$0xf]
      %v252 = vld [vmem:[%s1 + $0x60] sm:$0xf]
      %v253 = vld [vmem:[%s1 + $0x64] sm:$0xf]
      %v254 = vld [vmem:[%s1 + $0x68] sm:$0xf]
      %v255 = vld [vmem:[%s1 + $0x6c] sm:$0xf]
      %v256 = vld [vmem:[%s1 + $0x70] sm:$0xf]
      %v257 = vld [vmem:[%s1 + $0x74] sm:$0xf]
      %v258 = vld [vmem:[%s1 + $0x78] sm:$0xf]
      %v259 = vld [vmem:[%s1 + $0x7c] sm:$0xf]
      %v260 = vld [vmem:[%s2] sm:$0x1]
      %v262 = vlaneseq
      %v263 = vshrl.u32 %v262, 7
      %v264 = vsub.s32 0, %v263
      %v265 = vrot.slane %v260, %v264
      %v317 = vunpack.c.l.b16 %v178
      %v318 = vunpack.c.h.b16 %v178
      %v319 = vunpack.c.l.b16 %v179
      %v320 = vunpack.c.h.b16 %v179
      %v321 = vunpack.c.l.b16 %v180
      %v322 = vunpack.c.h.b16 %v180
      %v323 = vunpack.c.l.b16 %v181
      %v324 = vunpack.c.h.b16 %v181
      %v325 = vunpack.c.l.b16 %v182
      %v326 = vunpack.c.h.b16 %v182
      %v327 = vunpack.c.l.b16 %v183
      %v328 = vunpack.c.h.b16 %v183
      %v329 = vunpack.c.l.b16 %v184
      %v330 = vunpack.c.h.b16 %v184
      %v331 = vunpack.c.l.b16 %v185
      %v332 = vunpack.c.h.b16 %v185
      %v333 = vunpack.c.l.b16 %v186
      %v334 = vunpack.c.h.b16 %v186
      %v335 = vunpack.c.l.b16 %v187
      %v336 = vunpack.c.h.b16 %v187
      %v337 = vunpack.c.l.b16 %v188
      %v338 = vunpack.c.h.b16 %v188
      %v339 = vunpack.c.l.b16 %v189
      %v340 = vunpack.c.h.b16 %v189
      %v341 = vunpack.c.l.b16 %v190
      %v342 = vunpack.c.h.b16 %v190
      %v343 = vunpack.c.l.b16 %v191
      %v344 = vunpack.c.h.b16 %v191
      %v345 = vunpack.c.l.b16 %v192
      %v346 = vunpack.c.h.b16 %v192
      %v347 = vunpack.c.l.b16 %v193
      %v348 = vunpack.c.h.b16 %v193
      %v349 = vunpack.c.l.b16 %v194
      %v350 = vunpack.c.h.b16 %v194
      %v351 = vunpack.c.l.b16 %v195
      %v352 = vunpack.c.h.b16 %v195
      %v353 = vunpack.c.l.b16 %v196
      %v354 = vunpack.c.h.b16 %v196
      %v355 = vunpack.c.l.b16 %v197
      %v356 = vunpack.c.h.b16 %v197
      %v357 = vunpack.c.l.b16 %v198
      %v358 = vunpack.c.h.b16 %v198
      %v359 = vunpack.c.l.b16 %v199
      %v360 = vunpack.c.h.b16 %v199
      %v361 = vunpack.c.l.b16 %v200
      %v362 = vunpack.c.h.b16 %v200
      %v363 = vunpack.c.l.b16 %v201
      %v364 = vunpack.c.h.b16 %v201
      %v365 = vunpack.c.l.b16 %v202
      %v366 = vunpack.c.h.b16 %v202
      %v367 = vunpack.c.l.b16 %v203
      %v368 = vunpack.c.h.b16 %v203
      %v369 = vunpack.c.l.b16 %v204
      %v370 = vunpack.c.h.b16 %v204
      %v371 = vunpack.c.l.b16 %v205
      %v372 = vunpack.c.h.b16 %v205
      %v373 = vunpack.c.l.b16 %v206
      %v374 = vunpack.c.h.b16 %v206
      %v375 = vunpack.c.l.b16 %v207
      %v376 = vunpack.c.h.b16 %v207
      %v377 = vunpack.c.l.b16 %v208
      %v378 = vunpack.c.h.b16 %v208
      %v379 = vunpack.c.l.b16 %v209
      %v380 = vunpack.c.h.b16 %v209
      %v381 = vunpack.c.l.b16 %v210
      %v382 = vunpack.c.h.b16 %v210
      %v383 = vunpack.c.l.b16 %v211
      %v384 = vunpack.c.h.b16 %v211
      %v385 = vunpack.c.l.b16 %v212
      %v386 = vunpack.c.h.b16 %v212
      %v387 = vunpack.c.l.b16 %v213
      %v388 = vunpack.c.h.b16 %v213
      %v389 = vunpack.c.l.b16 %v214
      %v390 = vunpack.c.h.b16 %v214
      %v391 = vunpack.c.l.b16 %v215
      %v392 = vunpack.c.h.b16 %v215
      %v393 = vunpack.c.l.b16 %v216
      %v394 = vunpack.c.h.b16 %v216
      %v395 = vunpack.c.l.b16 %v217
      %v396 = vunpack.c.h.b16 %v217
      %v397 = vunpack.c.l.b16 %v218
      %v398 = vunpack.c.h.b16 %v218
      %v399 = vunpack.c.l.b16 %v219
      %v400 = vunpack.c.h.b16 %v219
      %v401 = vunpack.c.l.b16 %v220
      %v402 = vunpack.c.h.b16 %v220
      %v403 = vunpack.c.l.b16 %v221
      %v404 = vunpack.c.h.b16 %v221
      %v405 = vunpack.c.l.b16 %v222
      %v406 = vunpack.c.h.b16 %v222
      %v407 = vunpack.c.l.b16 %v223
      %v408 = vunpack.c.h.b16 %v223
      %v409 = vunpack.c.l.b16 %v224
      %v410 = vunpack.c.h.b16 %v224
      %v411 = vunpack.c.l.b16 %v225
      %v412 = vunpack.c.h.b16 %v225
      %v413 = vunpack.c.l.b16 %v226
      %v414 = vunpack.c.h.b16 %v226
      %v415 = vunpack.c.l.b16 %v227
      %v416 = vunpack.c.h.b16 %v227
      %v417 = vpack.c.b16 %v319, %v317
      %v418 = vpack.c.b16 %v320, %v318
      %v419 = vpack.c.b16 %v323, %v321
      %v420 = vpack.c.b16 %v324, %v322
      %v421 = vpack.c.b16 %v327, %v325
      %v422 = vpack.c.b16 %v328, %v326
      %v423 = vpack.c.b16 %v331, %v329
      %v424 = vpack.c.b16 %v332, %v330
      %v425 = vpack.c.b16 %v335, %v333
      %v426 = vpack.c.b16 %v336, %v334
      %v427 = vpack.c.b16 %v339, %v337
      %v428 = vpack.c.b16 %v340, %v338
      %v429 = vpack.c.b16 %v343, %v341
      %v430 = vpack.c.b16 %v344, %v342
      %v431 = vpack.c.b16 %v347, %v345
      %v432 = vpack.c.b16 %v348, %v346
      %v433 = vpack.c.b16 %v351, %v349
      %v434 = vpack.c.b16 %v352, %v350
      %v435 = vpack.c.b16 %v355, %v353
      %v436 = vpack.c.b16 %v356, %v354
      %v437 = vpack.c.b16 %v359, %v357
      %v438 = vpack.c.b16 %v360, %v358
      %v439 = vpack.c.b16 %v363, %v361
      %v440 = vpack.c.b16 %v364, %v362
      %v441 = vpack.c.b16 %v367, %v365
      %v442 = vpack.c.b16 %v368, %v366
      %v443 = vpack.c.b16 %v371, %v369
      %v444 = vpack.c.b16 %v372, %v370
      %v445 = vpack.c.b16 %v375, %v373
      %v446 = vpack.c.b16 %v376, %v374
      %v447 = vpack.c.b16 %v379, %v377
      %v448 = vpack.c.b16 %v380, %v378
      %v449 = vpack.c.b16 %v383, %v381
      %v450 = vpack.c.b16 %v384, %v382
      %v451 = vpack.c.b16 %v387, %v385
      %v452 = vpack.c.b16 %v388, %v386
      %v453 = vpack.c.b16 %v391, %v389
      %v454 = vpack.c.b16 %v392, %v390
      %v455 = vpack.c.b16 %v395, %v393
      %v456 = vpack.c.b16 %v396, %v394
      %v457 = vpack.c.b16 %v399, %v397
      %v458 = vpack.c.b16 %v400, %v398
      %v459 = vpack.c.b16 %v403, %v401
      %v460 = vpack.c.b16 %v404, %v402
      %v461 = vpack.c.b16 %v407, %v405
      %v462 = vpack.c.b16 %v408, %v406
      %v463 = vpack.c.b16 %v411, %v409
      %v464 = vpack.c.b16 %v412, %v410
      %v465 = vpack.c.b16 %v415, %v413
      %v466 = vpack.c.b16 %v416, %v414
      %v549 = vunpack.c.l.b16 %v228
      %v550 = vunpack.c.l.b16 %v229
      %v551 = vunpack.c.l.b16 %v230
      %v552 = vunpack.c.l.b16 %v231
      %v553 = vunpack.c.l.b16 %v232
      %v554 = vunpack.c.l.b16 %v233
      %v555 = vunpack.c.l.b16 %v234
      %v556 = vunpack.c.l.b16 %v235
      %v557 = vunpack.c.l.b16 %v236
      %v558 = vunpack.c.l.b16 %v237
      %v559 = vunpack.c.l.b16 %v238
      %v560 = vunpack.c.l.b16 %v239
      %v561 = vunpack.c.l.b16 %v240
      %v562 = vunpack.c.l.b16 %v241
      %v563 = vunpack.c.l.b16 %v242
      %v564 = vunpack.c.l.b16 %v243
      %v565 = vunpack.c.l.b16 %v244
      %v566 = vunpack.c.l.b16 %v245
      %v567 = vunpack.c.l.b16 %v246
      %v568 = vunpack.c.l.b16 %v247
      %v569 = vunpack.c.l.b16 %v248
      %v570 = vunpack.c.l.b16 %v249
      %v571 = vunpack.c.l.b16 %v250
      %v572 = vunpack.c.l.b16 %v251
      %v573 = vunpack.c.l.b16 %v252
      %v574 = vunpack.c.l.b16 %v253
      %v575 = vunpack.c.l.b16 %v254
      %v576 = vunpack.c.l.b16 %v255
      %v577 = vunpack.c.l.b16 %v256
      %v578 = vunpack.c.l.b16 %v257
      %v579 = vunpack.c.l.b16 %v258
      %v580 = vunpack.c.l.b16 %v259
      %v581 = vpack.c.b16 %v550, %v549
      %v582 = vpack.c.b16 %v552, %v551
      %v583 = vpack.c.b16 %v554, %v553
      %v584 = vpack.c.b16 %v556, %v555
      %v585 = vpack.c.b16 %v558, %v557
      %v586 = vpack.c.b16 %v560, %v559
      %v587 = vpack.c.b16 %v562, %v561
      %v588 = vpack.c.b16 %v564, %v563
      %v589 = vpack.c.b16 %v566, %v565
      %v590 = vpack.c.b16 %v568, %v567
      %v591 = vpack.c.b16 %v570, %v569
      %v592 = vpack.c.b16 %v572, %v571
      %v593 = vpack.c.b16 %v574, %v573
      %v594 = vpack.c.b16 %v576, %v575
      %v595 = vpack.c.b16 %v578, %v577
      %v596 = vpack.c.b16 %v580, %v579
      %613 = vmatprep.subr.bf16.mxu0 0
      %614 = vmatpush1.bf16.msra.mxu0 %v581
      %615 = vmatprep.subr.bf16.mxu0 0
      %616 = vmatpush1.bf16.msra.mxu0 %v582
      %617 = vmatprep.subr.bf16.mxu0 0
      %618 = vmatpush1.bf16.msra.mxu0 %v583
      %619 = vmatprep.subr.bf16.mxu0 0
      %620 = vmatpush1.bf16.msra.mxu0 %v584
      %621 = vmatprep.subr.bf16.mxu0 0
      %622 = vmatpush1.bf16.msra.mxu0 %v585
      %623 = vmatprep.subr.bf16.mxu0 0
      %624 = vmatpush1.bf16.msra.mxu0 %v586
      %625 = vmatprep.subr.bf16.mxu0 0
      %626 = vmatpush1.bf16.msra.mxu0 %v587
      %627 = vmatprep.subr.bf16.mxu0 0
      %628 = vmatpush1.bf16.msra.mxu0 %v588
      %629 = vmatprep.subr.bf16.mxu0 0
      %630 = vmatpush1.bf16.msra.mxu0 %v589
      %631 = vmatprep.subr.bf16.mxu0 0
      %632 = vmatpush1.bf16.msra.mxu0 %v590
      %633 = vmatprep.subr.bf16.mxu0 0
      %634 = vmatpush1.bf16.msra.mxu0 %v591
      %635 = vmatprep.subr.bf16.mxu0 0
      %636 = vmatpush1.bf16.msra.mxu0 %v592
      %637 = vmatprep.subr.bf16.mxu0 0
      %638 = vmatpush1.bf16.msra.mxu0 %v593
      %639 = vmatprep.subr.bf16.mxu0 0
      %640 = vmatpush1.bf16.msra.mxu0 %v594
      %641 = vmatprep.subr.bf16.mxu0 0
      %642 = vmatpush1.bf16.msra.mxu0 %v595
      %643 = vmatprep.subr.bf16.mxu0 0
      %644 = vmatpush1.bf16.msra.mxu0 %v596
      %645 = vmatprep.mubr.bf16.mxu0 %v418
      %646 = vmatmul.mubr.bf16.gmra.mrb[0].mxu0 %v417
      %v647 = vpop.f32.mrb[0].mxu0
      %v648 = vadd.f32 %v265, %v647
      %v649 = vpop.f32.mrb[0].mxu0
      %v650 = vpop.f32.mrb[0].mxu0
      %v651 = vadd.f32 %v265, %v650
      %v652 = vpop.f32.mrb[0].mxu0
      %653 = vmatprep.mubr.bf16.mxu0 %v420
      %654 = vmatmul.mubr.bf16.gmra.mrb[0].mxu0 %v419
      %v655 = vpop.f32.mrb[0].mxu0
      %v656 = vadd.f32 %v265, %v655
      %v657 = vpop.f32.mrb[0].mxu0
      %v658 = vpop.f32.mrb[0].mxu0
      %v659 = vadd.f32 %v265, %v658
      %v660 = vpop.f32.mrb[0].mxu0
      %661 = vmatprep.mubr.bf16.mxu0 %v422
      %662 = vmatmul.mubr.bf16.gmra.mrb[0].mxu0 %v421
      %v663 = vpop.f32.mrb[0].mxu0
      %v664 = vadd.f32 %v265, %v663
      %v665 = vpop.f32.mrb[0].mxu0
      %v666 = vpop.f32.mrb[0].mxu0
      %v667 = vadd.f32 %v265, %v666
      %v668 = vpop.f32.mrb[0].mxu0
      %669 = vmatprep.mubr.bf16.mxu0 %v424
      %670 = vmatmul.mubr.bf16.gmra.mrb[0].mxu0 %v423
      %v671 = vpop.f32.mrb[0].mxu0
      %v672 = vadd.f32 %v265, %v671
      %v673 = vpop.f32.mrb[0].mxu0
      %v674 = vpop.f32.mrb[0].mxu0
      %v675 = vadd.f32 %v265, %v674
      %v676 = vpop.f32.mrb[0].mxu0
      %677 = vmatprep.mubr.bf16.mxu0 %v426
      %678 = vmatmul.mubr.bf16.gmra.mrb[0].mxu0 %v425
      %v679 = vpop.f32.mrb[0].mxu0
      %v680 = vadd.f32 %v265, %v679
      %v681 = vpop.f32.mrb[0].mxu0
      %v682 = vpop.f32.mrb[0].mxu0
      %v683 = vadd.f32 %v265, %v682
      %v684 = vpop.f32.mrb[0].mxu0
      %685 = vmatprep.mubr.bf16.mxu0 %v428
      %686 = vmatmul.mubr.bf16.gmra.mrb[0].mxu0 %v427
      %v687 = vpop.f32.mrb[0].mxu0
      %v688 = vadd.f32 %v265, %v687
      %v689 = vpop.f32.mrb[0].mxu0
      %v690 = vpop.f32.mrb[0].mxu0
      %v691 = vadd.f32 %v265, %v690
      %v692 = vpop.f32.mrb[0].mxu0
      %693 = vmatprep.mubr.bf16.mxu0 %v430
      %694 = vmatmul.mubr.bf16.gmra.mrb[0].mxu0 %v429
      %v695 = vpop.f32.mrb[0].mxu0
      %v696 = vadd.f32 %v265, %v695
      %v697 = vpop.f32.mrb[0].mxu0
      %v698 = vpop.f32.mrb[0].mxu0
      %v699 = vadd.f32 %v265, %v698
      %v700 = vpop.f32.mrb[0].mxu0
      %701 = vmatprep.mubr.bf16.mxu0 %v432
      %702 = vmatmul.mubr.bf16.gmra.mrb[0].mxu0 %v431
      %v703 = vpop.f32.mrb[0].mxu0
      %v704 = vadd.f32 %v265, %v703
      %v705 = vpop.f32.mrb[0].mxu0
      %v706 = vpop.f32.mrb[0].mxu0
      %v707 = vadd.f32 %v265, %v706
      %v708 = vpop.f32.mrb[0].mxu0
      %709 = vmatprep.mubr.bf16.mxu0 %v434
      %710 = vmatmul.mubr.bf16.gmra.mrb[0].mxu0 %v433
      %v711 = vpop.f32.mrb[0].mxu0
      %v712 = vadd.f32 %v265, %v711
      %v713 = vpop.f32.mrb[0].mxu0
      %v714 = vpop.f32.mrb[0].mxu0
      %v715 = vadd.f32 %v265, %v714
      %v716 = vpop.f32.mrb[0].mxu0
      %717 = vmatprep.mubr.bf16.mxu0 %v436
      %718 = vmatmul.mubr.bf16.gmra.mrb[0].mxu0 %v435
      %v719 = vpop.f32.mrb[0].mxu0
      %v720 = vadd.f32 %v265, %v719
      %v721 = vpop.f32.mrb[0].mxu0
      %v722 = vpop.f32.mrb[0].mxu0
      %v723 = vadd.f32 %v265, %v722
      %v724 = vpop.f32.mrb[0].mxu0
      %725 = vmatprep.mubr.bf16.mxu0 %v438
      %726 = vmatmul.mubr.bf16.gmra.mrb[0].mxu0 %v437
      %v727 = vpop.f32.mrb[0].mxu0
      %v728 = vadd.f32 %v265, %v727
      %v729 = vpop.f32.mrb[0].mxu0
      %v730 = vpop.f32.mrb[0].mxu0
      %v731 = vadd.f32 %v265, %v730
      %v732 = vpop.f32.mrb[0].mxu0
      %733 = vmatprep.mubr.bf16.mxu0 %v440
      %734 = vmatmul.mubr.bf16.gmra.mrb[0].mxu0 %v439
      %v735 = vpop.f32.mrb[0].mxu0
      %v736 = vadd.f32 %v265, %v735
      %v737 = vpop.f32.mrb[0].mxu0
      %v738 = vpop.f32.mrb[0].mxu0
      %v739 = vadd.f32 %v265, %v738
      %v740 = vpop.f32.mrb[0].mxu0
      %741 = vmatprep.mubr.bf16.mxu0 %v442
      %742 = vmatmul.mubr.bf16.gmra.mrb[0].mxu0 %v441
      %v743 = vpop.f32.mrb[0].mxu0
      %v744 = vadd.f32 %v265, %v743
      %v745 = vpop.f32.mrb[0].mxu0
      %v746 = vpop.f32.mrb[0].mxu0
      %v747 = vadd.f32 %v265, %v746
      %v748 = vpop.f32.mrb[0].mxu0
      %749 = vmatprep.mubr.bf16.mxu0 %v444
      %750 = vmatmul.mubr.bf16.gmra.mrb[0].mxu0 %v443
      %v751 = vpop.f32.mrb[0].mxu0
      %v752 = vadd.f32 %v265, %v751
      %v753 = vpop.f32.mrb[0].mxu0
      %v754 = vpop.f32.mrb[0].mxu0
      %v755 = vadd.f32 %v265, %v754
      %v756 = vpop.f32.mrb[0].mxu0
      %757 = vmatprep.mubr.bf16.mxu0 %v446
      %758 = vmatmul.mubr.bf16.gmra.mrb[0].mxu0 %v445
      %v759 = vpop.f32.mrb[0].mxu0
      %v760 = vadd.f32 %v265, %v759
      %v761 = vpop.f32.mrb[0].mxu0
      %v762 = vpop.f32.mrb[0].mxu0
      %v763 = vadd.f32 %v265, %v762
      %v764 = vpop.f32.mrb[0].mxu0
      %765 = vmatprep.mubr.bf16.mxu0 %v448
      %766 = vmatmul.mubr.bf16.gmra.mrb[0].mxu0 %v447
      %v767 = vpop.f32.mrb[0].mxu0
      %v768 = vadd.f32 %v265, %v767
      %v769 = vpop.f32.mrb[0].mxu0
      %v770 = vpop.f32.mrb[0].mxu0
      %v771 = vadd.f32 %v265, %v770
      %v772 = vpop.f32.mrb[0].mxu0
      %773 = vmatprep.mubr.bf16.mxu0 %v450
      %774 = vmatmul.mubr.bf16.gmra.mrb[0].mxu0 %v449
      %v775 = vpop.f32.mrb[0].mxu0
      %v776 = vadd.f32 %v265, %v775
      %v777 = vpop.f32.mrb[0].mxu0
      %v778 = vpop.f32.mrb[0].mxu0
      %v779 = vadd.f32 %v265, %v778
      %v780 = vpop.f32.mrb[0].mxu0
      %781 = vmatprep.mubr.bf16.mxu0 %v452
      %782 = vmatmul.mubr.bf16.gmra.mrb[0].mxu0 %v451
      %v783 = vpop.f32.mrb[0].mxu0
      %v784 = vadd.f32 %v265, %v783
      %v785 = vpop.f32.mrb[0].mxu0
      %v786 = vpop.f32.mrb[0].mxu0
      %v787 = vadd.f32 %v265, %v786
      %v788 = vpop.f32.mrb[0].mxu0
      %789 = vmatprep.mubr.bf16.mxu0 %v454
      %790 = vmatmul.mubr.bf16.gmra.mrb[0].mxu0 %v453
      %v791 = vpop.f32.mrb[0].mxu0
      %v792 = vadd.f32 %v265, %v791
      %v793 = vpop.f32.mrb[0].mxu0
      %v794 = vpop.f32.mrb[0].mxu0
      %v795 = vadd.f32 %v265, %v794
      %v796 = vpop.f32.mrb[0].mxu0
      %797 = vmatprep.mubr.bf16.mxu0 %v456
      %798 = vmatmul.mubr.bf16.gmra.mrb[0].mxu0 %v455
      %v799 = vpop.f32.mrb[0].mxu0
      %v800 = vadd.f32 %v265, %v799
      %v801 = vpop.f32.mrb[0].mxu0
      %v802 = vpop.f32.mrb[0].mxu0
      %v803 = vadd.f32 %v265, %v802
      %v804 = vpop.f32.mrb[0].mxu0
      %805 = vmatprep.mubr.bf16.mxu0 %v458
      %806 = vmatmul.mubr.bf16.gmra.mrb[0].mxu0 %v457
      %v807 = vpop.f32.mrb[0].mxu0
      %v808 = vadd.f32 %v265, %v807
      %v809 = vpop.f32.mrb[0].mxu0
      %v810 = vpop.f32.mrb[0].mxu0
      %v811 = vadd.f32 %v265, %v810
      %v812 = vpop.f32.mrb[0].mxu0
      %813 = vmatprep.mubr.bf16.mxu0 %v460
      %814 = vmatmul.mubr.bf16.gmra.mrb[0].mxu0 %v459
      %v815 = vpop.f32.mrb[0].mxu0
      %v816 = vadd.f32 %v265, %v815
      %v817 = vpop.f32.mrb[0].mxu0
      %v818 = vpop.f32.mrb[0].mxu0
      %v819 = vadd.f32 %v265, %v818
      %v820 = vpop.f32.mrb[0].mxu0
      %821 = vmatprep.mubr.bf16.mxu0 %v462
      %822 = vmatmul.mubr.bf16.gmra.mrb[0].mxu0 %v461
      %v823 = vpop.f32.mrb[0].mxu0
      %v824 = vadd.f32 %v265, %v823
      %v825 = vpop.f32.mrb[0].mxu0
      %v826 = vpop.f32.mrb[0].mxu0
      %v827 = vadd.f32 %v265, %v826
      %v828 = vpop.f32.mrb[0].mxu0
      %829 = vmatprep.mubr.bf16.mxu0 %v464
      %830 = vmatmul.mubr.bf16.gmra.mrb[0].mxu0 %v463
      %v831 = vpop.f32.mrb[0].mxu0
      %v832 = vadd.f32 %v265, %v831
      %v833 = vpop.f32.mrb[0].mxu0
      %v834 = vpop.f32.mrb[0].mxu0
      %v835 = vadd.f32 %v265, %v834
      %v836 = vpop.f32.mrb[0].mxu0
      %837 = vmatprep.mubr.bf16.mxu0 %v466
      %838 = vmatmul.mubr.bf16.gmra.mrb[0].mxu0 %v465
      %v839 = vpop.f32.mrb[0].mxu0
      %v840 = vadd.f32 %v265, %v839
      %v841 = vpop.f32.mrb[0].mxu0
      %v842 = vpop.f32.mrb[0].mxu0
      %v843 = vadd.f32 %v265, %v842
      %v844 = vpop.f32.mrb[0].mxu0
      %845 = vdwg.mxu0
      %v846 = vmax.f32 %v648, 0.0
      %v847 = vmax.f32 %v651, 0.0
      %v848 = vmax.f32 %v656, 0.0
      %v849 = vmax.f32 %v659, 0.0
      %v850 = vmax.f32 %v664, 0.0
      %v851 = vmax.f32 %v667, 0.0
      %v852 = vmax.f32 %v672, 0.0
      %v853 = vmax.f32 %v675, 0.0
      %v854 = vmax.f32 %v680, 0.0
      %v855 = vmax.f32 %v683, 0.0
      %v856 = vmax.f32 %v688, 0.0
      %v857 = vmax.f32 %v691, 0.0
      %v858 = vmax.f32 %v696, 0.0
      %v859 = vmax.f32 %v699, 0.0
      %v860 = vmax.f32 %v704, 0.0
      %v861 = vmax.f32 %v707, 0.0
      %v862 = vmax.f32 %v712, 0.0
      %v863 = vmax.f32 %v715, 0.0
      %v864 = vmax.f32 %v720, 0.0
      %v865 = vmax.f32 %v723, 0.0
      %v866 = vmax.f32 %v728, 0.0
      %v867 = vmax.f32 %v731, 0.0
      %v868 = vmax.f32 %v736, 0.0
      %v869 = vmax.f32 %v739, 0.0
      %v870 = vmax.f32 %v744, 0.0
      %v871 = vmax.f32 %v747, 0.0
      %v872 = vmax.f32 %v752, 0.0
      %v873 = vmax.f32 %v755, 0.0
      %v874 = vmax.f32 %v760, 0.0
      %v875 = vmax.f32 %v763, 0.0
      %v876 = vmax.f32 %v768, 0.0
      %v877 = vmax.f32 %v771, 0.0
      %v878 = vmax.f32 %v776, 0.0
      %v879 = vmax.f32 %v779, 0.0
      %v880 = vmax.f32 %v784, 0.0
      %v881 = vmax.f32 %v787, 0.0
      %v882 = vmax.f32 %v792, 0.0
      %v883 = vmax.f32 %v795, 0.0
      %v884 = vmax.f32 %v800, 0.0
      %v885 = vmax.f32 %v803, 0.0
      %v886 = vmax.f32 %v808, 0.0
      %v887 = vmax.f32 %v811, 0.0
      %v888 = vmax.f32 %v816, 0.0
      %v889 = vmax.f32 %v819, 0.0
      %v890 = vmax.f32 %v824, 0.0
      %v891 = vmax.f32 %v827, 0.0
      %v892 = vmax.f32 %v832, 0.0
      %v893 = vmax.f32 %v835, 0.0
      %v894 = vmax.f32 %v840, 0.0
      %v895 = vmax.f32 %v843, 0.0
      %v896 = vpack.c.bf16 %v847, %v846
      %v897 = vpack.c.bf16 %v849, %v848
      %v898 = vpack.c.bf16 %v851, %v850
      %v899 = vpack.c.bf16 %v853, %v852
      %v900 = vpack.c.bf16 %v855, %v854
      %v901 = vpack.c.bf16 %v857, %v856
      %v902 = vpack.c.bf16 %v859, %v858
      %v903 = vpack.c.bf16 %v861, %v860
      %v904 = vpack.c.bf16 %v863, %v862
      %v905 = vpack.c.bf16 %v865, %v864
      %v906 = vpack.c.bf16 %v867, %v866
      %v907 = vpack.c.bf16 %v869, %v868
      %v908 = vpack.c.bf16 %v871, %v870
      %v909 = vpack.c.bf16 %v873, %v872
      %v910 = vpack.c.bf16 %v875, %v874
      %v911 = vpack.c.bf16 %v877, %v876
      %v912 = vpack.c.bf16 %v879, %v878
      %v913 = vpack.c.bf16 %v881, %v880
      %v914 = vpack.c.bf16 %v883, %v882
      %v915 = vpack.c.bf16 %v885, %v884
      %v916 = vpack.c.bf16 %v887, %v886
      %v917 = vpack.c.bf16 %v889, %v888
      %v918 = vpack.c.bf16 %v891, %v890
      %v919 = vpack.c.bf16 %v893, %v892
      %v920 = vpack.c.bf16 %v895, %v894
      %v946 = vunpack.c.l.b16 %v896
      %v947 = vunpack.c.h.b16 %v896
      %v948 = vunpack.c.l.b16 %v897
      %v949 = vunpack.c.h.b16 %v897
      %v950 = vunpack.c.l.b16 %v898
      %v951 = vunpack.c.h.b16 %v898
      %v952 = vunpack.c.l.b16 %v899
      %v953 = vunpack.c.h.b16 %v899
      %v954 = vunpack.c.l.b16 %v900
      %v955 = vunpack.c.h.b16 %v900
      %v956 = vunpack.c.l.b16 %v901
      %v957 = vunpack.c.h.b16 %v901
      %v958 = vunpack.c.l.b16 %v902
      %v959 = vunpack.c.h.b16 %v902
      %v960 = vunpack.c.l.b16 %v903
      %v961 = vunpack.c.h.b16 %v903
      %v962 = vunpack.c.l.b16 %v904
      %v963 = vunpack.c.h.b16 %v904
      %v964 = vunpack.c.l.b16 %v905
      %v965 = vunpack.c.h.b16 %v905
      %v966 = vunpack.c.l.b16 %v906
      %v967 = vunpack.c.h.b16 %v906
      %v968 = vunpack.c.l.b16 %v907
      %v969 = vunpack.c.h.b16 %v907
      %v970 = vunpack.c.l.b16 %v908
      %v971 = vunpack.c.h.b16 %v908
      %v972 = vunpack.c.l.b16 %v909
      %v973 = vunpack.c.h.b16 %v909
      %v974 = vunpack.c.l.b16 %v910
      %v975 = vunpack.c.h.b16 %v910
      %v976 = vunpack.c.l.b16 %v911
      %v977 = vunpack.c.h.b16 %v911
      %v978 = vunpack.c.l.b16 %v912
      %v979 = vunpack.c.h.b16 %v912
      %v980 = vunpack.c.l.b16 %v913
      %v981 = vunpack.c.h.b16 %v913
      %v982 = vunpack.c.l.b16 %v914
      %v983 = vunpack.c.h.b16 %v914
      %v984 = vunpack.c.l.b16 %v915
      %v985 = vunpack.c.h.b16 %v915
      %v986 = vunpack.c.l.b16 %v916
      %v987 = vunpack.c.h.b16 %v916
      %v988 = vunpack.c.l.b16 %v917
      %v989 = vunpack.c.h.b16 %v917
      %v990 = vunpack.c.l.b16 %v918
      %v991 = vunpack.c.h.b16 %v918
      %v992 = vunpack.c.l.b16 %v919
      %v993 = vunpack.c.h.b16 %v919
      %v994 = vunpack.c.l.b16 %v920
      %v995 = vunpack.c.h.b16 %v920
      %v996 = vpack.c.b16 %v946, %v946
      %v997 = vpack.c.b16 %v947, %v947
      %v998 = vpack.c.b16 %v948, %v948
      %v999 = vpack.c.b16 %v949, %v949
      %v1000 = vpack.c.b16 %v950, %v950
      %v1001 = vpack.c.b16 %v951, %v951
      %v1002 = vpack.c.b16 %v952, %v952
      %v1003 = vpack.c.b16 %v953, %v953
      %v1004 = vpack.c.b16 %v954, %v954
      %v1005 = vpack.c.b16 %v955, %v955
      %v1006 = vpack.c.b16 %v956, %v956
      %v1007 = vpack.c.b16 %v957, %v957
      %v1008 = vpack.c.b16 %v958, %v958
      %v1009 = vpack.c.b16 %v959, %v959
      %v1010 = vpack.c.b16 %v960, %v960
      %v1011 = vpack.c.b16 %v961, %v961
      %v1012 = vpack.c.b16 %v962, %v962
      %v1013 = vpack.c.b16 %v963, %v963
      %v1014 = vpack.c.b16 %v964, %v964
      %v1015 = vpack.c.b16 %v965, %v965
      %v1016 = vpack.c.b16 %v966, %v966
      %v1017 = vpack.c.b16 %v967, %v967
      %v1018 = vpack.c.b16 %v968, %v968
      %v1019 = vpack.c.b16 %v969, %v969
      %v1020 = vpack.c.b16 %v970, %v970
      %v1021 = vpack.c.b16 %v971, %v971
      %v1022 = vpack.c.b16 %v972, %v972
      %v1023 = vpack.c.b16 %v973, %v973
      %v1024 = vpack.c.b16 %v974, %v974
      %v1025 = vpack.c.b16 %v975, %v975
      %v1026 = vpack.c.b16 %v976, %v976
      %v1027 = vpack.c.b16 %v977, %v977
      %v1028 = vpack.c.b16 %v978, %v978
      %v1029 = vpack.c.b16 %v979, %v979
      %v1030 = vpack.c.b16 %v980, %v980
      %v1031 = vpack.c.b16 %v981, %v981
      %v1032 = vpack.c.b16 %v982, %v982
      %v1033 = vpack.c.b16 %v983, %v983
      %v1034 = vpack.c.b16 %v984, %v984
      %v1035 = vpack.c.b16 %v985, %v985
      %v1036 = vpack.c.b16 %v986, %v986
      %v1037 = vpack.c.b16 %v987, %v987
      %v1038 = vpack.c.b16 %v988, %v988
      %v1039 = vpack.c.b16 %v989, %v989
      %v1040 = vpack.c.b16 %v990, %v990
      %v1041 = vpack.c.b16 %v991, %v991
      %v1042 = vpack.c.b16 %v992, %v992
      %v1043 = vpack.c.b16 %v993, %v993
      %v1044 = vpack.c.b16 %v994, %v994
      %v1045 = vpack.c.b16 %v995, %v995
      %vm1096 = vcmask 257024
      %1097 = vst.msk [vmem:[%s175] sm:$0xf] %vm1096, %v996
      %1098 = vst.msk [vmem:[%s175 + $0x4] sm:$0xf] %vm1096, %v997
      %1099 = vst.msk [vmem:[%s175 + $0x8] sm:$0xf] %vm1096, %v998
      %1100 = vst.msk [vmem:[%s175 + $0xc] sm:$0xf] %vm1096, %v999
      %1101 = vst.msk [vmem:[%s175 + $0x10] sm:$0xf] %vm1096, %v1000
      %1102 = vst.msk [vmem:[%s175 + $0x14] sm:$0xf] %vm1096, %v1001
      %1103 = vst.msk [vmem:[%s175 + $0x18] sm:$0xf] %vm1096, %v1002
      %1104 = vst.msk [vmem:[%s175 + $0x1c] sm:$0xf] %vm1096, %v1003
      %1105 = vst.msk [vmem:[%s175 + $0x20] sm:$0xf] %vm1096, %v1004
      %1106 = vst.msk [vmem:[%s175 + $0x24] sm:$0xf] %vm1096, %v1005
      %1107 = vst.msk [vmem:[%s175 + $0x28] sm:$0xf] %vm1096, %v1006
      %1108 = vst.msk [vmem:[%s175 + $0x2c] sm:$0xf] %vm1096, %v1007
      %1109 = vst.msk [vmem:[%s175 + $0x30] sm:$0xf] %vm1096, %v1008
      %1110 = vst.msk [vmem:[%s175 + $0x34] sm:$0xf] %vm1096, %v1009
      %1111 = vst.msk [vmem:[%s175 + $0x38] sm:$0xf] %vm1096, %v1010
      %1112 = vst.msk [vmem:[%s175 + $0x3c] sm:$0xf] %vm1096, %v1011
      %1113 = vst.msk [vmem:[%s175 + $0x40] sm:$0xf] %vm1096, %v1012
      %1114 = vst.msk [vmem:[%s175 + $0x44] sm:$0xf] %vm1096, %v1013
      %1115 = vst.msk [vmem:[%s175 + $0x48] sm:$0xf] %vm1096, %v1014
      %1116 = vst.msk [vmem:[%s175 + $0x4c] sm:$0xf] %vm1096, %v1015
      %1117 = vst.msk [vmem:[%s175 + $0x50] sm:$0xf] %vm1096, %v1016
      %1118 = vst.msk [vmem:[%s175 + $0x54] sm:$0xf] %vm1096, %v1017
      %1119 = vst.msk [vmem:[%s175 + $0x58] sm:$0xf] %vm1096, %v1018
      %1120 = vst.msk [vmem:[%s175 + $0x5c] sm:$0xf] %vm1096, %v1019
      %1121 = vst.msk [vmem:[%s175 + $0x60] sm:$0xf] %vm1096, %v1020
      %1122 = vst.msk [vmem:[%s175 + $0x64] sm:$0xf] %vm1096, %v1021
      %1123 = vst.msk [vmem:[%s175 + $0x68] sm:$0xf] %vm1096, %v1022
      %1124 = vst.msk [vmem:[%s175 + $0x6c] sm:$0xf] %vm1096, %v1023
      %1125 = vst.msk [vmem:[%s175 + $0x70] sm:$0xf] %vm1096, %v1024
      %1126 = vst.msk [vmem:[%s175 + $0x74] sm:$0xf] %vm1096, %v1025
      %1127 = vst.msk [vmem:[%s175 + $0x78] sm:$0xf] %vm1096, %v1026
      %1128 = vst.msk [vmem:[%s175 + $0x7c] sm:$0xf] %vm1096, %v1027
      %1129 = vst.msk [vmem:[%s175 + $0x80] sm:$0xf] %vm1096, %v1028
      %1130 = vst.msk [vmem:[%s175 + $0x84] sm:$0xf] %vm1096, %v1029
      %1131 = vst.msk [vmem:[%s175 + $0x88] sm:$0xf] %vm1096, %v1030
      %1132 = vst.msk [vmem:[%s175 + $0x8c] sm:$0xf] %vm1096, %v1031
      %1133 = vst.msk [vmem:[%s175 + $0x90] sm:$0xf] %vm1096, %v1032
      %1134 = vst.msk [vmem:[%s175 + $0x94] sm:$0xf] %vm1096, %v1033
      %1135 = vst.msk [vmem:[%s175 + $0x98] sm:$0xf] %vm1096, %v1034
      %1136 = vst.msk [vmem:[%s175 + $0x9c] sm:$0xf] %vm1096, %v1035
      %1137 = vst.msk [vmem:[%s175 + $0xa0] sm:$0xf] %vm1096, %v1036
      %1138 = vst.msk [vmem:[%s175 + $0xa4] sm:$0xf] %vm1096, %v1037
      %1139 = vst.msk [vmem:[%s175 + $0xa8] sm:$0xf] %vm1096, %v1038
      %1140 = vst.msk [vmem:[%s175 + $0xac] sm:$0xf] %vm1096, %v1039
      %1141 = vst.msk [vmem:[%s175 + $0xb0] sm:$0xf] %vm1096, %v1040
      %1142 = vst.msk [vmem:[%s175 + $0xb4] sm:$0xf] %vm1096, %v1041
      %1143 = vst.msk [vmem:[%s175 + $0xb8] sm:$0xf] %vm1096, %v1042
      %1144 = vst.msk [vmem:[%s175 + $0xbc] sm:$0xf] %vm1096, %v1043
      %1145 = vst.msk [vmem:[%s175 + $0xc0] sm:$0xf] %vm1096, %v1044
      %1146 = vst.msk [vmem:[%s175 + $0xc4] sm:$0xf] %vm1096, %v1045
      %s1147 = smul.u32 50, %s14
      %p1148 = scmp.lt.s32.totalorder %s1147, 99
      %s1149 = scalar_select %p1148, %s1147, 99
      %s1150 = smul.addr %s1149, 4
      %s1151 = scalar_lea.vmem %s3, %s1150
      // Predicated region
      $region33: #{net_forward.4} parent=31 // pred_check
        %p1152 = pneg %p100
      $region34: #{net_forward.4} parent=31 // pred_check_branch
        %1154 = sbr.rel (%p1152) target = $region36
      $region35: #{net_forward.4} parent=31 // pred_region
        %s1155 = smul.u32 50, %s14
      $region36: #{net_forward.4} parent=31 // pred_fallthru
        _
    $region32: #{net_forward.4} parent=5 // pred_fallthru
      _
    %p1156 = scmp.le.s32.totalorder 2, %s9
    // Predicated region
    $region37: #{net_forward.4} parent=5 // pred_check
      %p1157 = pneg %p1156
    $region38: #{net_forward.4} parent=5 // pred_check_branch
      %1159 = sbr.rel (%p1157) target = $region40
    $region39: #{net_forward.4} parent=5 // pred_region
      %s1160 = ssub.s32 %s9, 2
      // Predicated region
      $region41: #{net_forward.4} parent=39 // pred_check
        %p1161 = pneg %p106
      $region42: #{net_forward.4} parent=39 // pred_check_branch
        %1163 = sbr.rel (%p1161) target = $region44
      $region43: #{net_forward.4} parent=39 // pred_region
        %s1164 = smul.u32 50, %s15
        %p1165 = scmp.lt.s32.totalorder %s1164, 99
        %s1166 = scalar_select %p1165, %s1164, 99
        %s1167 = smul.addr %s1166, 4
        %s1168 = scalar_lea.vmem %s3, %s1167
      $region44: #{net_forward.4} parent=39 // pred_fallthru
        _
    $region40: #{net_forward.4} parent=5 // pred_fallthru
      _
  $region6: #{net_forward.4} parent=0 // loop_footer
    %s13 = sadd.s32 1, %s9
  $region7: #{net_forward.4} parent=0 // loop_footer_branch
    %8 = sbr.rel target = $region3
  $region8: #{net_forward.4} parent=0 // loop_exit
    _

// kernel: net_forward.5
$region0: #{net_forward.5}
  #allocation0 [shape = 'u32[]', space=smem, size = 0x4, offset = 0x4, fixed_abs, tag = 'smem constant byte address 0x4 - core index']
  #allocation1 [shape = 'u32[144,128]{1,0:T(1,128)}', space=vmem, size = 0x12000, scoped, tag = 'internal scratch']
  %s0 = inlined_call_operand.vmem [shape: bf16[162,512], index: 0, kind: input, shape index: {}]
  %s1 = inlined_call_operand.vmem [shape: bf16[512,64], index: 1, kind: input, shape index: {}]
  %s2 = inlined_call_operand.vmem [shape: f32[1,64], index: 2, kind: input, shape index: {}]
  %s3 = inlined_call_operand.vmem [shape: bf16[162,64], index: 3, kind: output, shape index: {}]
  %s4 = sld [smem:[#allocation0]]
  $region89: #{net_forward.5} parent=0
    _
  %s6 = ssub.s32 1, %s4
  %s7 = scalar_select 0, %s6, %s4
  $region1: #{net_forward.5} parent=0
    #allocation2 [shape = 'u8[49152]{0}', space=vmem, size = 0xc000, scoped, tag = 'output window, operand 0']
    loop: start=0, step=1, limit=4
    $region2: #{net_forward.5} parent=1 // loop_pre_header
      _
    $region3: #{net_forward.5} parent=1 // loop_header
      %s9 = sphi 0, %s13
      %p10 = scmp.ge.s32.totalorder %s9, 4
      %s19 = sphi 0, %s21
      %s22 = sphi 0, %s19
      %s23 = sphi 0, %s22
      %s39 = sphi 0, %s23
      %s43 = sphi 0, %s43
      %s45 = sphi 0, %s43
      %s46 = sphi 0, %s45
      %s60 = sphi 0, %s46
      %s64 = sphi 0, %s64
      %s66 = sphi 0, %s64
      %s67 = sphi 0, %s66
      %s81 = sphi 0, %s67
      %s87 = sphi 0, %s89
      %s90 = sphi 0, %s87
      %s91 = sphi 0, %s90
      %s107 = sphi 0, %s91
    $region4: #{net_forward.5} parent=1 // loop_header_branch
      %12 = sbr.rel (%p10) target = $region8
    $region5: #{net_forward.5} parent=1 // loop_body
      %s14 = ssub.s32 %s9, 1
      %s15 = ssub.s32 %s9, 2
      %s16 = sadd.s32 %s9, 1
      %s17 = ssub.s32 %s9, %s16
      %p18 = scmp.eq.s32.totalorder %s17, 0
      %s20 = sadd.s32 %s19, 1
      %s21 = scalar_select %p18, %s19, %s20
      %p24 = pneg %p18
      %p25 = scmp.eq.s32.totalorder %s9, 1
      %p26 = por %p24, %p25
      %p27 = scmp.ne.s32.totalorder %s19, %s22
      %p28 = scmp.eq.s32.totalorder %s9, 0
      %p29 = por %p27, %p28
      %p30 = scmp.ne.s32.totalorder %s19, %s22
      %p31 = scmp.eq.s32.totalorder %s14, 1
      %p32 = por %p30, %p31
      %p33 = scmp.ne.s32.totalorder %s22, %s23
      %p34 = scmp.eq.s32.totalorder %s14, 0
      %p35 = por %p33, %p34
      %p36 = scmp.ne.s32.totalorder %s22, %s23
      %p37 = scmp.eq.s32.totalorder %s15, 1
      %p38 = por %p36, %p37
      %p40 = scmp.ne.s32.totalorder %s23, %s39
      %p41 = scmp.eq.s32.totalorder %s15, 0
      %p42 = por %p40, %p41
      %s44 = sadd.s32 %s43, 1
      %p47 = scmp.eq.s32.totalorder %s9, 1
      %p48 = scmp.ne.s32.totalorder %s43, %s45
      %p49 = scmp.eq.s32.totalorder %s9, 0
      %p50 = por %p48, %p49
      %p51 = scmp.ne.s32.totalorder %s43, %s45
      %p52 = scmp.eq.s32.totalorder %s14, 1
      %p53 = por %p51, %p52
      %p54 = scmp.ne.s32.totalorder %s45, %s46
      %p55 = scmp.eq.s32.totalorder %s14, 0
      %p56 = por %p54, %p55
      %p57 = scmp.ne.s32.totalorder %s45, %s46
      %p58 = scmp.eq.s32.totalorder %s15, 1
      %p59 = por %p57, %p58
      %p61 = scmp.ne.s32.totalorder %s46, %s60
      %p62 = scmp.eq.s32.totalorder %s15, 0
      %p63 = por %p61, %p62
      %s65 = sadd.s32 %s64, 1
      %p68 = scmp.eq.s32.totalorder %s9, 1
      %p69 = scmp.ne.s32.totalorder %s64, %s66
      %p70 = scmp.eq.s32.totalorder %s9, 0
      %p71 = por %p69, %p70
      %p72 = scmp.ne.s32.totalorder %s64, %s66
      %p73 = scmp.eq.s32.totalorder %s14, 1
      %p74 = por %p72, %p73
      %p75 = scmp.ne.s32.totalorder %s66, %s67
      %p76 = scmp.eq.s32.totalorder %s14, 0
      %p77 = por %p75, %p76
      %p78 = scmp.ne.s32.totalorder %s66, %s67
      %p79 = scmp.eq.s32.totalorder %s15, 1
      %p80 = por %p78, %p79
      %p82 = scmp.ne.s32.totalorder %s67, %s81
      %p83 = scmp.eq.s32.totalorder %s15, 0
      %p84 = por %p82, %p83
      %s85 = ssub.s32 %s9, %s16
      %p86 = scmp.eq.s32.totalorder %s85, 0
      %s88 = sadd.s32 %s87, 1
      %s89 = scalar_select %p86, %s87, %s88
      %p92 = pneg %p86
      %p93 = scmp.eq.s32.totalorder %s9, 1
      %p94 = por %p92, %p93
      %p95 = scmp.ne.s32.totalorder %s87, %s90
      %p96 = scmp.eq.s32.totalorder %s9, 0
      %p97 = por %p95, %p96
      %p98 = scmp.ne.s32.totalorder %s87, %s90
      %p99 = scmp.eq.s32.totalorder %s14, 1
      %p100 = por %p98, %p99
      %p101 = scmp.ne.s32.totalorder %s90, %s91
      %p102 = scmp.eq.s32.totalorder %s14, 0
      %p103 = por %p101, %p102
      %p104 = scmp.ne.s32.totalorder %s90, %s91
      %p105 = scmp.eq.s32.totalorder %s15, 1
      %p106 = por %p104, %p105
      %p108 = scmp.ne.s32.totalorder %s91, %s107
      %p109 = scmp.eq.s32.totalorder %s15, 0
      %p110 = por %p108, %p109
      %p111 = scmp.le.s32.totalorder 1, %s9
      %p112 = scmp.lt.s32.totalorder %s9, 3
      %p113 = pnand %p111, %p112
      %p114 = pneg %p113
      // Predicated region
      $region9: #{net_forward.5} parent=5 // pred_check
        _
      $region10: #{net_forward.5} parent=5 // pred_check_branch
        %116 = sbr.rel (%p113) target = $region12
      $region11: #{net_forward.5} parent=5 // pred_region
        %s117 = ssub.s32 %s9, 1
        // Predicated region
        $region13: #{net_forward.5} parent=11 // pred_check
          %p118 = pneg %p56
        $region14: #{net_forward.5} parent=11 // pred_check_branch
          %120 = sbr.rel (%p118) target = $region16
        $region15: #{net_forward.5} parent=11 // pred_region
          _
        $region16: #{net_forward.5} parent=11 // pred_fallthru
          _
        // Predicated region
        $region17: #{net_forward.5} parent=11 // pred_check
          %p121 = pneg %p77
        $region18: #{net_forward.5} parent=11 // pred_check_branch
          %123 = sbr.rel (%p121) target = $region20
        $region19: #{net_forward.5} parent=11 // pred_region
          _
        $region20: #{net_forward.5} parent=11 // pred_fallthru
          _
      $region12: #{net_forward.5} parent=5 // pred_fallthru
        _
      %p124 = scmp.lt.s32.totalorder %s9, 2
      // Predicated region
      $region21: #{net_forward.5} parent=5 // pred_check
        %p125 = pneg %p124
      $region22: #{net_forward.5} parent=5 // pred_check_branch
        %127 = sbr.rel (%p125) target = $region24
      $region23: #{net_forward.5} parent=5 // pred_region
        // Predicated region
        $region25: #{net_forward.5} parent=23 // pred_check
          %p128 = pneg %p29
        $region26: #{net_forward.5} parent=23 // pred_check_branch
          %130 = sbr.rel (%p128) target = $region28
        $region27: #{net_forward.5} parent=23 // pred_region
          %s131 = smul.u32 12, %s9
          %s132 = ssub.s32 21, %s131
          %p133 = scmp.lt.s32.totalorder %s132, 12
          %s134 = scalar_select %p133, %s132, 12
          %s135 = smul.u32 64, %s134
          %s136 = smul.u32 %s135, 4
          %p137 = scmp.lt.s32.totalorder %s131, 20
          %s138 = scalar_select %p137, %s131, 20
          %s139 = smul.addr %s138, 4
          %s140 = smul.addr %s139, 4
          %s141 = scalar_lea.vmem %s0, %s140
          %s142 = smul.u32 12, %s9
          %s143 = ssub.s32 21, %s142
          %p144 = scmp.lt.s32.totalorder %s143, 12
          %s145 = scalar_select %p144, %s143, 12
          %s146 = smul.u32 64, %s145
          %s147 = smul.u32 %s146, 4
        $region28: #{net_forward.5} parent=23 // pred_fallthru
          _
      $region24: #{net_forward.5} parent=5 // pred_fallthru
        _
      %p148 = scmp.le.s32.totalorder 1, %s9
      %p149 = scmp.lt.s32.totalorder %s9, 3
      %p150 = pnand %p148, %p149
      %p151 = pneg %p150
      // Predicated region
      $region29: #{net_forward.5} parent=5 // pred_check
        _
      $region30: #{net_forward.5} parent=5 // pred_check_branch
        %153 = sbr.rel (%p150) target = $region32
      $region31: #{net_forward.5} parent=5 // pred_region
        %s154 = ssub.s32 %s9, 1
        %s155 = smul.u32 12, %s14
        %s156 = ssub.s32 21, %s155
        %p157 = scmp.lt.s32.totalorder %s156, 12
        %s158 = scalar_select %p157, %s156, 12
        %s159 = smul.u32 64, %s158
        %s160 = smul.u32 %s159, 4
        %p161 = scmp.lt.s32.totalorder %s155, 20
        %s162 = scalar_select %p161, %s155, 20
        %s163 = smul.addr %s162, 4
        %s164 = smul.addr %s163, 4
        %s165 = scalar_lea.vmem %s0, %s164
        %p166 = pneg %p35
        %p167 = pneg %p32
        %p168 = pneg %p56
        %p169 = pneg %p53
        %p170 = pneg %p77
        %p171 = pneg %p74
        %p172 = pneg %p103
        %p173 = pneg %p100
        %s174 = sand.u32 %s90, 1
        %s175 = sand.u32 %s90, 1
        %s176 = smul.addr %s175, 48
        %s177 = scalar_lea.vmem [#allocation2], %s176
        %s178 = smul.u32 12, %s14
        %s179 = ssub.s32 21, %s178
        %p180 = scmp.lt.s32.totalorder %s179, 12
        %s181 = scalar_select %p180, %s179, 12
        %s182 = smul.u32 64, %s181
        %s183 = smul.u32 %s182, 4
        %p184 = scmp.lt.s32.totalorder %s178, 20
        %s185 = scalar_select %p184, %s178, 20
        %s186 = smul.addr %s185, 4
        %s187 = smul.addr %s186, 4
        %s188 = scalar_lea.vmem %s0, %s187
        %s189 = smul.u32 12, %s14
        %s190 = ssub.s32 21, %s189
        %p191 = scmp.lt.s32.totalorder %s190, 12
        %s192 = scalar_select %p191, %s190, 12
        %s193 = smul.u32 64, %s192
        %s194 = smul.u32 %s193, 4
        %s195 = smul.u32 12, %s14
        %s196 = ssub.s32 21, %s195
        %p197 = scmp.lt.s32.totalorder %s196, 12
        %s198 = scalar_select %p197, %s196, 12
        %s199 = smul.u32 64, %s198
        %v201 = vld [vmem:[%s188] sm:$0xff]
        %v202 = vld [vmem:[%s188 + $0x8] sm:$0xff]
        %v203 = vld [vmem:[%s188 + $0x10] sm:$0xff]
        %v204 = vld [vmem:[%s188 + $0x18] sm:$0xff]
        %v205 = vld [vmem:[%s188 + $0x20] sm:$0xff]
        %v206 = vld [vmem:[%s188 + $0x28] sm:$0xff]
        %v207 = vld [vmem:[%s188 + $0x30] sm:$0xff]
        %v208 = vld [vmem:[%s188 + $0x38] sm:$0xff]
        %v209 = vld [vmem:[%s188 + $0x40] sm:$0xff]
        %v210 = vld [vmem:[%s188 + $0x48] sm:$0xff]
        %v211 = vld [vmem:[%s188 + $0x50] sm:$0xff]
        %v212 = vld [vmem:[%s188 + $0x58] sm:$0xff]
        %v213 = vld [vmem:[%s188 + $0x60] sm:$0xff]
        %v214 = vld [vmem:[%s188 + $0x68] sm:$0xff]
        %v215 = vld [vmem:[%s188 + $0x70] sm:$0xff]
        %v216 = vld [vmem:[%s188 + $0x78] sm:$0xff]
        %v217 = vld [vmem:[%s188 + $0x80] sm:$0xff]
        %v218 = vld [vmem:[%s188 + $0x88] sm:$0xff]
        %v219 = vld [vmem:[%s188 + $0x90] sm:$0xff]
        %v220 = vld [vmem:[%s188 + $0x98] sm:$0xff]
        %v221 = vld [vmem:[%s188 + $0xa0] sm:$0xff]
        %v222 = vld [vmem:[%s188 + $0xa8] sm:$0xff]
        %v223 = vld [vmem:[%s188 + $0xb0] sm:$0xff]
        %v224 = vld [vmem:[%s188 + $0xb8] sm:$0xff]
        %v225 = vld [vmem:[%s1] sm:$0xf]
        %v226 = vld [vmem:[%s1 + $0x4] sm:$0xf]
        %v227 = vld [vmem:[%s1 + $0x8] sm:$0xf]
        %v228 = vld [vmem:[%s1 + $0xc] sm:$0xf]
        %v229 = vld [vmem:[%s1 + $0x10] sm:$0xf]
        %v230 = vld [vmem:[%s1 + $0x14] sm:$0xf]
        %v231 = vld [vmem:[%s1 + $0x18] sm:$0xf]
        %v232 = vld [vmem:[%s1 + $0x1c] sm:$0xf]
        %v233 = vld [vmem:[%s1 + $0x20] sm:$0xf]
        %v234 = vld [vmem:[%s1 + $0x24] sm:$0xf]
        %v235 = vld [vmem:[%s1 + $0x28] sm:$0xf]
        %v236 = vld [vmem:[%s1 + $0x2c] sm:$0xf]
        %v237 = vld [vmem:[%s1 + $0x30] sm:$0xf]
        %v238 = vld [vmem:[%s1 + $0x34] sm:$0xf]
        %v239 = vld [vmem:[%s1 + $0x38] sm:$0xf]
        %v240 = vld [vmem:[%s1 + $0x3c] sm:$0xf]
        %v241 = vld [vmem:[%s1 + $0x40] sm:$0xf]
        %v242 = vld [vmem:[%s1 + $0x44] sm:$0xf]
        %v243 = vld [vmem:[%s1 + $0x48] sm:$0xf]
        %v244 = vld [vmem:[%s1 + $0x4c] sm:$0xf]
        %v245 = vld [vmem:[%s1 + $0x50] sm:$0xf]
        %v246 = vld [vmem:[%s1 + $0x54] sm:$0xf]
        %v247 = vld [vmem:[%s1 + $0x58] sm:$0xf]
        %v248 = vld [vmem:[%s1 + $0x5c] sm:$0xf]
        %v249 = vld [vmem:[%s1 + $0x60] sm:$0xf]
        %v250 = vld [vmem:[%s1 + $0x64] sm:$0xf]
        %v251 = vld [vmem:[%s1 + $0x68] sm:$0xf]
        %v252 = vld [vmem:[%s1 + $0x6c] sm:$0xf]
        %v253 = vld [vmem:[%s1 + $0x70] sm:$0xf]
        %v254 = vld [vmem:[%s1 + $0x74] sm:$0xf]
        %v255 = vld [vmem:[%s1 + $0x78] sm:$0xf]
        %v256 = vld [vmem:[%s1 + $0x7c] sm:$0xf]
        %v257 = vld [vmem:[%s1 + $0x80] sm:$0xf]
        %v258 = vld [vmem:[%s1 + $0x84] sm:$0xf]
        %v259 = vld [vmem:[%s1 + $0x88] sm:$0xf]
        %v260 = vld [vmem:[%s1 + $0x8c] sm:$0xf]
        %v261 = vld [vmem:[%s1 + $0x90] sm:$0xf]
        %v262 = vld [vmem:[%s1 + $0x94] sm:$0xf]
        %v263 = vld [vmem:[%s1 + $0x98] sm:$0xf]
        %v264 = vld [vmem:[%s1 + $0x9c] sm:$0xf]
        %v265 = vld [vmem:[%s1 + $0xa0] sm:$0xf]
        %v266 = vld [vmem:[%s1 + $0xa4] sm:$0xf]
        %v267 = vld [vmem:[%s1 + $0xa8] sm:$0xf]
        %v268 = vld [vmem:[%s1 + $0xac] sm:$0xf]
        %v269 = vld [vmem:[%s1 + $0xb0] sm:$0xf]
        %v270 = vld [vmem:[%s1 + $0xb4] sm:$0xf]
        %v271 = vld [vmem:[%s1 + $0xb8] sm:$0xf]
        %v272 = vld [vmem:[%s1 + $0xbc] sm:$0xf]
        %v273 = vld [vmem:[%s1 + $0xc0] sm:$0xf]
        %v274 = vld [vmem:[%s1 + $0xc4] sm:$0xf]
        %v275 = vld [vmem:[%s1 + $0xc8] sm:$0xf]
        %v276 = vld [vmem:[%s1 + $0xcc] sm:$0xf]
        %v277 = vld [vmem:[%s1 + $0xd0] sm:$0xf]
        %v278 = vld [vmem:[%s1 + $0xd4] sm:$0xf]
        %v279 = vld [vmem:[%s1 + $0xd8] sm:$0xf]
        %v280 = vld [vmem:[%s1 + $0xdc] sm:$0xf]
        %v281 = vld [vmem:[%s1 + $0xe0] sm:$0xf]
        %v282 = vld [vmem:[%s1 + $0xe4] sm:$0xf]
        %v283 = vld [vmem:[%s1 + $0xe8] sm:$0xf]
        %v284 = vld [vmem:[%s1 + $0xec] sm:$0xf]
        %v285 = vld [vmem:[%s1 + $0xf0] sm:$0xf]
        %v286 = vld [vmem:[%s1 + $0xf4] sm:$0xf]
        %v287 = vld [vmem:[%s1 + $0xf8] sm:$0xf]
        %v288 = vld [vmem:[%s1 + $0xfc] sm:$0xf]
        %v289 = vld [vmem:[%s2] sm:$0x1]
        %v291 = vlaneseq
        %v292 = vshrl.u32 %v291, 7
        %v293 = vsub.s32 0, %v292
        %v294 = vrot.slane %v289, %v293
        %v320 = vunpack.c.l.b16 %v201
        %v321 = vunpack.c.h.b16 %v201
        %v322 = vunpack.c.l.b16 %v202
        %v323 = vunpack.c.h.b16 %v202
        %v324 = vunpack.c.l.b16 %v203
        %v325 = vunpack.c.h.b16 %v203
        %v326 = vunpack.c.l.b16 %v204
        %v327 = vunpack.c.h.b16 %v204
        %v328 = vunpack.c.l.b16 %v205
        %v329 = vunpack.c.h.b16 %v205
        %v330 = vunpack.c.l.b16 %v206
        %v331 = vunpack.c.h.b16 %v206
        %v332 = vunpack.c.l.b16 %v207
        %v333 = vunpack.c.h.b16 %v207
        %v334 = vunpack.c.l.b16 %v208
        %v335 = vunpack.c.h.b16 %v208
        %v336 = vunpack.c.l.b16 %v209
        %v337 = vunpack.c.h.b16 %v209
        %v338 = vunpack.c.l.b16 %v210
        %v339 = vunpack.c.h.b16 %v210
        %v340 = vunpack.c.l.b16 %v211
        %v341 = vunpack.c.h.b16 %v211
        %v342 = vunpack.c.l.b16 %v212
        %v343 = vunpack.c.h.b16 %v212
        %v344 = vunpack.c.l.b16 %v213
        %v345 = vunpack.c.h.b16 %v213
        %v346 = vunpack.c.l.b16 %v214
        %v347 = vunpack.c.h.b16 %v214
        %v348 = vunpack.c.l.b16 %v215
        %v349 = vunpack.c.h.b16 %v215
        %v350 = vunpack.c.l.b16 %v216
        %v351 = vunpack.c.h.b16 %v216
        %v352 = vunpack.c.l.b16 %v217
        %v353 = vunpack.c.h.b16 %v217
        %v354 = vunpack.c.l.b16 %v218
        %v355 = vunpack.c.h.b16 %v218
        %v356 = vunpack.c.l.b16 %v219
        %v357 = vunpack.c.h.b16 %v219
        %v358 = vunpack.c.l.b16 %v220
        %v359 = vunpack.c.h.b16 %v220
        %v360 = vunpack.c.l.b16 %v221
        %v361 = vunpack.c.h.b16 %v221
        %v362 = vunpack.c.l.b16 %v222
        %v363 = vunpack.c.h.b16 %v222
        %v364 = vunpack.c.l.b16 %v223
        %v365 = vunpack.c.h.b16 %v223
        %v366 = vunpack.c.l.b16 %v224
        %v367 = vunpack.c.h.b16 %v224
        %v368 = vpack.c.b16 %v324, %v320
        %v369 = vpack.c.b16 %v325, %v321
        %v370 = vpack.c.b16 %v326, %v322
        %v371 = vpack.c.b16 %v327, %v323
        %v372 = vpack.c.b16 %v332, %v328
        %v373 = vpack.c.b16 %v333, %v329
        %v374 = vpack.c.b16 %v334, %v330
        %v375 = vpack.c.b16 %v335, %v331
        %v376 = vpack.c.b16 %v340, %v336
        %v377 = vpack.c.b16 %v341, %v337
        %v378 = vpack.c.b16 %v342, %v338
        %v379 = vpack.c.b16 %v343, %v339
        %v380 = vpack.c.b16 %v348, %v344
        %v381 = vpack.c.b16 %v349, %v345
        %v382 = vpack.c.b16 %v350, %v346
        %v383 = vpack.c.b16 %v351, %v347
        %v384 = vpack.c.b16 %v356, %v352
        %v385 = vpack.c.b16 %v357, %v353
        %v386 = vpack.c.b16 %v358, %v354
        %v387 = vpack.c.b16 %v359, %v355
        %v388 = vpack.c.b16 %v364, %v360
        %v389 = vpack.c.b16 %v365, %v361
        %v390 = vpack.c.b16 %v366, %v362
        %v391 = vpack.c.b16 %v367, %v363
        %v480 = vunpack.c.l.b16 %v225
        %v481 = vunpack.c.l.b16 %v226
        %v482 = vunpack.c.l.b16 %v227
        %v483 = vunpack.c.l.b16 %v228
        %v484 = vunpack.c.l.b16 %v229
        %v485 = vunpack.c.l.b16 %v230
        %v486 = vunpack.c.l.b16 %v231
        %v487 = vunpack.c.l.b16 %v232
        %v488 = vunpack.c.l.b16 %v233
        %v489 = vunpack.c.l.b16 %v234
        %v490 = vunpack.c.l.b16 %v235
        %v491 = vunpack.c.l.b16 %v236
        %v492 = vunpack.c.l.b16 %v237
        %v493 = vunpack.c.l.b16 %v238
        %v494 = vunpack.c.l.b16 %v239
        %v495 = vunpack.c.l.b16 %v240
        %v496 = vunpack.c.l.b16 %v241
        %v497 = vunpack.c.l.b16 %v242
        %v498 = vunpack.c.l.b16 %v243
        %v499 = vunpack.c.l.b16 %v244
        %v500 = vunpack.c.l.b16 %v245
        %v501 = vunpack.c.l.b16 %v246
        %v502 = vunpack.c.l.b16 %v247
        %v503 = vunpack.c.l.b16 %v248
        %v504 = vunpack.c.l.b16 %v249
        %v505 = vunpack.c.l.b16 %v250
        %v506 = vunpack.c.l.b16 %v251
        %v507 = vunpack.c.l.b16 %v252
        %v508 = vunpack.c.l.b16 %v253
        %v509 = vunpack.c.l.b16 %v254
        %v510 = vunpack.c.l.b16 %v255
        %v511 = vunpack.c.l.b16 %v256
        %v512 = vunpack.c.l.b16 %v257
        %v513 = vunpack.c.l.b16 %v258
        %v514 = vunpack.c.l.b16 %v259
        %v515 = vunpack.c.l.b16 %v260
        %v516 = vunpack.c.l.b16 %v261
        %v517 = vunpack.c.l.b16 %v262
        %v518 = vunpack.c.l.b16 %v263
        %v519 = vunpack.c.l.b16 %v264
        %v520 = vunpack.c.l.b16 %v265
        %v521 = vunpack.c.l.b16 %v266
        %v522 = vunpack.c.l.b16 %v267
        %v523 = vunpack.c.l.b16 %v268
        %v524 = vunpack.c.l.b16 %v269
        %v525 = vunpack.c.l.b16 %v270
        %v526 = vunpack.c.l.b16 %v271
        %v527 = vunpack.c.l.b16 %v272
        %v528 = vunpack.c.l.b16 %v273
        %v529 = vunpack.c.l.b16 %v274
        %v530 = vunpack.c.l.b16 %v275
        %v531 = vunpack.c.l.b16 %v276
        %v532 = vunpack.c.l.b16 %v277
        %v533 = vunpack.c.l.b16 %v278
        %v534 = vunpack.c.l.b16 %v279
        %v535 = vunpack.c.l.b16 %v280
        %v536 = vunpack.c.l.b16 %v281
        %v537 = vunpack.c.l.b16 %v282
        %v538 = vunpack.c.l.b16 %v283
        %v539 = vunpack.c.l.b16 %v284
        %v540 = vunpack.c.l.b16 %v285
        %v541 = vunpack.c.l.b16 %v286
        %v542 = vunpack.c.l.b16 %v287
        %v543 = vunpack.c.l.b16 %v288
        %v544 = vpack.c.b16 %v481, %v480
        %v545 = vpack.c.b16 %v483, %v482
        %v546 = vpack.c.b16 %v485, %v484
        %v547 = vpack.c.b16 %v487, %v486
        %v548 = vpack.c.b16 %v489, %v488
        %v549 = vpack.c.b16 %v491, %v490
        %v550 = vpack.c.b16 %v493, %v492
        %v551 = vpack.c.b16 %v495, %v494
        %v552 = vpack.c.b16 %v497, %v496
        %v553 = vpack.c.b16 %v499, %v498
        %v554 = vpack.c.b16 %v501, %v500
        %v555 = vpack.c.b16 %v503, %v502
        %v556 = vpack.c.b16 %v505, %v504
        %v557 = vpack.c.b16 %v507, %v506
        %v558 = vpack.c.b16 %v509, %v508
        %v559 = vpack.c.b16 %v511, %v510
        %v560 = vpack.c.b16 %v513, %v512
        %v561 = vpack.c.b16 %v515, %v514
        %v562 = vpack.c.b16 %v517, %v516
        %v563 = vpack.c.b16 %v519, %v518
        %v564 = vpack.c.b16 %v521, %v520
        %v565 = vpack.c.b16 %v523, %v522
        %v566 = vpack.c.b16 %v525, %v524
        %v567 = vpack.c.b16 %v527, %v526
        %v568 = vpack.c.b16 %v529, %v528
        %v569 = vpack.c.b16 %v531, %v530
        %v570 = vpack.c.b16 %v533, %v532
        %v571 = vpack.c.b16 %v535, %v534
        %v572 = vpack.c.b16 %v537, %v536
        %v573 = vpack.c.b16 %v539, %v538
        %v574 = vpack.c.b16 %v541, %v540
        %v575 = vpack.c.b16 %v543, %v542
        %608 = vmatprep.subr.bf16.mxu0 0
        %609 = vmatpush1.bf16.msra.mxu0 %v544
        %610 = vmatprep.subr.bf16.mxu0 0
        %611 = vmatpush1.bf16.msra.mxu0 %v545
        %612 = vmatprep.subr.bf16.mxu0 0
        %613 = vmatpush1.bf16.msra.mxu0 %v546
        %614 = vmatprep.subr.bf16.mxu0 0
        %615 = vmatpush1.bf16.msra.mxu0 %v547
        %616 = vmatprep.subr.bf16.mxu0 0
        %617 = vmatpush1.bf16.msra.mxu0 %v548
        %618 = vmatprep.subr.bf16.mxu0 0
        %619 = vmatpush1.bf16.msra.mxu0 %v549
        %620 = vmatprep.subr.bf16.mxu0 0
        %621 = vmatpush1.bf16.msra.mxu0 %v550
        %622 = vmatprep.subr.bf16.mxu0 0
        %623 = vmatpush1.bf16.msra.mxu0 %v551
        %624 = vmatprep.subr.bf16.mxu0 0
        %625 = vmatpush1.bf16.msra.mxu0 %v552
        %626 = vmatprep.subr.bf16.mxu0 0
        %627 = vmatpush1.bf16.msra.mxu0 %v553
        %628 = vmatprep.subr.bf16.mxu0 0
        %629 = vmatpush1.bf16.msra.mxu0 %v554
        %630 = vmatprep.subr.bf16.mxu0 0
        %631 = vmatpush1.bf16.msra.mxu0 %v555
        %632 = vmatprep.subr.bf16.mxu0 0
        %633 = vmatpush1.bf16.msra.mxu0 %v556
        %634 = vmatprep.subr.bf16.mxu0 0
        %635 = vmatpush1.bf16.msra.mxu0 %v557
        %636 = vmatprep.subr.bf16.mxu0 0
        %637 = vmatpush1.bf16.msra.mxu0 %v558
        %638 = vmatprep.subr.bf16.mxu0 0
        %639 = vmatpush1.bf16.msra.mxu0 %v559
        %640 = vmatprep.mubr.bf16.mxu0 %v369
        %641 = vmatmul.mubr.bf16.gmra.mrb[0].mxu0 %v368
        %v642 = vpop.f32.mrb[0].mxu0
        %v643 = vadd.f32 %v294, %v642
        %v644 = vpop.f32.mrb[0].mxu0
        %v645 = vpop.f32.mrb[0].mxu0
        %v646 = vadd.f32 %v294, %v645
        %v647 = vpop.f32.mrb[0].mxu0
        %648 = vmatprep.mubr.bf16.mxu0 %v373
        %649 = vmatmul.mubr.bf16.gmra.mrb[0].mxu0 %v372
        %v650 = vpop.f32.mrb[0].mxu0
        %v651 = vadd.f32 %v294, %v650
        %v652 = vpop.f32.mrb[0].mxu0
        %v653 = vpop.f32.mrb[0].mxu0
        %v654 = vadd.f32 %v294, %v653
        %v655 = vpop.f32.mrb[0].mxu0
        %656 = vmatprep.mubr.bf16.mxu0 %v377
        %657 = vmatmul.mubr.bf16.gmra.mrb[0].mxu0 %v376
        %v658 = vpop.f32.mrb[0].mxu0
        %v659 = vadd.f32 %v294, %v658
        %v660 = vpop.f32.mrb[0].mxu0
        %v661 = vpop.f32.mrb[0].mxu0
        %v662 = vadd.f32 %v294, %v661
        %v663 = vpop.f32.mrb[0].mxu0
        %664 = vmatprep.mubr.bf16.mxu0 %v381
        %665 = vmatmul.mubr.bf16.gmra.mrb[0].mxu0 %v380
        %v666 = vpop.f32.mrb[0].mxu0
        %v667 = vadd.f32 %v294, %v666
        %v668 = vpop.f32.mrb[0].mxu0
        %v669 = vpop.f32.mrb[0].mxu0
        %v670 = vadd.f32 %v294, %v669
        %v671 = vpop.f32.mrb[0].mxu0
        %672 = vmatprep.mubr.bf16.mxu0 %v385
        %673 = vmatmul.mubr.bf16.gmra.mrb[0].mxu0 %v384
        %v674 = vpop.f32.mrb[0].mxu0
        %v675 = vadd.f32 %v294, %v674
        %v676 = vpop.f32.mrb[0].mxu0
        %v677 = vpop.f32.mrb[0].mxu0
        %v678 = vadd.f32 %v294, %v677
        %v679 = vpop.f32.mrb[0].mxu0
        %680 = vmatprep.mubr.bf16.mxu0 %v389
        %681 = vmatmul.mubr.bf16.gmra.mrb[0].mxu0 %v388
        %v682 = vpop.f32.mrb[0].mxu0
        %v683 = vadd.f32 %v294, %v682
        %v684 = vpop.f32.mrb[0].mxu0
        %v685 = vpop.f32.mrb[0].mxu0
        %v686 = vadd.f32 %v294, %v685
        %v687 = vpop.f32.mrb[0].mxu0
        %688 = vdwg.mxu0
        %689 = vmatprep.subr.bf16.mxu0 0
        %690 = vmatpush1.bf16.msra.mxu0 %v560
        %691 = vmatprep.subr.bf16.mxu0 0
        %692 = vmatpush1.bf16.msra.mxu0 %v561
        %693 = vmatprep.subr.bf16.mxu0 0
        %694 = vmatpush1.bf16.msra.mxu0 %v562
        %695 = vmatprep.subr.bf16.mxu0 0
        %696 = vmatpush1.bf16.msra.mxu0 %v563
        %697 = vmatprep.subr.bf16.mxu0 0
        %698 = vmatpush1.bf16.msra.mxu0 %v564
        %699 = vmatprep.subr.bf16.mxu0 0
        %700 = vmatpush1.bf16.msra.mxu0 %v565
        %701 = vmatprep.subr.bf16.mxu0 0
        %702 = vmatpush1.bf16.msra.mxu0 %v566
        %703 = vmatprep.subr.bf16.mxu0 0
        %704 = vmatpush1.bf16.msra.mxu0 %v567
        %705 = vmatprep.subr.bf16.mxu0 0
        %706 = vmatpush1.bf16.msra.mxu0 %v568
        %707 = vmatprep.subr.bf16.mxu0 0
        %708 = vmatpush1.bf16.msra.mxu0 %v569
        %709 = vmatprep.subr.bf16.mxu0 0
        %710 = vmatpush1.bf16.msra.mxu0 %v570
        %711 = vmatprep.subr.bf16.mxu0 0
        %712 = vmatpush1.bf16.msra.mxu0 %v571
        %713 = vmatprep.subr.bf16.mxu0 0
        %714 = vmatpush1.bf16.msra.mxu0 %v572
        %715 = vmatprep.subr.bf16.mxu0 0
        %716 = vmatpush1.bf16.msra.mxu0 %v573
        %717 = vmatprep.subr.bf16.mxu0 0
        %718 = vmatpush1.bf16.msra.mxu0 %v574
        %719 = vmatprep.subr.bf16.mxu0 0
        %720 = vmatpush1.bf16.msra.mxu0 %v575
        %721 = vmatprep.mubr.bf16.mxu0 %v371
        %722 = vmatmul.mubr.bf16.gmra.mrb[0].mxu0 %v370
        %v723 = vpop.f32.mrb[0].mxu0
        %v724 = vadd.f32 %v643, %v723
        %v725 = vpop.f32.mrb[0].mxu0
        %v726 = vpop.f32.mrb[0].mxu0
        %v727 = vadd.f32 %v646, %v726
        %v728 = vpop.f32.mrb[0].mxu0
        %729 = vmatprep.mubr.bf16.mxu0 %v375
        %730 = vmatmul.mubr.bf16.gmra.mrb[0].mxu0 %v374
        %v731 = vpop.f32.mrb[0].mxu0
        %v732 = vadd.f32 %v651, %v731
        %v733 = vpop.f32.mrb[0].mxu0
        %v734 = vpop.f32.mrb[0].mxu0
        %v735 = vadd.f32 %v654, %v734
        %v736 = vpop.f32.mrb[0].mxu0
        %737 = vmatprep.mubr.bf16.mxu0 %v379
        %738 = vmatmul.mubr.bf16.gmra.mrb[0].mxu0 %v378
        %v739 = vpop.f32.mrb[0].mxu0
        %v740 = vadd.f32 %v659, %v739
        %v741 = vpop.f32.mrb[0].mxu0
        %v742 = vpop.f32.mrb[0].mxu0
        %v743 = vadd.f32 %v662, %v742
        %v744 = vpop.f32.mrb[0].mxu0
        %745 = vmatprep.mubr.bf16.mxu0 %v383
        %746 = vmatmul.mubr.bf16.gmra.mrb[0].mxu0 %v382
        %v747 = vpop.f32.mrb[0].mxu0
        %v748 = vadd.f32 %v667, %v747
        %v749 = vpop.f32.mrb[0].mxu0
        %v750 = vpop.f32.mrb[0].mxu0
        %v751 = vadd.f32 %v670, %v750
        %v752 = vpop.f32.mrb[0].mxu0
        %753 = vmatprep.mubr.bf16.mxu0 %v387
        %754 = vmatmul.mubr.bf16.gmra.mrb[0].mxu0 %v386
        %v755 = vpop.f32.mrb[0].mxu0
        %v756 = vadd.f32 %v675, %v755
        %v757 = vpop.f32.mrb[0].mxu0
        %v758 = vpop.f32.mrb[0].mxu0
        %v759 = vadd.f32 %v678, %v758
        %v760 = vpop.f32.mrb[0].mxu0
        %761 = vmatprep.mubr.bf16.mxu0 %v391
        %762 = vmatmul.mubr.bf16.gmra.mrb[0].mxu0 %v390
        %v763 = vpop.f32.mrb[0].mxu0
        %v764 = vadd.f32 %v683, %v763
        %v765 = vpop.f32.mrb[0].mxu0
        %v766 = vpop.f32.mrb[0].mxu0
        %v767 = vadd.f32 %v686, %v766
        %v768 = vpop.f32.mrb[0].mxu0
        %769 = vdwg.mxu0
        %v770 = vmax.f32 %v724, 0.0
        %v771 = vmax.f32 %v727, 0.0
        %v772 = vmax.f32 %v732, 0.0
        %v773 = vmax.f32 %v735, 0.0
        %v774 = vmax.f32 %v740, 0.0
        %v775 = vmax.f32 %v743, 0.0
        %v776 = vmax.f32 %v748, 0.0
        %v777 = vmax.f32 %v751, 0.0
        %v778 = vmax.f32 %v756, 0.0
        %v779 = vmax.f32 %v759, 0.0
        %v780 = vmax.f32 %v764, 0.0
        %v781 = vmax.f32 %v767, 0.0
        %v782 = vpack.c.bf16 %v771, %v770
        %v783 = vpack.c.bf16 %v773, %v772
        %v784 = vpack.c.bf16 %v775, %v774
        %v785 = vpack.c.bf16 %v777, %v776
        %v786 = vpack.c.bf16 %v779, %v778
        %v787 = vpack.c.bf16 %v781, %v780
        %v794 = vunpack.c.l.b16 %v782
        %v795 = vunpack.c.h.b16 %v782
        %v796 = vunpack.c.l.b16 %v783
        %v797 = vunpack.c.h.b16 %v783
        %v798 = vunpack.c.l.b16 %v784
        %v799 = vunpack.c.h.b16 %v784
        %v800 = vunpack.c.l.b16 %v785
        %v801 = vunpack.c.h.b16 %v785
        %v802 = vunpack.c.l.b16 %v786
        %v803 = vunpack.c.h.b16 %v786
        %v804 = vunpack.c.l.b16 %v787
        %v805 = vunpack.c.h.b16 %v787
        %v806 = vpack.c.b16 %v794, %v794
        %v807 = vpack.c.b16 %v795, %v795
        %v808 = vpack.c.b16 %v796, %v796
        %v809 = vpack.c.b16 %v797, %v797
        %v810 = vpack.c.b16 %v798, %v798
        %v811 = vpack.c.b16 %v799, %v799
        %v812 = vpack.c.b16 %v800, %v800
        %v813 = vpack.c.b16 %v801, %v801
        %v814 = vpack.c.b16 %v802, %v802
        %v815 = vpack.c.b16 %v803, %v803
        %v816 = vpack.c.b16 %v804, %v804
        %v817 = vpack.c.b16 %v805, %v805
        %vm830 = vcmask 519168
        %831 = vst.msk [vmem:[%s177] sm:$0xf] %vm830, %v806
        %832 = vst.msk [vmem:[%s177 + $0x4] sm:$0xf] %vm830, %v807
        %833 = vst.msk [vmem:[%s177 + $0x8] sm:$0xf] %vm830, %v808
        %834 = vst.msk [vmem:[%s177 + $0xc] sm:$0xf] %vm830, %v809
        %835 = vst.msk [vmem:[%s177 + $0x10] sm:$0xf] %vm830, %v810
        %836 = vst.msk [vmem:[%s177 + $0x14] sm:$0xf] %vm830, %v811
        %837 = vst.msk [vmem:[%s177 + $0x18] sm:$0xf] %vm830, %v812
        %838 = vst.msk [vmem:[%s177 + $0x1c] sm:$0xf] %vm830, %v813
        %839 = vst.msk [vmem:[%s177 + $0x20] sm:$0xf] %vm830, %v814
        %840 = vst.msk [vmem:[%s177 + $0x24] sm:$0xf] %vm830, %v815
        %841 = vst.msk [vmem:[%s177 + $0x28] sm:$0xf] %vm830, %v816
        %842 = vst.msk [vmem:[%s177 + $0x2c] sm:$0xf] %vm830, %v817
        %s843 = sand.u32 %s90, 1
        %s844 = sand.u32 %s90, 1
        %s845 = smul.addr %s844, 48
        %s846 = scalar_lea.vmem [#allocation2], %s845
        // Predicated region
        $region33: #{net_forward.5} parent=31 // pred_check
          %p847 = pneg %p100
        $region34: #{net_forward.5} parent=31 // pred_check_branch
          %849 = sbr.rel (%p847) target = $region36
        $region35: #{net_forward.5} parent=31 // pred_region
          %s850 = smul.u32 12, %s14
          %s851 = ssub.s32 21, %s850
          %p852 = scmp.lt.s32.totalorder %s851, 12
          %s853 = scalar_select %p852, %s851, 12
          %s854 = smul.u32 64, %s853
          %p855 = scmp.ne.s32.totalorder 0, %s854
          %s856 = smul.addr %s850, 4
          %s857 = scalar_lea.vmem %s3, %s856
          // Predicated region
          $region37: #{net_forward.5} parent=35 // pred_check
            %p858 = pneg %p855
          $region38: #{net_forward.5} parent=35 // pred_check_branch
            %860 = sbr.rel (%p858) target = $region40
          $region39: #{net_forward.5} parent=35 // pred_region
            // Predicated region
            $region41: #{net_forward.5} parent=39 // pred_check
              _
            $region42: #{net_forward.5} parent=39 // pred_check_branch
              %862 = sbr.rel target = $region44
            $region43: #{net_forward.5} parent=39 // pred_region
              // Predicated region
              $region63: #{net_forward.5} parent=43 // pred_check
                _
              $region64: #{net_forward.5} parent=43 // pred_check_branch
                %934 = sbr.rel (0) target = $region66
              $region65: #{net_forward.5} parent=43 // pred_region
                %s936 = sdiv.u32.pop %s853, 12
                %s937 = srem.u32.pop %s853, 12
                // While loop
                $region67: #{net_forward.5} parent=65 // loop_pre_header
                  _
                $region68: #{net_forward.5} parent=65 // loop_header
                  %s939 = sphi 0, %s941
                  %p940 = scmp.ge.s32.totalorder %s939, %s936
                  %s944 = sphi 0, %s973
                  %s945 = sphi %s846, %s976
                  %s946 = sphi %s857, %s977
                $region69: #{net_forward.5} parent=65 // loop_header_branch
                  %943 = sbr.rel (%p940) target = $region73
                $region70: #{net_forward.5} parent=65 // loop_body
                  %v947 = vld [vmem:[%s945] sm:$0xf]
                  %948 = vst [vmem:[%s946] sm:$0xf] %v947
                  %v949 = vld [vmem:[%s945 + $0x4] sm:$0xf]
                  %950 = vst [vmem:[%s946 + $0x4] sm:$0xf] %v949
                  %v951 = vld [vmem:[%s945 + $0x8] sm:$0xf]
                  %952 = vst [vmem:[%s946 + $0x8] sm:$0xf] %v951
                  %v953 = vld [vmem:[%s945 + $0xc] sm:$0xf]
                  %954 = vst [vmem:[%s946 + $0xc] sm:$0xf] %v953
                  %v955 = vld [vmem:[%s945 + $0x10] sm:$0xf]
                  %956 = vst [vmem:[%s946 + $0x10] sm:$0xf] %v955
                  %v957 = vld [vmem:[%s945 + $0x14] sm:$0xf]
                  %958 = vst [vmem:[%s946 + $0x14] sm:$0xf] %v957
                  %v959 = vld [vmem:[%s945 + $0x18] sm:$0xf]
                  %960 = vst [vmem:[%s946 + $0x18] sm:$0xf] %v959
                  %v961 = vld [vmem:[%s945 + $0x1c] sm:$0xf]
                  %962 = vst [vmem:[%s946 + $0x1c] sm:$0xf] %v961
                  %v963 = vld [vmem:[%s945 + $0x20] sm:$0xf]
                  %964 = vst [vmem:[%s946 + $0x20] sm:$0xf] %v963
                  %v965 = vld [vmem:[%s945 + $0x24] sm:$0xf]
                  %966 = vst [vmem:[%s946 + $0x24] sm:$0xf] %v965
                  %v967 = vld [vmem:[%s945 + $0x28] sm:$0xf]
                  %968 = vst [vmem:[%s946 + $0x28] sm:$0xf] %v967
                  %v969 = vld [vmem:[%s945 + $0x2c] sm:$0xf]
                  %970 = vst [vmem:[%s946 + $0x2c] sm:$0xf] %v969
                  %s971 = sadd.s32 1, %s944
                  %p972 = scmp.ge.s32.totalorder %s971, %s936
                  %s973 = scalar_select %p972, 0, %s971
                  %s974 = smul.u32 %s973, 48
                  %s975 = smul.u32 %s973, 48
                  %s976 = scalar_lea.vmem %s846, %s974 [#allocation2]
                  %s977 = scalar_lea.vmem %s857, %s975
                $region71: #{net_forward.5} parent=65 // loop_footer
                  %s941 = sadd.s32 %s939, 1
                $region72: #{net_forward.5} parent=65 // loop_footer_branch
                  %938 = sbr.rel target = $region68
                $region73: #{net_forward.5} parent=65 // loop_exit
                  _
                %s978 = sdiv.u32.pop %s853, 12
                %s979 = srem.u32.pop %s853, 12
                %s980 = smul.u32 %s978, 12
                %s981 = smul.u32 4, %s980
                %s982 = scalar_lea.vmem %s846, %s981 [#allocation2]
                %s983 = smul.u32 4, %s980
                %s984 = scalar_lea.vmem %s857, %s983
                // While loop
                $region74: #{net_forward.5} parent=65 // loop_pre_header
                  _
                $region75: #{net_forward.5} parent=65 // loop_header
                  %s986 = sphi 0, %s988
                  %p987 = scmp.ge.s32.totalorder %s986, %s979
                  %s991 = sphi 0, %s998
                  %s992 = sphi %s982, %s1001
                  %s993 = sphi %s984, %s1002
                $region76: #{net_forward.5} parent=65 // loop_header_branch
                  %990 = sbr.rel (%p987) target = $region80
                $region77: #{net_forward.5} parent=65 // loop_body
                  %v994 = vld [vmem:[%s992] sm:$0xf]
                  %995 = vst [vmem:[%s993] sm:$0xf] %v994
                  %s996 = sadd.s32 1, %s991
                  %p997 = scmp.ge.s32.totalorder %s996, %s979
                  %s998 = scalar_select %p997, 0, %s996
                  %s999 = smul.u32 %s998, 4
                  %s1000 = smul.u32 %s998, 4
                  %s1001 = scalar_lea.vmem %s982, %s999 [#allocation2]
                  %s1002 = scalar_lea.vmem %s984, %s1000
                $region78: #{net_forward.5} parent=65 // loop_footer
                  %s988 = sadd.s32 %s986, 1
                $region79: #{net_forward.5} parent=65 // loop_footer_branch
                  %985 = sbr.rel target = $region75
                $region80: #{net_forward.5} parent=65 // loop_exit
                  _
              $region66: #{net_forward.5} parent=43 // pred_fallthru
                _
            $region44: #{net_forward.5} parent=39 // pred_fallthru
              _
            // Predicated region
            $region45: #{net_forward.5} parent=39 // pred_check
              _
            $region46: #{net_forward.5} parent=39 // pred_check_branch
              %864 = sbr.rel (0) target = $region48
            $region47: #{net_forward.5} parent=39 // pred_region
              %s866 = sdiv.u32.pop %s853, 12
              %s867 = srem.u32.pop %s853, 12
              // While loop
              $region49: #{net_forward.5} parent=47 // loop_pre_header
                _
              $region50: #{net_forward.5} parent=47 // loop_header
                %s869 = sphi 0, %s871
                %p870 = scmp.ge.s32.totalorder %s869, %s866
                %s874 = sphi 0, %s903
                %s875 = sphi %s846, %s906
                %s876 = sphi %s857, %s907
              $region51: #{net_forward.5} parent=47 // loop_header_branch
                %873 = sbr.rel (%p870) target = $region55
              $region52: #{net_forward.5} parent=47 // loop_body
                %v877 = vld [vmem:[%s875] sm:$0xf]
                %878 = vst [vmem:[%s876] sm:$0xf] %v877
                %v879 = vld [vmem:[%s875 + $0x4] sm:$0xf]
                %880 = vst [vmem:[%s876 + $0x4] sm:$0xf] %v879
                %v881 = vld [vmem:[%s875 + $0x8] sm:$0xf]
                %882 = vst [vmem:[%s876 + $0x8] sm:$0xf] %v881
                %v883 = vld [vmem:[%s875 + $0xc] sm:$0xf]
                %884 = vst [vmem:[%s876 + $0xc] sm:$0xf] %v883
                %v885 = vld [vmem:[%s875 + $0x10] sm:$0xf]
                %886 = vst [vmem:[%s876 + $0x10] sm:$0xf] %v885
                %v887 = vld [vmem:[%s875 + $0x14] sm:$0xf]
                %888 = vst [vmem:[%s876 + $0x14] sm:$0xf] %v887
                %v889 = vld [vmem:[%s875 + $0x18] sm:$0xf]
                %890 = vst [vmem:[%s876 + $0x18] sm:$0xf] %v889
                %v891 = vld [vmem:[%s875 + $0x1c] sm:$0xf]
                %892 = vst [vmem:[%s876 + $0x1c] sm:$0xf] %v891
                %v893 = vld [vmem:[%s875 + $0x20] sm:$0xf]
                %894 = vst [vmem:[%s876 + $0x20] sm:$0xf] %v893
                %v895 = vld [vmem:[%s875 + $0x24] sm:$0xf]
                %896 = vst [vmem:[%s876 + $0x24] sm:$0xf] %v895
                %v897 = vld [vmem:[%s875 + $0x28] sm:$0xf]
                %898 = vst [vmem:[%s876 + $0x28] sm:$0xf] %v897
                %v899 = vld [vmem:[%s875 + $0x2c] sm:$0xf]
                %900 = vst [vmem:[%s876 + $0x2c] sm:$0xf] %v899
                %s901 = sadd.s32 1, %s874
                %p902 = scmp.ge.s32.totalorder %s901, %s866
                %s903 = scalar_select %p902, 0, %s901
                %s904 = smul.u32 %s903, 48
                %s905 = smul.u32 %s903, 48
                %s906 = scalar_lea.vmem %s846, %s904 [#allocation2]
                %s907 = scalar_lea.vmem %s857, %s905
              $region53: #{net_forward.5} parent=47 // loop_footer
                %s871 = sadd.s32 %s869, 1
              $region54: #{net_forward.5} parent=47 // loop_footer_branch
                %868 = sbr.rel target = $region50
              $region55: #{net_forward.5} parent=47 // loop_exit
                _
              %s908 = sdiv.u32.pop %s853, 12
              %s909 = srem.u32.pop %s853, 12
              %s910 = smul.u32 %s908, 12
              %s911 = smul.u32 4, %s910
              %s912 = scalar_lea.vmem %s846, %s911 [#allocation2]
              %s913 = smul.u32 4, %s910
              %s914 = scalar_lea.vmem %s857, %s913
              // While loop
              $region56: #{net_forward.5} parent=47 // loop_pre_header
                _
              $region57: #{net_forward.5} parent=47 // loop_header
                %s916 = sphi 0, %s918
                %p917 = scmp.ge.s32.totalorder %s916, %s909
                %s921 = sphi 0, %s928
                %s922 = sphi %s912, %s931
                %s923 = sphi %s914, %s932
              $region58: #{net_forward.5} parent=47 // loop_header_branch
                %920 = sbr.rel (%p917) target = $region62
              $region59: #{net_forward.5} parent=47 // loop_body
                %v924 = vld [vmem:[%s922] sm:$0xf]
                %925 = vst [vmem:[%s923] sm:$0xf] %v924
                %s926 = sadd.s32 1, %s921
                %p927 = scmp.ge.s32.totalorder %s926, %s909
                %s928 = scalar_select %p927, 0, %s926
                %s929 = smul.u32 %s928, 4
                %s930 = smul.u32 %s928, 4
                %s931 = scalar_lea.vmem %s912, %s929 [#allocation2]
                %s932 = scalar_lea.vmem %s914, %s930
              $region60: #{net_forward.5} parent=47 // loop_footer
                %s918 = sadd.s32 %s916, 1
              $region61: #{net_forward.5} parent=47 // loop_footer_branch
                %915 = sbr.rel target = $region57
              $region62: #{net_forward.5} parent=47 // loop_exit
                _
            $region48: #{net_forward.5} parent=39 // pred_fallthru
              _
          $region40: #{net_forward.5} parent=35 // pred_fallthru
            _
          %1003 = vnop
        $region36: #{net_forward.5} parent=31 // pred_fallthru
          _
      $region32: #{net_forward.5} parent=5 // pred_fallthru
        _
      %p1004 = scmp.le.s32.totalorder 2, %s9
      // Predicated region
      $region81: #{net_forward.5} parent=5 // pred_check
        %p1005 = pneg %p1004
      $region82: #{net_forward.5} parent=5 // pred_check_branch
        %1007 = sbr.rel (%p1005) target = $region84
      $region83: #{net_forward.5} parent=5 // pred_region
        %s1008 = ssub.s32 %s9, 2
        // Predicated region
        $region85: #{net_forward.5} parent=83 // pred_check
          %p1009 = pneg %p106
        $region86: #{net_forward.5} parent=83 // pred_check_branch
          %1011 = sbr.rel (%p1009) target = $region88
        $region87: #{net_forward.5} parent=83 // pred_region
          %s1012 = sand.u32 %s91, 1
          %s1013 = sand.u32 %s91, 1
          %s1014 = smul.addr %s1013, 48
          %s1015 = scalar_lea.vmem [#allocation2], %s1014
        $region88: #{net_forward.5} parent=83 // pred_fallthru
          _
      $region84: #{net_forward.5} parent=5 // pred_fallthru
        _
    $region6: #{net_forward.5} parent=1 // loop_footer
      %s13 = sadd.s32 1, %s9
    $region7: #{net_forward.5} parent=1 // loop_footer_branch
      %8 = sbr.rel target = $region3
    $region8: #{net_forward.5} parent=1 // loop_exit
      _

// kernel: net_forward.6
$region0: #{net_forward.6}
  #allocation0 [shape = 'u32[]', space=smem, size = 0x4, offset = 0x4, fixed_abs, tag = 'smem constant byte address 0x4 - core index']
  #allocation1 [shape = 'u32[144,128]{1,0:T(1,128)}', space=vmem, size = 0x12000, scoped, tag = 'internal scratch']
  %s0 = inlined_call_operand.vmem [shape: bf16[98,576], index: 0, kind: input, shape index: {}]
  %s1 = inlined_call_operand.vmem [shape: bf16[576,64], index: 1, kind: input, shape index: {}]
  %s2 = inlined_call_operand.vmem [shape: f32[1,64], index: 2, kind: input, shape index: {}]
  %s3 = inlined_call_operand.vmem [shape: bf16[98,64], index: 3, kind: output, shape index: {}]
  %s4 = sld [smem:[#allocation0]]
  $region89: #{net_forward.6} parent=0
    _
  %s6 = ssub.s32 1, %s4
  %s7 = scalar_select 0, %s6, %s4
  $region1: #{net_forward.6} parent=0
    #allocation2 [shape = 'u8[32768]{0}', space=vmem, size = 0x8000, scoped, tag = 'output window, operand 0']
    loop: start=0, step=1, limit=4
    $region2: #{net_forward.6} parent=1 // loop_pre_header
      _
    $region3: #{net_forward.6} parent=1 // loop_header
      %s9 = sphi 0, %s13
      %p10 = scmp.ge.s32.totalorder %s9, 4
      %s19 = sphi 0, %s21
      %s22 = sphi 0, %s19
      %s23 = sphi 0, %s22
      %s39 = sphi 0, %s23
      %s43 = sphi 0, %s43
      %s45 = sphi 0, %s43
      %s46 = sphi 0, %s45
      %s60 = sphi 0, %s46
      %s64 = sphi 0, %s64
      %s66 = sphi 0, %s64
      %s67 = sphi 0, %s66
      %s81 = sphi 0, %s67
      %s87 = sphi 0, %s89
      %s90 = sphi 0, %s87
      %s91 = sphi 0, %s90
      %s107 = sphi 0, %s91
    $region4: #{net_forward.6} parent=1 // loop_header_branch
      %12 = sbr.rel (%p10) target = $region8
    $region5: #{net_forward.6} parent=1 // loop_body
      %s14 = ssub.s32 %s9, 1
      %s15 = ssub.s32 %s9, 2
      %s16 = sadd.s32 %s9, 1
      %s17 = ssub.s32 %s9, %s16
      %p18 = scmp.eq.s32.totalorder %s17, 0
      %s20 = sadd.s32 %s19, 1
      %s21 = scalar_select %p18, %s19, %s20
      %p24 = pneg %p18
      %p25 = scmp.eq.s32.totalorder %s9, 1
      %p26 = por %p24, %p25
      %p27 = scmp.ne.s32.totalorder %s19, %s22
      %p28 = scmp.eq.s32.totalorder %s9, 0
      %p29 = por %p27, %p28
      %p30 = scmp.ne.s32.totalorder %s19, %s22
      %p31 = scmp.eq.s32.totalorder %s14, 1
      %p32 = por %p30, %p31
      %p33 = scmp.ne.s32.totalorder %s22, %s23
      %p34 = scmp.eq.s32.totalorder %s14, 0
      %p35 = por %p33, %p34
      %p36 = scmp.ne.s32.totalorder %s22, %s23
      %p37 = scmp.eq.s32.totalorder %s15, 1
      %p38 = por %p36, %p37
      %p40 = scmp.ne.s32.totalorder %s23, %s39
      %p41 = scmp.eq.s32.totalorder %s15, 0
      %p42 = por %p40, %p41
      %s44 = sadd.s32 %s43, 1
      %p47 = scmp.eq.s32.totalorder %s9, 1
      %p48 = scmp.ne.s32.totalorder %s43, %s45
      %p49 = scmp.eq.s32.totalorder %s9, 0
      %p50 = por %p48, %p49
      %p51 = scmp.ne.s32.totalorder %s43, %s45
      %p52 = scmp.eq.s32.totalorder %s14, 1
      %p53 = por %p51, %p52
      %p54 = scmp.ne.s32.totalorder %s45, %s46
      %p55 = scmp.eq.s32.totalorder %s14, 0
      %p56 = por %p54, %p55
      %p57 = scmp.ne.s32.totalorder %s45, %s46
      %p58 = scmp.eq.s32.totalorder %s15, 1
      %p59 = por %p57, %p58
      %p61 = scmp.ne.s32.totalorder %s46, %s60
      %p62 = scmp.eq.s32.totalorder %s15, 0
      %p63 = por %p61, %p62
      %s65 = sadd.s32 %s64, 1
      %p68 = scmp.eq.s32.totalorder %s9, 1
      %p69 = scmp.ne.s32.totalorder %s64, %s66
      %p70 = scmp.eq.s32.totalorder %s9, 0
      %p71 = por %p69, %p70
      %p72 = scmp.ne.s32.totalorder %s64, %s66
      %p73 = scmp.eq.s32.totalorder %s14, 1
      %p74 = por %p72, %p73
      %p75 = scmp.ne.s32.totalorder %s66, %s67
      %p76 = scmp.eq.s32.totalorder %s14, 0
      %p77 = por %p75, %p76
      %p78 = scmp.ne.s32.totalorder %s66, %s67
      %p79 = scmp.eq.s32.totalorder %s15, 1
      %p80 = por %p78, %p79
      %p82 = scmp.ne.s32.totalorder %s67, %s81
      %p83 = scmp.eq.s32.totalorder %s15, 0
      %p84 = por %p82, %p83
      %s85 = ssub.s32 %s9, %s16
      %p86 = scmp.eq.s32.totalorder %s85, 0
      %s88 = sadd.s32 %s87, 1
      %s89 = scalar_select %p86, %s87, %s88
      %p92 = pneg %p86
      %p93 = scmp.eq.s32.totalorder %s9, 1
      %p94 = por %p92, %p93
      %p95 = scmp.ne.s32.totalorder %s87, %s90
      %p96 = scmp.eq.s32.totalorder %s9, 0
      %p97 = por %p95, %p96
      %p98 = scmp.ne.s32.totalorder %s87, %s90
      %p99 = scmp.eq.s32.totalorder %s14, 1
      %p100 = por %p98, %p99
      %p101 = scmp.ne.s32.totalorder %s90, %s91
      %p102 = scmp.eq.s32.totalorder %s14, 0
      %p103 = por %p101, %p102
      %p104 = scmp.ne.s32.totalorder %s90, %s91
      %p105 = scmp.eq.s32.totalorder %s15, 1
      %p106 = por %p104, %p105
      %p108 = scmp.ne.s32.totalorder %s91, %s107
      %p109 = scmp.eq.s32.totalorder %s15, 0
      %p110 = por %p108, %p109
      %p111 = scmp.le.s32.totalorder 1, %s9
      %p112 = scmp.lt.s32.totalorder %s9, 3
      %p113 = pnand %p111, %p112
      %p114 = pneg %p113
      // Predicated region
      $region9: #{net_forward.6} parent=5 // pred_check
        _
      $region10: #{net_forward.6} parent=5 // pred_check_branch
        %116 = sbr.rel (%p113) target = $region12
      $region11: #{net_forward.6} parent=5 // pred_region
        %s117 = ssub.s32 %s9, 1
        // Predicated region
        $region13: #{net_forward.6} parent=11 // pred_check
          %p118 = pneg %p56
        $region14: #{net_forward.6} parent=11 // pred_check_branch
          %120 = sbr.rel (%p118) target = $region16
        $region15: #{net_forward.6} parent=11 // pred_region
          _
        $region16: #{net_forward.6} parent=11 // pred_fallthru
          _
        // Predicated region
        $region17: #{net_forward.6} parent=11 // pred_check
          %p121 = pneg %p77
        $region18: #{net_forward.6} parent=11 // pred_check_branch
          %123 = sbr.rel (%p121) target = $region20
        $region19: #{net_forward.6} parent=11 // pred_region
          _
        $region20: #{net_forward.6} parent=11 // pred_fallthru
          _
      $region12: #{net_forward.6} parent=5 // pred_fallthru
        _
      %p124 = scmp.lt.s32.totalorder %s9, 2
      // Predicated region
      $region21: #{net_forward.6} parent=5 // pred_check
        %p125 = pneg %p124
      $region22: #{net_forward.6} parent=5 // pred_check_branch
        %127 = sbr.rel (%p125) target = $region24
      $region23: #{net_forward.6} parent=5 // pred_region
        // Predicated region
        $region25: #{net_forward.6} parent=23 // pred_check
          %p128 = pneg %p29
        $region26: #{net_forward.6} parent=23 // pred_check_branch
          %130 = sbr.rel (%p128) target = $region28
        $region27: #{net_forward.6} parent=23 // pred_region
          %s131 = smul.u32 8, %s9
          %s132 = ssub.s32 13, %s131
          %p133 = scmp.lt.s32.totalorder %s132, 8
          %s134 = scalar_select %p133, %s132, 8
          %s135 = smul.u32 64, %s134
          %s136 = smul.u32 %s135, 5
          %p137 = scmp.lt.s32.totalorder %s131, 12
          %s138 = scalar_select %p137, %s131, 12
          %s139 = smul.addr %s138, 5
          %s140 = smul.addr %s139, 4
          %s141 = scalar_lea.vmem %s0, %s140
          %s142 = smul.u32 8, %s9
          %s143 = ssub.s32 13, %s142
          %p144 = scmp.lt.s32.totalorder %s143, 8
          %s145 = scalar_select %p144, %s143, 8
          %s146 = smul.u32 64, %s145
          %s147 = smul.u32 %s146, 5
        $region28: #{net_forward.6} parent=23 // pred_fallthru
          _
      $region24: #{net_forward.6} parent=5 // pred_fallthru
        _
      %p148 = scmp.le.s32.totalorder 1, %s9
      %p149 = scmp.lt.s32.totalorder %s9, 3
      %p150 = pnand %p148, %p149
      %p151 = pneg %p150
      // Predicated region
      $region29: #{net_forward.6} parent=5 // pred_check
        _
      $region30: #{net_forward.6} parent=5 // pred_check_branch
        %153 = sbr.rel (%p150) target = $region32
      $region31: #{net_forward.6} parent=5 // pred_region
        %s154 = ssub.s32 %s9, 1
        %s155 = smul.u32 8, %s14
        %s156 = ssub.s32 13, %s155
        %p157 = scmp.lt.s32.totalorder %s156, 8
        %s158 = scalar_select %p157, %s156, 8
        %s159 = smul.u32 64, %s158
        %s160 = smul.u32 %s159, 5
        %p161 = scmp.lt.s32.totalorder %s155, 12
        %s162 = scalar_select %p161, %s155, 12
        %s163 = smul.addr %s162, 5
        %s164 = smul.addr %s163, 4
        %s165 = scalar_lea.vmem %s0, %s164
        %p166 = pneg %p35
        %p167 = pneg %p32
        %p168 = pneg %p56
        %p169 = pneg %p53
        %p170 = pneg %p77
        %p171 = pneg %p74
        %p172 = pneg %p103
        %p173 = pneg %p100
        %s174 = sand.u32 %s90, 1
        %s175 = sand.u32 %s90, 1
        %s176 = smul.addr %s175, 32
        %s177 = scalar_lea.vmem [#allocation2], %s176
        %s178 = smul.u32 8, %s14
        %s179 = ssub.s32 13, %s178
        %p180 = scmp.lt.s32.totalorder %s179, 8
        %s181 = scalar_select %p180, %s179, 8
        %s182 = smul.u32 64, %s181
        %s183 = smul.u32 %s182, 5
        %p184 = scmp.lt.s32.totalorder %s178, 12
        %s185 = scalar_select %p184, %s178, 12
        %s186 = smul.addr %s185, 5
        %s187 = smul.addr %s186, 4
        %s188 = scalar_lea.vmem %s0, %s187
        %s189 = smul.u32 8, %s14
        %s190 = ssub.s32 13, %s189
        %p191 = scmp.lt.s32.totalorder %s190, 8
        %s192 = scalar_select %p191, %s190, 8
        %s193 = smul.u32 64, %s192
        %s194 = smul.u32 %s193, 5
        %s195 = smul.u32 8, %s14
        %s196 = ssub.s32 13, %s195
        %p197 = scmp.lt.s32.totalorder %s196, 8
        %s198 = scalar_select %p197, %s196, 8
        %s199 = smul.u32 64, %s198
        %v201 = vld [vmem:[%s188] sm:$0xff]
        %v202 = vld [vmem:[%s188 + $0x8] sm:$0xff]
        %v203 = vld [vmem:[%s188 + $0x10] sm:$0xf]
        %v204 = vld [vmem:[%s188 + $0x14] sm:$0xff]
        %v205 = vld [vmem:[%s188 + $0x1c] sm:$0xff]
        %v206 = vld [vmem:[%s188 + $0x24] sm:$0xf]
        %v207 = vld [vmem:[%s188 + $0x28] sm:$0xff]
        %v208 = vld [vmem:[%s188 + $0x30] sm:$0xff]
        %v209 = vld [vmem:[%s188 + $0x38] sm:$0xf]
        %v210 = vld [vmem:[%s188 + $0x3c] sm:$0xff]
        %v211 = vld [vmem:[%s188 + $0x44] sm:$0xff]
        %v212 = vld [vmem:[%s188 + $0x4c] sm:$0xf]
        %v213 = vld [vmem:[%s188 + $0x50] sm:$0xff]
        %v214 = vld [vmem:[%s188 + $0x58] sm:$0xff]
        %v215 = vld [vmem:[%s188 + $0x60] sm:$0xf]
        %v216 = vld [vmem:[%s188 + $0x64] sm:$0xff]
        %v217 = vld [vmem:[%s188 + $0x6c] sm:$0xff]
        %v218 = vld [vmem:[%s188 + $0x74] sm:$0xf]
        %v219 = vld [vmem:[%s188 + $0x78] sm:$0xff]
        %v220 = vld [vmem:[%s188 + $0x80] sm:$0xff]
        %v221 = vld [vmem:[%s188 + $0x88] sm:$0xf]
        %v222 = vld [vmem:[%s188 + $0x8c] sm:$0xff]
        %v223 = vld [vmem:[%s188 + $0x94] sm:$0xff]
        %v224 = vld [vmem:[%s188 + $0x9c] sm:$0xf]
        %v225 = vld [vmem:[%s1] sm:$0xf]
        %v226 = vld [vmem:[%s1 + $0x4] sm:$0xf]
        %v227 = vld [vmem:[%s1 + $0x8] sm:$0xf]
        %v228 = vld [vmem:[%s1 + $0xc] sm:$0xf]
        %v229 = vld [vmem:[%s1 + $0x10] sm:$0xf]
        %v230 = vld [vmem:[%s1 + $0x14] sm:$0xf]
        %v231 = vld [vmem:[%s1 + $0x18] sm:$0xf]
        %v232 = vld [vmem:[%s1 + $0x1c] sm:$0xf]
        %v233 = vld [vmem:[%s1 + $0x20] sm:$0xf]
        %v234 = vld [vmem:[%s1 + $0x24] sm:$0xf]
        %v235 = vld [vmem:[%s1 + $0x28] sm:$0xf]
        %v236 = vld [vmem:[%s1 + $0x2c] sm:$0xf]
        %v237 = vld [vmem:[%s1 + $0x30] sm:$0xf]
        %v238 = vld [vmem:[%s1 + $0x34] sm:$0xf]
        %v239 = vld [vmem:[%s1 + $0x38] sm:$0xf]
        %v240 = vld [vmem:[%s1 + $0x3c] sm:$0xf]
        %v241 = vld [vmem:[%s1 + $0x40] sm:$0xf]
        %v242 = vld [vmem:[%s1 + $0x44] sm:$0xf]
        %v243 = vld [vmem:[%s1 + $0x48] sm:$0xf]
        %v244 = vld [vmem:[%s1 + $0x4c] sm:$0xf]
        %v245 = vld [vmem:[%s1 + $0x50] sm:$0xf]
        %v246 = vld [vmem:[%s1 + $0x54] sm:$0xf]
        %v247 = vld [vmem:[%s1 + $0x58] sm:$0xf]
        %v248 = vld [vmem:[%s1 + $0x5c] sm:$0xf]
        %v249 = vld [vmem:[%s1 + $0x60] sm:$0xf]
        %v250 = vld [vmem:[%s1 + $0x64] sm:$0xf]
        %v251 = vld [vmem:[%s1 + $0x68] sm:$0xf]
        %v252 = vld [vmem:[%s1 + $0x6c] sm:$0xf]
        %v253 = vld [vmem:[%s1 + $0x70] sm:$0xf]
        %v254 = vld [vmem:[%s1 + $0x74] sm:$0xf]
        %v255 = vld [vmem:[%s1 + $0x78] sm:$0xf]
        %v256 = vld [vmem:[%s1 + $0x7c] sm:$0xf]
        %v257 = vld [vmem:[%s1 + $0x80] sm:$0xf]
        %v258 = vld [vmem:[%s1 + $0x84] sm:$0xf]
        %v259 = vld [vmem:[%s1 + $0x88] sm:$0xf]
        %v260 = vld [vmem:[%s1 + $0x8c] sm:$0xf]
        %v261 = vld [vmem:[%s1 + $0x90] sm:$0xf]
        %v262 = vld [vmem:[%s1 + $0x94] sm:$0xf]
        %v263 = vld [vmem:[%s1 + $0x98] sm:$0xf]
        %v264 = vld [vmem:[%s1 + $0x9c] sm:$0xf]
        %v265 = vld [vmem:[%s1 + $0xa0] sm:$0xf]
        %v266 = vld [vmem:[%s1 + $0xa4] sm:$0xf]
        %v267 = vld [vmem:[%s1 + $0xa8] sm:$0xf]
        %v268 = vld [vmem:[%s1 + $0xac] sm:$0xf]
        %v269 = vld [vmem:[%s1 + $0xb0] sm:$0xf]
        %v270 = vld [vmem:[%s1 + $0xb4] sm:$0xf]
        %v271 = vld [vmem:[%s1 + $0xb8] sm:$0xf]
        %v272 = vld [vmem:[%s1 + $0xbc] sm:$0xf]
        %v273 = vld [vmem:[%s1 + $0xc0] sm:$0xf]
        %v274 = vld [vmem:[%s1 + $0xc4] sm:$0xf]
        %v275 = vld [vmem:[%s1 + $0xc8] sm:$0xf]
        %v276 = vld [vmem:[%s1 + $0xcc] sm:$0xf]
        %v277 = vld [vmem:[%s1 + $0xd0] sm:$0xf]
        %v278 = vld [vmem:[%s1 + $0xd4] sm:$0xf]
        %v279 = vld [vmem:[%s1 + $0xd8] sm:$0xf]
        %v280 = vld [vmem:[%s1 + $0xdc] sm:$0xf]
        %v281 = vld [vmem:[%s1 + $0xe0] sm:$0xf]
        %v282 = vld [vmem:[%s1 + $0xe4] sm:$0xf]
        %v283 = vld [vmem:[%s1 + $0xe8] sm:$0xf]
        %v284 = vld [vmem:[%s1 + $0xec] sm:$0xf]
        %v285 = vld [vmem:[%s1 + $0xf0] sm:$0xf]
        %v286 = vld [vmem:[%s1 + $0xf4] sm:$0xf]
        %v287 = vld [vmem:[%s1 + $0xf8] sm:$0xf]
        %v288 = vld [vmem:[%s1 + $0xfc] sm:$0xf]
        %v289 = vld [vmem:[%s1 + $0x100] sm:$0xf]
        %v290 = vld [vmem:[%s1 + $0x104] sm:$0xf]
        %v291 = vld [vmem:[%s1 + $0x108] sm:$0xf]
        %v292 = vld [vmem:[%s1 + $0x10c] sm:$0xf]
        %v293 = vld [vmem:[%s1 + $0x110] sm:$0xf]
        %v294 = vld [vmem:[%s1 + $0x114] sm:$0xf]
        %v295 = vld [vmem:[%s1 + $0x118] sm:$0xf]
        %v296 = vld [vmem:[%s1 + $0x11c] sm:$0xf]
        %v297 = vld [vmem:[%s2] sm:$0x1]
        %v299 = vlaneseq
        %v300 = vshrl.u32 %v299, 7
        %v301 = vsub.s32 0, %v300
        %v302 = vrot.slane %v297, %v301
        %v328 = vunpack.c.l.b16 %v201
        %v329 = vunpack.c.h.b16 %v201
        %v330 = vunpack.c.l.b16 %v202
        %v331 = vunpack.c.h.b16 %v202
        %v332 = vunpack.c.l.b16 %v203
        %v333 = vunpack.c.l.b16 %v204
        %v334 = vunpack.c.h.b16 %v204
        %v335 = vunpack.c.l.b16 %v205
        %v336 = vunpack.c.h.b16 %v205
        %v337 = vunpack.c.l.b16 %v206
        %v338 = vunpack.c.l.b16 %v207
        %v339 = vunpack.c.h.b16 %v207
        %v340 = vunpack.c.l.b16 %v208
        %v341 = vunpack.c.h.b16 %v208
        %v342 = vunpack.c.l.b16 %v209
        %v343 = vunpack.c.l.b16 %v210
        %v344 = vunpack.c.h.b16 %v210
        %v345 = vunpack.c.l.b16 %v211
        %v346 = vunpack.c.h.b16 %v211
        %v347 = vunpack.c.l.b16 %v212
        %v348 = vunpack.c.l.b16 %v213
        %v349 = vunpack.c.h.b16 %v213
        %v350 = vunpack.c.l.b16 %v214
        %v351 = vunpack.c.h.b16 %v214
        %v352 = vunpack.c.l.b16 %v215
        %v353 = vunpack.c.l.b16 %v216
        %v354 = vunpack.c.h.b16 %v216
        %v355 = vunpack.c.l.b16 %v217
        %v356 = vunpack.c.h.b16 %v217
        %v357 = vunpack.c.l.b16 %v218
        %v358 = vunpack.c.l.b16 %v219
        %v359 = vunpack.c.h.b16 %v219
        %v360 = vunpack.c.l.b16 %v220
        %v361 = vunpack.c.h.b16 %v220
        %v362 = vunpack.c.l.b16 %v221
        %v363 = vunpack.c.l.b16 %v222
        %v364 = vunpack.c.h.b16 %v222
        %v365 = vunpack.c.l.b16 %v223
        %v366 = vunpack.c.h.b16 %v223
        %v367 = vunpack.c.l.b16 %v224
        %v368 = vpack.c.b16 %v333, %v328
        %v369 = vpack.c.b16 %v334, %v329
        %v370 = vpack.c.b16 %v335, %v330
        %v371 = vpack.c.b16 %v336, %v331
        %v372 = vpack.c.b16 %v337, %v332
        %v373 = vpack.c.b16 %v343, %v338
        %v374 = vpack.c.b16 %v344, %v339
        %v375 = vpack.c.b16 %v345, %v340
        %v376 = vpack.c.b16 %v346, %v341
        %v377 = vpack.c.b16 %v347, %v342
        %v378 = vpack.c.b16 %v353, %v348
        %v379 = vpack.c.b16 %v354, %v349
        %v380 = vpack.c.b16 %v355, %v350
        %v381 = vpack.c.b16 %v356, %v351
        %v382 = vpack.c.b16 %v357, %v352
        %v383 = vpack.c.b16 %v363, %v358
        %v384 = vpack.c.b16 %v364, %v359
        %v385 = vpack.c.b16 %v365, %v360
        %v386 = vpack.c.b16 %v366, %v361
        %v387 = vpack.c.b16 %v367, %v362
        %v476 = vunpack.c.l.b16 %v225
        %v477 = vunpack.c.l.b16 %v226
        %v478 = vunpack.c.l.b16 %v227
        %v479 = vunpack.c.l.b16 %v228
        %v480 = vunpack.c.l.b16 %v229
        %v481 = vunpack.c.l.b16 %v230
        %v482 = vunpack.c.l.b16 %v231
        %v483 = vunpack.c.l.b16 %v232
        %v484 = vunpack.c.l.b16 %v233
        %v485 = vunpack.c.l.b16 %v234
        %v486 = vunpack.c.l.b16 %v235
        %v487 = vunpack.c.l.b16 %v236
        %v488 = vunpack.c.l.b16 %v237
        %v489 = vunpack.c.l.b16 %v238
        %v490 = vunpack.c.l.b16 %v239
        %v491 = vunpack.c.l.b16 %v240
        %v492 = vunpack.c.l.b16 %v241
        %v493 = vunpack.c.l.b16 %v242
        %v494 = vunpack.c.l.b16 %v243
        %v495 = vunpack.c.l.b16 %v244
        %v496 = vunpack.c.l.b16 %v245
        %v497 = vunpack.c.l.b16 %v246
        %v498 = vunpack.c.l.b16 %v247
        %v499 = vunpack.c.l.b16 %v248
        %v500 = vunpack.c.l.b16 %v249
        %v501 = vunpack.c.l.b16 %v250
        %v502 = vunpack.c.l.b16 %v251
        %v503 = vunpack.c.l.b16 %v252
        %v504 = vunpack.c.l.b16 %v253
        %v505 = vunpack.c.l.b16 %v254
        %v506 = vunpack.c.l.b16 %v255
        %v507 = vunpack.c.l.b16 %v256
        %v508 = vunpack.c.l.b16 %v257
        %v509 = vunpack.c.l.b16 %v258
        %v510 = vunpack.c.l.b16 %v259
        %v511 = vunpack.c.l.b16 %v260
        %v512 = vunpack.c.l.b16 %v261
        %v513 = vunpack.c.l.b16 %v262
        %v514 = vunpack.c.l.b16 %v263
        %v515 = vunpack.c.l.b16 %v264
        %v516 = vunpack.c.l.b16 %v265
        %v517 = vunpack.c.l.b16 %v266
        %v518 = vunpack.c.l.b16 %v267
        %v519 = vunpack.c.l.b16 %v268
        %v520 = vunpack.c.l.b16 %v269
        %v521 = vunpack.c.l.b16 %v270
        %v522 = vunpack.c.l.b16 %v271
        %v523 = vunpack.c.l.b16 %v272
        %v524 = vunpack.c.l.b16 %v273
        %v525 = vunpack.c.l.b16 %v274
        %v526 = vunpack.c.l.b16 %v275
        %v527 = vunpack.c.l.b16 %v276
        %v528 = vunpack.c.l.b16 %v277
        %v529 = vunpack.c.l.b16 %v278
        %v530 = vunpack.c.l.b16 %v279
        %v531 = vunpack.c.l.b16 %v280
        %v532 = vunpack.c.l.b16 %v281
        %v533 = vunpack.c.l.b16 %v282
        %v534 = vunpack.c.l.b16 %v283
        %v535 = vunpack.c.l.b16 %v284
        %v536 = vunpack.c.l.b16 %v285
        %v537 = vunpack.c.l.b16 %v286
        %v538 = vunpack.c.l.b16 %v287
        %v539 = vunpack.c.l.b16 %v288
        %v540 = vunpack.c.l.b16 %v289
        %v541 = vunpack.c.l.b16 %v290
        %v542 = vunpack.c.l.b16 %v291
        %v543 = vunpack.c.l.b16 %v292
        %v544 = vunpack.c.l.b16 %v293
        %v545 = vunpack.c.l.b16 %v294
        %v546 = vunpack.c.l.b16 %v295
        %v547 = vunpack.c.l.b16 %v296
        %v548 = vpack.c.b16 %v477, %v476
        %v549 = vpack.c.b16 %v479, %v478
        %v550 = vpack.c.b16 %v481, %v480
        %v551 = vpack.c.b16 %v483, %v482
        %v552 = vpack.c.b16 %v485, %v484
        %v553 = vpack.c.b16 %v487, %v486
        %v554 = vpack.c.b16 %v489, %v488
        %v555 = vpack.c.b16 %v491, %v490
        %v556 = vpack.c.b16 %v493, %v492
        %v557 = vpack.c.b16 %v495, %v494
        %v558 = vpack.c.b16 %v497, %v496
        %v559 = vpack.c.b16 %v499, %v498
        %v560 = vpack.c.b16 %v501, %v500
        %v561 = vpack.c.b16 %v503, %v502
        %v562 = vpack.c.b16 %v505, %v504
        %v563 = vpack.c.b16 %v507, %v506
        %v564 = vpack.c.b16 %v509, %v508
        %v565 = vpack.c.b16 %v511, %v510
        %v566 = vpack.c.b16 %v513, %v512
        %v567 = vpack.c.b16 %v515, %v514
        %v568 = vpack.c.b16 %v517, %v516
        %v569 = vpack.c.b16 %v519, %v518
        %v570 = vpack.c.b16 %v521, %v520
        %v571 = vpack.c.b16 %v523, %v522
        %v572 = vpack.c.b16 %v525, %v524
        %v573 = vpack.c.b16 %v527, %v526
        %v574 = vpack.c.b16 %v529, %v528
        %v575 = vpack.c.b16 %v531, %v530
        %v576 = vpack.c.b16 %v533, %v532
        %v577 = vpack.c.b16 %v535, %v534
        %v578 = vpack.c.b16 %v537, %v536
        %v579 = vpack.c.b16 %v539, %v538
        %v580 = vpack.c.b16 %v541, %v540
        %v581 = vpack.c.b16 %v543, %v542
        %v582 = vpack.c.b16 %v545, %v544
        %v583 = vpack.c.b16 %v547, %v546
        %vm620 = vcmask 523264
        %v622 = vsel %vm620, %v372, 0
        %v625 = vsel %vm620, %v377, 0
        %v628 = vsel %vm620, %v382, 0
        %v631 = vsel %vm620, %v387, 0
        %633 = vmatprep.subr.bf16.mxu0 0
        %634 = vmatpush1.bf16.msra.mxu0 %v548
        %635 = vmatprep.subr.bf16.mxu0 0
        %636 = vmatpush1.bf16.msra.mxu0 %v549
        %637 = vmatprep.subr.bf16.mxu0 0
        %638 = vmatpush1.bf16.msra.mxu0 %v550
        %639 = vmatprep.subr.bf16.mxu0 0
        %640 = vmatpush1.bf16.msra.mxu0 %v551
        %641 = vmatprep.subr.bf16.mxu0 0
        %642 = vmatpush1.bf16.msra.mxu0 %v552
        %643 = vmatprep.subr.bf16.mxu0 0
        %644 = vmatpush1.bf16.msra.mxu0 %v553
        %645 = vmatprep.subr.bf16.mxu0 0
        %646 = vmatpush1.bf16.msra.mxu0 %v554
        %647 = vmatprep.subr.bf16.mxu0 0
        %648 = vmatpush1.bf16.msra.mxu0 %v555
        %649 = vmatprep.subr.bf16.mxu0 0
        %650 = vmatpush1.bf16.msra.mxu0 %v556
        %651 = vmatprep.subr.bf16.mxu0 0
        %652 = vmatpush1.bf16.msra.mxu0 %v557
        %653 = vmatprep.subr.bf16.mxu0 0
        %654 = vmatpush1.bf16.msra.mxu0 %v558
        %655 = vmatprep.subr.bf16.mxu0 0
        %656 = vmatpush1.bf16.msra.mxu0 %v559
        %657 = vmatprep.subr.bf16.mxu0 0
        %658 = vmatpush1.bf16.msra.mxu0 %v560
        %659 = vmatprep.subr.bf16.mxu0 0
        %660 = vmatpush1.bf16.msra.mxu0 %v561
        %661 = vmatprep.subr.bf16.mxu0 0
        %662 = vmatpush1.bf16.msra.mxu0 %v562
        %663 = vmatprep.subr.bf16.mxu0 0
        %664 = vmatpush1.bf16.msra.mxu0 %v563
        %665 = vmatprep.mubr.bf16.mxu0 %v369
        %666 = vmatmul.mubr.bf16.gmra.mrb[0].mxu0 %v368
        %v667 = vpop.f32.mrb[0].mxu0
        %v668 = vadd.f32 %v302, %v667
        %v669 = vpop.f32.mrb[0].mxu0
        %v670 = vpop.f32.mrb[0].mxu0
        %v671 = vadd.f32 %v302, %v670
        %v672 = vpop.f32.mrb[0].mxu0
        %673 = vmatprep.mubr.bf16.mxu0 %v374
        %674 = vmatmul.mubr.bf16.gmra.mrb[0].mxu0 %v373
        %v675 = vpop.f32.mrb[0].mxu0
        %v676 = vadd.f32 %v302, %v675
        %v677 = vpop.f32.mrb[0].mxu0
        %v678 = vpop.f32.mrb[0].mxu0
        %v679 = vadd.f32 %v302, %v678
        %v680 = vpop.f32.mrb[0].mxu0
        %681 = vmatprep.mubr.bf16.mxu0 %v379
        %682 = vmatmul.mubr.bf16.gmra.mrb[0].mxu0 %v378
        %v683 = vpop.f32.mrb[0].mxu0
        %v684 = vadd.f32 %v302, %v683
        %v685 = vpop.f32.mrb[0].mxu0
        %v686 = vpop.f32.mrb[0].mxu0
        %v687 = vadd.f32 %v302, %v686
        %v688 = vpop.f32.mrb[0].mxu0
        %689 = vmatprep.mubr.bf16.mxu0 %v384
        %690 = vmatmul.mubr.bf16.gmra.mrb[0].mxu0 %v383
        %v691 = vpop.f32.mrb[0].mxu0
        %v692 = vadd.f32 %v302, %v691
        %v693 = vpop.f32.mrb[0].mxu0
        %v694 = vpop.f32.mrb[0].mxu0
        %v695 = vadd.f32 %v302, %v694
        %v696 = vpop.f32.mrb[0].mxu0
        %697 = vdwg.mxu0
        %698 = vmatprep.subr.bf16.mxu0 0
        %699 = vmatpush1.bf16.msra.mxu0 %v564
        %700 = vmatprep.subr.bf16.mxu0 0
        %701 = vmatpush1.bf16.msra.mxu0 %v565
        %702 = vmatprep.subr.bf16.mxu0 0
        %703 = vmatpush1.bf16.msra.mxu0 %v566
        %704 = vmatprep.subr.bf16.mxu0 0
        %705 = vmatpush1.bf16.msra.mxu0 %v567
        %706 = vmatprep.subr.bf16.mxu0 0
        %707 = vmatpush1.bf16.msra.mxu0 %v568
        %708 = vmatprep.subr.bf16.mxu0 0
        %709 = vmatpush1.bf16.msra.mxu0 %v569
        %710 = vmatprep.subr.bf16.mxu0 0
        %711 = vmatpush1.bf16.msra.mxu0 %v570
        %712 = vmatprep.subr.bf16.mxu0 0
        %713 = vmatpush1.bf16.msra.mxu0 %v571
        %714 = vmatprep.subr.bf16.mxu0 0
        %715 = vmatpush1.bf16.msra.mxu0 %v572
        %716 = vmatprep.subr.bf16.mxu0 0
        %717 = vmatpush1.bf16.msra.mxu0 %v573
        %718 = vmatprep.subr.bf16.mxu0 0
        %719 = vmatpush1.bf16.msra.mxu0 %v574
        %720 = vmatprep.subr.bf16.mxu0 0
        %721 = vmatpush1.bf16.msra.mxu0 %v575
        %722 = vmatprep.subr.bf16.mxu0 0
        %723 = vmatpush1.bf16.msra.mxu0 %v576
        %724 = vmatprep.subr.bf16.mxu0 0
        %725 = vmatpush1.bf16.msra.mxu0 %v577
        %726 = vmatprep.subr.bf16.mxu0 0
        %727 = vmatpush1.bf16.msra.mxu0 %v578
        %728 = vmatprep.subr.bf16.mxu0 0
        %729 = vmatpush1.bf16.msra.mxu0 %v579
        %730 = vmatprep.mubr.bf16.mxu0 %v371
        %731 = vmatmul.mubr.bf16.gmra.mrb[0].mxu0 %v370
        %v732 = vpop.f32.mrb[0].mxu0
        %v733 = vadd.f32 %v668, %v732
        %v734 = vpop.f32.mrb[0].mxu0
        %v735 = vpop.f32.mrb[0].mxu0
        %v736 = vadd.f32 %v671, %v735
        %v737 = vpop.f32.mrb[0].mxu0
        %738 = vmatprep.mubr.bf16.mxu0 %v376
        %739 = vmatmul.mubr.bf16.gmra.mrb[0].mxu0 %v375
        %v740 = vpop.f32.mrb[0].mxu0
        %v741 = vadd.f32 %v676, %v740
        %v742 = vpop.f32.mrb[0].mxu0
        %v743 = vpop.f32.mrb[0].mxu0
        %v744 = vadd.f32 %v679, %v743
        %v745 = vpop.f32.mrb[0].mxu0
        %746 = vmatprep.mubr.bf16.mxu0 %v381
        %747 = vmatmul.mubr.bf16.gmra.mrb[0].mxu0 %v380
        %v748 = vpop.f32.mrb[0].mxu0
        %v749 = vadd.f32 %v684, %v748
        %v750 = vpop.f32.mrb[0].mxu0
        %v751 = vpop.f32.mrb[0].mxu0
        %v752 = vadd.f32 %v687, %v751
        %v753 = vpop.f32.mrb[0].mxu0
        %754 = vmatprep.mubr.bf16.mxu0 %v386
        %755 = vmatmul.mubr.bf16.gmra.mrb[0].mxu0 %v385
        %v756 = vpop.f32.mrb[0].mxu0
        %v757 = vadd.f32 %v692, %v756
        %v758 = vpop.f32.mrb[0].mxu0
        %v759 = vpop.f32.mrb[0].mxu0
        %v760 = vadd.f32 %v695, %v759
        %v761 = vpop.f32.mrb[0].mxu0
        %762 = vdwg.mxu0
        %763 = vmatprep.subr.bf16.mxu0 0
        %764 = vmatpush1.bf16.msra.mxu0 %v580
        %765 = vmatprep.subr.bf16.mxu0 0
        %766 = vmatpush1.bf16.msra.mxu0 %v581
        %767 = vmatprep.subr.bf16.mxu0 0
        %768 = vmatpush1.bf16.msra.mxu0 %v582
        %769 = vmatprep.subr.bf16.mxu0 0
        %770 = vmatpush1.bf16.msra.mxu0 %v583
        %771 = vmatprep.subr.bf16.mxu0 0
        %772 = vmatpush1.bf16.msra.mxu0 0
        %773 = vmatprep.subr.bf16.mxu0 0
        %774 = vmatpush1.bf16.msra.mxu0 0
        %775 = vmatprep.subr.bf16.mxu0 0
        %776 = vmatpush1.bf16.msra.mxu0 0
        %777 = vmatprep.subr.bf16.mxu0 0
        %778 = vmatpush1.bf16.msra.mxu0 0
        %779 = vmatprep.subr.bf16.mxu0 0
        %780 = vmatpush1.bf16.msra.mxu0 0
        %781 = vmatprep.subr.bf16.mxu0 0
        %782 = vmatpush1.bf16.msra.mxu0 0
        %783 = vmatprep.subr.bf16.mxu0 0
        %784 = vmatpush1.bf16.msra.mxu0 0
        %785 = vmatprep.subr.bf16.mxu0 0
        %786 = vmatpush1.bf16.msra.mxu0 0
        %787 = vmatprep.subr.bf16.mxu0 0
        %788 = vmatpush1.bf16.msra.mxu0 0
        %789 = vmatprep.subr.bf16.mxu0 0
        %790 = vmatpush1.bf16.msra.mxu0 0
        %791 = vmatprep.subr.bf16.mxu0 0
        %792 = vmatpush1.bf16.msra.mxu0 0
        %793 = vmatprep.subr.bf16.mxu0 0
        %794 = vmatpush1.bf16.msra.mxu0 0
        %795 = vmatprep.mubr.bf16.mxu0 0
        %796 = vmatmul.mubr.bf16.gmra.mrb[0].mxu0 %v622
        %v797 = vpop.f32.mrb[0].mxu0
        %v798 = vadd.f32 %v733, %v797
        %v799 = vpop.f32.mrb[0].mxu0
        %v800 = vpop.f32.mrb[0].mxu0
        %v801 = vadd.f32 %v736, %v800
        %v802 = vpop.f32.mrb[0].mxu0
        %803 = vmatprep.mubr.bf16.mxu0 0
        %804 = vmatmul.mubr.bf16.gmra.mrb[0].mxu0 %v625
        %v805 = vpop.f32.mrb[0].mxu0
        %v806 = vadd.f32 %v741, %v805
        %v807 = vpop.f32.mrb[0].mxu0
        %v808 = vpop.f32.mrb[0].mxu0
        %v809 = vadd.f32 %v744, %v808
        %v810 = vpop.f32.mrb[0].mxu0
        %811 = vmatprep.mubr.bf16.mxu0 0
        %812 = vmatmul.mubr.bf16.gmra.mrb[0].mxu0 %v628
        %v813 = vpop.f32.mrb[0].mxu0
        %v814 = vadd.f32 %v749, %v813
        %v815 = vpop.f32.mrb[0].mxu0
        %v816 = vpop.f32.mrb[0].mxu0
        %v817 = vadd.f32 %v752, %v816
        %v818 = vpop.f32.mrb[0].mxu0
        %819 = vmatprep.mubr.bf16.mxu0 0
        %820 = vmatmul.mubr.bf16.gmra.mrb[0].mxu0 %v631
        %v821 = vpop.f32.mrb[0].mxu0
        %v822 = vadd.f32 %v757, %v821
        %v823 = vpop.f32.mrb[0].mxu0
        %v824 = vpop.f32.mrb[0].mxu0
        %v825 = vadd.f32 %v760, %v824
        %v826 = vpop.f32.mrb[0].mxu0
        %827 = vdwg.mxu0
        %v828 = vmax.f32 %v798, 0.0
        %v829 = vmax.f32 %v801, 0.0
        %v830 = vmax.f32 %v806, 0.0
        %v831 = vmax.f32 %v809, 0.0
        %v832 = vmax.f32 %v814, 0.0
        %v833 = vmax.f32 %v817, 0.0
        %v834 = vmax.f32 %v822, 0.0
        %v835 = vmax.f32 %v825, 0.0
        %v836 = vpack.c.bf16 %v829, %v828
        %v837 = vpack.c.bf16 %v831, %v830
        %v838 = vpack.c.bf16 %v833, %v832
        %v839 = vpack.c.bf16 %v835, %v834
        %v844 = vunpack.c.l.b16 %v836
        %v845 = vunpack.c.h.b16 %v836
        %v846 = vunpack.c.l.b16 %v837
        %v847 = vunpack.c.h.b16 %v837
        %v848 = vunpack.c.l.b16 %v838
        %v849 = vunpack.c.h.b16 %v838
        %v850 = vunpack.c.l.b16 %v839
        %v851 = vunpack.c.h.b16 %v839
        %v852 = vpack.c.b16 %v844, %v844
        %v853 = vpack.c.b16 %v845, %v845
        %v854 = vpack.c.b16 %v846, %v846
        %v855 = vpack.c.b16 %v847, %v847
        %v856 = vpack.c.b16 %v848, %v848
        %v857 = vpack.c.b16 %v849, %v849
        %v858 = vpack.c.b16 %v850, %v850
        %v859 = vpack.c.b16 %v851, %v851
        %vm868 = vcmask 519168
        %869 = vst.msk [vmem:[%s177] sm:$0xf] %vm868, %v852
        %870 = vst.msk [vmem:[%s177 + $0x4] sm:$0xf] %vm868, %v853
        %871 = vst.msk [vmem:[%s177 + $0x8] sm:$0xf] %vm868, %v854
        %872 = vst.msk [vmem:[%s177 + $0xc] sm:$0xf] %vm868, %v855
        %873 = vst.msk [vmem:[%s177 + $0x10] sm:$0xf] %vm868, %v856
        %874 = vst.msk [vmem:[%s177 + $0x14] sm:$0xf] %vm868, %v857
        %875 = vst.msk [vmem:[%s177 + $0x18] sm:$0xf] %vm868, %v858
        %876 = vst.msk [vmem:[%s177 + $0x1c] sm:$0xf] %vm868, %v859
        %s877 = sand.u32 %s90, 1
        %s878 = sand.u32 %s90, 1
        %s879 = smul.addr %s878, 32
        %s880 = scalar_lea.vmem [#allocation2], %s879
        // Predicated region
        $region33: #{net_forward.6} parent=31 // pred_check
          %p881 = pneg %p100
        $region34: #{net_forward.6} parent=31 // pred_check_branch
          %883 = sbr.rel (%p881) target = $region36
        $region35: #{net_forward.6} parent=31 // pred_region
          %s884 = smul.u32 8, %s14
          %s885 = ssub.s32 13, %s884
          %p886 = scmp.lt.s32.totalorder %s885, 8
          %s887 = scalar_select %p886, %s885, 8
          %s888 = smul.u32 64, %s887
          %p889 = scmp.ne.s32.totalorder 0, %s888
          %s890 = smul.addr %s884, 4
          %s891 = scalar_lea.vmem %s3, %s890
          // Predicated region
          $region37: #{net_forward.6} parent=35 // pred_check
            %p892 = pneg %p889
          $region38: #{net_forward.6} parent=35 // pred_check_branch
            %894 = sbr.rel (%p892) target = $region40
          $region39: #{net_forward.6} parent=35 // pred_region
            // Predicated region
            $region41: #{net_forward.6} parent=39 // pred_check
              _
            $region42: #{net_forward.6} parent=39 // pred_check_branch
              %896 = sbr.rel target = $region44
            $region43: #{net_forward.6} parent=39 // pred_region
              // Predicated region
              $region63: #{net_forward.6} parent=43 // pred_check
                _
              $region64: #{net_forward.6} parent=43 // pred_check_branch
                %959 = sbr.rel (0) target = $region66
              $region65: #{net_forward.6} parent=43 // pred_region
                %s961 = sshrl.u32 %s887, 3
                // While loop
                $region67: #{net_forward.6} parent=65 // loop_pre_header
                  _
                $region68: #{net_forward.6} parent=65 // loop_header
                  %s963 = sphi 0, %s965
                  %p964 = scmp.ge.s32.totalorder %s963, %s961
                  %s968 = sphi 0, %s989
                  %s969 = sphi %s880, %s992
                  %s970 = sphi %s891, %s993
                $region69: #{net_forward.6} parent=65 // loop_header_branch
                  %967 = sbr.rel (%p964) target = $region73
                $region70: #{net_forward.6} parent=65 // loop_body
                  %v971 = vld [vmem:[%s969] sm:$0xf]
                  %972 = vst [vmem:[%s970] sm:$0xf] %v971
                  %v973 = vld [vmem:[%s969 + $0x4] sm:$0xf]
                  %974 = vst [vmem:[%s970 + $0x4] sm:$0xf] %v973
                  %v975 = vld [vmem:[%s969 + $0x8] sm:$0xf]
                  %976 = vst [vmem:[%s970 + $0x8] sm:$0xf] %v975
                  %v977 = vld [vmem:[%s969 + $0xc] sm:$0xf]
                  %978 = vst [vmem:[%s970 + $0xc] sm:$0xf] %v977
                  %v979 = vld [vmem:[%s969 + $0x10] sm:$0xf]
                  %980 = vst [vmem:[%s970 + $0x10] sm:$0xf] %v979
                  %v981 = vld [vmem:[%s969 + $0x14] sm:$0xf]
                  %982 = vst [vmem:[%s970 + $0x14] sm:$0xf] %v981
                  %v983 = vld [vmem:[%s969 + $0x18] sm:$0xf]
                  %984 = vst [vmem:[%s970 + $0x18] sm:$0xf] %v983
                  %v985 = vld [vmem:[%s969 + $0x1c] sm:$0xf]
                  %986 = vst [vmem:[%s970 + $0x1c] sm:$0xf] %v985
                  %s987 = sadd.s32 1, %s968
                  %p988 = scmp.ge.s32.totalorder %s987, %s961
                  %s989 = scalar_select %p988, 0, %s987
                  %s990 = smul.u32 %s989, 32
                  %s991 = smul.u32 %s989, 32
                  %s992 = scalar_lea.vmem %s880, %s990 [#allocation2]
                  %s993 = scalar_lea.vmem %s891, %s991
                $region71: #{net_forward.6} parent=65 // loop_footer
                  %s965 = sadd.s32 %s963, 1
                $region72: #{net_forward.6} parent=65 // loop_footer_branch
                  %962 = sbr.rel target = $region68
                $region73: #{net_forward.6} parent=65 // loop_exit
                  _
                %s994 = sshrl.u32 %s887, 3
                %s995 = sand.u32 %s887, 7
                %s996 = smul.u32 %s994, 8
                %s997 = smul.u32 4, %s996
                %s998 = scalar_lea.vmem %s880, %s997 [#allocation2]
                %s999 = smul.u32 4, %s996
                %s1000 = scalar_lea.vmem %s891, %s999
                // While loop
                $region74: #{net_forward.6} parent=65 // loop_pre_header
                  _
                $region75: #{net_forward.6} parent=65 // loop_header
                  %s1002 = sphi 0, %s1004
                  %p1003 = scmp.ge.s32.totalorder %s1002, %s995
                  %s1007 = sphi 0, %s1014
                  %s1008 = sphi %s998, %s1017
                  %s1009 = sphi %s1000, %s1018
                $region76: #{net_forward.6} parent=65 // loop_header_branch
                  %1006 = sbr.rel (%p1003) target = $region80
                $region77: #{net_forward.6} parent=65 // loop_body
                  %v1010 = vld [vmem:[%s1008] sm:$0xf]
                  %1011 = vst [vmem:[%s1009] sm:$0xf] %v1010
                  %s1012 = sadd.s32 1, %s1007
                  %p1013 = scmp.ge.s32.totalorder %s1012, %s995
                  %s1014 = scalar_select %p1013, 0, %s1012
                  %s1015 = smul.u32 %s1014, 4
                  %s1016 = smul.u32 %s1014, 4
                  %s1017 = scalar_lea.vmem %s998, %s1015 [#allocation2]
                  %s1018 = scalar_lea.vmem %s1000, %s1016
                $region78: #{net_forward.6} parent=65 // loop_footer
                  %s1004 = sadd.s32 %s1002, 1
                $region79: #{net_forward.6} parent=65 // loop_footer_branch
                  %1001 = sbr.rel target = $region75
                $region80: #{net_forward.6} parent=65 // loop_exit
                  _
              $region66: #{net_forward.6} parent=43 // pred_fallthru
                _
            $region44: #{net_forward.6} parent=39 // pred_fallthru
              _
            // Predicated region
            $region45: #{net_forward.6} parent=39 // pred_check
              _
            $region46: #{net_forward.6} parent=39 // pred_check_branch
              %898 = sbr.rel (0) target = $region48
            $region47: #{net_forward.6} parent=39 // pred_region
              %s900 = sshrl.u32 %s887, 3
              // While loop
              $region49: #{net_forward.6} parent=47 // loop_pre_header
                _
              $region50: #{net_forward.6} parent=47 // loop_header
                %s902 = sphi 0, %s904
                %p903 = scmp.ge.s32.totalorder %s902, %s900
                %s907 = sphi 0, %s928
                %s908 = sphi %s880, %s931
                %s909 = sphi %s891, %s932
              $region51: #{net_forward.6} parent=47 // loop_header_branch
                %906 = sbr.rel (%p903) target = $region55
              $region52: #{net_forward.6} parent=47 // loop_body
                %v910 = vld [vmem:[%s908] sm:$0xf]
                %911 = vst [vmem:[%s909] sm:$0xf] %v910
                %v912 = vld [vmem:[%s908 + $0x4] sm:$0xf]
                %913 = vst [vmem:[%s909 + $0x4] sm:$0xf] %v912
                %v914 = vld [vmem:[%s908 + $0x8] sm:$0xf]
                %915 = vst [vmem:[%s909 + $0x8] sm:$0xf] %v914
                %v916 = vld [vmem:[%s908 + $0xc] sm:$0xf]
                %917 = vst [vmem:[%s909 + $0xc] sm:$0xf] %v916
                %v918 = vld [vmem:[%s908 + $0x10] sm:$0xf]
                %919 = vst [vmem:[%s909 + $0x10] sm:$0xf] %v918
                %v920 = vld [vmem:[%s908 + $0x14] sm:$0xf]
                %921 = vst [vmem:[%s909 + $0x14] sm:$0xf] %v920
                %v922 = vld [vmem:[%s908 + $0x18] sm:$0xf]
                %923 = vst [vmem:[%s909 + $0x18] sm:$0xf] %v922
                %v924 = vld [vmem:[%s908 + $0x1c] sm:$0xf]
                %925 = vst [vmem:[%s909 + $0x1c] sm:$0xf] %v924
                %s926 = sadd.s32 1, %s907
                %p927 = scmp.ge.s32.totalorder %s926, %s900
                %s928 = scalar_select %p927, 0, %s926
                %s929 = smul.u32 %s928, 32
                %s930 = smul.u32 %s928, 32
                %s931 = scalar_lea.vmem %s880, %s929 [#allocation2]
                %s932 = scalar_lea.vmem %s891, %s930
              $region53: #{net_forward.6} parent=47 // loop_footer
                %s904 = sadd.s32 %s902, 1
              $region54: #{net_forward.6} parent=47 // loop_footer_branch
                %901 = sbr.rel target = $region50
              $region55: #{net_forward.6} parent=47 // loop_exit
                _
              %s933 = sshrl.u32 %s887, 3
              %s934 = sand.u32 %s887, 7
              %s935 = smul.u32 %s933, 8
              %s936 = smul.u32 4, %s935
              %s937 = scalar_lea.vmem %s880, %s936 [#allocation2]
              %s938 = smul.u32 4, %s935
              %s939 = scalar_lea.vmem %s891, %s938
              // While loop
              $region56: #{net_forward.6} parent=47 // loop_pre_header
                _
              $region57: #{net_forward.6} parent=47 // loop_header
                %s941 = sphi 0, %s943
                %p942 = scmp.ge.s32.totalorder %s941, %s934
                %s946 = sphi 0, %s953
                %s947 = sphi %s937, %s956
                %s948 = sphi %s939, %s957
              $region58: #{net_forward.6} parent=47 // loop_header_branch
                %945 = sbr.rel (%p942) target = $region62
              $region59: #{net_forward.6} parent=47 // loop_body
                %v949 = vld [vmem:[%s947] sm:$0xf]
                %950 = vst [vmem:[%s948] sm:$0xf] %v949
                %s951 = sadd.s32 1, %s946
                %p952 = scmp.ge.s32.totalorder %s951, %s934
                %s953 = scalar_select %p952, 0, %s951
                %s954 = smul.u32 %s953, 4
                %s955 = smul.u32 %s953, 4
                %s956 = scalar_lea.vmem %s937, %s954 [#allocation2]
                %s957 = scalar_lea.vmem %s939, %s955
              $region60: #{net_forward.6} parent=47 // loop_footer
                %s943 = sadd.s32 %s941, 1
              $region61: #{net_forward.6} parent=47 // loop_footer_branch
                %940 = sbr.rel target = $region57
              $region62: #{net_forward.6} parent=47 // loop_exit
                _
            $region48: #{net_forward.6} parent=39 // pred_fallthru
              _
          $region40: #{net_forward.6} parent=35 // pred_fallthru
            _
          %1019 = vnop
        $region36: #{net_forward.6} parent=31 // pred_fallthru
          _
      $region32: #{net_forward.6} parent=5 // pred_fallthru
        _
      %p1020 = scmp.le.s32.totalorder 2, %s9
      // Predicated region
      $region81: #{net_forward.6} parent=5 // pred_check
        %p1021 = pneg %p1020
      $region82: #{net_forward.6} parent=5 // pred_check_branch
        %1023 = sbr.rel (%p1021) target = $region84
      $region83: #{net_forward.6} parent=5 // pred_region
        %s1024 = ssub.s32 %s9, 2
        // Predicated region
        $region85: #{net_forward.6} parent=83 // pred_check
          %p1025 = pneg %p106
        $region86: #{net_forward.6} parent=83 // pred_check_branch
          %1027 = sbr.rel (%p1025) target = $region88
        $region87: #{net_forward.6} parent=83 // pred_region
          %s1028 = sand.u32 %s91, 1
          %s1029 = sand.u32 %s91, 1
          %s1030 = smul.addr %s1029, 32
          %s1031 = scalar_lea.vmem [#allocation2], %s1030
        $region88: #{net_forward.6} parent=83 // pred_fallthru
          _
      $region84: #{net_forward.6} parent=5 // pred_fallthru
        _
    $region6: #{net_forward.6} parent=1 // loop_footer
      %s13 = sadd.s32 1, %s9
    $region7: #{net_forward.6} parent=1 // loop_footer_branch
      %8 = sbr.rel target = $region3
    $region8: #{net_forward.6} parent=1 // loop_exit
      _

// kernel: net_forward.7
$region0: #{net_forward.7}
  #allocation0 [shape = 'u32[]', space=smem, size = 0x4, offset = 0x4, fixed_abs, tag = 'smem constant byte address 0x4 - core index']
  #allocation1 [shape = 'u32[144,128]{1,0:T(1,128)}', space=vmem, size = 0x12000, scoped, tag = 'internal scratch']
  %s0 = inlined_call_operand.vmem [shape: bf16[2,3136], index: 0, kind: input, shape index: {}]
  %s1 = inlined_call_operand.vmem [shape: bf16[3136,512], index: 1, kind: input, shape index: {}]
  %s2 = inlined_call_operand.vmem [shape: f32[1,512], index: 2, kind: input, shape index: {}]
  %s3 = inlined_call_operand.vmem [shape: bf16[512,128], index: 3, kind: input, shape index: {}]
  %s4 = inlined_call_operand.vmem [shape: f32[1,128], index: 4, kind: input, shape index: {}]
  %s5 = inlined_call_operand.hbm [shape: f32[2,128], index: 5, kind: output, shape index: {}]
  %s6 = sld [smem:[#allocation0]]
  $region30: #{net_forward.7} parent=0
    _
  %s8 = ssub.s32 1, %s6
  %s9 = scalar_select 0, %s8, %s6
  $region1: #{net_forward.7} parent=0
    #allocation2 [shape = 'u8[8192]{0}', space=vmem, size = 0x2000, scoped, tag = 'output window, operand 0, single buffered']
    #allocation3 [shape = 's32[1]{0}', space=sflag, size = 0x4, scoped, tag = 'scoped memory for net_forward.7']
    %10 = vsyncpa [#allocation3], 0
    // Predicated region
    $region2: #{net_forward.7} parent=1 // pred_check
      _
    $region3: #{net_forward.7} parent=1 // pred_check_branch
      %12 = sbr.rel (0) target = $region5
    $region4: #{net_forward.7} parent=1 // pred_region
      _
    $region5: #{net_forward.7} parent=1 // pred_fallthru
      _
    // Predicated region
    $region6: #{net_forward.7} parent=1 // pred_check
      _
    $region7: #{net_forward.7} parent=1 // pred_check_branch
      %14 = sbr.rel (0) target = $region9
    $region8: #{net_forward.7} parent=1 // pred_region
      _
    $region9: #{net_forward.7} parent=1 // pred_fallthru
      _
    // Predicated region
    $region10: #{net_forward.7} parent=1 // pred_check
      _
    $region11: #{net_forward.7} parent=1 // pred_check_branch
      %16 = sbr.rel (0) target = $region13
    $region12: #{net_forward.7} parent=1 // pred_region
      _
    $region13: #{net_forward.7} parent=1 // pred_fallthru
      _
    // Predicated region
    $region14: #{net_forward.7} parent=1 // pred_check
      _
    $region15: #{net_forward.7} parent=1 // pred_check_branch
      %18 = sbr.rel (0) target = $region17
    $region16: #{net_forward.7} parent=1 // pred_region
      _
    $region17: #{net_forward.7} parent=1 // pred_fallthru
      _
    // Predicated region
    $region18: #{net_forward.7} parent=1 // pred_check
      _
    $region19: #{net_forward.7} parent=1 // pred_check_branch
      %20 = sbr.rel (0) target = $region21
    $region20: #{net_forward.7} parent=1 // pred_region
      _
    $region21: #{net_forward.7} parent=1 // pred_fallthru
      _
    %v22 = vld [vmem:[%s0] sm:$0xff]
    %v23 = vld [vmem:[%s0 + $0x8] sm:$0xff]
    %v24 = vld [vmem:[%s0 + $0x10] sm:$0xff]
    %v25 = vld [vmem:[%s0 + $0x18] sm:$0x1]
    %v26 = vld [vmem:[%s0 + $0x19] sm:$0xff]
    %v27 = vld [vmem:[%s0 + $0x21] sm:$0xff]
    %v28 = vld [vmem:[%s0 + $0x29] sm:$0xff]
    %v29 = vld [vmem:[%s0 + $0x31] sm:$0x1]
    %v30 = vld [vmem:[%s0 + $0x32] sm:$0xff]
    %v31 = vld [vmem:[%s0 + $0x3a] sm:$0xff]
    %v32 = vld [vmem:[%s0 + $0x42] sm:$0xff]
    %v33 = vld [vmem:[%s0 + $0x4a] sm:$0x1]
    %v34 = vld [vmem:[%s0 + $0x4b] sm:$0xff]
    %v35 = vld [vmem:[%s0 + $0x53] sm:$0xff]
    %v36 = vld [vmem:[%s0 + $0x5b] sm:$0xff]
    %v37 = vld [vmem:[%s0 + $0x63] sm:$0x1]
    %v38 = vld [vmem:[%s0 + $0x64] sm:$0xff]
    %v39 = vld [vmem:[%s0 + $0x6c] sm:$0xff]
    %v40 = vld [vmem:[%s0 + $0x74] sm:$0xff]
    %v41 = vld [vmem:[%s0 + $0x7c] sm:$0x1]
    %v42 = vld [vmem:[%s0 + $0x7d] sm:$0xff]
    %v43 = vld [vmem:[%s0 + $0x85] sm:$0xff]
    %v44 = vld [vmem:[%s0 + $0x8d] sm:$0xff]
    %v45 = vld [vmem:[%s0 + $0x95] sm:$0x1]
    %v46 = vld [vmem:[%s0 + $0x96] sm:$0xff]
    %v47 = vld [vmem:[%s0 + $0x9e] sm:$0xff]
    %v48 = vld [vmem:[%s0 + $0xa6] sm:$0xff]
    %v49 = vld [vmem:[%s0 + $0xae] sm:$0x1]
    %v50 = vld [vmem:[%s0 + $0xaf] sm:$0xff]
    %v51 = vld [vmem:[%s0 + $0xb7] sm:$0xff]
    %v52 = vld [vmem:[%s0 + $0xbf] sm:$0xff]
    %v53 = vld [vmem:[%s0 + $0xc7] sm:$0x1]
    %v54 = vld [vmem:[%s1] sm:$0xff]
    %v55 = vld [vmem:[%s1 + $0x8] sm:$0xff]
    %v56 = vld [vmem:[%s1 + $0x10] sm:$0xff]
    %v57 = vld [vmem:[%s1 + $0x18] sm:$0xff]
    %v58 = vld [vmem:[%s1 + $0x20] sm:$0xff]
    %v59 = vld [vmem:[%s1 + $0x28] sm:$0xff]
    %v60 = vld [vmem:[%s1 + $0x30] sm:$0xff]
    %v61 = vld [vmem:[%s1 + $0x38] sm:$0xff]
    %v62 = vld [vmem:[%s1 + $0x40] sm:$0xff]
    %v63 = vld [vmem:[%s1 + $0x48] sm:$0xff]
    %v64 = vld [vmem:[%s1 + $0x50] sm:$0xff]
    %v65 = vld [vmem:[%s1 + $0x58] sm:$0xff]
    %v66 = vld [vmem:[%s1 + $0x60] sm:$0xff]
    %v67 = vld [vmem:[%s1 + $0x68] sm:$0xff]
    %v68 = vld [vmem:[%s1 + $0x70] sm:$0xff]
    %v69 = vld [vmem:[%s1 + $0x78] sm:$0xff]
    %v70 = vld [vmem:[%s1 + $0x80] sm:$0xff]
    %v71 = vld [vmem:[%s1 + $0x88] sm:$0xff]
    %v72 = vld [vmem:[%s1 + $0x90] sm:$0xff]
    %v73 = vld [vmem:[%s1 + $0x98] sm:$0xff]
    %v74 = vld [vmem:[%s1 + $0xa0] sm:$0xff]
    %v75 = vld [vmem:[%s1 + $0xa8] sm:$0xff]
    %v76 = vld [vmem:[%s1 + $0xb0] sm:$0xff]
    %v77 = vld [vmem:[%s1 + $0xb8] sm:$0xff]
    %v78 = vld [vmem:[%s1 + $0xc0] sm:$0xff]
    %v79 = vld [vmem:[%s1 + $0xc8] sm:$0xff]
    %v80 = vld [vmem:[%s1 + $0xd0] sm:$0xff]
    %v81 = vld [vmem:[%s1 + $0xd8] sm:$0xff]
    %v82 = vld [vmem:[%s1 + $0xe0] sm:$0xff]
    %v83 = vld [vmem:[%s1 + $0xe8] sm:$0xff]
    %v84 = vld [vmem:[%s1 + $0xf0] sm:$0xff]
    %v85 = vld [vmem:[%s1 + $0xf8] sm:$0xff]
    %v86 = vld [vmem:[%s1 + $0x100] sm:$0xff]
    %v87 = vld [vmem:[%s1 + $0x108] sm:$0xff]
    %v88 = vld [vmem:[%s1 + $0x110] sm:$0xff]
    %v89 = vld [vmem:[%s1 + $0x118] sm:$0xff]
    %v90 = vld [vmem:[%s1 + $0x120] sm:$0xff]
    %v91 = vld [vmem:[%s1 + $0x128] sm:$0xff]
    %v92 = vld [vmem:[%s1 + $0x130] sm:$0xff]
    %v93 = vld [vmem:[%s1 + $0x138] sm:$0xff]
    %v94 = vld [vmem:[%s1 + $0x140] sm:$0xff]
    %v95 = vld [vmem:[%s1 + $0x148] sm:$0xff]
    %v96 = vld [vmem:[%s1 + $0x150] sm:$0xff]
    %v97 = vld [vmem:[%s1 + $0x158] sm:$0xff]
    %v98 = vld [vmem:[%s1 + $0x160] sm:$0xff]
    %v99 = vld [vmem:[%s1 + $0x168] sm:$0xff]
    %v100 = vld [vmem:[%s1 + $0x170] sm:$0xff]
    %v101 = vld [vmem:[%s1 + $0x178] sm:$0xff]
    %v102 = vld [vmem:[%s1 + $0x180] sm:$0xff]
    %v103 = vld [vmem:[%s1 + $0x188] sm:$0xff]
    %v104 = vld [vmem:[%s1 + $0x190] sm:$0xff]
    %v105 = vld [vmem:[%s1 + $0x198] sm:$0xff]
    %v106 = vld [vmem:[%s1 + $0x1a0] sm:$0xff]
    %v107 = vld [vmem:[%s1 + $0x1a8] sm:$0xff]
    %v108 = vld [vmem:[%s1 + $0x1b0] sm:$0xff]
    %v109 = vld [vmem:[%s1 + $0x1b8] sm:$0xff]
    %v110 = vld [vmem:[%s1 + $0x1c0] sm:$0xff]
    %v111 = vld [vmem:[%s1 + $0x1c8] sm:$0xff]
    %v112 = vld [vmem:[%s1 + $0x1d0] sm:$0xff]
    %v113 = vld [vmem:[%s1 + $0x1d8] sm:$0xff]
    %v114 = vld [vmem:[%s1 + $0x1e0] sm:$0xff]
    %v115 = vld [vmem:[%s1 + $0x1e8] sm:$0xff]
    %v116 = vld [vmem:[%s1 + $0x1f0] sm:$0xff]
    %v117 = vld [vmem:[%s1 + $0x1f8] sm:$0xff]
    %v118 = vld [vmem:[%s1 + $0x200] sm:$0xff]
    %v119 = vld [vmem:[%s1 + $0x208] sm:$0xff]
    %v120 = vld [vmem:[%s1 + $0x210] sm:$0xff]
    %v121 = vld [vmem:[%s1 + $0x218] sm:$0xff]
    %v122 = vld [vmem:[%s1 + $0x220] sm:$0xff]
    %v123 = vld [vmem:[%s1 + $0x228] sm:$0xff]
    %v124 = vld [vmem:[%s1 + $0x230] sm:$0xff]
    %v125 = vld [vmem:[%s1 + $0x238] sm:$0xff]
    %v126 = vld [vmem:[%s1 + $0x240] sm:$0xff]
    %v127 = vld [vmem:[%s1 + $0x248] sm:$0xff]
    %v128 = vld [vmem:[%s1 + $0x250] sm:$0xff]
    %v129 = vld [vmem:[%s1 + $0x258] sm:$0xff]
    %v130 = vld [vmem:[%s1 + $0x260] sm:$0xff]
    %v131 = vld [vmem:[%s1 + $0x268] sm:$0xff]
    %v132 = vld [vmem:[%s1 + $0x270] sm:$0xff]
    %v133 = vld [vmem:[%s1 + $0x278] sm:$0xff]
    %v134 = vld [vmem:[%s1 + $0x280] sm:$0xff]
    %v135 = vld [vmem:[%s1 + $0x288] sm:$0xff]
    %v136 = vld [vmem:[%s1 + $0x290] sm:$0xff]
    %v137 = vld [vmem:[%s1 + $0x298] sm:$0xff]
    %v138 = vld [vmem:[%s1 + $0x2a0] sm:$0xff]
    %v139 = vld [vmem:[%s1 + $0x2a8] sm:$0xff]
    %v140 = vld [vmem:[%s1 + $0x2b0] sm:$0xff]
    %v141 = vld [vmem:[%s1 + $0x2b8] sm:$0xff]
    %v142 = vld [vmem:[%s1 + $0x2c0] sm:$0xff]
    %v143 = vld [vmem:[%s1 + $0x2c8] sm:$0xff]
    %v144 = vld [vmem:[%s1 + $0x2d0] sm:$0xff]
    %v145 = vld [vmem:[%s1 + $0x2d8] sm:$0xff]
    %v146 = vld [vmem:[%s1 + $0x2e0] sm:$0xff]
    %v147 = vld [vmem:[%s1 + $0x2e8] sm:$0xff]
    %v148 = vld [vmem:[%s1 + $0x2f0] sm:$0xff]
    %v149 = vld [vmem:[%s1 + $0x2f8] sm:$0xff]
    %v150 = vld [vmem:[%s1 + $0x300] sm:$0xff]
    %v151 = vld [vmem:[%s1 + $0x308] sm:$0xff]
    %v152 = vld [vmem:[%s1 + $0x310] sm:$0xff]
    %v153 = vld [vmem:[%s1 + $0x318] sm:$0xff]
    %v154 = vld [vmem:[%s1 + $0x320] sm:$0xff]
    %v155 = vld [vmem:[%s1 + $0x328] sm:$0xff]
    %v156 = vld [vmem:[%s1 + $0x330] sm:$0xff]
    %v157 = vld [vmem:[%s1 + $0x338] sm:$0xff]
    %v158 = vld [vmem:[%s1 + $0x340] sm:$0xff]
    %v159 = vld [vmem:[%s1 + $0x348] sm:$0xff]
    %v160 = vld [vmem:[%s1 + $0x350] sm:$0xff]
    %v161 = vld [vmem:[%s1 + $0x358] sm:$0xff]
    %v162 = vld [vmem:[%s1 + $0x360] sm:$0xff]
    %v163 = vld [vmem:[%s1 + $0x368] sm:$0xff]
    %v164 = vld [vmem:[%s1 + $0x370] sm:$0xff]
    %v165 = vld [vmem:[%s1 + $0x378] sm:$0xff]
    %v166 = vld [vmem:[%s1 + $0x380] sm:$0xff]
    %v167 = vld [vmem:[%s1 + $0x388] sm:$0xff]
    %v168 = vld [vmem:[%s1 + $0x390] sm:$0xff]
    %v169 = vld [vmem:[%s1 + $0x398] sm:$0xff]
    %v170 = vld [vmem:[%s1 + $0x3a0] sm:$0xff]
    %v171 = vld [vmem:[%s1 + $0x3a8] sm:$0xff]
    %v172 = vld [vmem:[%s1 + $0x3b0] sm:$0xff]
    %v173 = vld [vmem:[%s1 + $0x3b8] sm:$0xff]
    %v174 = vld [vmem:[%s1 + $0x3c0] sm:$0xff]
    %v175 = vld [vmem:[%s1 + $0x3c8] sm:$0xff]
    %v176 = vld [vmem:[%s1 + $0x3d0] sm:$0xff]
    %v177 = vld [vmem:[%s1 + $0x3d8] sm:$0xff]
    %v178 = vld [vmem:[%s1 + $0x3e0] sm:$0xff]
    %v179 = vld [vmem:[%s1 + $0x3e8] sm:$0xff]
    %v180 = vld [vmem:[%s1 + $0x3f0] sm:$0xff]
    %v181 = vld [vmem:[%s1 + $0x3f8] sm:$0xff]
    %v182 = vld [vmem:[%s1 + $0x400] sm:$0xff]
    %v183 = vld [vmem:[%s1 + $0x408] sm:$0xff]
    %v184 = vld [vmem:[%s1 + $0x410] sm:$0xff]
    %v185 = vld [vmem:[%s1 + $0x418] sm:$0xff]
    %v186 = vld [vmem:[%s1 + $0x420] sm:$0xff]
    %v187 = vld [vmem:[%s1 + $0x428] sm:$0xff]
    %v188 = vld [vmem:[%s1 + $0x430] sm:$0xff]
    %v189 = vld [vmem:[%s1 + $0x438] sm:$0xff]
    %v190 = vld [vmem:[%s1 + $0x440] sm:$0xff]
    %v191 = vld [vmem:[%s1 + $0x448] sm:$0xff]
    %v192 = vld [vmem:[%s1 + $0x450] sm:$0xff]
    %v193 = vld [vmem:[%s1 + $0x458] sm:$0xff]
    %v194 = vld [vmem:[%s1 + $0x460] sm:$0xff]
    %v195 = vld [vmem:[%s1 + $0x468] sm:$0xff]
    %v196 = vld [vmem:[%s1 + $0x470] sm:$0xff]
    %v197 = vld [vmem:[%s1 + $0x478] sm:$0xff]
    %v198 = vld [vmem:[%s1 + $0x480] sm:$0xff]
    %v199 = vld [vmem:[%s1 + $0x488] sm:$0xff]
    %v200 = vld [vmem:[%s1 + $0x490] sm:$0xff]
    %v201 = vld [vmem:[%s1 + $0x498] sm:$0xff]
    %v202 = vld [vmem:[%s1 + $0x4a0] sm:$0xff]
    %v203 = vld [vmem:[%s1 + $0x4a8] sm:$0xff]
    %v204 = vld [vmem:[%s1 + $0x4b0] sm:$0xff]
    %v205 = vld [vmem:[%s1 + $0x4b8] sm:$0xff]
    %v206 = vld [vmem:[%s1 + $0x4c0] sm:$0xff]
    %v207 = vld [vmem:[%s1 + $0x4c8] sm:$0xff]
    %v208 = vld [vmem:[%s1 + $0x4d0] sm:$0xff]
    %v209 = vld [vmem:[%s1 + $0x4d8] sm:$0xff]
    %v210 = vld [vmem:[%s1 + $0x4e0] sm:$0xff]
    %v211 = vld [vmem:[%s1 + $0x4e8] sm:$0xff]
    %v212 = vld [vmem:[%s1 + $0x4f0] sm:$0xff]
    %v213 = vld [vmem:[%s1 + $0x4f8] sm:$0xff]
    %v214 = vld [vmem:[%s1 + $0x500] sm:$0xff]
    %v215 = vld [vmem:[%s1 + $0x508] sm:$0xff]
    %v216 = vld [vmem:[%s1 + $0x510] sm:$0xff]
    %v217 = vld [vmem:[%s1 + $0x518] sm:$0xff]
    %v218 = vld [vmem:[%s1 + $0x520] sm:$0xff]
    %v219 = vld [vmem:[%s1 + $0x528] sm:$0xff]
    %v220 = vld [vmem:[%s1 + $0x530] sm:$0xff]
    %v221 = vld [vmem:[%s1 + $0x538] sm:$0xff]
    %v222 = vld [vmem:[%s1 + $0x540] sm:$0xff]
    %v223 = vld [vmem:[%s1 + $0x548] sm:$0xff]
    %v224 = vld [vmem:[%s1 + $0x550] sm:$0xff]
    %v225 = vld [vmem:[%s1 + $0x558] sm:$0xff]
    %v226 = vld [vmem:[%s1 + $0x560] sm:$0xff]
    %v227 = vld [vmem:[%s1 + $0x568] sm:$0xff]
    %v228 = vld [vmem:[%s1 + $0x570] sm:$0xff]
    %v229 = vld [vmem:[%s1 + $0x578] sm:$0xff]
    %v230 = vld [vmem:[%s1 + $0x580] sm:$0xff]
    %v231 = vld [vmem:[%s1 + $0x588] sm:$0xff]
    %v232 = vld [vmem:[%s1 + $0x590] sm:$0xff]
    %v233 = vld [vmem:[%s1 + $0x598] sm:$0xff]
    %v234 = vld [vmem:[%s1 + $0x5a0] sm:$0xff]
    %v235 = vld [vmem:[%s1 + $0x5a8] sm:$0xff]
    %v236 = vld [vmem:[%s1 + $0x5b0] sm:$0xff]
    %v237 = vld [vmem:[%s1 + $0x5b8] sm:$0xff]
    %v238 = vld [vmem:[%s1 + $0x5c0] sm:$0xff]
    %v239 = vld [vmem:[%s1 + $0x5c8] sm:$0xff]
    %v240 = vld [vmem:[%s1 + $0x5d0] sm:$0xff]
    %v241 = vld [vmem:[%s1 + $0x5d8] sm:$0xff]
    %v242 = vld [vmem:[%s1 + $0x5e0] sm:$0xff]
    %v243 = vld [vmem:[%s1 + $0x5e8] sm:$0xff]
    %v244 = vld [vmem:[%s1 + $0x5f0] sm:$0xff]
    %v245 = vld [vmem:[%s1 + $0x5f8] sm:$0xff]
    %v246 = vld [vmem:[%s1 + $0x600] sm:$0xff]
    %v247 = vld [vmem:[%s1 + $0x608] sm:$0xff]
    %v248 = vld [vmem:[%s1 + $0x610] sm:$0xff]
    %v249 = vld [vmem:[%s1 + $0x618] sm:$0xff]
    %v250 = vld [vmem:[%s1 + $0x620] sm:$0xff]
    %v251 = vld [vmem:[%s1 + $0x628] sm:$0xff]
    %v252 = vld [vmem:[%s1 + $0x630] sm:$0xff]
    %v253 = vld [vmem:[%s1 + $0x638] sm:$0xff]
    %v254 = vld [vmem:[%s1 + $0x640] sm:$0xff]
    %v255 = vld [vmem:[%s1 + $0x648] sm:$0xff]
    %v256 = vld [vmem:[%s1 + $0x650] sm:$0xff]
    %v257 = vld [vmem:[%s1 + $0x658] sm:$0xff]
    %v258 = vld [vmem:[%s1 + $0x660] sm:$0xff]
    %v259 = vld [vmem:[%s1 + $0x668] sm:$0xff]
    %v260 = vld [vmem:[%s1 + $0x670] sm:$0xff]
    %v261 = vld [vmem:[%s1 + $0x678] sm:$0xff]
    %v262 = vld [vmem:[%s1 + $0x680] sm:$0xff]
    %v263 = vld [vmem:[%s1 + $0x688] sm:$0xff]
    %v264 = vld [vmem:[%s1 + $0x690] sm:$0xff]
    %v265 = vld [vmem:[%s1 + $0x698] sm:$0xff]
    %v266 = vld [vmem:[%s1 + $0x6a0] sm:$0xff]
    %v267 = vld [vmem:[%s1 + $0x6a8] sm:$0xff]
    %v268 = vld [vmem:[%s1 + $0x6b0] sm:$0xff]
    %v269 = vld [vmem:[%s1 + $0x6b8] sm:$0xff]
    %v270 = vld [vmem:[%s1 + $0x6c0] sm:$0xff]
    %v271 = vld [vmem:[%s1 + $0x6c8] sm:$0xff]
    %v272 = vld [vmem:[%s1 + $0x6d0] sm:$0xff]
    %v273 = vld [vmem:[%s1 + $0x6d8] sm:$0xff]
    %v274 = vld [vmem:[%s1 + $0x6e0] sm:$0xff]
    %v275 = vld [vmem:[%s1 + $0x6e8] sm:$0xff]
    %v276 = vld [vmem:[%s1 + $0x6f0] sm:$0xff]
    %v277 = vld [vmem:[%s1 + $0x6f8] sm:$0xff]
    %v278 = vld [vmem:[%s1 + $0x700] sm:$0xff]
    %v279 = vld [vmem:[%s1 + $0x708] sm:$0xff]
    %v280 = vld [vmem:[%s1 + $0x710] sm:$0xff]
    %v281 = vld [vmem:[%s1 + $0x718] sm:$0xff]
    %v282 = vld [vmem:[%s1 + $0x720] sm:$0xff]
    %v283 = vld [vmem:[%s1 + $0x728] sm:$0xff]
    %v284 = vld [vmem:[%s1 + $0x730] sm:$0xff]
    %v285 = vld [vmem:[%s1 + $0x738] sm:$0xff]
    %v286 = vld [vmem:[%s1 + $0x740] sm:$0xff]
    %v287 = vld [vmem:[%s1 + $0x748] sm:$0xff]
    %v288 = vld [vmem:[%s1 + $0x750] sm:$0xff]
    %v289 = vld [vmem:[%s1 + $0x758] sm:$0xff]
    %v290 = vld [vmem:[%s1 + $0x760] sm:$0xff]
    %v291 = vld [vmem:[%s1 + $0x768] sm:$0xff]
    %v292 = vld [vmem:[%s1 + $0x770] sm:$0xff]
    %v293 = vld [vmem:[%s1 + $0x778] sm:$0xff]
    %v294 = vld [vmem:[%s1 + $0x780] sm:$0xff]
    %v295 = vld [vmem:[%s1 + $0x788] sm:$0xff]
    %v296 = vld [vmem:[%s1 + $0x790] sm:$0xff]
    %v297 = vld [vmem:[%s1 + $0x798] sm:$0xff]
    %v298 = vld [vmem:[%s1 + $0x7a0] sm:$0xff]
    %v299 = vld [vmem:[%s1 + $0x7a8] sm:$0xff]
    %v300 = vld [vmem:[%s1 + $0x7b0] sm:$0xff]
    %v301 = vld [vmem:[%s1 + $0x7b8] sm:$0xff]
    %v302 = vld [vmem:[%s1 + $0x7c0] sm:$0xff]
    %v303 = vld [vmem:[%s1 + $0x7c8] sm:$0xff]
    %v304 = vld [vmem:[%s1 + $0x7d0] sm:$0xff]
    %v305 = vld [vmem:[%s1 + $0x7d8] sm:$0xff]
    %v306 = vld [vmem:[%s1 + $0x7e0] sm:$0xff]
    %v307 = vld [vmem:[%s1 + $0x7e8] sm:$0xff]
    %v308 = vld [vmem:[%s1 + $0x7f0] sm:$0xff]
    %v309 = vld [vmem:[%s1 + $0x7f8] sm:$0xff]
    %v310 = vld [vmem:[%s1 + $0x800] sm:$0xff]
    %v311 = vld [vmem:[%s1 + $0x808] sm:$0xff]
    %v312 = vld [vmem:[%s1 + $0x810] sm:$0xff]
    %v313 = vld [vmem:[%s1 + $0x818] sm:$0xff]
    %v314 = vld [vmem:[%s1 + $0x820] sm:$0xff]
    %v315 = vld [vmem:[%s1 + $0x828] sm:$0xff]
    %v316 = vld [vmem:[%s1 + $0x830] sm:$0xff]
    %v317 = vld [vmem:[%s1 + $0x838] sm:$0xff]
    %v318 = vld [vmem:[%s1 + $0x840] sm:$0xff]
    %v319 = vld [vmem:[%s1 + $0x848] sm:$0xff]
    %v320 = vld [vmem:[%s1 + $0x850] sm:$0xff]
    %v321 = vld [vmem:[%s1 + $0x858] sm:$0xff]
    %v322 = vld [vmem:[%s1 + $0x860] sm:$0xff]
    %v323 = vld [vmem:[%s1 + $0x868] sm:$0xff]
    %v324 = vld [vmem:[%s1 + $0x870] sm:$0xff]
    %v325 = vld [vmem:[%s1 + $0x878] sm:$0xff]
    %v326 = vld [vmem:[%s1 + $0x880] sm:$0xff]
    %v327 = vld [vmem:[%s1 + $0x888] sm:$0xff]
    %v328 = vld [vmem:[%s1 + $0x890] sm:$0xff]
    %v329 = vld [vmem:[%s1 + $0x898] sm:$0xff]
    %v330 = vld [vmem:[%s1 + $0x8a0] sm:$0xff]
    %v331 = vld [vmem:[%s1 + $0x8a8] sm:$0xff]
    %v332 = vld [vmem:[%s1 + $0x8b0] sm:$0xff]
    %v333 = vld [vmem:[%s1 + $0x8b8] sm:$0xff]
    %v334 = vld [vmem:[%s1 + $0x8c0] sm:$0xff]
    %v335 = vld [vmem:[%s1 + $0x8c8] sm:$0xff]
    %v336 = vld [vmem:[%s1 + $0x8d0] sm:$0xff]
    %v337 = vld [vmem:[%s1 + $0x8d8] sm:$0xff]
    %v338 = vld [vmem:[%s1 + $0x8e0] sm:$0xff]
    %v339 = vld [vmem:[%s1 + $0x8e8] sm:$0xff]
    %v340 = vld [vmem:[%s1 + $0x8f0] sm:$0xff]
    %v341 = vld [vmem:[%s1 + $0x8f8] sm:$0xff]
    %v342 = vld [vmem:[%s1 + $0x900] sm:$0xff]
    %v343 = vld [vmem:[%s1 + $0x908] sm:$0xff]
    %v344 = vld [vmem:[%s1 + $0x910] sm:$0xff]
    %v345 = vld [vmem:[%s1 + $0x918] sm:$0xff]
    %v346 = vld [vmem:[%s1 + $0x920] sm:$0xff]
    %v347 = vld [vmem:[%s1 + $0x928] sm:$0xff]
    %v348 = vld [vmem:[%s1 + $0x930] sm:$0xff]
    %v349 = vld [vmem:[%s1 + $0x938] sm:$0xff]
    %v350 = vld [vmem:[%s1 + $0x940] sm:$0xff]
    %v351 = vld [vmem:[%s1 + $0x948] sm:$0xff]
    %v352 = vld [vmem:[%s1 + $0x950] sm:$0xff]
    %v353 = vld [vmem:[%s1 + $0x958] sm:$0xff]
    %v354 = vld [vmem:[%s1 + $0x960] sm:$0xff]
    %v355 = vld [vmem:[%s1 + $0x968] sm:$0xff]
    %v356 = vld [vmem:[%s1 + $0x970] sm:$0xff]
    %v357 = vld [vmem:[%s1 + $0x978] sm:$0xff]
    %v358 = vld [vmem:[%s1 + $0x980] sm:$0xff]
    %v359 = vld [vmem:[%s1 + $0x988] sm:$0xff]
    %v360 = vld [vmem:[%s1 + $0x990] sm:$0xff]
    %v361 = vld [vmem:[%s1 + $0x998] sm:$0xff]
    %v362 = vld [vmem:[%s1 + $0x9a0] sm:$0xff]
    %v363 = vld [vmem:[%s1 + $0x9a8] sm:$0xff]
    %v364 = vld [vmem:[%s1 + $0x9b0] sm:$0xff]
    %v365 = vld [vmem:[%s1 + $0x9b8] sm:$0xff]
    %v366 = vld [vmem:[%s1 + $0x9c0] sm:$0xff]
    %v367 = vld [vmem:[%s1 + $0x9c8] sm:$0xff]
    %v368 = vld [vmem:[%s1 + $0x9d0] sm:$0xff]
    %v369 = vld [vmem:[%s1 + $0x9d8] sm:$0xff]
    %v370 = vld [vmem:[%s1 + $0x9e0] sm:$0xff]
    %v371 = vld [vmem:[%s1 + $0x9e8] sm:$0xff]
    %v372 = vld [vmem:[%s1 + $0x9f0] sm:$0xff]
    %v373 = vld [vmem:[%s1 + $0x9f8] sm:$0xff]
    %v374 = vld [vmem:[%s1 + $0xa00] sm:$0xff]
    %v375 = vld [vmem:[%s1 + $0xa08] sm:$0xff]
    %v376 = vld [vmem:[%s1 + $0xa10] sm:$0xff]
    %v377 = vld [vmem:[%s1 + $0xa18] sm:$0xff]
    %v378 = vld [vmem:[%s1 + $0xa20] sm:$0xff]
    %v379 = vld [vmem:[%s1 + $0xa28] sm:$0xff]
    %v380 = vld [vmem:[%s1 + $0xa30] sm:$0xff]
    %v381 = vld [vmem:[%s1 + $0xa38] sm:$0xff]
    %v382 = vld [vmem:[%s1 + $0xa40] sm:$0xff]
    %v383 = vld [vmem:[%s1 + $0xa48] sm:$0xff]
    %v384 = vld [vmem:[%s1 + $0xa50] sm:$0xff]
    %v385 = vld [vmem:[%s1 + $0xa58] sm:$0xff]
    %v386 = vld [vmem:[%s1 + $0xa60] sm:$0xff]
    %v387 = vld [vmem:[%s1 + $0xa68] sm:$0xff]
    %v388 = vld [vmem:[%s1 + $0xa70] sm:$0xff]
    %v389 = vld [vmem:[%s1 + $0xa78] sm:$0xff]
    %v390 = vld [vmem:[%s1 + $0xa80] sm:$0xff]
    %v391 = vld [vmem:[%s1 + $0xa88] sm:$0xff]
    %v392 = vld [vmem:[%s1 + $0xa90] sm:$0xff]
    %v393 = vld [vmem:[%s1 + $0xa98] sm:$0xff]
    %v394 = vld [vmem:[%s1 + $0xaa0] sm:$0xff]
    %v395 = vld [vmem:[%s1 + $0xaa8] sm:$0xff]
    %v396 = vld [vmem:[%s1 + $0xab0] sm:$0xff]
    %v397 = vld [vmem:[%s1 + $0xab8] sm:$0xff]
    %v398 = vld [vmem:[%s1 + $0xac0] sm:$0xff]
    %v399 = vld [vmem:[%s1 + $0xac8] sm:$0xff]
    %v400 = vld [vmem:[%s1 + $0xad0] sm:$0xff]
    %v401 = vld [vmem:[%s1 + $0xad8] sm:$0xff]
    %v402 = vld [vmem:[%s1 + $0xae0] sm:$0xff]
    %v403 = vld [vmem:[%s1 + $0xae8] sm:$0xff]
    %v404 = vld [vmem:[%s1 + $0xaf0] sm:$0xff]
    %v405 = vld [vmem:[%s1 + $0xaf8] sm:$0xff]
    %v406 = vld [vmem:[%s1 + $0xb00] sm:$0xff]
    %v407 = vld [vmem:[%s1 + $0xb08] sm:$0xff]
    %v408 = vld [vmem:[%s1 + $0xb10] sm:$0xff]
    %v409 = vld [vmem:[%s1 + $0xb18] sm:$0xff]
    %v410 = vld [vmem:[%s1 + $0xb20] sm:$0xff]
    %v411 = vld [vmem:[%s1 + $0xb28] sm:$0xff]
    %v412 = vld [vmem:[%s1 + $0xb30] sm:$0xff]
    %v413 = vld [vmem:[%s1 + $0xb38] sm:$0xff]
    %v414 = vld [vmem:[%s1 + $0xb40] sm:$0xff]
    %v415 = vld [vmem:[%s1 + $0xb48] sm:$0xff]
    %v416 = vld [vmem:[%s1 + $0xb50] sm:$0xff]
    %v417 = vld [vmem:[%s1 + $0xb58] sm:$0xff]
    %v418 = vld [vmem:[%s1 + $0xb60] sm:$0xff]
    %v419 = vld [vmem:[%s1 + $0xb68] sm:$0xff]
    %v420 = vld [vmem:[%s1 + $0xb70] sm:$0xff]
    %v421 = vld [vmem:[%s1 + $0xb78] sm:$0xff]
    %v422 = vld [vmem:[%s1 + $0xb80] sm:$0xff]
    %v423 = vld [vmem:[%s1 + $0xb88] sm:$0xff]
    %v424 = vld [vmem:[%s1 + $0xb90] sm:$0xff]
    %v425 = vld [vmem:[%s1 + $0xb98] sm:$0xff]
    %v426 = vld [vmem:[%s1 + $0xba0] sm:$0xff]
    %v427 = vld [vmem:[%s1 + $0xba8] sm:$0xff]
    %v428 = vld [vmem:[%s1 + $0xbb0] sm:$0xff]
    %v429 = vld [vmem:[%s1 + $0xbb8] sm:$0xff]
    %v430 = vld [vmem:[%s1 + $0xbc0] sm:$0xff]
    %v431 = vld [vmem:[%s1 + $0xbc8] sm:$0xff]
    %v432 = vld [vmem:[%s1 + $0xbd0] sm:$0xff]
    %v433 = vld [vmem:[%s1 + $0xbd8] sm:$0xff]
    %v434 = vld [vmem:[%s1 + $0xbe0] sm:$0xff]
    %v435 = vld [vmem:[%s1 + $0xbe8] sm:$0xff]
    %v436 = vld [vmem:[%s1 + $0xbf0] sm:$0xff]
    %v437 = vld [vmem:[%s1 + $0xbf8] sm:$0xff]
    %v438 = vld [vmem:[%s1 + $0xc00] sm:$0xff]
    %v439 = vld [vmem:[%s1 + $0xc08] sm:$0xff]
    %v440 = vld [vmem:[%s1 + $0xc10] sm:$0xff]
    %v441 = vld [vmem:[%s1 + $0xc18] sm:$0xff]
    %v442 = vld [vmem:[%s1 + $0xc20] sm:$0xff]
    %v443 = vld [vmem:[%s1 + $0xc28] sm:$0xff]
    %v444 = vld [vmem:[%s1 + $0xc30] sm:$0xff]
    %v445 = vld [vmem:[%s1 + $0xc38] sm:$0xff]
    %v446 = vld [vmem:[%s1 + $0xc40] sm:$0xff]
    %v447 = vld [vmem:[%s1 + $0xc48] sm:$0xff]
    %v448 = vld [vmem:[%s1 + $0xc50] sm:$0xff]
    %v449 = vld [vmem:[%s1 + $0xc58] sm:$0xff]
    %v450 = vld [vmem:[%s1 + $0xc60] sm:$0xff]
    %v451 = vld [vmem:[%s1 + $0xc68] sm:$0xff]
    %v452 = vld [vmem:[%s1 + $0xc70] sm:$0xff]
    %v453 = vld [vmem:[%s1 + $0xc78] sm:$0xff]
    %v454 = vld [vmem:[%s1 + $0xc80] sm:$0xff]
    %v455 = vld [vmem:[%s1 + $0xc88] sm:$0xff]
    %v456 = vld [vmem:[%s1 + $0xc90] sm:$0xff]
    %v457 = vld [vmem:[%s1 + $0xc98] sm:$0xff]
    %v458 = vld [vmem:[%s1 + $0xca0] sm:$0xff]
    %v459 = vld [vmem:[%s1 + $0xca8] sm:$0xff]
    %v460 = vld [vmem:[%s1 + $0xcb0] sm:$0xff]
    %v461 = vld [vmem:[%s1 + $0xcb8] sm:$0xff]
    %v462 = vld [vmem:[%s1 + $0xcc0] sm:$0xff]
    %v463 = vld [vmem:[%s1 + $0xcc8] sm:$0xff]
    %v464 = vld [vmem:[%s1 + $0xcd0] sm:$0xff]
    %v465 = vld [vmem:[%s1 + $0xcd8] sm:$0xff]
    %v466 = vld [vmem:[%s1 + $0xce0] sm:$0xff]
    %v467 = vld [vmem:[%s1 + $0xce8] sm:$0xff]
    %v468 = vld [vmem:[%s1 + $0xcf0] sm:$0xff]
    %v469 = vld [vmem:[%s1 + $0xcf8] sm:$0xff]
    %v470 = vld [vmem:[%s1 + $0xd00] sm:$0xff]
    %v471 = vld [vmem:[%s1 + $0xd08] sm:$0xff]
    %v472 = vld [vmem:[%s1 + $0xd10] sm:$0xff]
    %v473 = vld [vmem:[%s1 + $0xd18] sm:$0xff]
    %v474 = vld [vmem:[%s1 + $0xd20] sm:$0xff]
    %v475 = vld [vmem:[%s1 + $0xd28] sm:$0xff]
    %v476 = vld [vmem:[%s1 + $0xd30] sm:$0xff]
    %v477 = vld [vmem:[%s1 + $0xd38] sm:$0xff]
    %v478 = vld [vmem:[%s1 + $0xd40] sm:$0xff]
    %v479 = vld [vmem:[%s1 + $0xd48] sm:$0xff]
    %v480 = vld [vmem:[%s1 + $0xd50] sm:$0xff]
    %v481 = vld [vmem:[%s1 + $0xd58] sm:$0xff]
    %v482 = vld [vmem:[%s1 + $0xd60] sm:$0xff]
    %v483 = vld [vmem:[%s1 + $0xd68] sm:$0xff]
    %v484 = vld [vmem:[%s1 + $0xd70] sm:$0xff]
    %v485 = vld [vmem:[%s1 + $0xd78] sm:$0xff]
    %v486 = vld [vmem:[%s1 + $0xd80] sm:$0xff]
    %v487 = vld [vmem:[%s1 + $0xd88] sm:$0xff]
    %v488 = vld [vmem:[%s1 + $0xd90] sm:$0xff]
    %v489 = vld [vmem:[%s1 + $0xd98] sm:$0xff]
    %v490 = vld [vmem:[%s1 + $0xda0] sm:$0xff]
    %v491 = vld [vmem:[%s1 + $0xda8] sm:$0xff]
    %v492 = vld [vmem:[%s1 + $0xdb0] sm:$0xff]
    %v493 = vld [vmem:[%s1 + $0xdb8] sm:$0xff]
    %v494 = vld [vmem:[%s1 + $0xdc0] sm:$0xff]
    %v495 = vld [vmem:[%s1 + $0xdc8] sm:$0xff]
    %v496 = vld [vmem:[%s1 + $0xdd0] sm:$0xff]
    %v497 = vld [vmem:[%s1 + $0xdd8] sm:$0xff]
    %v498 = vld [vmem:[%s1 + $0xde0] sm:$0xff]
    %v499 = vld [vmem:[%s1 + $0xde8] sm:$0xff]
    %v500 = vld [vmem:[%s1 + $0xdf0] sm:$0xff]
    %v501 = vld [vmem:[%s1 + $0xdf8] sm:$0xff]
    %v502 = vld [vmem:[%s1 + $0xe00] sm:$0xff]
    %v503 = vld [vmem:[%s1 + $0xe08] sm:$0xff]
    %v504 = vld [vmem:[%s1 + $0xe10] sm:$0xff]
    %v505 = vld [vmem:[%s1 + $0xe18] sm:$0xff]
    %v506 = vld [vmem:[%s1 + $0xe20] sm:$0xff]
    %v507 = vld [vmem:[%s1 + $0xe28] sm:$0xff]
    %v508 = vld [vmem:[%s1 + $0xe30] sm:$0xff]
    %v509 = vld [vmem:[%s1 + $0xe38] sm:$0xff]
    %v510 = vld [vmem:[%s1 + $0xe40] sm:$0xff]
    %v511 = vld [vmem:[%s1 + $0xe48] sm:$0xff]
    %v512 = vld [vmem:[%s1 + $0xe50] sm:$0xff]
    %v513 = vld [vmem:[%s1 + $0xe58] sm:$0xff]
    %v514 = vld [vmem:[%s1 + $0xe60] sm:$0xff]
    %v515 = vld [vmem:[%s1 + $0xe68] sm:$0xff]
    %v516 = vld [vmem:[%s1 + $0xe70] sm:$0xff]
    %v517 = vld [vmem:[%s1 + $0xe78] sm:$0xff]
    %v518 = vld [vmem:[%s1 + $0xe80] sm:$0xff]
    %v519 = vld [vmem:[%s1 + $0xe88] sm:$0xff]
    %v520 = vld [vmem:[%s1 + $0xe90] sm:$0xff]
    %v521 = vld [vmem:[%s1 + $0xe98] sm:$0xff]
    %v522 = vld [vmem:[%s1 + $0xea0] sm:$0xff]
    %v523 = vld [vmem:[%s1 + $0xea8] sm:$0xff]
    %v524 = vld [vmem:[%s1 + $0xeb0] sm:$0xff]
    %v525 = vld [vmem:[%s1 + $0xeb8] sm:$0xff]
    %v526 = vld [vmem:[%s1 + $0xec0] sm:$0xff]
    %v527 = vld [vmem:[%s1 + $0xec8] sm:$0xff]
    %v528 = vld [vmem:[%s1 + $0xed0] sm:$0xff]
    %v529 = vld [vmem:[%s1 + $0xed8] sm:$0xff]
    %v530 = vld [vmem:[%s1 + $0xee0] sm:$0xff]
    %v531 = vld [vmem:[%s1 + $0xee8] sm:$0xff]
    %v532 = vld [vmem:[%s1 + $0xef0] sm:$0xff]
    %v533 = vld [vmem:[%s1 + $0xef8] sm:$0xff]
    %v534 = vld [vmem:[%s1 + $0xf00] sm:$0xff]
    %v535 = vld [vmem:[%s1 + $0xf08] sm:$0xff]
    %v536 = vld [vmem:[%s1 + $0xf10] sm:$0xff]
    %v537 = vld [vmem:[%s1 + $0xf18] sm:$0xff]
    %v538 = vld [vmem:[%s1 + $0xf20] sm:$0xff]
    %v539 = vld [vmem:[%s1 + $0xf28] sm:$0xff]
    %v540 = vld [vmem:[%s1 + $0xf30] sm:$0xff]
    %v541 = vld [vmem:[%s1 + $0xf38] sm:$0xff]
    %v542 = vld [vmem:[%s1 + $0xf40] sm:$0xff]
    %v543 = vld [vmem:[%s1 + $0xf48] sm:$0xff]
    %v544 = vld [vmem:[%s1 + $0xf50] sm:$0xff]
    %v545 = vld [vmem:[%s1 + $0xf58] sm:$0xff]
    %v546 = vld [vmem:[%s1 + $0xf60] sm:$0xff]
    %v547 = vld [vmem:[%s1 + $0xf68] sm:$0xff]
    %v548 = vld [vmem:[%s1 + $0xf70] sm:$0xff]
    %v549 = vld [vmem:[%s1 + $0xf78] sm:$0xff]
    %v550 = vld [vmem:[%s1 + $0xf80] sm:$0xff]
    %v551 = vld [vmem:[%s1 + $0xf88] sm:$0xff]
    %v552 = vld [vmem:[%s1 + $0xf90] sm:$0xff]
    %v553 = vld [vmem:[%s1 + $0xf98] sm:$0xff]
    %v554 = vld [vmem:[%s1 + $0xfa0] sm:$0xff]
    %v555 = vld [vmem:[%s1 + $0xfa8] sm:$0xff]
    %v556 = vld [vmem:[%s1 + $0xfb0] sm:$0xff]
    %v557 = vld [vmem:[%s1 + $0xfb8] sm:$0xff]
    %v558 = vld [vmem:[%s1 + $0xfc0] sm:$0xff]
    %v559 = vld [vmem:[%s1 + $0xfc8] sm:$0xff]
    %v560 = vld [vmem:[%s1 + $0xfd0] sm:$0xff]
    %v561 = vld [vmem:[%s1 + $0xfd8] sm:$0xff]
    %v562 = vld [vmem:[%s1 + $0xfe0] sm:$0xff]
    %v563 = vld [vmem:[%s1 + $0xfe8] sm:$0xff]
    %v564 = vld [vmem:[%s1 + $0xff0] sm:$0xff]
    %v565 = vld [vmem:[%s1 + $0xff8] sm:$0xff]
    %v566 = vld [vmem:[%s1 + $0x1000] sm:$0xff]
    %v567 = vld [vmem:[%s1 + $0x1008] sm:$0xff]
    %v568 = vld [vmem:[%s1 + $0x1010] sm:$0xff]
    %v569 = vld [vmem:[%s1 + $0x1018] sm:$0xff]
    %v570 = vld [vmem:[%s1 + $0x1020] sm:$0xff]
    %v571 = vld [vmem:[%s1 + $0x1028] sm:$0xff]
    %v572 = vld [vmem:[%s1 + $0x1030] sm:$0xff]
    %v573 = vld [vmem:[%s1 + $0x1038] sm:$0xff]
    %v574 = vld [vmem:[%s1 + $0x1040] sm:$0xff]
    %v575 = vld [vmem:[%s1 + $0x1048] sm:$0xff]
    %v576 = vld [vmem:[%s1 + $0x1050] sm:$0xff]
    %v577 = vld [vmem:[%s1 + $0x1058] sm:$0xff]
    %v578 = vld [vmem:[%s1 + $0x1060] sm:$0xff]
    %v579 = vld [vmem:[%s1 + $0x1068] sm:$0xff]
    %v580 = vld [vmem:[%s1 + $0x1070] sm:$0xff]
    %v581 = vld [vmem:[%s1 + $0x1078] sm:$0xff]
    %v582 = vld [vmem:[%s1 + $0x1080] sm:$0xff]
    %v583 = vld [vmem:[%s1 + $0x1088] sm:$0xff]
    %v584 = vld [vmem:[%s1 + $0x1090] sm:$0xff]
    %v585 = vld [vmem:[%s1 + $0x1098] sm:$0xff]
    %v586 = vld [vmem:[%s1 + $0x10a0] sm:$0xff]
    %v587 = vld [vmem:[%s1 + $0x10a8] sm:$0xff]
    %v588 = vld [vmem:[%s1 + $0x10b0] sm:$0xff]
    %v589 = vld [vmem:[%s1 + $0x10b8] sm:$0xff]
    %v590 = vld [vmem:[%s1 + $0x10c0] sm:$0xff]
    %v591 = vld [vmem:[%s1 + $0x10c8] sm:$0xff]
    %v592 = vld [vmem:[%s1 + $0x10d0] sm:$0xff]
    %v593 = vld [vmem:[%s1 + $0x10d8] sm:$0xff]
    %v594 = vld [vmem:[%s1 + $0x10e0] sm:$0xff]
    %v595 = vld [vmem:[%s1 + $0x10e8] sm:$0xff]
    %v596 = vld [vmem:[%s1 + $0x10f0] sm:$0xff]
    %v597 = vld [vmem:[%s1 + $0x10f8] sm:$0xff]
    %v598 = vld [vmem:[%s1 + $0x1100] sm:$0xff]
    %v599 = vld [vmem:[%s1 + $0x1108] sm:$0xff]
    %v600 = vld [vmem:[%s1 + $0x1110] sm:$0xff]
    %v601 = vld [vmem:[%s1 + $0x1118] sm:$0xff]
    %v602 = vld [vmem:[%s1 + $0x1120] sm:$0xff]
    %v603 = vld [vmem:[%s1 + $0x1128] sm:$0xff]
    %v604 = vld [vmem:[%s1 + $0x1130] sm:$0xff]
    %v605 = vld [vmem:[%s1 + $0x1138] sm:$0xff]
    %v606 = vld [vmem:[%s1 + $0x1140] sm:$0xff]
    %v607 = vld [vmem:[%s1 + $0x1148] sm:$0xff]
    %v608 = vld [vmem:[%s1 + $0x1150] sm:$0xff]
    %v609 = vld [vmem:[%s1 + $0x1158] sm:$0xff]
    %v610 = vld [vmem:[%s1 + $0x1160] sm:$0xff]
    %v611 = vld [vmem:[%s1 + $0x1168] sm:$0xff]
    %v612 = vld [vmem:[%s1 + $0x1170] sm:$0xff]
    %v613 = vld [vmem:[%s1 + $0x1178] sm:$0xff]
    %v614 = vld [vmem:[%s1 + $0x1180] sm:$0xff]
    %v615 = vld [vmem:[%s1 + $0x1188] sm:$0xff]
    %v616 = vld [vmem:[%s1 + $0x1190] sm:$0xff]
    %v617 = vld [vmem:[%s1 + $0x1198] sm:$0xff]
    %v618 = vld [vmem:[%s1 + $0x11a0] sm:$0xff]
    %v619 = vld [vmem:[%s1 + $0x11a8] sm:$0xff]
    %v620 = vld [vmem:[%s1 + $0x11b0] sm:$0xff]
    %v621 = vld [vmem:[%s1 + $0x11b8] sm:$0xff]
    %v622 = vld [vmem:[%s1 + $0x11c0] sm:$0xff]
    %v623 = vld [vmem:[%s1 + $0x11c8] sm:$0xff]
    %v624 = vld [vmem:[%s1 + $0x11d0] sm:$0xff]
    %v625 = vld [vmem:[%s1 + $0x11d8] sm:$0xff]
    %v626 = vld [vmem:[%s1 + $0x11e0] sm:$0xff]
    %v627 = vld [vmem:[%s1 + $0x11e8] sm:$0xff]
    %v628 = vld [vmem:[%s1 + $0x11f0] sm:$0xff]
    %v629 = vld [vmem:[%s1 + $0x11f8] sm:$0xff]
    %v630 = vld [vmem:[%s1 + $0x1200] sm:$0xff]
    %v631 = vld [vmem:[%s1 + $0x1208] sm:$0xff]
    %v632 = vld [vmem:[%s1 + $0x1210] sm:$0xff]
    %v633 = vld [vmem:[%s1 + $0x1218] sm:$0xff]
    %v634 = vld [vmem:[%s1 + $0x1220] sm:$0xff]
    %v635 = vld [vmem:[%s1 + $0x1228] sm:$0xff]
    %v636 = vld [vmem:[%s1 + $0x1230] sm:$0xff]
    %v637 = vld [vmem:[%s1 + $0x1238] sm:$0xff]
    %v638 = vld [vmem:[%s1 + $0x1240] sm:$0xff]
    %v639 = vld [vmem:[%s1 + $0x1248] sm:$0xff]
    %v640 = vld [vmem:[%s1 + $0x1250] sm:$0xff]
    %v641 = vld [vmem:[%s1 + $0x1258] sm:$0xff]
    %v642 = vld [vmem:[%s1 + $0x1260] sm:$0xff]
    %v643 = vld [vmem:[%s1 + $0x1268] sm:$0xff]
    %v644 = vld [vmem:[%s1 + $0x1270] sm:$0xff]
    %v645 = vld [vmem:[%s1 + $0x1278] sm:$0xff]
    %v646 = vld [vmem:[%s1 + $0x1280] sm:$0xff]
    %v647 = vld [vmem:[%s1 + $0x1288] sm:$0xff]
    %v648 = vld [vmem:[%s1 + $0x1290] sm:$0xff]
    %v649 = vld [vmem:[%s1 + $0x1298] sm:$0xff]
    %v650 = vld [vmem:[%s1 + $0x12a0] sm:$0xff]
    %v651 = vld [vmem:[%s1 + $0x12a8] sm:$0xff]
    %v652 = vld [vmem:[%s1 + $0x12b0] sm:$0xff]
    %v653 = vld [vmem:[%s1 + $0x12b8] sm:$0xff]
    %v654 = vld [vmem:[%s1 + $0x12c0] sm:$0xff]
    %v655 = vld [vmem:[%s1 + $0x12c8] sm:$0xff]
    %v656 = vld [vmem:[%s1 + $0x12d0] sm:$0xff]
    %v657 = vld [vmem:[%s1 + $0x12d8] sm:$0xff]
    %v658 = vld [vmem:[%s1 + $0x12e0] sm:$0xff]
    %v659 = vld [vmem:[%s1 + $0x12e8] sm:$0xff]
    %v660 = vld [vmem:[%s1 + $0x12f0] sm:$0xff]
    %v661 = vld [vmem:[%s1 + $0x12f8] sm:$0xff]
    %v662 = vld [vmem:[%s1 + $0x1300] sm:$0xff]
    %v663 = vld [vmem:[%s1 + $0x1308] sm:$0xff]
    %v664 = vld [vmem:[%s1 + $0x1310] sm:$0xff]
    %v665 = vld [vmem:[%s1 + $0x1318] sm:$0xff]
    %v666 = vld [vmem:[%s1 + $0x1320] sm:$0xff]
    %v667 = vld [vmem:[%s1 + $0x1328] sm:$0xff]
    %v668 = vld [vmem:[%s1 + $0x1330] sm:$0xff]
    %v669 = vld [vmem:[%s1 + $0x1338] sm:$0xff]
    %v670 = vld [vmem:[%s1 + $0x1340] sm:$0xff]
    %v671 = vld [vmem:[%s1 + $0x1348] sm:$0xff]
    %v672 = vld [vmem:[%s1 + $0x1350] sm:$0xff]
    %v673 = vld [vmem:[%s1 + $0x1358] sm:$0xff]
    %v674 = vld [vmem:[%s1 + $0x1360] sm:$0xff]
    %v675 = vld [vmem:[%s1 + $0x1368] sm:$0xff]
    %v676 = vld [vmem:[%s1 + $0x1370] sm:$0xff]
    %v677 = vld [vmem:[%s1 + $0x1378] sm:$0xff]
    %v678 = vld [vmem:[%s1 + $0x1380] sm:$0xff]
    %v679 = vld [vmem:[%s1 + $0x1388] sm:$0xff]
    %v680 = vld [vmem:[%s1 + $0x1390] sm:$0xff]
    %v681 = vld [vmem:[%s1 + $0x1398] sm:$0xff]
    %v682 = vld [vmem:[%s1 + $0x13a0] sm:$0xff]
    %v683 = vld [vmem:[%s1 + $0x13a8] sm:$0xff]
    %v684 = vld [vmem:[%s1 + $0x13b0] sm:$0xff]
    %v685 = vld [vmem:[%s1 + $0x13b8] sm:$0xff]
    %v686 = vld [vmem:[%s1 + $0x13c0] sm:$0xff]
    %v687 = vld [vmem:[%s1 + $0x13c8] sm:$0xff]
    %v688 = vld [vmem:[%s1 + $0x13d0] sm:$0xff]
    %v689 = vld [vmem:[%s1 + $0x13d8] sm:$0xff]
    %v690 = vld [vmem:[%s1 + $0x13e0] sm:$0xff]
    %v691 = vld [vmem:[%s1 + $0x13e8] sm:$0xff]
    %v692 = vld [vmem:[%s1 + $0x13f0] sm:$0xff]
    %v693 = vld [vmem:[%s1 + $0x13f8] sm:$0xff]
    %v694 = vld [vmem:[%s1 + $0x1400] sm:$0xff]
    %v695 = vld [vmem:[%s1 + $0x1408] sm:$0xff]
    %v696 = vld [vmem:[%s1 + $0x1410] sm:$0xff]
    %v697 = vld [vmem:[%s1 + $0x1418] sm:$0xff]
    %v698 = vld [vmem:[%s1 + $0x1420] sm:$0xff]
    %v699 = vld [vmem:[%s1 + $0x1428] sm:$0xff]
    %v700 = vld [vmem:[%s1 + $0x1430] sm:$0xff]
    %v701 = vld [vmem:[%s1 + $0x1438] sm:$0xff]
    %v702 = vld [vmem:[%s1 + $0x1440] sm:$0xff]
    %v703 = vld [vmem:[%s1 + $0x1448] sm:$0xff]
    %v704 = vld [vmem:[%s1 + $0x1450] sm:$0xff]
    %v705 = vld [vmem:[%s1 + $0x1458] sm:$0xff]
    %v706 = vld [vmem:[%s1 + $0x1460] sm:$0xff]
    %v707 = vld [vmem:[%s1 + $0x1468] sm:$0xff]
    %v708 = vld [vmem:[%s1 + $0x1470] sm:$0xff]
    %v709 = vld [vmem:[%s1 + $0x1478] sm:$0xff]
    %v710 = vld [vmem:[%s1 + $0x1480] sm:$0xff]
    %v711 = vld [vmem:[%s1 + $0x1488] sm:$0xff]
    %v712 = vld [vmem:[%s1 + $0x1490] sm:$0xff]
    %v713 = vld [vmem:[%s1 + $0x1498] sm:$0xff]
    %v714 = vld [vmem:[%s1 + $0x14a0] sm:$0xff]
    %v715 = vld [vmem:[%s1 + $0x14a8] sm:$0xff]
    %v716 = vld [vmem:[%s1 + $0x14b0] sm:$0xff]
    %v717 = vld [vmem:[%s1 + $0x14b8] sm:$0xff]
    %v718 = vld [vmem:[%s1 + $0x14c0] sm:$0xff]
    %v719 = vld [vmem:[%s1 + $0x14c8] sm:$0xff]
    %v720 = vld [vmem:[%s1 + $0x14d0] sm:$0xff]
    %v721 = vld [vmem:[%s1 + $0x14d8] sm:$0xff]
    %v722 = vld [vmem:[%s1 + $0x14e0] sm:$0xff]
    %v723 = vld [vmem:[%s1 + $0x14e8] sm:$0xff]
    %v724 = vld [vmem:[%s1 + $0x14f0] sm:$0xff]
    %v725 = vld [vmem:[%s1 + $0x14f8] sm:$0xff]
    %v726 = vld [vmem:[%s1 + $0x1500] sm:$0xff]
    %v727 = vld [vmem:[%s1 + $0x1508] sm:$0xff]
    %v728 = vld [vmem:[%s1 + $0x1510] sm:$0xff]
    %v729 = vld [vmem:[%s1 + $0x1518] sm:$0xff]
    %v730 = vld [vmem:[%s1 + $0x1520] sm:$0xff]
    %v731 = vld [vmem:[%s1 + $0x1528] sm:$0xff]
    %v732 = vld [vmem:[%s1 + $0x1530] sm:$0xff]
    %v733 = vld [vmem:[%s1 + $0x1538] sm:$0xff]
    %v734 = vld [vmem:[%s1 + $0x1540] sm:$0xff]
    %v735 = vld [vmem:[%s1 + $0x1548] sm:$0xff]
    %v736 = vld [vmem:[%s1 + $0x1550] sm:$0xff]
    %v737 = vld [vmem:[%s1 + $0x1558] sm:$0xff]
    %v738 = vld [vmem:[%s1 + $0x1560] sm:$0xff]
    %v739 = vld [vmem:[%s1 + $0x1568] sm:$0xff]
    %v740 = vld [vmem:[%s1 + $0x1570] sm:$0xff]
    %v741 = vld [vmem:[%s1 + $0x1578] sm:$0xff]
    %v742 = vld [vmem:[%s1 + $0x1580] sm:$0xff]
    %v743 = vld [vmem:[%s1 + $0x1588] sm:$0xff]
    %v744 = vld [vmem:[%s1 + $0x1590] sm:$0xff]
    %v745 = vld [vmem:[%s1 + $0x1598] sm:$0xff]
    %v746 = vld [vmem:[%s1 + $0x15a0] sm:$0xff]
    %v747 = vld [vmem:[%s1 + $0x15a8] sm:$0xff]
    %v748 = vld [vmem:[%s1 + $0x15b0] sm:$0xff]
    %v749 = vld [vmem:[%s1 + $0x15b8] sm:$0xff]
    %v750 = vld [vmem:[%s1 + $0x15c0] sm:$0xff]
    %v751 = vld [vmem:[%s1 + $0x15c8] sm:$0xff]
    %v752 = vld [vmem:[%s1 + $0x15d0] sm:$0xff]
    %v753 = vld [vmem:[%s1 + $0x15d8] sm:$0xff]
    %v754 = vld [vmem:[%s1 + $0x15e0] sm:$0xff]
    %v755 = vld [vmem:[%s1 + $0x15e8] sm:$0xff]
    %v756 = vld [vmem:[%s1 + $0x15f0] sm:$0xff]
    %v757 = vld [vmem:[%s1 + $0x15f8] sm:$0xff]
    %v758 = vld [vmem:[%s1 + $0x1600] sm:$0xff]
    %v759 = vld [vmem:[%s1 + $0x1608] sm:$0xff]
    %v760 = vld [vmem:[%s1 + $0x1610] sm:$0xff]
    %v761 = vld [vmem:[%s1 + $0x1618] sm:$0xff]
    %v762 = vld [vmem:[%s1 + $0x1620] sm:$0xff]
    %v763 = vld [vmem:[%s1 + $0x1628] sm:$0xff]
    %v764 = vld [vmem:[%s1 + $0x1630] sm:$0xff]
    %v765 = vld [vmem:[%s1 + $0x1638] sm:$0xff]
    %v766 = vld [vmem:[%s1 + $0x1640] sm:$0xff]
    %v767 = vld [vmem:[%s1 + $0x1648] sm:$0xff]
    %v768 = vld [vmem:[%s1 + $0x1650] sm:$0xff]
    %v769 = vld [vmem:[%s1 + $0x1658] sm:$0xff]
    %v770 = vld [vmem:[%s1 + $0x1660] sm:$0xff]
    %v771 = vld [vmem:[%s1 + $0x1668] sm:$0xff]
    %v772 = vld [vmem:[%s1 + $0x1670] sm:$0xff]
    %v773 = vld [vmem:[%s1 + $0x1678] sm:$0xff]
    %v774 = vld [vmem:[%s1 + $0x1680] sm:$0xff]
    %v775 = vld [vmem:[%s1 + $0x1688] sm:$0xff]
    %v776 = vld [vmem:[%s1 + $0x1690] sm:$0xff]
    %v777 = vld [vmem:[%s1 + $0x1698] sm:$0xff]
    %v778 = vld [vmem:[%s1 + $0x16a0] sm:$0xff]
    %v779 = vld [vmem:[%s1 + $0x16a8] sm:$0xff]
    %v780 = vld [vmem:[%s1 + $0x16b0] sm:$0xff]
    %v781 = vld [vmem:[%s1 + $0x16b8] sm:$0xff]
    %v782 = vld [vmem:[%s1 + $0x16c0] sm:$0xff]
    %v783 = vld [vmem:[%s1 + $0x16c8] sm:$0xff]
    %v784 = vld [vmem:[%s1 + $0x16d0] sm:$0xff]
    %v785 = vld [vmem:[%s1 + $0x16d8] sm:$0xff]
    %v786 = vld [vmem:[%s1 + $0x16e0] sm:$0xff]
    %v787 = vld [vmem:[%s1 + $0x16e8] sm:$0xff]
    %v788 = vld [vmem:[%s1 + $0x16f0] sm:$0xff]
    %v789 = vld [vmem:[%s1 + $0x16f8] sm:$0xff]
    %v790 = vld [vmem:[%s1 + $0x1700] sm:$0xff]
    %v791 = vld [vmem:[%s1 + $0x1708] sm:$0xff]
    %v792 = vld [vmem:[%s1 + $0x1710] sm:$0xff]
    %v793 = vld [vmem:[%s1 + $0x1718] sm:$0xff]
    %v794 = vld [vmem:[%s1 + $0x1720] sm:$0xff]
    %v795 = vld [vmem:[%s1 + $0x1728] sm:$0xff]
    %v796 = vld [vmem:[%s1 + $0x1730] sm:$0xff]
    %v797 = vld [vmem:[%s1 + $0x1738] sm:$0xff]
    %v798 = vld [vmem:[%s1 + $0x1740] sm:$0xff]
    %v799 = vld [vmem:[%s1 + $0x1748] sm:$0xff]
    %v800 = vld [vmem:[%s1 + $0x1750] sm:$0xff]
    %v801 = vld [vmem:[%s1 + $0x1758] sm:$0xff]
    %v802 = vld [vmem:[%s1 + $0x1760] sm:$0xff]
    %v803 = vld [vmem:[%s1 + $0x1768] sm:$0xff]
    %v804 = vld [vmem:[%s1 + $0x1770] sm:$0xff]
    %v805 = vld [vmem:[%s1 + $0x1778] sm:$0xff]
    %v806 = vld [vmem:[%s1 + $0x1780] sm:$0xff]
    %v807 = vld [vmem:[%s1 + $0x1788] sm:$0xff]
    %v808 = vld [vmem:[%s1 + $0x1790] sm:$0xff]
    %v809 = vld [vmem:[%s1 + $0x1798] sm:$0xff]
    %v810 = vld [vmem:[%s1 + $0x17a0] sm:$0xff]
    %v811 = vld [vmem:[%s1 + $0x17a8] sm:$0xff]
    %v812 = vld [vmem:[%s1 + $0x17b0] sm:$0xff]
    %v813 = vld [vmem:[%s1 + $0x17b8] sm:$0xff]
    %v814 = vld [vmem:[%s1 + $0x17c0] sm:$0xff]
    %v815 = vld [vmem:[%s1 + $0x17c8] sm:$0xff]
    %v816 = vld [vmem:[%s1 + $0x17d0] sm:$0xff]
    %v817 = vld [vmem:[%s1 + $0x17d8] sm:$0xff]
    %v818 = vld [vmem:[%s1 + $0x17e0] sm:$0xff]
    %v819 = vld [vmem:[%s1 + $0x17e8] sm:$0xff]
    %v820 = vld [vmem:[%s1 + $0x17f0] sm:$0xff]
    %v821 = vld [vmem:[%s1 + $0x17f8] sm:$0xff]
    %v822 = vld [vmem:[%s1 + $0x1800] sm:$0xff]
    %v823 = vld [vmem:[%s1 + $0x1808] sm:$0xff]
    %v824 = vld [vmem:[%s1 + $0x1810] sm:$0xff]
    %v825 = vld [vmem:[%s1 + $0x1818] sm:$0xff]
    %v826 = vld [vmem:[%s1 + $0x1820] sm:$0xff]
    %v827 = vld [vmem:[%s1 + $0x1828] sm:$0xff]
    %v828 = vld [vmem:[%s1 + $0x1830] sm:$0xff]
    %v829 = vld [vmem:[%s1 + $0x1838] sm:$0xff]
    %v830 = vld [vmem:[%s1 + $0x1840] sm:$0xff]
    %v831 = vld [vmem:[%s1 + $0x1848] sm:$0xff]
    %v832 = vld [vmem:[%s1 + $0x1850] sm:$0xff]
    %v833 = vld [vmem:[%s1 + $0x1858] sm:$0xff]
    %v834 = vld [vmem:[%s1 + $0x1860] sm:$0xff]
    %v835 = vld [vmem:[%s1 + $0x1868] sm:$0xff]
    %v836 = vld [vmem:[%s1 + $0x1870] sm:$0xff]
    %v837 = vld [vmem:[%s1 + $0x1878] sm:$0xff]
    %v838 = vld [vmem:[%s2] sm:$0xf]
    %v840 = vlaneseq
    %v841 = vshrl.u32 %v840, 7
    %v842 = vsub.s32 0, %v841
    %v843 = vrot.slane %v838, %v842
    %v844 = vlaneseq
    %v845 = vshrl.u32 %v844, 7
    %v846 = vsub.s32 1, %v845
    %v847 = vrot.slane %v838, %v846
    %v848 = vlaneseq
    %v849 = vshrl.u32 %v848, 7
    %v850 = vsub.s32 2, %v849
    %v851 = vrot.slane %v838, %v850
    %v852 = vlaneseq
    %v853 = vshrl.u32 %v852, 7
    %v854 = vsub.s32 3, %v853
    %v855 = vrot.slane %v838, %v854
    %v892 = vcombine.low %v22, %v26
    %v893 = vcombine.high %v22, %v26
    %v894 = vcombine.low %v30, %v34
    %v895 = vcombine.high %v30, %v34
    %v896 = vcombine.low %v38, %v42
    %v897 = vcombine.high %v38, %v42
    %v898 = vcombine.low %v46, %v50
    %v899 = vcombine.high %v46, %v50
    %v901 = vunpack.c.l.s4 1966171168
    %v902 = vunpack.c.0.s8 %v901
    %v903 = vlaneseq
    %v904 = vshrl.u32 %v903, 7
    %v905 = vsub.s32 %v902, %v904
    %v906 = vrot.slane %v892, %v905
    %v908 = vunpack.c.l.s4 1966171168
    %v909 = vunpack.c.0.s8 %v908
    %v910 = vlaneseq
    %v911 = vshrl.u32 %v910, 7
    %v912 = vsub.s32 %v909, %v911
    %v913 = vrot.slane %v893, %v912
    %v915 = vunpack.c.l.s4 1966171168
    %v916 = vunpack.c.0.s8 %v915
    %v917 = vlaneseq
    %v918 = vshrl.u32 %v917, 7
    %v919 = vsub.s32 %v916, %v918
    %v920 = vrot.slane %v894, %v919
    %v922 = vunpack.c.l.s4 1966171168
    %v923 = vunpack.c.0.s8 %v922
    %v924 = vlaneseq
    %v925 = vshrl.u32 %v924, 7
    %v926 = vsub.s32 %v923, %v925
    %v927 = vrot.slane %v895, %v926
    %v929 = vunpack.c.l.s4 1966171168
    %v930 = vunpack.c.0.s8 %v929
    %v931 = vlaneseq
    %v932 = vshrl.u32 %v931, 7
    %v933 = vsub.s32 %v930, %v932
    %v934 = vrot.slane %v896, %v933
    %v936 = vunpack.c.l.s4 1966171168
    %v937 = vunpack.c.0.s8 %v936
    %v938 = vlaneseq
    %v939 = vshrl.u32 %v938, 7
    %v940 = vsub.s32 %v937, %v939
    %v941 = vrot.slane %v897, %v940
    %v943 = vunpack.c.l.s4 1966171168
    %v944 = vunpack.c.0.s8 %v943
    %v945 = vlaneseq
    %v946 = vshrl.u32 %v945, 7
    %v947 = vsub.s32 %v944, %v946
    %v948 = vrot.slane %v898, %v947
    %v950 = vunpack.c.l.s4 1966171168
    %v951 = vunpack.c.0.s8 %v950
    %v952 = vlaneseq
    %v953 = vshrl.u32 %v952, 7
    %v954 = vsub.s32 %v951, %v953
    %v955 = vrot.slane %v899, %v954
    %v956 = vcombine.low %v906, %v920
    %v957 = vcombine.high %v906, %v920
    %v958 = vcombine.low %v913, %v927
    %v959 = vcombine.high %v913, %v927
    %v960 = vcombine.low %v934, %v948
    %v961 = vcombine.high %v934, %v948
    %v962 = vcombine.low %v941, %v955
    %v963 = vcombine.high %v941, %v955
    %v965 = vunpack.c.l.s4 1966171168
    %v966 = vunpack.c.0.s8 %v965
    %v967 = vlaneseq
    %v968 = vshrl.u32 %v967, 7
    %v969 = vsub.s32 %v966, %v968
    %v970 = vrot.slane %v956, %v969
    %v972 = vunpack.c.l.s4 1966171168
    %v973 = vunpack.c.0.s8 %v972
    %v974 = vlaneseq
    %v975 = vshrl.u32 %v974, 7
    %v976 = vsub.s32 %v973, %v975
    %v977 = vrot.slane %v958, %v976
    %v979 = vunpack.c.l.s4 1966171168
    %v980 = vunpack.c.0.s8 %v979
    %v981 = vlaneseq
    %v982 = vshrl.u32 %v981, 7
    %v983 = vsub.s32 %v980, %v982
    %v984 = vrot.slane %v957, %v983
    %v986 = vunpack.c.l.s4 1966171168
    %v987 = vunpack.c.0.s8 %v986
    %v988 = vlaneseq
    %v989 = vshrl.u32 %v988, 7
    %v990 = vsub.s32 %v987, %v989
    %v991 = vrot.slane %v959, %v990
    %v993 = vunpack.c.l.s4 1966171168
    %v994 = vunpack.c.0.s8 %v993
    %v995 = vlaneseq
    %v996 = vshrl.u32 %v995, 7
    %v997 = vsub.s32 %v994, %v996
    %v998 = vrot.slane %v960, %v997
    %v1000 = vunpack.c.l.s4 1966171168
    %v1001 = vunpack.c.0.s8 %v1000
    %v1002 = vlaneseq
    %v1003 = vshrl.u32 %v1002, 7
    %v1004 = vsub.s32 %v1001, %v1003
    %v1005 = vrot.slane %v962, %v1004
    %v1007 = vunpack.c.l.s4 1966171168
    %v1008 = vunpack.c.0.s8 %v1007
    %v1009 = vlaneseq
    %v1010 = vshrl.u32 %v1009, 7
    %v1011 = vsub.s32 %v1008, %v1010
    %v1012 = vrot.slane %v961, %v1011
    %v1014 = vunpack.c.l.s4 1966171168
    %v1015 = vunpack.c.0.s8 %v1014
    %v1016 = vlaneseq
    %v1017 = vshrl.u32 %v1016, 7
    %v1018 = vsub.s32 %v1015, %v1017
    %v1019 = vrot.slane %v963, %v1018
    %v1020 = vcombine.low %v970, %v998
    %v1021 = vcombine.high %v970, %v998
    %v1022 = vcombine.low %v977, %v1005
    %v1023 = vcombine.high %v977, %v1005
    %v1024 = vcombine.low %v984, %v1012
    %v1025 = vcombine.high %v984, %v1012
    %v1026 = vcombine.low %v991, %v1019
    %v1027 = vcombine.high %v991, %v1019
    %v1028 = vcombine.low %v23, %v27
    %v1029 = vcombine.high %v23, %v27
    %v1030 = vcombine.low %v31, %v35
    %v1031 = vcombine.high %v31, %v35
    %v1032 = vcombine.low %v39, %v43
    %v1033 = vcombine.high %v39, %v43
    %v1034 = vcombine.low %v47, %v51
    %v1035 = vcombine.high %v47, %v51
    %v1037 = vunpack.c.l.s4 1966171168
    %v1038 = vunpack.c.0.s8 %v1037
    %v1039 = vlaneseq
    %v1040 = vshrl.u32 %v1039, 7
    %v1041 = vsub.s32 %v1038, %v1040
    %v1042 = vrot.slane %v1028, %v1041
    %v1044 = vunpack.c.l.s4 1966171168
    %v1045 = vunpack.c.0.s8 %v1044
    %v1046 = vlaneseq
    %v1047 = vshrl.u32 %v1046, 7
    %v1048 = vsub.s32 %v1045, %v1047
    %v1049 = vrot.slane %v1029, %v1048
    %v1051 = vunpack.c.l.s4 1966171168
    %v1052 = vunpack.c.0.s8 %v1051
    %v1053 = vlaneseq
    %v1054 = vshrl.u32 %v1053, 7
    %v1055 = vsub.s32 %v1052, %v1054
    %v1056 = vrot.slane %v1030, %v1055
    %v1058 = vunpack.c.l.s4 1966171168
    %v1059 = vunpack.c.0.s8 %v1058
    %v1060 = vlaneseq
    %v1061 = vshrl.u32 %v1060, 7
    %v1062 = vsub.s32 %v1059, %v1061
    %v1063 = vrot.slane %v1031, %v1062
    %v1065 = vunpack.c.l.s4 1966171168
    %v1066 = vunpack.c.0.s8 %v1065
    %v1067 = vlaneseq
    %v1068 = vshrl.u32 %v1067, 7
    %v1069 = vsub.s32 %v1066, %v1068
    %v1070 = vrot.slane %v1032, %v1069
    %v1072 = vunpack.c.l.s4 1966171168
    %v1073 = vunpack.c.0.s8 %v1072
    %v1074 = vlaneseq
    %v1075 = vshrl.u32 %v1074, 7
    %v1076 = vsub.s32 %v1073, %v1075
    %v1077 = vrot.slane %v1033, %v1076
    %v1079 = vunpack.c.l.s4 1966171168
    %v1080 = vunpack.c.0.s8 %v1079
    %v1081 = vlaneseq
    %v1082 = vshrl.u32 %v1081, 7
    %v1083 = vsub.s32 %v1080, %v1082
    %v1084 = vrot.slane %v1034, %v1083
    %v1086 = vunpack.c.l.s4 1966171168
    %v1087 = vunpack.c.0.s8 %v1086
    %v1088 = vlaneseq
    %v1089 = vshrl.u32 %v1088, 7
    %v1090 = vsub.s32 %v1087, %v1089
    %v1091 = vrot.slane %v1035, %v1090
    %v1092 = vcombine.low %v1042, %v1056
    %v1093 = vcombine.high %v1042, %v1056
    %v1094 = vcombine.low %v1049, %v1063
    %v1095 = vcombine.high %v1049, %v1063
    %v1096 = vcombine.low %v1070, %v1084
    %v1097 = vcombine.high %v1070, %v1084
    %v1098 = vcombine.low %v1077, %v1091
    %v1099 = vcombine.high %v1077, %v1091
    %v1101 = vunpack.c.l.s4 1966171168
    %v1102 = vunpack.c.0.s8 %v1101
    %v1103 = vlaneseq
    %v1104 = vshrl.u32 %v1103, 7
    %v1105 = vsub.s32 %v1102, %v1104
    %v1106 = vrot.slane %v1092, %v1105
    %v1108 = vunpack.c.l.s4 1966171168
    %v1109 = vunpack.c.0.s8 %v1108
    %v1110 = vlaneseq
    %v1111 = vshrl.u32 %v1110, 7
    %v1112 = vsub.s32 %v1109, %v1111
    %v1113 = vrot.slane %v1094, %v1112
    %v1115 = vunpack.c.l.s4 1966171168
    %v1116 = vunpack.c.0.s8 %v1115
    %v1117 = vlaneseq
    %v1118 = vshrl.u32 %v1117, 7
    %v1119 = vsub.s32 %v1116, %v1118
    %v1120 = vrot.slane %v1093, %v1119
    %v1122 = vunpack.c.l.s4 1966171168
    %v1123 = vunpack.c.0.s8 %v1122
    %v1124 = vlaneseq
    %v1125 = vshrl.u32 %v1124, 7
    %v1126 = vsub.s32 %v1123, %v1125
    %v1127 = vrot.slane %v1095, %v1126
    %v1129 = vunpack.c.l.s4 1966171168
    %v1130 = vunpack.c.0.s8 %v1129
    %v1131 = vlaneseq
    %v1132 = vshrl.u32 %v1131, 7
    %v1133 = vsub.s32 %v1130, %v1132
    %v1134 = vrot.slane %v1096, %v1133
    %v1136 = vunpack.c.l.s4 1966171168
    %v1137 = vunpack.c.0.s8 %v1136
    %v1138 = vlaneseq
    %v1139 = vshrl.u32 %v1138, 7
    %v1140 = vsub.s32 %v1137, %v1139
    %v1141 = vrot.slane %v1098, %v1140
    %v1143 = vunpack.c.l.s4 1966171168
    %v1144 = vunpack.c.0.s8 %v1143
    %v1145 = vlaneseq
    %v1146 = vshrl.u32 %v1145, 7
    %v1147 = vsub.s32 %v1144, %v1146
    %v1148 = vrot.slane %v1097, %v1147
    %v1150 = vunpack.c.l.s4 1966171168
    %v1151 = vunpack.c.0.s8 %v1150
    %v1152 = vlaneseq
    %v1153 = vshrl.u32 %v1152, 7
    %v1154 = vsub.s32 %v1151, %v1153
    %v1155 = vrot.slane %v1099, %v1154
    %v1156 = vcombine.low %v1106, %v1134
    %v1157 = vcombine.high %v1106, %v1134
    %v1158 = vcombine.low %v1113, %v1141
    %v1159 = vcombine.high %v1113, %v1141
    %v1160 = vcombine.low %v1120, %v1148
    %v1161 = vcombine.high %v1120, %v1148
    %v1162 = vcombine.low %v1127, %v1155
    %v1163 = vcombine.high %v1127, %v1155
    %v1164 = vcombine.low %v24, %v28
    %v1165 = vcombine.high %v24, %v28
    %v1166 = vcombine.low %v32, %v36
    %v1167 = vcombine.high %v32, %v36
    %v1168 = vcombine.low %v40, %v44
    %v1169 = vcombine.high %v40, %v44
    %v1170 = vcombine.low %v48, %v52
    %v1171 = vcombine.high %v48, %v52
    %v1173 = vunpack.c.l.s4 1966171168
    %v1174 = vunpack.c.0.s8 %v1173
    %v1175 = vlaneseq
    %v1176 = vshrl.u32 %v1175, 7
    %v1177 = vsub.s32 %v1174, %v1176
    %v1178 = vrot.slane %v1164, %v1177
    %v1180 = vunpack.c.l.s4 1966171168
    %v1181 = vunpack.c.0.s8 %v1180
    %v1182 = vlaneseq
    %v1183 = vshrl.u32 %v1182, 7
    %v1184 = vsub.s32 %v1181, %v1183
    %v1185 = vrot.slane %v1165, %v1184
    %v1187 = vunpack.c.l.s4 1966171168
    %v1188 = vunpack.c.0.s8 %v1187
    %v1189 = vlaneseq
    %v1190 = vshrl.u32 %v1189, 7
    %v1191 = vsub.s32 %v1188, %v1190
    %v1192 = vrot.slane %v1166, %v1191
    %v1194 = vunpack.c.l.s4 1966171168
    %v1195 = vunpack.c.0.s8 %v1194
    %v1196 = vlaneseq
    %v1197 = vshrl.u32 %v1196, 7
    %v1198 = vsub.s32 %v1195, %v1197
    %v1199 = vrot.slane %v1167, %v1198
    %v1201 = vunpack.c.l.s4 1966171168
    %v1202 = vunpack.c.0.s8 %v1201
    %v1203 = vlaneseq
    %v1204 = vshrl.u32 %v1203, 7
    %v1205 = vsub.s32 %v1202, %v1204
    %v1206 = vrot.slane %v1168, %v1205
    %v1208 = vunpack.c.l.s4 1966171168
    %v1209 = vunpack.c.0.s8 %v1208
    %v1210 = vlaneseq
    %v1211 = vshrl.u32 %v1210, 7
    %v1212 = vsub.s32 %v1209, %v1211
    %v1213 = vrot.slane %v1169, %v1212
    %v1215 = vunpack.c.l.s4 1966171168
    %v1216 = vunpack.c.0.s8 %v1215
    %v1217 = vlaneseq
    %v1218 = vshrl.u32 %v1217, 7
    %v1219 = vsub.s32 %v1216, %v1218
    %v1220 = vrot.slane %v1170, %v1219
    %v1222 = vunpack.c.l.s4 1966171168
    %v1223 = vunpack.c.0.s8 %v1222
    %v1224 = vlaneseq
    %v1225 = vshrl.u32 %v1224, 7
    %v1226 = vsub.s32 %v1223, %v1225
    %v1227 = vrot.slane %v1171, %v1226
    %v1228 = vcombine.low %v1178, %v1192
    %v1229 = vcombine.high %v1178, %v1192
    %v1230 = vcombine.low %v1185, %v1199
    %v1231 = vcombine.high %v1185, %v1199
    %v1232 = vcombine.low %v1206, %v1220
    %v1233 = vcombine.high %v1206, %v1220
    %v1234 = vcombine.low %v1213, %v1227
    %v1235 = vcombine.high %v1213, %v1227
    %v1237 = vunpack.c.l.s4 1966171168
    %v1238 = vunpack.c.0.s8 %v1237
    %v1239 = vlaneseq
    %v1240 = vshrl.u32 %v1239, 7
    %v1241 = vsub.s32 %v1238, %v1240
    %v1242 = vrot.slane %v1228, %v1241
    %v1244 = vunpack.c.l.s4 1966171168
    %v1245 = vunpack.c.0.s8 %v1244
    %v1246 = vlaneseq
    %v1247 = vshrl.u32 %v1246, 7
    %v1248 = vsub.s32 %v1245, %v1247
    %v1249 = vrot.slane %v1230, %v1248
    %v1251 = vunpack.c.l.s4 1966171168
    %v1252 = vunpack.c.0.s8 %v1251
    %v1253 = vlaneseq
    %v1254 = vshrl.u32 %v1253, 7
    %v1255 = vsub.s32 %v1252, %v1254
    %v1256 = vrot.slane %v1229, %v1255
    %v1258 = vunpack.c.l.s4 1966171168
    %v1259 = vunpack.c.0.s8 %v1258
    %v1260 = vlaneseq
    %v1261 = vshrl.u32 %v1260, 7
    %v1262 = vsub.s32 %v1259, %v1261
    %v1263 = vrot.slane %v1231, %v1262
    %v1265 = vunpack.c.l.s4 1966171168
    %v1266 = vunpack.c.0.s8 %v1265
    %v1267 = vlaneseq
    %v1268 = vshrl.u32 %v1267, 7
    %v1269 = vsub.s32 %v1266, %v1268
    %v1270 = vrot.slane %v1232, %v1269
    %v1272 = vunpack.c.l.s4 1966171168
    %v1273 = vunpack.c.0.s8 %v1272
    %v1274 = vlaneseq
    %v1275 = vshrl.u32 %v1274, 7
    %v1276 = vsub.s32 %v1273, %v1275
    %v1277 = vrot.slane %v1234, %v1276
    %v1279 = vunpack.c.l.s4 1966171168
    %v1280 = vunpack.c.0.s8 %v1279
    %v1281 = vlaneseq
    %v1282 = vshrl.u32 %v1281, 7
    %v1283 = vsub.s32 %v1280, %v1282
    %v1284 = vrot.slane %v1233, %v1283
    %v1286 = vunpack.c.l.s4 1966171168
    %v1287 = vunpack.c.0.s8 %v1286
    %v1288 = vlaneseq
    %v1289 = vshrl.u32 %v1288, 7
    %v1290 = vsub.s32 %v1287, %v1289
    %v1291 = vrot.slane %v1235, %v1290
    %v1292 = vcombine.low %v1242, %v1270
    %v1293 = vcombine.high %v1242, %v1270
    %v1294 = vcombine.low %v1249, %v1277
    %v1295 = vcombine.high %v1249, %v1277
    %v1296 = vcombine.low %v1256, %v1284
    %v1297 = vcombine.high %v1256, %v1284
    %v1298 = vcombine.low %v1263, %v1291
    %v1299 = vcombine.high %v1263, %v1291
    %v1300 = vcombine.low %v25, %v29
    %v1301 = vcombine.low %v33, %v37
    %v1302 = vcombine.low %v41, %v45
    %v1303 = vcombine.low %v49, %v53
    %v1305 = vunpack.c.l.s4 1966171168
    %v1306 = vunpack.c.0.s8 %v1305
    %v1307 = vlaneseq
    %v1308 = vshrl.u32 %v1307, 7
    %v1309 = vsub.s32 %v1306, %v1308
    %v1310 = vrot.slane %v1300, %v1309
    %v1312 = vunpack.c.l.s4 1966171168
    %v1313 = vunpack.c.0.s8 %v1312
    %v1314 = vlaneseq
    %v1315 = vshrl.u32 %v1314, 7
    %v1316 = vsub.s32 %v1313, %v1315
    %v1317 = vrot.slane %v1301, %v1316
    %v1319 = vunpack.c.l.s4 1966171168
    %v1320 = vunpack.c.0.s8 %v1319
    %v1321 = vlaneseq
    %v1322 = vshrl.u32 %v1321, 7
    %v1323 = vsub.s32 %v1320, %v1322
    %v1324 = vrot.slane %v1302, %v1323
    %v1326 = vunpack.c.l.s4 1966171168
    %v1327 = vunpack.c.0.s8 %v1326
    %v1328 = vlaneseq
    %v1329 = vshrl.u32 %v1328, 7
    %v1330 = vsub.s32 %v1327, %v1329
    %v1331 = vrot.slane %v1303, %v1330
    %v1332 = vcombine.low %v1310, %v1317
    %v1333 = vcombine.low %v1324, %v1331
    %v1335 = vunpack.c.l.s4 1966171168
    %v1336 = vunpack.c.0.s8 %v1335
    %v1337 = vlaneseq
    %v1338 = vshrl.u32 %v1337, 7
    %v1339 = vsub.s32 %v1336, %v1338
    %v1340 = vrot.slane %v1332, %v1339
    %v1342 = vunpack.c.l.s4 1966171168
    %v1343 = vunpack.c.0.s8 %v1342
    %v1344 = vlaneseq
    %v1345 = vshrl.u32 %v1344, 7
    %v1346 = vsub.s32 %v1343, %v1345
    %v1347 = vrot.slane %v1333, %v1346
    %v1348 = vcombine.low %v1340, %v1347
    %v2157 = vunpack.c.l.b16 %v54
    %v2158 = vunpack.c.h.b16 %v54
    %v2159 = vunpack.c.l.b16 %v55
    %v2160 = vunpack.c.h.b16 %v55
    %v2161 = vunpack.c.l.b16 %v56
    %v2162 = vunpack.c.h.b16 %v56
    %v2163 = vunpack.c.l.b16 %v57
    %v2164 = vunpack.c.h.b16 %v57
    %v2165 = vunpack.c.l.b16 %v58
    %v2166 = vunpack.c.h.b16 %v58
    %v2167 = vunpack.c.l.b16 %v59
    %v2168 = vunpack.c.h.b16 %v59
    %v2169 = vunpack.c.l.b16 %v60
    %v2170 = vunpack.c.h.b16 %v60
    %v2171 = vunpack.c.l.b16 %v61
    %v2172 = vunpack.c.h.b16 %v61
    %v2173 = vunpack.c.l.b16 %v62
    %v2174 = vunpack.c.h.b16 %v62
    %v2175 = vunpack.c.l.b16 %v63
    %v2176 = vunpack.c.h.b16 %v63
    %v2177 = vunpack.c.l.b16 %v64
    %v2178 = vunpack.c.h.b16 %v64
    %v2179 = vunpack.c.l.b16 %v65
    %v2180 = vunpack.c.h.b16 %v65
    %v2181 = vunpack.c.l.b16 %v66
    %v2182 = vunpack.c.h.b16 %v66
    %v2183 = vunpack.c.l.b16 %v67
    %v2184 = vunpack.c.h.b16 %v67
    %v2185 = vunpack.c.l.b16 %v68
    %v2186 = vunpack.c.h.b16 %v68
    %v2187 = vunpack.c.l.b16 %v69
    %v2188 = vunpack.c.h.b16 %v69
    %v2189 = vunpack.c.l.b16 %v70
    %v2190 = vunpack.c.h.b16 %v70
    %v2191 = vunpack.c.l.b16 %v71
    %v2192 = vunpack.c.h.b16 %v71
    %v2193 = vunpack.c.l.b16 %v72
    %v2194 = vunpack.c.h.b16 %v72
    %v2195 = vunpack.c.l.b16 %v73
    %v2196 = vunpack.c.h.b16 %v73
    %v2197 = vunpack.c.l.b16 %v74
    %v2198 = vunpack.c.h.b16 %v74
    %v2199 = vunpack.c.l.b16 %v75
    %v2200 = vunpack.c.h.b16 %v75
    %v2201 = vunpack.c.l.b16 %v76
    %v2202 = vunpack.c.h.b16 %v76
    %v2203 = vunpack.c.l.b16 %v77
    %v2204 = vunpack.c.h.b16 %v77
    %v2205 = vunpack.c.l.b16 %v78
    %v2206 = vunpack.c.h.b16 %v78
    %v2207 = vunpack.c.l.b16 %v79
    %v2208 = vunpack.c.h.b16 %v79
    %v2209 = vunpack.c.l.b16 %v80
    %v2210 = vunpack.c.h.b16 %v80
    %v2211 = vunpack.c.l.b16 %v81
    %v2212 = vunpack.c.h.b16 %v81
    %v2213 = vunpack.c.l.b16 %v82
    %v2214 = vunpack.c.h.b16 %v82
    %v2215 = vunpack.c.l.b16 %v83
    %v2216 = vunpack.c.h.b16 %v83
    %v2217 = vunpack.c.l.b16 %v84
    %v2218 = vunpack.c.h.b16 %v84
    %v2219 = vunpack.c.l.b16 %v85
    %v2220 = vunpack.c.h.b16 %v85
    %v2221 = vunpack.c.l.b16 %v86
    %v2222 = vunpack.c.h.b16 %v86
    %v2223 = vunpack.c.l.b16 %v87
    %v2224 = vunpack.c.h.b16 %v87
    %v2225 = vunpack.c.l.b16 %v88
    %v2226 = vunpack.c.h.b16 %v88
    %v2227 = vunpack.c.l.b16 %v89
    %v2228 = vunpack.c.h.b16 %v89
    %v2229 = vunpack.c.l.b16 %v90
    %v2230 = vunpack.c.h.b16 %v90
    %v2231 = vunpack.c.l.b16 %v91
    %v2232 = vunpack.c.h.b16 %v91
    %v2233 = vunpack.c.l.b16 %v92
    %v2234 = vunpack.c.h.b16 %v92
    %v2235 = vunpack.c.l.b16 %v93
    %v2236 = vunpack.c.h.b16 %v93
    %v2237 = vunpack.c.l.b16 %v94
    %v2238 = vunpack.c.h.b16 %v94
    %v2239 = vunpack.c.l.b16 %v95
    %v2240 = vunpack.c.h.b16 %v95
    %v2241 = vunpack.c.l.b16 %v96
    %v2242 = vunpack.c.h.b16 %v96
    %v2243 = vunpack.c.l.b16 %v97
    %v2244 = vunpack.c.h.b16 %v97
    %v2245 = vunpack.c.l.b16 %v98
    %v2246 = vunpack.c.h.b16 %v98
    %v2247 = vunpack.c.l.b16 %v99
    %v2248 = vunpack.c.h.b16 %v99
    %v2249 = vunpack.c.l.b16 %v100
    %v2250 = vunpack.c.h.b16 %v100
    %v2251 = vunpack.c.l.b16 %v101
    %v2252 = vunpack.c.h.b16 %v101
    %v2253 = vunpack.c.l.b16 %v102
    %v2254 = vunpack.c.h.b16 %v102
    %v2255 = vunpack.c.l.b16 %v103
    %v2256 = vunpack.c.h.b16 %v103
    %v2257 = vunpack.c.l.b16 %v104
    %v2258 = vunpack.c.h.b16 %v104
    %v2259 = vunpack.c.l.b16 %v105
    %v2260 = vunpack.c.h.b16 %v105
    %v2261 = vunpack.c.l.b16 %v106
    %v2262 = vunpack.c.h.b16 %v106
    %v2263 = vunpack.c.l.b16 %v107
    %v2264 = vunpack.c.h.b16 %v107
    %v2265 = vunpack.c.l.b16 %v108
    %v2266 = vunpack.c.h.b16 %v108
    %v2267 = vunpack.c.l.b16 %v109
    %v2268 = vunpack.c.h.b16 %v109
    %v2269 = vunpack.c.l.b16 %v110
    %v2270 = vunpack.c.h.b16 %v110
    %v2271 = vunpack.c.l.b16 %v111
    %v2272 = vunpack.c.h.b16 %v111
    %v2273 = vunpack.c.l.b16 %v112
    %v2274 = vunpack.c.h.b16 %v112
    %v2275 = vunpack.c.l.b16 %v113
    %v2276 = vunpack.c.h.b16 %v113
    %v2277 = vunpack.c.l.b16 %v114
    %v2278 = vunpack.c.h.b16 %v114
    %v2279 = vunpack.c.l.b16 %v115
    %v2280 = vunpack.c.h.b16 %v115
    %v2281 = vunpack.c.l.b16 %v116
    %v2282 = vunpack.c.h.b16 %v116
    %v2283 = vunpack.c.l.b16 %v117
    %v2284 = vunpack.c.h.b16 %v117
    %v2285 = vunpack.c.l.b16 %v118
    %v2286 = vunpack.c.h.b16 %v118
    %v2287 = vunpack.c.l.b16 %v119
    %v2288 = vunpack.c.h.b16 %v119
    %v2289 = vunpack.c.l.b16 %v120
    %v2290 = vunpack.c.h.b16 %v120
    %v2291 = vunpack.c.l.b16 %v121
    %v2292 = vunpack.c.h.b16 %v121
    %v2293 = vunpack.c.l.b16 %v122
    %v2294 = vunpack.c.h.b16 %v122
    %v2295 = vunpack.c.l.b16 %v123
    %v2296 = vunpack.c.h.b16 %v123
    %v2297 = vunpack.c.l.b16 %v124
    %v2298 = vunpack.c.h.b16 %v124
    %v2299 = vunpack.c.l.b16 %v125
    %v2300 = vunpack.c.h.b16 %v125
    %v2301 = vunpack.c.l.b16 %v126
    %v2302 = vunpack.c.h.b16 %v126
    %v2303 = vunpack.c.l.b16 %v127
    %v2304 = vunpack.c.h.b16 %v127
    %v2305 = vunpack.c.l.b16 %v128
    %v2306 = vunpack.c.h.b16 %v128
    %v2307 = vunpack.c.l.b16 %v129
    %v2308 = vunpack.c.h.b16 %v129
    %v2309 = vunpack.c.l.b16 %v130
    %v2310 = vunpack.c.h.b16 %v130
    %v2311 = vunpack.c.l.b16 %v131
    %v2312 = vunpack.c.h.b16 %v131
    %v2313 = vunpack.c.l.b16 %v132
    %v2314 = vunpack.c.h.b16 %v132
    %v2315 = vunpack.c.l.b16 %v133
    %v2316 = vunpack.c.h.b16 %v133
    %v2317 = vunpack.c.l.b16 %v134
    %v2318 = vunpack.c.h.b16 %v134
    %v2319 = vunpack.c.l.b16 %v135
    %v2320 = vunpack.c.h.b16 %v135
    %v2321 = vunpack.c.l.b16 %v136
    %v2322 = vunpack.c.h.b16 %v136
    %v2323 = vunpack.c.l.b16 %v137
    %v2324 = vunpack.c.h.b16 %v137
    %v2325 = vunpack.c.l.b16 %v138
    %v2326 = vunpack.c.h.b16 %v138
    %v2327 = vunpack.c.l.b16 %v139
    %v2328 = vunpack.c.h.b16 %v139
    %v2329 = vunpack.c.l.b16 %v140
    %v2330 = vunpack.c.h.b16 %v140
    %v2331 = vunpack.c.l.b16 %v141
    %v2332 = vunpack.c.h.b16 %v141
    %v2333 = vunpack.c.l.b16 %v142
    %v2334 = vunpack.c.h.b16 %v142
    %v2335 = vunpack.c.l.b16 %v143
    %v2336 = vunpack.c.h.b16 %v143
    %v2337 = vunpack.c.l.b16 %v144
    %v2338 = vunpack.c.h.b16 %v144
    %v2339 = vunpack.c.l.b16 %v145
    %v2340 = vunpack.c.h.b16 %v145
    %v2341 = vunpack.c.l.b16 %v146
    %v2342 = vunpack.c.h.b16 %v146
    %v2343 = vunpack.c.l.b16 %v147
    %v2344 = vunpack.c.h.b16 %v147
    %v2345 = vunpack.c.l.b16 %v148
    %v2346 = vunpack.c.h.b16 %v148
    %v2347 = vunpack.c.l.b16 %v149
    %v2348 = vunpack.c.h.b16 %v149
    %v2349 = vunpack.c.l.b16 %v150
    %v2350 = vunpack.c.h.b16 %v150
    %v2351 = vunpack.c.l.b16 %v151
    %v2352 = vunpack.c.h.b16 %v151
    %v2353 = vunpack.c.l.b16 %v152
    %v2354 = vunpack.c.h.b16 %v152
    %v2355 = vunpack.c.l.b16 %v153
    %v2356 = vunpack.c.h.b16 %v153
    %v2357 = vunpack.c.l.b16 %v154
    %v2358 = vunpack.c.h.b16 %v154
    %v2359 = vunpack.c.l.b16 %v155
    %v2360 = vunpack.c.h.b16 %v155
    %v2361 = vunpack.c.l.b16 %v156
    %v2362 = vunpack.c.h.b16 %v156
    %v2363 = vunpack.c.l.b16 %v157
    %v2364 = vunpack.c.h.b16 %v157
    %v2365 = vunpack.c.l.b16 %v158
    %v2366 = vunpack.c.h.b16 %v158
    %v2367 = vunpack.c.l.b16 %v159
    %v2368 = vunpack.c.h.b16 %v159
    %v2369 = vunpack.c.l.b16 %v160
    %v2370 = vunpack.c.h.b16 %v160
    %v2371 = vunpack.c.l.b16 %v161
    %v2372 = vunpack.c.h.b16 %v161
    %v2373 = vunpack.c.l.b16 %v162
    %v2374 = vunpack.c.h.b16 %v162
    %v2375 = vunpack.c.l.b16 %v163
    %v2376 = vunpack.c.h.b16 %v163
    %v2377 = vunpack.c.l.b16 %v164
    %v2378 = vunpack.c.h.b16 %v164
    %v2379 = vunpack.c.l.b16 %v165
    %v2380 = vunpack.c.h.b16 %v165
    %v2381 = vunpack.c.l.b16 %v166
    %v2382 = vunpack.c.h.b16 %v166
    %v2383 = vunpack.c.l.b16 %v167
    %v2384 = vunpack.c.h.b16 %v167
    %v2385 = vunpack.c.l.b16 %v168
    %v2386 = vunpack.c.h.b16 %v168
    %v2387 = vunpack.c.l.b16 %v169
    %v2388 = vunpack.c.h.b16 %v169
    %v2389 = vunpack.c.l.b16 %v170
    %v2390 = vunpack.c.h.b16 %v170
    %v2391 = vunpack.c.l.b16 %v171
    %v2392 = vunpack.c.h.b16 %v171
    %v2393 = vunpack.c.l.b16 %v172
    %v2394 = vunpack.c.h.b16 %v172
    %v2395 = vunpack.c.l.b16 %v173
    %v2396 = vunpack.c.h.b16 %v173
    %v2397 = vunpack.c.l.b16 %v174
    %v2398 = vunpack.c.h.b16 %v174
    %v2399 = vunpack.c.l.b16 %v175
    %v2400 = vunpack.c.h.b16 %v175
    %v2401 = vunpack.c.l.b16 %v176
    %v2402 = vunpack.c.h.b16 %v176
    %v2403 = vunpack.c.l.b16 %v177
    %v2404 = vunpack.c.h.b16 %v177
    %v2405 = vunpack.c.l.b16 %v178
    %v2406 = vunpack.c.h.b16 %v178
    %v2407 = vunpack.c.l.b16 %v179
    %v2408 = vunpack.c.h.b16 %v179
    %v2409 = vunpack.c.l.b16 %v180
    %v2410 = vunpack.c.h.b16 %v180
    %v2411 = vunpack.c.l.b16 %v181
    %v2412 = vunpack.c.h.b16 %v181
    %v2413 = vunpack.c.l.b16 %v182
    %v2414 = vunpack.c.h.b16 %v182
    %v2415 = vunpack.c.l.b16 %v183
    %v2416 = vunpack.c.h.b16 %v183
    %v2417 = vunpack.c.l.b16 %v184
    %v2418 = vunpack.c.h.b16 %v184
    %v2419 = vunpack.c.l.b16 %v185
    %v2420 = vunpack.c.h.b16 %v185
    %v2421 = vunpack.c.l.b16 %v186
    %v2422 = vunpack.c.h.b16 %v186
    %v2423 = vunpack.c.l.b16 %v187
    %v2424 = vunpack.c.h.b16 %v187
    %v2425 = vunpack.c.l.b16 %v188
    %v2426 = vunpack.c.h.b16 %v188
    %v2427 = vunpack.c.l.b16 %v189
    %v2428 = vunpack.c.h.b16 %v189
    %v2429 = vunpack.c.l.b16 %v190
    %v2430 = vunpack.c.h.b16 %v190
    %v2431 = vunpack.c.l.b16 %v191
    %v2432 = vunpack.c.h.b16 %v191
    %v2433 = vunpack.c.l.b16 %v192
    %v2434 = vunpack.c.h.b16 %v192
    %v2435 = vunpack.c.l.b16 %v193
    %v2436 = vunpack.c.h.b16 %v193
    %v2437 = vunpack.c.l.b16 %v194
    %v2438 = vunpack.c.h.b16 %v194
    %v2439 = vunpack.c.l.b16 %v195
    %v2440 = vunpack.c.h.b16 %v195
    %v2441 = vunpack.c.l.b16 %v196
    %v2442 = vunpack.c.h.b16 %v196
    %v2443 = vunpack.c.l.b16 %v197
    %v2444 = vunpack.c.h.b16 %v197
    %v2445 = vunpack.c.l.b16 %v198
    %v2446 = vunpack.c.h.b16 %v198
    %v2447 = vunpack.c.l.b16 %v199
    %v2448 = vunpack.c.h.b16 %v199
    %v2449 = vunpack.c.l.b16 %v200
    %v2450 = vunpack.c.h.b16 %v200
    %v2451 = vunpack.c.l.b16 %v201
    %v2452 = vunpack.c.h.b16 %v201
    %v2453 = vunpack.c.l.b16 %v202
    %v2454 = vunpack.c.h.b16 %v202
    %v2455 = vunpack.c.l.b16 %v203
    %v2456 = vunpack.c.h.b16 %v203
    %v2457 = vunpack.c.l.b16 %v204
    %v2458 = vunpack.c.h.b16 %v204
    %v2459 = vunpack.c.l.b16 %v205
    %v2460 = vunpack.c.h.b16 %v205
    %v2461 = vunpack.c.l.b16 %v206
    %v2462 = vunpack.c.h.b16 %v206
    %v2463 = vunpack.c.l.b16 %v207
    %v2464 = vunpack.c.h.b16 %v207
    %v2465 = vunpack.c.l.b16 %v208
    %v2466 = vunpack.c.h.b16 %v208
    %v2467 = vunpack.c.l.b16 %v209
    %v2468 = vunpack.c.h.b16 %v209
    %v2469 = vunpack.c.l.b16 %v210
    %v2470 = vunpack.c.h.b16 %v210
    %v2471 = vunpack.c.l.b16 %v211
    %v2472 = vunpack.c.h.b16 %v211
    %v2473 = vunpack.c.l.b16 %v212
    %v2474 = vunpack.c.h.b16 %v212
    %v2475 = vunpack.c.l.b16 %v213
    %v2476 = vunpack.c.h.b16 %v213
    %v2477 = vunpack.c.l.b16 %v214
    %v2478 = vunpack.c.h.b16 %v214
    %v2479 = vunpack.c.l.b16 %v215
    %v2480 = vunpack.c.h.b16 %v215
    %v2481 = vunpack.c.l.b16 %v216
    %v2482 = vunpack.c.h.b16 %v216
    %v2483 = vunpack.c.l.b16 %v217
    %v2484 = vunpack.c.h.b16 %v217
    %v2485 = vunpack.c.l.b16 %v218
    %v2486 = vunpack.c.h.b16 %v218
    %v2487 = vunpack.c.l.b16 %v219
    %v2488 = vunpack.c.h.b16 %v219
    %v2489 = vunpack.c.l.b16 %v220
    %v2490 = vunpack.c.h.b16 %v220
    %v2491 = vunpack.c.l.b16 %v221
    %v2492 = vunpack.c.h.b16 %v221
    %v2493 = vunpack.c.l.b16 %v222
    %v2494 = vunpack.c.h.b16 %v222
    %v2495 = vunpack.c.l.b16 %v223
    %v2496 = vunpack.c.h.b16 %v223
    %v2497 = vunpack.c.l.b16 %v224
    %v2498 = vunpack.c.h.b16 %v224
    %v2499 = vunpack.c.l.b16 %v225
    %v2500 = vunpack.c.h.b16 %v225
    %v2501 = vunpack.c.l.b16 %v226
    %v2502 = vunpack.c.h.b16 %v226
    %v2503 = vunpack.c.l.b16 %v227
    %v2504 = vunpack.c.h.b16 %v227
    %v2505 = vunpack.c.l.b16 %v228
    %v2506 = vunpack.c.h.b16 %v228
    %v2507 = vunpack.c.l.b16 %v229
    %v2508 = vunpack.c.h.b16 %v229
    %v2509 = vunpack.c.l.b16 %v230
    %v2510 = vunpack.c.h.b16 %v230
    %v2511 = vunpack.c.l.b16 %v231
    %v2512 = vunpack.c.h.b16 %v231
    %v2513 = vunpack.c.l.b16 %v232
    %v2514 = vunpack.c.h.b16 %v232
    %v2515 = vunpack.c.l.b16 %v233
    %v2516 = vunpack.c.h.b16 %v233
    %v2517 = vunpack.c.l.b16 %v234
    %v2518 = vunpack.c.h.b16 %v234
    %v2519 = vunpack.c.l.b16 %v235
    %v2520 = vunpack.c.h.b16 %v235
    %v2521 = vunpack.c.l.b16 %v236
    %v2522 = vunpack.c.h.b16 %v236
    %v2523 = vunpack.c.l.b16 %v237
    %v2524 = vunpack.c.h.b16 %v237
    %v2525 = vunpack.c.l.b16 %v238
    %v2526 = vunpack.c.h.b16 %v238
    %v2527 = vunpack.c.l.b16 %v239
    %v2528 = vunpack.c.h.b16 %v239
    %v2529 = vunpack.c.l.b16 %v240
    %v2530 = vunpack.c.h.b16 %v240
    %v2531 = vunpack.c.l.b16 %v241
    %v2532 = vunpack.c.h.b16 %v241
    %v2533 = vunpack.c.l.b16 %v242
    %v2534 = vunpack.c.h.b16 %v242
    %v2535 = vunpack.c.l.b16 %v243
    %v2536 = vunpack.c.h.b16 %v243
    %v2537 = vunpack.c.l.b16 %v244
    %v2538 = vunpack.c.h.b16 %v244
    %v2539 = vunpack.c.l.b16 %v245
    %v2540 = vunpack.c.h.b16 %v245
    %v2541 = vunpack.c.l.b16 %v246
    %v2542 = vunpack.c.h.b16 %v246
    %v2543 = vunpack.c.l.b16 %v247
    %v2544 = vunpack.c.h.b16 %v247
    %v2545 = vunpack.c.l.b16 %v248
    %v2546 = vunpack.c.h.b16 %v248
    %v2547 = vunpack.c.l.b16 %v249
    %v2548 = vunpack.c.h.b16 %v249
    %v2549 = vunpack.c.l.b16 %v250
    %v2550 = vunpack.c.h.b16 %v250
    %v2551 = vunpack.c.l.b16 %v251
    %v2552 = vunpack.c.h.b16 %v251
    %v2553 = vunpack.c.l.b16 %v252
    %v2554 = vunpack.c.h.b16 %v252
    %v2555 = vunpack.c.l.b16 %v253
    %v2556 = vunpack.c.h.b16 %v253
    %v2557 = vunpack.c.l.b16 %v254
    %v2558 = vunpack.c.h.b16 %v254
    %v2559 = vunpack.c.l.b16 %v255
    %v2560 = vunpack.c.h.b16 %v255
    %v2561 = vunpack.c.l.b16 %v256
    %v2562 = vunpack.c.h.b16 %v256
    %v2563 = vunpack.c.l.b16 %v257
    %v2564 = vunpack.c.h.b16 %v257
    %v2565 = vunpack.c.l.b16 %v258
    %v2566 = vunpack.c.h.b16 %v258
    %v2567 = vunpack.c.l.b16 %v259
    %v2568 = vunpack.c.h.b16 %v259
    %v2569 = vunpack.c.l.b16 %v260
    %v2570 = vunpack.c.h.b16 %v260
    %v2571 = vunpack.c.l.b16 %v261
    %v2572 = vunpack.c.h.b16 %v261
    %v2573 = vunpack.c.l.b16 %v262
    %v2574 = vunpack.c.h.b16 %v262
    %v2575 = vunpack.c.l.b16 %v263
    %v2576 = vunpack.c.h.b16 %v263
    %v2577 = vunpack.c.l.b16 %v264
    %v2578 = vunpack.c.h.b16 %v264
    %v2579 = vunpack.c.l.b16 %v265
    %v2580 = vunpack.c.h.b16 %v265
    %v2581 = vunpack.c.l.b16 %v266
    %v2582 = vunpack.c.h.b16 %v266
    %v2583 = vunpack.c.l.b16 %v267
    %v2584 = vunpack.c.h.b16 %v267
    %v2585 = vunpack.c.l.b16 %v268
    %v2586 = vunpack.c.h.b16 %v268
    %v2587 = vunpack.c.l.b16 %v269
    %v2588 = vunpack.c.h.b16 %v269
    %v2589 = vunpack.c.l.b16 %v270
    %v2590 = vunpack.c.h.b16 %v270
    %v2591 = vunpack.c.l.b16 %v271
    %v2592 = vunpack.c.h.b16 %v271
    %v2593 = vunpack.c.l.b16 %v272
    %v2594 = vunpack.c.h.b16 %v272
    %v2595 = vunpack.c.l.b16 %v273
    %v2596 = vunpack.c.h.b16 %v273
    %v2597 = vunpack.c.l.b16 %v274
    %v2598 = vunpack.c.h.b16 %v274
    %v2599 = vunpack.c.l.b16 %v275
    %v2600 = vunpack.c.h.b16 %v275
    %v2601 = vunpack.c.l.b16 %v276
    %v2602 = vunpack.c.h.b16 %v276
    %v2603 = vunpack.c.l.b16 %v277
    %v2604 = vunpack.c.h.b16 %v277
    %v2605 = vunpack.c.l.b16 %v278
    %v2606 = vunpack.c.h.b16 %v278
    %v2607 = vunpack.c.l.b16 %v279
    %v2608 = vunpack.c.h.b16 %v279
    %v2609 = vunpack.c.l.b16 %v280
    %v2610 = vunpack.c.h.b16 %v280
    %v2611 = vunpack.c.l.b16 %v281
    %v2612 = vunpack.c.h.b16 %v281
    %v2613 = vunpack.c.l.b16 %v282
    %v2614 = vunpack.c.h.b16 %v282
    %v2615 = vunpack.c.l.b16 %v283
    %v2616 = vunpack.c.h.b16 %v283
    %v2617 = vunpack.c.l.b16 %v284
    %v2618 = vunpack.c.h.b16 %v284
    %v2619 = vunpack.c.l.b16 %v285
    %v2620 = vunpack.c.h.b16 %v285
    %v2621 = vunpack.c.l.b16 %v286
    %v2622 = vunpack.c.h.b16 %v286
    %v2623 = vunpack.c.l.b16 %v287
    %v2624 = vunpack.c.h.b16 %v287
    %v2625 = vunpack.c.l.b16 %v288
    %v2626 = vunpack.c.h.b16 %v288
    %v2627 = vunpack.c.l.b16 %v289
    %v2628 = vunpack.c.h.b16 %v289
    %v2629 = vunpack.c.l.b16 %v290
    %v2630 = vunpack.c.h.b16 %v290
    %v2631 = vunpack.c.l.b16 %v291
    %v2632 = vunpack.c.h.b16 %v291
    %v2633 = vunpack.c.l.b16 %v292
    %v2634 = vunpack.c.h.b16 %v292
    %v2635 = vunpack.c.l.b16 %v293
    %v2636 = vunpack.c.h.b16 %v293
    %v2637 = vunpack.c.l.b16 %v294
    %v2638 = vunpack.c.h.b16 %v294
    %v2639 = vunpack.c.l.b16 %v295
    %v2640 = vunpack.c.h.b16 %v295
    %v2641 = vunpack.c.l.b16 %v296
    %v2642 = vunpack.c.h.b16 %v296
    %v2643 = vunpack.c.l.b16 %v297
    %v2644 = vunpack.c.h.b16 %v297
    %v2645 = vunpack.c.l.b16 %v298
    %v2646 = vunpack.c.h.b16 %v298
    %v2647 = vunpack.c.l.b16 %v299
    %v2648 = vunpack.c.h.b16 %v299
    %v2649 = vunpack.c.l.b16 %v300
    %v2650 = vunpack.c.h.b16 %v300
    %v2651 = vunpack.c.l.b16 %v301
    %v2652 = vunpack.c.h.b16 %v301
    %v2653 = vunpack.c.l.b16 %v302
    %v2654 = vunpack.c.h.b16 %v302
    %v2655 = vunpack.c.l.b16 %v303
    %v2656 = vunpack.c.h.b16 %v303
    %v2657 = vunpack.c.l.b16 %v304
    %v2658 = vunpack.c.h.b16 %v304
    %v2659 = vunpack.c.l.b16 %v305
    %v2660 = vunpack.c.h.b16 %v305
    %v2661 = vunpack.c.l.b16 %v306
    %v2662 = vunpack.c.h.b16 %v306
    %v2663 = vunpack.c.l.b16 %v307
    %v2664 = vunpack.c.h.b16 %v307
    %v2665 = vunpack.c.l.b16 %v308
    %v2666 = vunpack.c.h.b16 %v308
    %v2667 = vunpack.c.l.b16 %v309
    %v2668 = vunpack.c.h.b16 %v309
    %v2669 = vunpack.c.l.b16 %v310
    %v2670 = vunpack.c.h.b16 %v310
    %v2671 = vunpack.c.l.b16 %v311
    %v2672 = vunpack.c.h.b16 %v311
    %v2673 = vunpack.c.l.b16 %v312
    %v2674 = vunpack.c.h.b16 %v312
    %v2675 = vunpack.c.l.b16 %v313
    %v2676 = vunpack.c.h.b16 %v313
    %v2677 = vunpack.c.l.b16 %v314
    %v2678 = vunpack.c.h.b16 %v314
    %v2679 = vunpack.c.l.b16 %v315
    %v2680 = vunpack.c.h.b16 %v315
    %v2681 = vunpack.c.l.b16 %v316
    %v2682 = vunpack.c.h.b16 %v316
    %v2683 = vunpack.c.l.b16 %v317
    %v2684 = vunpack.c.h.b16 %v317
    %v2685 = vunpack.c.l.b16 %v318
    %v2686 = vunpack.c.h.b16 %v318
    %v2687 = vunpack.c.l.b16 %v319
    %v2688 = vunpack.c.h.b16 %v319
    %v2689 = vunpack.c.l.b16 %v320
    %v2690 = vunpack.c.h.b16 %v320
    %v2691 = vunpack.c.l.b16 %v321
    %v2692 = vunpack.c.h.b16 %v321
    %v2693 = vunpack.c.l.b16 %v322
    %v2694 = vunpack.c.h.b16 %v322
    %v2695 = vunpack.c.l.b16 %v323
    %v2696 = vunpack.c.h.b16 %v323
    %v2697 = vunpack.c.l.b16 %v324
    %v2698 = vunpack.c.h.b16 %v324
    %v2699 = vunpack.c.l.b16 %v325
    %v2700 = vunpack.c.h.b16 %v325
    %v2701 = vunpack.c.l.b16 %v326
    %v2702 = vunpack.c.h.b16 %v326
    %v2703 = vunpack.c.l.b16 %v327
    %v2704 = vunpack.c.h.b16 %v327
    %v2705 = vunpack.c.l.b16 %v328
    %v2706 = vunpack.c.h.b16 %v328
    %v2707 = vunpack.c.l.b16 %v329
    %v2708 = vunpack.c.h.b16 %v329
    %v2709 = vunpack.c.l.b16 %v330
    %v2710 = vunpack.c.h.b16 %v330
    %v2711 = vunpack.c.l.b16 %v331
    %v2712 = vunpack.c.h.b16 %v331
    %v2713 = vunpack.c.l.b16 %v332
    %v2714 = vunpack.c.h.b16 %v332
    %v2715 = vunpack.c.l.b16 %v333
    %v2716 = vunpack.c.h.b16 %v333
    %v2717 = vunpack.c.l.b16 %v334
    %v2718 = vunpack.c.h.b16 %v334
    %v2719 = vunpack.c.l.b16 %v335
    %v2720 = vunpack.c.h.b16 %v335
    %v2721 = vunpack.c.l.b16 %v336
    %v2722 = vunpack.c.h.b16 %v336
    %v2723 = vunpack.c.l.b16 %v337
    %v2724 = vunpack.c.h.b16 %v337
    %v2725 = vunpack.c.l.b16 %v338
    %v2726 = vunpack.c.h.b16 %v338
    %v2727 = vunpack.c.l.b16 %v339
    %v2728 = vunpack.c.h.b16 %v339
    %v2729 = vunpack.c.l.b16 %v340
    %v2730 = vunpack.c.h.b16 %v340
    %v2731 = vunpack.c.l.b16 %v341
    %v2732 = vunpack.c.h.b16 %v341
    %v2733 = vunpack.c.l.b16 %v342
    %v2734 = vunpack.c.h.b16 %v342
    %v2735 = vunpack.c.l.b16 %v343
    %v2736 = vunpack.c.h.b16 %v343
    %v2737 = vunpack.c.l.b16 %v344
    %v2738 = vunpack.c.h.b16 %v344
    %v2739 = vunpack.c.l.b16 %v345
    %v2740 = vunpack.c.h.b16 %v345
    %v2741 = vunpack.c.l.b16 %v346
    %v2742 = vunpack.c.h.b16 %v346
    %v2743 = vunpack.c.l.b16 %v347
    %v2744 = vunpack.c.h.b16 %v347
    %v2745 = vunpack.c.l.b16 %v348
    %v2746 = vunpack.c.h.b16 %v348
    %v2747 = vunpack.c.l.b16 %v349
    %v2748 = vunpack.c.h.b16 %v349
    %v2749 = vunpack.c.l.b16 %v350
    %v2750 = vunpack.c.h.b16 %v350
    %v2751 = vunpack.c.l.b16 %v351
    %v2752 = vunpack.c.h.b16 %v351
    %v2753 = vunpack.c.l.b16 %v352
    %v2754 = vunpack.c.h.b16 %v352
    %v2755 = vunpack.c.l.b16 %v353
    %v2756 = vunpack.c.h.b16 %v353
    %v2757 = vunpack.c.l.b16 %v354
    %v2758 = vunpack.c.h.b16 %v354
    %v2759 = vunpack.c.l.b16 %v355
    %v2760 = vunpack.c.h.b16 %v355
    %v2761 = vunpack.c.l.b16 %v356
    %v2762 = vunpack.c.h.b16 %v356
    %v2763 = vunpack.c.l.b16 %v357
    %v2764 = vunpack.c.h.b16 %v357
    %v2765 = vunpack.c.l.b16 %v358
    %v2766 = vunpack.c.h.b16 %v358
    %v2767 = vunpack.c.l.b16 %v359
    %v2768 = vunpack.c.h.b16 %v359
    %v2769 = vunpack.c.l.b16 %v360
    %v2770 = vunpack.c.h.b16 %v360
    %v2771 = vunpack.c.l.b16 %v361
    %v2772 = vunpack.c.h.b16 %v361
    %v2773 = vunpack.c.l.b16 %v362
    %v2774 = vunpack.c.h.b16 %v362
    %v2775 = vunpack.c.l.b16 %v363
    %v2776 = vunpack.c.h.b16 %v363
    %v2777 = vunpack.c.l.b16 %v364
    %v2778 = vunpack.c.h.b16 %v364
    %v2779 = vunpack.c.l.b16 %v365
    %v2780 = vunpack.c.h.b16 %v365
    %v2781 = vunpack.c.l.b16 %v366
    %v2782 = vunpack.c.h.b16 %v366
    %v2783 = vunpack.c.l.b16 %v367
    %v2784 = vunpack.c.h.b16 %v367
    %v2785 = vunpack.c.l.b16 %v368
    %v2786 = vunpack.c.h.b16 %v368
    %v2787 = vunpack.c.l.b16 %v369
    %v2788 = vunpack.c.h.b16 %v369
    %v2789 = vunpack.c.l.b16 %v370
    %v2790 = vunpack.c.h.b16 %v370
    %v2791 = vunpack.c.l.b16 %v371
    %v2792 = vunpack.c.h.b16 %v371
    %v2793 = vunpack.c.l.b16 %v372
    %v2794 = vunpack.c.h.b16 %v372
    %v2795 = vunpack.c.l.b16 %v373
    %v2796 = vunpack.c.h.b16 %v373
    %v2797 = vunpack.c.l.b16 %v374
    %v2798 = vunpack.c.h.b16 %v374
    %v2799 = vunpack.c.l.b16 %v375
    %v2800 = vunpack.c.h.b16 %v375
    %v2801 = vunpack.c.l.b16 %v376
    %v2802 = vunpack.c.h.b16 %v376
    %v2803 = vunpack.c.l.b16 %v377
    %v2804 = vunpack.c.h.b16 %v377
    %v2805 = vunpack.c.l.b16 %v378
    %v2806 = vunpack.c.h.b16 %v378
    %v2807 = vunpack.c.l.b16 %v379
    %v2808 = vunpack.c.h.b16 %v379
    %v2809 = vunpack.c.l.b16 %v380
    %v2810 = vunpack.c.h.b16 %v380
    %v2811 = vunpack.c.l.b16 %v381
    %v2812 = vunpack.c.h.b16 %v381
    %v2813 = vunpack.c.l.b16 %v382
    %v2814 = vunpack.c.h.b16 %v382
    %v2815 = vunpack.c.l.b16 %v383
    %v2816 = vunpack.c.h.b16 %v383
    %v2817 = vunpack.c.l.b16 %v384
    %v2818 = vunpack.c.h.b16 %v384
    %v2819 = vunpack.c.l.b16 %v385
    %v2820 = vunpack.c.h.b16 %v385
    %v2821 = vunpack.c.l.b16 %v386
    %v2822 = vunpack.c.h.b16 %v386
    %v2823 = vunpack.c.l.b16 %v387
    %v2824 = vunpack.c.h.b16 %v387
    %v2825 = vunpack.c.l.b16 %v388
    %v2826 = vunpack.c.h.b16 %v388
    %v2827 = vunpack.c.l.b16 %v389
    %v2828 = vunpack.c.h.b16 %v389
    %v2829 = vunpack.c.l.b16 %v390
    %v2830 = vunpack.c.h.b16 %v390
    %v2831 = vunpack.c.l.b16 %v391
    %v2832 = vunpack.c.h.b16 %v391
    %v2833 = vunpack.c.l.b16 %v392
    %v2834 = vunpack.c.h.b16 %v392
    %v2835 = vunpack.c.l.b16 %v393
    %v2836 = vunpack.c.h.b16 %v393
    %v2837 = vunpack.c.l.b16 %v394
    %v2838 = vunpack.c.h.b16 %v394
    %v2839 = vunpack.c.l.b16 %v395
    %v2840 = vunpack.c.h.b16 %v395
    %v2841 = vunpack.c.l.b16 %v396
    %v2842 = vunpack.c.h.b16 %v396
    %v2843 = vunpack.c.l.b16 %v397
    %v2844 = vunpack.c.h.b16 %v397
    %v2845 = vunpack.c.l.b16 %v398
    %v2846 = vunpack.c.h.b16 %v398
    %v2847 = vunpack.c.l.b16 %v399
    %v2848 = vunpack.c.h.b16 %v399
    %v2849 = vunpack.c.l.b16 %v400
    %v2850 = vunpack.c.h.b16 %v400
    %v2851 = vunpack.c.l.b16 %v401
    %v2852 = vunpack.c.h.b16 %v401
    %v2853 = vunpack.c.l.b16 %v402
    %v2854 = vunpack.c.h.b16 %v402
    %v2855 = vunpack.c.l.b16 %v403
    %v2856 = vunpack.c.h.b16 %v403
    %v2857 = vunpack.c.l.b16 %v404
    %v2858 = vunpack.c.h.b16 %v404
    %v2859 = vunpack.c.l.b16 %v405
    %v2860 = vunpack.c.h.b16 %v405
    %v2861 = vunpack.c.l.b16 %v406
    %v2862 = vunpack.c.h.b16 %v406
    %v2863 = vunpack.c.l.b16 %v407
    %v2864 = vunpack.c.h.b16 %v407
    %v2865 = vunpack.c.l.b16 %v408
    %v2866 = vunpack.c.h.b16 %v408
    %v2867 = vunpack.c.l.b16 %v409
    %v2868 = vunpack.c.h.b16 %v409
    %v2869 = vunpack.c.l.b16 %v410
    %v2870 = vunpack.c.h.b16 %v410
    %v2871 = vunpack.c.l.b16 %v411
    %v2872 = vunpack.c.h.b16 %v411
    %v2873 = vunpack.c.l.b16 %v412
    %v2874 = vunpack.c.h.b16 %v412
    %v2875 = vunpack.c.l.b16 %v413
    %v2876 = vunpack.c.h.b16 %v413
    %v2877 = vunpack.c.l.b16 %v414
    %v2878 = vunpack.c.h.b16 %v414
    %v2879 = vunpack.c.l.b16 %v415
    %v2880 = vunpack.c.h.b16 %v415
    %v2881 = vunpack.c.l.b16 %v416
    %v2882 = vunpack.c.h.b16 %v416
    %v2883 = vunpack.c.l.b16 %v417
    %v2884 = vunpack.c.h.b16 %v417
    %v2885 = vunpack.c.l.b16 %v418
    %v2886 = vunpack.c.h.b16 %v418
    %v2887 = vunpack.c.l.b16 %v419
    %v2888 = vunpack.c.h.b16 %v419
    %v2889 = vunpack.c.l.b16 %v420
    %v2890 = vunpack.c.h.b16 %v420
    %v2891 = vunpack.c.l.b16 %v421
    %v2892 = vunpack.c.h.b16 %v421
    %v2893 = vunpack.c.l.b16 %v422
    %v2894 = vunpack.c.h.b16 %v422
    %v2895 = vunpack.c.l.b16 %v423
    %v2896 = vunpack.c.h.b16 %v423
    %v2897 = vunpack.c.l.b16 %v424
    %v2898 = vunpack.c.h.b16 %v424
    %v2899 = vunpack.c.l.b16 %v425
    %v2900 = vunpack.c.h.b16 %v425
    %v2901 = vunpack.c.l.b16 %v426
    %v2902 = vunpack.c.h.b16 %v426
    %v2903 = vunpack.c.l.b16 %v427
    %v2904 = vunpack.c.h.b16 %v427
    %v2905 = vunpack.c.l.b16 %v428
    %v2906 = vunpack.c.h.b16 %v428
    %v2907 = vunpack.c.l.b16 %v429
    %v2908 = vunpack.c.h.b16 %v429
    %v2909 = vunpack.c.l.b16 %v430
    %v2910 = vunpack.c.h.b16 %v430
    %v2911 = vunpack.c.l.b16 %v431
    %v2912 = vunpack.c.h.b16 %v431
    %v2913 = vunpack.c.l.b16 %v432
    %v2914 = vunpack.c.h.b16 %v432
    %v2915 = vunpack.c.l.b16 %v433
    %v2916 = vunpack.c.h.b16 %v433
    %v2917 = vunpack.c.l.b16 %v434
    %v2918 = vunpack.c.h.b16 %v434
    %v2919 = vunpack.c.l.b16 %v435
    %v2920 = vunpack.c.h.b16 %v435
    %v2921 = vunpack.c.l.b16 %v436
    %v2922 = vunpack.c.h.b16 %v436
    %v2923 = vunpack.c.l.b16 %v437
    %v2924 = vunpack.c.h.b16 %v437
    %v2925 = vunpack.c.l.b16 %v438
    %v2926 = vunpack.c.h.b16 %v438
    %v2927 = vunpack.c.l.b16 %v439
    %v2928 = vunpack.c.h.b16 %v439
    %v2929 = vunpack.c.l.b16 %v440
    %v2930 = vunpack.c.h.b16 %v440
    %v2931 = vunpack.c.l.b16 %v441
    %v2932 = vunpack.c.h.b16 %v441
    %v2933 = vunpack.c.l.b16 %v442
    %v2934 = vunpack.c.h.b16 %v442
    %v2935 = vunpack.c.l.b16 %v443
    %v2936 = vunpack.c.h.b16 %v443
    %v2937 = vunpack.c.l.b16 %v444
    %v2938 = vunpack.c.h.b16 %v444
    %v2939 = vunpack.c.l.b16 %v445
    %v2940 = vunpack.c.h.b16 %v445
    %v2941 = vunpack.c.l.b16 %v446
    %v2942 = vunpack.c.h.b16 %v446
    %v2943 = vunpack.c.l.b16 %v447
    %v2944 = vunpack.c.h.b16 %v447
    %v2945 = vunpack.c.l.b16 %v448
    %v2946 = vunpack.c.h.b16 %v448
    %v2947 = vunpack.c.l.b16 %v449
    %v2948 = vunpack.c.h.b16 %v449
    %v2949 = vunpack.c.l.b16 %v450
    %v2950 = vunpack.c.h.b16 %v450
    %v2951 = vunpack.c.l.b16 %v451
    %v2952 = vunpack.c.h.b16 %v451
    %v2953 = vunpack.c.l.b16 %v452
    %v2954 = vunpack.c.h.b16 %v452
    %v2955 = vunpack.c.l.b16 %v453
    %v2956 = vunpack.c.h.b16 %v453
    %v2957 = vunpack.c.l.b16 %v454
    %v2958 = vunpack.c.h.b16 %v454
    %v2959 = vunpack.c.l.b16 %v455
    %v2960 = vunpack.c.h.b16 %v455
    %v2961 = vunpack.c.l.b16 %v456
    %v2962 = vunpack.c.h.b16 %v456
    %v2963 = vunpack.c.l.b16 %v457
    %v2964 = vunpack.c.h.b16 %v457
    %v2965 = vunpack.c.l.b16 %v458
    %v2966 = vunpack.c.h.b16 %v458
    %v2967 = vunpack.c.l.b16 %v459
    %v2968 = vunpack.c.h.b16 %v459
    %v2969 = vunpack.c.l.b16 %v460
    %v2970 = vunpack.c.h.b16 %v460
    %v2971 = vunpack.c.l.b16 %v461
    %v2972 = vunpack.c.h.b16 %v461
    %v2973 = vunpack.c.l.b16 %v462
    %v2974 = vunpack.c.h.b16 %v462
    %v2975 = vunpack.c.l.b16 %v463
    %v2976 = vunpack.c.h.b16 %v463
    %v2977 = vunpack.c.l.b16 %v464
    %v2978 = vunpack.c.h.b16 %v464
    %v2979 = vunpack.c.l.b16 %v465
    %v2980 = vunpack.c.h.b16 %v465
    %v2981 = vunpack.c.l.b16 %v466
    %v2982 = vunpack.c.h.b16 %v466
    %v2983 = vunpack.c.l.b16 %v467
    %v2984 = vunpack.c.h.b16 %v467
    %v2985 = vunpack.c.l.b16 %v468
    %v2986 = vunpack.c.h.b16 %v468
    %v2987 = vunpack.c.l.b16 %v469
    %v2988 = vunpack.c.h.b16 %v469
    %v2989 = vunpack.c.l.b16 %v470
    %v2990 = vunpack.c.h.b16 %v470
    %v2991 = vunpack.c.l.b16 %v471
    %v2992 = vunpack.c.h.b16 %v471
    %v2993 = vunpack.c.l.b16 %v472
    %v2994 = vunpack.c.h.b16 %v472
    %v2995 = vunpack.c.l.b16 %v473
    %v2996 = vunpack.c.h.b16 %v473
    %v2997 = vunpack.c.l.b16 %v474
    %v2998 = vunpack.c.h.b16 %v474
    %v2999 = vunpack.c.l.b16 %v475
    %v3000 = vunpack.c.h.b16 %v475
    %v3001 = vunpack.c.l.b16 %v476
    %v3002 = vunpack.c.h.b16 %v476
    %v3003 = vunpack.c.l.b16 %v477
    %v3004 = vunpack.c.h.b16 %v477
    %v3005 = vunpack.c.l.b16 %v478
    %v3006 = vunpack.c.h.b16 %v478
    %v3007 = vunpack.c.l.b16 %v479
    %v3008 = vunpack.c.h.b16 %v479
    %v3009 = vunpack.c.l.b16 %v480
    %v3010 = vunpack.c.h.b16 %v480
    %v3011 = vunpack.c.l.b16 %v481
    %v3012 = vunpack.c.h.b16 %v481
    %v3013 = vunpack.c.l.b16 %v482
    %v3014 = vunpack.c.h.b16 %v482
    %v3015 = vunpack.c.l.b16 %v483
    %v3016 = vunpack.c.h.b16 %v483
    %v3017 = vunpack.c.l.b16 %v484
    %v3018 = vunpack.c.h.b16 %v484
    %v3019 = vunpack.c.l.b16 %v485
    %v3020 = vunpack.c.h.b16 %v485
    %v3021 = vunpack.c.l.b16 %v486
    %v3022 = vunpack.c.h.b16 %v486
    %v3023 = vunpack.c.l.b16 %v487
    %v3024 = vunpack.c.h.b16 %v487
    %v3025 = vunpack.c.l.b16 %v488
    %v3026 = vunpack.c.h.b16 %v488
    %v3027 = vunpack.c.l.b16 %v489
    %v3028 = vunpack.c.h.b16 %v489
    %v3029 = vunpack.c.l.b16 %v490
    %v3030 = vunpack.c.h.b16 %v490
    %v3031 = vunpack.c.l.b16 %v491
    %v3032 = vunpack.c.h.b16 %v491
    %v3033 = vunpack.c.l.b16 %v492
    %v3034 = vunpack.c.h.b16 %v492
    %v3035 = vunpack.c.l.b16 %v493
    %v3036 = vunpack.c.h.b16 %v493
    %v3037 = vunpack.c.l.b16 %v494
    %v3038 = vunpack.c.h.b16 %v494
    %v3039 = vunpack.c.l.b16 %v495
    %v3040 = vunpack.c.h.b16 %v495
    %v3041 = vunpack.c.l.b16 %v496
    %v3042 = vunpack.c.h.b16 %v496
    %v3043 = vunpack.c.l.b16 %v497
    %v3044 = vunpack.c.h.b16 %v497
    %v3045 = vunpack.c.l.b16 %v498
    %v3046 = vunpack.c.h.b16 %v498
    %v3047 = vunpack.c.l.b16 %v499
    %v3048 = vunpack.c.h.b16 %v499
    %v3049 = vunpack.c.l.b16 %v500
    %v3050 = vunpack.c.h.b16 %v500
    %v3051 = vunpack.c.l.b16 %v501
    %v3052 = vunpack.c.h.b16 %v501
    %v3053 = vunpack.c.l.b16 %v502
    %v3054 = vunpack.c.h.b16 %v502
    %v3055 = vunpack.c.l.b16 %v503
    %v3056 = vunpack.c.h.b16 %v503
    %v3057 = vunpack.c.l.b16 %v504
    %v3058 = vunpack.c.h.b16 %v504
    %v3059 = vunpack.c.l.b16 %v505
    %v3060 = vunpack.c.h.b16 %v505
    %v3061 = vunpack.c.l.b16 %v506
    %v3062 = vunpack.c.h.b16 %v506
    %v3063 = vunpack.c.l.b16 %v507
    %v3064 = vunpack.c.h.b16 %v507
    %v3065 = vunpack.c.l.b16 %v508
    %v3066 = vunpack.c.h.b16 %v508
    %v3067 = vunpack.c.l.b16 %v509
    %v3068 = vunpack.c.h.b16 %v509
    %v3069 = vunpack.c.l.b16 %v510
    %v3070 = vunpack.c.h.b16 %v510
    %v3071 = vunpack.c.l.b16 %v511
    %v3072 = vunpack.c.h.b16 %v511
    %v3073 = vunpack.c.l.b16 %v512
    %v3074 = vunpack.c.h.b16 %v512
    %v3075 = vunpack.c.l.b16 %v513
    %v3076 = vunpack.c.h.b16 %v513
    %v3077 = vunpack.c.l.b16 %v514
    %v3078 = vunpack.c.h.b16 %v514
    %v3079 = vunpack.c.l.b16 %v515
    %v3080 = vunpack.c.h.b16 %v515
    %v3081 = vunpack.c.l.b16 %v516
    %v3082 = vunpack.c.h.b16 %v516
    %v3083 = vunpack.c.l.b16 %v517
    %v3084 = vunpack.c.h.b16 %v517
    %v3085 = vunpack.c.l.b16 %v518
    %v3086 = vunpack.c.h.b16 %v518
    %v3087 = vunpack.c.l.b16 %v519
    %v3088 = vunpack.c.h.b16 %v519
    %v3089 = vunpack.c.l.b16 %v520
    %v3090 = vunpack.c.h.b16 %v520
    %v3091 = vunpack.c.l.b16 %v521
    %v3092 = vunpack.c.h.b16 %v521
    %v3093 = vunpack.c.l.b16 %v522
    %v3094 = vunpack.c.h.b16 %v522
    %v3095 = vunpack.c.l.b16 %v523
    %v3096 = vunpack.c.h.b16 %v523
    %v3097 = vunpack.c.l.b16 %v524
    %v3098 = vunpack.c.h.b16 %v524
    %v3099 = vunpack.c.l.b16 %v525
    %v3100 = vunpack.c.h.b16 %v525
    %v3101 = vunpack.c.l.b16 %v526
    %v3102 = vunpack.c.h.b16 %v526
    %v3103 = vunpack.c.l.b16 %v527
    %v3104 = vunpack.c.h.b16 %v527
    %v3105 = vunpack.c.l.b16 %v528
    %v3106 = vunpack.c.h.b16 %v528
    %v3107 = vunpack.c.l.b16 %v529
    %v3108 = vunpack.c.h.b16 %v529
    %v3109 = vunpack.c.l.b16 %v530
    %v3110 = vunpack.c.h.b16 %v530
    %v3111 = vunpack.c.l.b16 %v531
    %v3112 = vunpack.c.h.b16 %v531
    %v3113 = vunpack.c.l.b16 %v532
    %v3114 = vunpack.c.h.b16 %v532
    %v3115 = vunpack.c.l.b16 %v533
    %v3116 = vunpack.c.h.b16 %v533
    %v3117 = vunpack.c.l.b16 %v534
    %v3118 = vunpack.c.h.b16 %v534
    %v3119 = vunpack.c.l.b16 %v535
    %v3120 = vunpack.c.h.b16 %v535
    %v3121 = vunpack.c.l.b16 %v536
    %v3122 = vunpack.c.h.b16 %v536
    %v3123 = vunpack.c.l.b16 %v537
    %v3124 = vunpack.c.h.b16 %v537
    %v3125 = vunpack.c.l.b16 %v538
    %v3126 = vunpack.c.h.b16 %v538
    %v3127 = vunpack.c.l.b16 %v539
    %v3128 = vunpack.c.h.b16 %v539
    %v3129 = vunpack.c.l.b16 %v540
    %v3130 = vunpack.c.h.b16 %v540
    %v3131 = vunpack.c.l.b16 %v541
    %v3132 = vunpack.c.h.b16 %v541
    %v3133 = vunpack.c.l.b16 %v542
    %v3134 = vunpack.c.h.b16 %v542
    %v3135 = vunpack.c.l.b16 %v543
    %v3136 = vunpack.c.h.b16 %v543
    %v3137 = vunpack.c.l.b16 %v544
    %v3138 = vunpack.c.h.b16 %v544
    %v3139 = vunpack.c.l.b16 %v545
    %v3140 = vunpack.c.h.b16 %v545
    %v3141 = vunpack.c.l.b16 %v546
    %v3142 = vunpack.c.h.b16 %v546
    %v3143 = vunpack.c.l.b16 %v547
    %v3144 = vunpack.c.h.b16 %v547
    %v3145 = vunpack.c.l.b16 %v548
    %v3146 = vunpack.c.h.b16 %v548
    %v3147 = vunpack.c.l.b16 %v549
    %v3148 = vunpack.c.h.b16 %v549
    %v3149 = vunpack.c.l.b16 %v550
    %v3150 = vunpack.c.h.b16 %v550
    %v3151 = vunpack.c.l.b16 %v551
    %v3152 = vunpack.c.h.b16 %v551
    %v3153 = vunpack.c.l.b16 %v552
    %v3154 = vunpack.c.h.b16 %v552
    %v3155 = vunpack.c.l.b16 %v553
    %v3156 = vunpack.c.h.b16 %v553
    %v3157 = vunpack.c.l.b16 %v554
    %v3158 = vunpack.c.h.b16 %v554
    %v3159 = vunpack.c.l.b16 %v555
    %v3160 = vunpack.c.h.b16 %v555
    %v3161 = vunpack.c.l.b16 %v556
    %v3162 = vunpack.c.h.b16 %v556
    %v3163 = vunpack.c.l.b16 %v557
    %v3164 = vunpack.c.h.b16 %v557
    %v3165 = vunpack.c.l.b16 %v558
    %v3166 = vunpack.c.h.b16 %v558
    %v3167 = vunpack.c.l.b16 %v559
    %v3168 = vunpack.c.h.b16 %v559
    %v3169 = vunpack.c.l.b16 %v560
    %v3170 = vunpack.c.h.b16 %v560
    %v3171 = vunpack.c.l.b16 %v561
    %v3172 = vunpack.c.h.b16 %v561
    %v3173 = vunpack.c.l.b16 %v562
    %v3174 = vunpack.c.h.b16 %v562
    %v3175 = vunpack.c.l.b16 %v563
    %v3176 = vunpack.c.h.b16 %v563
    %v3177 = vunpack.c.l.b16 %v564
    %v3178 = vunpack.c.h.b16 %v564
    %v3179 = vunpack.c.l.b16 %v565
    %v3180 = vunpack.c.h.b16 %v565
    %v3181 = vunpack.c.l.b16 %v566
    %v3182 = vunpack.c.h.b16 %v566
    %v3183 = vunpack.c.l.b16 %v567
    %v3184 = vunpack.c.h.b16 %v567
    %v3185 = vunpack.c.l.b16 %v568
    %v3186 = vunpack.c.h.b16 %v568
    %v3187 = vunpack.c.l.b16 %v569
    %v3188 = vunpack.c.h.b16 %v569
    %v3189 = vunpack.c.l.b16 %v570
    %v3190 = vunpack.c.h.b16 %v570
    %v3191 = vunpack.c.l.b16 %v571
    %v3192 = vunpack.c.h.b16 %v571
    %v3193 = vunpack.c.l.b16 %v572
    %v3194 = vunpack.c.h.b16 %v572
    %v3195 = vunpack.c.l.b16 %v573
    %v3196 = vunpack.c.h.b16 %v573
    %v3197 = vunpack.c.l.b16 %v574
    %v3198 = vunpack.c.h.b16 %v574
    %v3199 = vunpack.c.l.b16 %v575
    %v3200 = vunpack.c.h.b16 %v575
    %v3201 = vunpack.c.l.b16 %v576
    %v3202 = vunpack.c.h.b16 %v576
    %v3203 = vunpack.c.l.b16 %v577
    %v3204 = vunpack.c.h.b16 %v577
    %v3205 = vunpack.c.l.b16 %v578
    %v3206 = vunpack.c.h.b16 %v578
    %v3207 = vunpack.c.l.b16 %v579
    %v3208 = vunpack.c.h.b16 %v579
    %v3209 = vunpack.c.l.b16 %v580
    %v3210 = vunpack.c.h.b16 %v580
    %v3211 = vunpack.c.l.b16 %v581
    %v3212 = vunpack.c.h.b16 %v581
    %v3213 = vunpack.c.l.b16 %v582
    %v3214 = vunpack.c.h.b16 %v582
    %v3215 = vunpack.c.l.b16 %v583
    %v3216 = vunpack.c.h.b16 %v583
    %v3217 = vunpack.c.l.b16 %v584
    %v3218 = vunpack.c.h.b16 %v584
    %v3219 = vunpack.c.l.b16 %v585
    %v3220 = vunpack.c.h.b16 %v585
    %v3221 = vunpack.c.l.b16 %v586
    %v3222 = vunpack.c.h.b16 %v586
    %v3223 = vunpack.c.l.b16 %v587
    %v3224 = vunpack.c.h.b16 %v587
    %v3225 = vunpack.c.l.b16 %v588
    %v3226 = vunpack.c.h.b16 %v588
    %v3227 = vunpack.c.l.b16 %v589
    %v3228 = vunpack.c.h.b16 %v589
    %v3229 = vunpack.c.l.b16 %v590
    %v3230 = vunpack.c.h.b16 %v590
    %v3231 = vunpack.c.l.b16 %v591
    %v3232 = vunpack.c.h.b16 %v591
    %v3233 = vunpack.c.l.b16 %v592
    %v3234 = vunpack.c.h.b16 %v592
    %v3235 = vunpack.c.l.b16 %v593
    %v3236 = vunpack.c.h.b16 %v593
    %v3237 = vunpack.c.l.b16 %v594
    %v3238 = vunpack.c.h.b16 %v594
    %v3239 = vunpack.c.l.b16 %v595
    %v3240 = vunpack.c.h.b16 %v595
    %v3241 = vunpack.c.l.b16 %v596
    %v3242 = vunpack.c.h.b16 %v596
    %v3243 = vunpack.c.l.b16 %v597
    %v3244 = vunpack.c.h.b16 %v597
    %v3245 = vunpack.c.l.b16 %v598
    %v3246 = vunpack.c.h.b16 %v598
    %v3247 = vunpack.c.l.b16 %v599
    %v3248 = vunpack.c.h.b16 %v599
    %v3249 = vunpack.c.l.b16 %v600
    %v3250 = vunpack.c.h.b16 %v600
    %v3251 = vunpack.c.l.b16 %v601
    %v3252 = vunpack.c.h.b16 %v601
    %v3253 = vunpack.c.l.b16 %v602
    %v3254 = vunpack.c.h.b16 %v602
    %v3255 = vunpack.c.l.b16 %v603
    %v3256 = vunpack.c.h.b16 %v603
    %v3257 = vunpack.c.l.b16 %v604
    %v3258 = vunpack.c.h.b16 %v604
    %v3259 = vunpack.c.l.b16 %v605
    %v3260 = vunpack.c.h.b16 %v605
    %v3261 = vunpack.c.l.b16 %v606
    %v3262 = vunpack.c.h.b16 %v606
    %v3263 = vunpack.c.l.b16 %v607
    %v3264 = vunpack.c.h.b16 %v607
    %v3265 = vunpack.c.l.b16 %v608
    %v3266 = vunpack.c.h.b16 %v608
    %v3267 = vunpack.c.l.b16 %v609
    %v3268 = vunpack.c.h.b16 %v609
    %v3269 = vunpack.c.l.b16 %v610
    %v3270 = vunpack.c.h.b16 %v610
    %v3271 = vunpack.c.l.b16 %v611
    %v3272 = vunpack.c.h.b16 %v611
    %v3273 = vunpack.c.l.b16 %v612
    %v3274 = vunpack.c.h.b16 %v612
    %v3275 = vunpack.c.l.b16 %v613
    %v3276 = vunpack.c.h.b16 %v613
    %v3277 = vunpack.c.l.b16 %v614
    %v3278 = vunpack.c.h.b16 %v614
    %v3279 = vunpack.c.l.b16 %v615
    %v3280 = vunpack.c.h.b16 %v615
    %v3281 = vunpack.c.l.b16 %v616
    %v3282 = vunpack.c.h.b16 %v616
    %v3283 = vunpack.c.l.b16 %v617
    %v3284 = vunpack.c.h.b16 %v617
    %v3285 = vunpack.c.l.b16 %v618
    %v3286 = vunpack.c.h.b16 %v618
    %v3287 = vunpack.c.l.b16 %v619
    %v3288 = vunpack.c.h.b16 %v619
    %v3289 = vunpack.c.l.b16 %v620
    %v3290 = vunpack.c.h.b16 %v620
    %v3291 = vunpack.c.l.b16 %v621
    %v3292 = vunpack.c.h.b16 %v621
    %v3293 = vunpack.c.l.b16 %v622
    %v3294 = vunpack.c.h.b16 %v622
    %v3295 = vunpack.c.l.b16 %v623
    %v3296 = vunpack.c.h.b16 %v623
    %v3297 = vunpack.c.l.b16 %v624
    %v3298 = vunpack.c.h.b16 %v624
    %v3299 = vunpack.c.l.b16 %v625
    %v3300 = vunpack.c.h.b16 %v625
    %v3301 = vunpack.c.l.b16 %v626
    %v3302 = vunpack.c.h.b16 %v626
    %v3303 = vunpack.c.l.b16 %v627
    %v3304 = vunpack.c.h.b16 %v627
    %v3305 = vunpack.c.l.b16 %v628
    %v3306 = vunpack.c.h.b16 %v628
    %v3307 = vunpack.c.l.b16 %v629
    %v3308 = vunpack.c.h.b16 %v629
    %v3309 = vunpack.c.l.b16 %v630
    %v3310 = vunpack.c.h.b16 %v630
    %v3311 = vunpack.c.l.b16 %v631
    %v3312 = vunpack.c.h.b16 %v631
    %v3313 = vunpack.c.l.b16 %v632
    %v3314 = vunpack.c.h.b16 %v632
    %v3315 = vunpack.c.l.b16 %v633
    %v3316 = vunpack.c.h.b16 %v633
    %v3317 = vunpack.c.l.b16 %v634
    %v3318 = vunpack.c.h.b16 %v634
    %v3319 = vunpack.c.l.b16 %v635
    %v3320 = vunpack.c.h.b16 %v635
    %v3321 = vunpack.c.l.b16 %v636
    %v3322 = vunpack.c.h.b16 %v636
    %v3323 = vunpack.c.l.b16 %v637
    %v3324 = vunpack.c.h.b16 %v637
    %v3325 = vunpack.c.l.b16 %v638
    %v3326 = vunpack.c.h.b16 %v638
    %v3327 = vunpack.c.l.b16 %v639
    %v3328 = vunpack.c.h.b16 %v639
    %v3329 = vunpack.c.l.b16 %v640
    %v3330 = vunpack.c.h.b16 %v640
    %v3331 = vunpack.c.l.b16 %v641
    %v3332 = vunpack.c.h.b16 %v641
    %v3333 = vunpack.c.l.b16 %v642
    %v3334 = vunpack.c.h.b16 %v642
    %v3335 = vunpack.c.l.b16 %v643
    %v3336 = vunpack.c.h.b16 %v643
    %v3337 = vunpack.c.l.b16 %v644
    %v3338 = vunpack.c.h.b16 %v644
    %v3339 = vunpack.c.l.b16 %v645
    %v3340 = vunpack.c.h.b16 %v645
    %v3341 = vunpack.c.l.b16 %v646
    %v3342 = vunpack.c.h.b16 %v646
    %v3343 = vunpack.c.l.b16 %v647
    %v3344 = vunpack.c.h.b16 %v647
    %v3345 = vunpack.c.l.b16 %v648
    %v3346 = vunpack.c.h.b16 %v648
    %v3347 = vunpack.c.l.b16 %v649
    %v3348 = vunpack.c.h.b16 %v649
    %v3349 = vunpack.c.l.b16 %v650
    %v3350 = vunpack.c.h.b16 %v650
    %v3351 = vunpack.c.l.b16 %v651
    %v3352 = vunpack.c.h.b16 %v651
    %v3353 = vunpack.c.l.b16 %v652
    %v3354 = vunpack.c.h.b16 %v652
    %v3355 = vunpack.c.l.b16 %v653
    %v3356 = vunpack.c.h.b16 %v653
    %v3357 = vunpack.c.l.b16 %v654
    %v3358 = vunpack.c.h.b16 %v654
    %v3359 = vunpack.c.l.b16 %v655
    %v3360 = vunpack.c.h.b16 %v655
    %v3361 = vunpack.c.l.b16 %v656
    %v3362 = vunpack.c.h.b16 %v656
    %v3363 = vunpack.c.l.b16 %v657
    %v3364 = vunpack.c.h.b16 %v657
    %v3365 = vunpack.c.l.b16 %v658
    %v3366 = vunpack.c.h.b16 %v658
    %v3367 = vunpack.c.l.b16 %v659
    %v3368 = vunpack.c.h.b16 %v659
    %v3369 = vunpack.c.l.b16 %v660
    %v3370 = vunpack.c.h.b16 %v660
    %v3371 = vunpack.c.l.b16 %v661
    %v3372 = vunpack.c.h.b16 %v661
    %v3373 = vunpack.c.l.b16 %v662
    %v3374 = vunpack.c.h.b16 %v662
    %v3375 = vunpack.c.l.b16 %v663
    %v3376 = vunpack.c.h.b16 %v663
    %v3377 = vunpack.c.l.b16 %v664
    %v3378 = vunpack.c.h.b16 %v664
    %v3379 = vunpack.c.l.b16 %v665
    %v3380 = vunpack.c.h.b16 %v665
    %v3381 = vunpack.c.l.b16 %v666
    %v3382 = vunpack.c.h.b16 %v666
    %v3383 = vunpack.c.l.b16 %v667
    %v3384 = vunpack.c.h.b16 %v667
    %v3385 = vunpack.c.l.b16 %v668
    %v3386 = vunpack.c.h.b16 %v668
    %v3387 = vunpack.c.l.b16 %v669
    %v3388 = vunpack.c.h.b16 %v669
    %v3389 = vunpack.c.l.b16 %v670
    %v3390 = vunpack.c.h.b16 %v670
    %v3391 = vunpack.c.l.b16 %v671
    %v3392 = vunpack.c.h.b16 %v671
    %v3393 = vunpack.c.l.b16 %v672
    %v3394 = vunpack.c.h.b16 %v672
    %v3395 = vunpack.c.l.b16 %v673
    %v3396 = vunpack.c.h.b16 %v673
    %v3397 = vunpack.c.l.b16 %v674
    %v3398 = vunpack.c.h.b16 %v674
    %v3399 = vunpack.c.l.b16 %v675
    %v3400 = vunpack.c.h.b16 %v675
    %v3401 = vunpack.c.l.b16 %v676
    %v3402 = vunpack.c.h.b16 %v676
    %v3403 = vunpack.c.l.b16 %v677
    %v3404 = vunpack.c.h.b16 %v677
    %v3405 = vunpack.c.l.b16 %v678
    %v3406 = vunpack.c.h.b16 %v678
    %v3407 = vunpack.c.l.b16 %v679
    %v3408 = vunpack.c.h.b16 %v679
    %v3409 = vunpack.c.l.b16 %v680
    %v3410 = vunpack.c.h.b16 %v680
    %v3411 = vunpack.c.l.b16 %v681
    %v3412 = vunpack.c.h.b16 %v681
    %v3413 = vunpack.c.l.b16 %v682
    %v3414 = vunpack.c.h.b16 %v682
    %v3415 = vunpack.c.l.b16 %v683
    %v3416 = vunpack.c.h.b16 %v683
    %v3417 = vunpack.c.l.b16 %v684
    %v3418 = vunpack.c.h.b16 %v684
    %v3419 = vunpack.c.l.b16 %v685
    %v3420 = vunpack.c.h.b16 %v685
    %v3421 = vunpack.c.l.b16 %v686
    %v3422 = vunpack.c.h.b16 %v686
    %v3423 = vunpack.c.l.b16 %v687
    %v3424 = vunpack.c.h.b16 %v687
    %v3425 = vunpack.c.l.b16 %v688
    %v3426 = vunpack.c.h.b16 %v688
    %v3427 = vunpack.c.l.b16 %v689
    %v3428 = vunpack.c.h.b16 %v689
    %v3429 = vunpack.c.l.b16 %v690
    %v3430 = vunpack.c.h.b16 %v690
    %v3431 = vunpack.c.l.b16 %v691
    %v3432 = vunpack.c.h.b16 %v691
    %v3433 = vunpack.c.l.b16 %v692
    %v3434 = vunpack.c.h.b16 %v692
    %v3435 = vunpack.c.l.b16 %v693
    %v3436 = vunpack.c.h.b16 %v693
    %v3437 = vunpack.c.l.b16 %v694
    %v3438 = vunpack.c.h.b16 %v694
    %v3439 = vunpack.c.l.b16 %v695
    %v3440 = vunpack.c.h.b16 %v695
    %v3441 = vunpack.c.l.b16 %v696
    %v3442 = vunpack.c.h.b16 %v696
    %v3443 = vunpack.c.l.b16 %v697
    %v3444 = vunpack.c.h.b16 %v697
    %v3445 = vunpack.c.l.b16 %v698
    %v3446 = vunpack.c.h.b16 %v698
    %v3447 = vunpack.c.l.b16 %v699
    %v3448 = vunpack.c.h.b16 %v699
    %v3449 = vunpack.c.l.b16 %v700
    %v3450 = vunpack.c.h.b16 %v700
    %v3451 = vunpack.c.l.b16 %v701
    %v3452 = vunpack.c.h.b16 %v701
    %v3453 = vunpack.c.l.b16 %v702
    %v3454 = vunpack.c.h.b16 %v702
    %v3455 = vunpack.c.l.b16 %v703
    %v3456 = vunpack.c.h.b16 %v703
    %v3457 = vunpack.c.l.b16 %v704
    %v3458 = vunpack.c.h.b16 %v704
    %v3459 = vunpack.c.l.b16 %v705
    %v3460 = vunpack.c.h.b16 %v705
    %v3461 = vunpack.c.l.b16 %v706
    %v3462 = vunpack.c.h.b16 %v706
    %v3463 = vunpack.c.l.b16 %v707
    %v3464 = vunpack.c.h.b16 %v707
    %v3465 = vunpack.c.l.b16 %v708
    %v3466 = vunpack.c.h.b16 %v708
    %v3467 = vunpack.c.l.b16 %v709
    %v3468 = vunpack.c.h.b16 %v709
    %v3469 = vunpack.c.l.b16 %v710
    %v3470 = vunpack.c.h.b16 %v710
    %v3471 = vunpack.c.l.b16 %v711
    %v3472 = vunpack.c.h.b16 %v711
    %v3473 = vunpack.c.l.b16 %v712
    %v3474 = vunpack.c.h.b16 %v712
    %v3475 = vunpack.c.l.b16 %v713
    %v3476 = vunpack.c.h.b16 %v713
    %v3477 = vunpack.c.l.b16 %v714
    %v3478 = vunpack.c.h.b16 %v714
    %v3479 = vunpack.c.l.b16 %v715
    %v3480 = vunpack.c.h.b16 %v715
    %v3481 = vunpack.c.l.b16 %v716
    %v3482 = vunpack.c.h.b16 %v716
    %v3483 = vunpack.c.l.b16 %v717
    %v3484 = vunpack.c.h.b16 %v717
    %v3485 = vunpack.c.l.b16 %v718
    %v3486 = vunpack.c.h.b16 %v718
    %v3487 = vunpack.c.l.b16 %v719
    %v3488 = vunpack.c.h.b16 %v719
    %v3489 = vunpack.c.l.b16 %v720
    %v3490 = vunpack.c.h.b16 %v720
    %v3491 = vunpack.c.l.b16 %v721
    %v3492 = vunpack.c.h.b16 %v721
    %v3493 = vunpack.c.l.b16 %v722
    %v3494 = vunpack.c.h.b16 %v722
    %v3495 = vunpack.c.l.b16 %v723
    %v3496 = vunpack.c.h.b16 %v723
    %v3497 = vunpack.c.l.b16 %v724
    %v3498 = vunpack.c.h.b16 %v724
    %v3499 = vunpack.c.l.b16 %v725
    %v3500 = vunpack.c.h.b16 %v725
    %v3501 = vunpack.c.l.b16 %v726
    %v3502 = vunpack.c.h.b16 %v726
    %v3503 = vunpack.c.l.b16 %v727
    %v3504 = vunpack.c.h.b16 %v727
    %v3505 = vunpack.c.l.b16 %v728
    %v3506 = vunpack.c.h.b16 %v728
    %v3507 = vunpack.c.l.b16 %v729
    %v3508 = vunpack.c.h.b16 %v729
    %v3509 = vunpack.c.l.b16 %v730
    %v3510 = vunpack.c.h.b16 %v730
    %v3511 = vunpack.c.l.b16 %v731
    %v3512 = vunpack.c.h.b16 %v731
    %v3513 = vunpack.c.l.b16 %v732
    %v3514 = vunpack.c.h.b16 %v732
    %v3515 = vunpack.c.l.b16 %v733
    %v3516 = vunpack.c.h.b16 %v733
    %v3517 = vunpack.c.l.b16 %v734
    %v3518 = vunpack.c.h.b16 %v734
    %v3519 = vunpack.c.l.b16 %v735
    %v3520 = vunpack.c.h.b16 %v735
    %v3521 = vunpack.c.l.b16 %v736
    %v3522 = vunpack.c.h.b16 %v736
    %v3523 = vunpack.c.l.b16 %v737
    %v3524 = vunpack.c.h.b16 %v737
    %v3525 = vunpack.c.l.b16 %v738
    %v3526 = vunpack.c.h.b16 %v738
    %v3527 = vunpack.c.l.b16 %v739
    %v3528 = vunpack.c.h.b16 %v739
    %v3529 = vunpack.c.l.b16 %v740
    %v3530 = vunpack.c.h.b16 %v740
    %v3531 = vunpack.c.l.b16 %v741
    %v3532 = vunpack.c.h.b16 %v741
    %v3533 = vunpack.c.l.b16 %v742
    %v3534 = vunpack.c.h.b16 %v742
    %v3535 = vunpack.c.l.b16 %v743
    %v3536 = vunpack.c.h.b16 %v743
    %v3537 = vunpack.c.l.b16 %v744
    %v3538 = vunpack.c.h.b16 %v744
    %v3539 = vunpack.c.l.b16 %v745
    %v3540 = vunpack.c.h.b16 %v745
    %v3541 = vunpack.c.l.b16 %v746
    %v3542 = vunpack.c.h.b16 %v746
    %v3543 = vunpack.c.l.b16 %v747
    %v3544 = vunpack.c.h.b16 %v747
    %v3545 = vunpack.c.l.b16 %v748
    %v3546 = vunpack.c.h.b16 %v748
    %v3547 = vunpack.c.l.b16 %v749
    %v3548 = vunpack.c.h.b16 %v749
    %v3549 = vunpack.c.l.b16 %v750
    %v3550 = vunpack.c.h.b16 %v750
    %v3551 = vunpack.c.l.b16 %v751
    %v3552 = vunpack.c.h.b16 %v751
    %v3553 = vunpack.c.l.b16 %v752
    %v3554 = vunpack.c.h.b16 %v752
    %v3555 = vunpack.c.l.b16 %v753
    %v3556 = vunpack.c.h.b16 %v753
    %v3557 = vunpack.c.l.b16 %v754
    %v3558 = vunpack.c.h.b16 %v754
    %v3559 = vunpack.c.l.b16 %v755
    %v3560 = vunpack.c.h.b16 %v755
    %v3561 = vunpack.c.l.b16 %v756
    %v3562 = vunpack.c.h.b16 %v756
    %v3563 = vunpack.c.l.b16 %v757
    %v3564 = vunpack.c.h.b16 %v757
    %v3565 = vunpack.c.l.b16 %v758
    %v3566 = vunpack.c.h.b16 %v758
    %v3567 = vunpack.c.l.b16 %v759
    %v3568 = vunpack.c.h.b16 %v759
    %v3569 = vunpack.c.l.b16 %v760
    %v3570 = vunpack.c.h.b16 %v760
    %v3571 = vunpack.c.l.b16 %v761
    %v3572 = vunpack.c.h.b16 %v761
    %v3573 = vunpack.c.l.b16 %v762
    %v3574 = vunpack.c.h.b16 %v762
    %v3575 = vunpack.c.l.b16 %v763
    %v3576 = vunpack.c.h.b16 %v763
    %v3577 = vunpack.c.l.b16 %v764
    %v3578 = vunpack.c.h.b16 %v764
    %v3579 = vunpack.c.l.b16 %v765
    %v3580 = vunpack.c.h.b16 %v765
    %v3581 = vunpack.c.l.b16 %v766
    %v3582 = vunpack.c.h.b16 %v766
    %v3583 = vunpack.c.l.b16 %v767
    %v3584 = vunpack.c.h.b16 %v767
    %v3585 = vunpack.c.l.b16 %v768
    %v3586 = vunpack.c.h.b16 %v768
    %v3587 = vunpack.c.l.b16 %v769
    %v3588 = vunpack.c.h.b16 %v769
    %v3589 = vunpack.c.l.b16 %v770
    %v3590 = vunpack.c.h.b16 %v770
    %v3591 = vunpack.c.l.b16 %v771
    %v3592 = vunpack.c.h.b16 %v771
    %v3593 = vunpack.c.l.b16 %v772
    %v3594 = vunpack.c.h.b16 %v772
    %v3595 = vunpack.c.l.b16 %v773
    %v3596 = vunpack.c.h.b16 %v773
    %v3597 = vunpack.c.l.b16 %v774
    %v3598 = vunpack.c.h.b16 %v774
    %v3599 = vunpack.c.l.b16 %v775
    %v3600 = vunpack.c.h.b16 %v775
    %v3601 = vunpack.c.l.b16 %v776
    %v3602 = vunpack.c.h.b16 %v776
    %v3603 = vunpack.c.l.b16 %v777
    %v3604 = vunpack.c.h.b16 %v777
    %v3605 = vunpack.c.l.b16 %v778
    %v3606 = vunpack.c.h.b16 %v778
    %v3607 = vunpack.c.l.b16 %v779
    %v3608 = vunpack.c.h.b16 %v779
    %v3609 = vunpack.c.l.b16 %v780
    %v3610 = vunpack.c.h.b16 %v780
    %v3611 = vunpack.c.l.b16 %v781
    %v3612 = vunpack.c.h.b16 %v781
    %v3613 = vunpack.c.l.b16 %v782
    %v3614 = vunpack.c.h.b16 %v782
    %v3615 = vunpack.c.l.b16 %v783
    %v3616 = vunpack.c.h.b16 %v783
    %v3617 = vunpack.c.l.b16 %v784
    %v3618 = vunpack.c.h.b16 %v784
    %v3619 = vunpack.c.l.b16 %v785
    %v3620 = vunpack.c.h.b16 %v785
    %v3621 = vunpack.c.l.b16 %v786
    %v3622 = vunpack.c.h.b16 %v786
    %v3623 = vunpack.c.l.b16 %v787
    %v3624 = vunpack.c.h.b16 %v787
    %v3625 = vunpack.c.l.b16 %v788
    %v3626 = vunpack.c.h.b16 %v788
    %v3627 = vunpack.c.l.b16 %v789
    %v3628 = vunpack.c.h.b16 %v789
    %v3629 = vunpack.c.l.b16 %v790
    %v3630 = vunpack.c.h.b16 %v790
    %v3631 = vunpack.c.l.b16 %v791
    %v3632 = vunpack.c.h.b16 %v791
    %v3633 = vunpack.c.l.b16 %v792
    %v3634 = vunpack.c.h.b16 %v792
    %v3635 = vunpack.c.l.b16 %v793
    %v3636 = vunpack.c.h.b16 %v793
    %v3637 = vunpack.c.l.b16 %v794
    %v3638 = vunpack.c.h.b16 %v794
    %v3639 = vunpack.c.l.b16 %v795
    %v3640 = vunpack.c.h.b16 %v795
    %v3641 = vunpack.c.l.b16 %v796
    %v3642 = vunpack.c.h.b16 %v796
    %v3643 = vunpack.c.l.b16 %v797
    %v3644 = vunpack.c.h.b16 %v797
    %v3645 = vunpack.c.l.b16 %v798
    %v3646 = vunpack.c.h.b16 %v798
    %v3647 = vunpack.c.l.b16 %v799
    %v3648 = vunpack.c.h.b16 %v799
    %v3649 = vunpack.c.l.b16 %v800
    %v3650 = vunpack.c.h.b16 %v800
    %v3651 = vunpack.c.l.b16 %v801
    %v3652 = vunpack.c.h.b16 %v801
    %v3653 = vunpack.c.l.b16 %v802
    %v3654 = vunpack.c.h.b16 %v802
    %v3655 = vunpack.c.l.b16 %v803
    %v3656 = vunpack.c.h.b16 %v803
    %v3657 = vunpack.c.l.b16 %v804
    %v3658 = vunpack.c.h.b16 %v804
    %v3659 = vunpack.c.l.b16 %v805
    %v3660 = vunpack.c.h.b16 %v805
    %v3661 = vunpack.c.l.b16 %v806
    %v3662 = vunpack.c.h.b16 %v806
    %v3663 = vunpack.c.l.b16 %v807
    %v3664 = vunpack.c.h.b16 %v807
    %v3665 = vunpack.c.l.b16 %v808
    %v3666 = vunpack.c.h.b16 %v808
    %v3667 = vunpack.c.l.b16 %v809
    %v3668 = vunpack.c.h.b16 %v809
    %v3669 = vunpack.c.l.b16 %v810
    %v3670 = vunpack.c.h.b16 %v810
    %v3671 = vunpack.c.l.b16 %v811
    %v3672 = vunpack.c.h.b16 %v811
    %v3673 = vunpack.c.l.b16 %v812
    %v3674 = vunpack.c.h.b16 %v812
    %v3675 = vunpack.c.l.b16 %v813
    %v3676 = vunpack.c.h.b16 %v813
    %v3677 = vunpack.c.l.b16 %v814
    %v3678 = vunpack.c.h.b16 %v814
    %v3679 = vunpack.c.l.b16 %v815
    %v3680 = vunpack.c.h.b16 %v815
    %v3681 = vunpack.c.l.b16 %v816
    %v3682 = vunpack.c.h.b16 %v816
    %v3683 = vunpack.c.l.b16 %v817
    %v3684 = vunpack.c.h.b16 %v817
    %v3685 = vunpack.c.l.b16 %v818
    %v3686 = vunpack.c.h.b16 %v818
    %v3687 = vunpack.c.l.b16 %v819
    %v3688 = vunpack.c.h.b16 %v819
    %v3689 = vunpack.c.l.b16 %v820
    %v3690 = vunpack.c.h.b16 %v820
    %v3691 = vunpack.c.l.b16 %v821
    %v3692 = vunpack.c.h.b16 %v821
    %v3693 = vunpack.c.l.b16 %v822
    %v3694 = vunpack.c.h.b16 %v822
    %v3695 = vunpack.c.l.b16 %v823
    %v3696 = vunpack.c.h.b16 %v823
    %v3697 = vunpack.c.l.b16 %v824
    %v3698 = vunpack.c.h.b16 %v824
    %v3699 = vunpack.c.l.b16 %v825
    %v3700 = vunpack.c.h.b16 %v825
    %v3701 = vunpack.c.l.b16 %v826
    %v3702 = vunpack.c.h.b16 %v826
    %v3703 = vunpack.c.l.b16 %v827
    %v3704 = vunpack.c.h.b16 %v827
    %v3705 = vunpack.c.l.b16 %v828
    %v3706 = vunpack.c.h.b16 %v828
    %v3707 = vunpack.c.l.b16 %v829
    %v3708 = vunpack.c.h.b16 %v829
    %v3709 = vunpack.c.l.b16 %v830
    %v3710 = vunpack.c.h.b16 %v830
    %v3711 = vunpack.c.l.b16 %v831
    %v3712 = vunpack.c.h.b16 %v831
    %v3713 = vunpack.c.l.b16 %v832
    %v3714 = vunpack.c.h.b16 %v832
    %v3715 = vunpack.c.l.b16 %v833
    %v3716 = vunpack.c.h.b16 %v833
    %v3717 = vunpack.c.l.b16 %v834
    %v3718 = vunpack.c.h.b16 %v834
    %v3719 = vunpack.c.l.b16 %v835
    %v3720 = vunpack.c.h.b16 %v835
    %v3721 = vunpack.c.l.b16 %v836
    %v3722 = vunpack.c.h.b16 %v836
    %v3723 = vunpack.c.l.b16 %v837
    %v3724 = vunpack.c.h.b16 %v837
    %v3725 = vpack.c.b16 %v2161, %v2157
    %v3726 = vpack.c.b16 %v2162, %v2158
    %v3727 = vpack.c.b16 %v2163, %v2159
    %v3728 = vpack.c.b16 %v2164, %v2160
    %v3729 = vpack.c.b16 %v2169, %v2165
    %v3730 = vpack.c.b16 %v2170, %v2166
    %v3731 = vpack.c.b16 %v2171, %v2167
    %v3732 = vpack.c.b16 %v2172, %v2168
    %v3733 = vpack.c.b16 %v2177, %v2173
    %v3734 = vpack.c.b16 %v2178, %v2174
    %v3735 = vpack.c.b16 %v2179, %v2175
    %v3736 = vpack.c.b16 %v2180, %v2176
    %v3737 = vpack.c.b16 %v2185, %v2181
    %v3738 = vpack.c.b16 %v2186, %v2182
    %v3739 = vpack.c.b16 %v2187, %v2183
    %v3740 = vpack.c.b16 %v2188, %v2184
    %v3741 = vpack.c.b16 %v2193, %v2189
    %v3742 = vpack.c.b16 %v2194, %v2190
    %v3743 = vpack.c.b16 %v2195, %v2191
    %v3744 = vpack.c.b16 %v2196, %v2192
    %v3745 = vpack.c.b16 %v2201, %v2197
    %v3746 = vpack.c.b16 %v2202, %v2198
    %v3747 = vpack.c.b16 %v2203, %v2199
    %v3748 = vpack.c.b16 %v2204, %v2200
    %v3749 = vpack.c.b16 %v2209, %v2205
    %v3750 = vpack.c.b16 %v2210, %v2206
    %v3751 = vpack.c.b16 %v2211, %v2207
    %v3752 = vpack.c.b16 %v2212, %v2208
    %v3753 = vpack.c.b16 %v2217, %v2213
    %v3754 = vpack.c.b16 %v2218, %v2214
    %v3755 = vpack.c.b16 %v2219, %v2215
    %v3756 = vpack.c.b16 %v2220, %v2216
    %v3757 = vpack.c.b16 %v2225, %v2221
    %v3758 = vpack.c.b16 %v2226, %v2222
    %v3759 = vpack.c.b16 %v2227, %v2223
    %v3760 = vpack.c.b16 %v2228, %v2224
    %v3761 = vpack.c.b16 %v2233, %v2229
    %v3762 = vpack.c.b16 %v2234, %v2230
    %v3763 = vpack.c.b16 %v2235, %v2231
    %v3764 = vpack.c.b16 %v2236, %v2232
    %v3765 = vpack.c.b16 %v2241, %v2237
    %v3766 = vpack.c.b16 %v2242, %v2238
    %v3767 = vpack.c.b16 %v2243, %v2239
    %v3768 = vpack.c.b16 %v2244, %v2240
    %v3769 = vpack.c.b16 %v2249, %v2245
    %v3770 = vpack.c.b16 %v2250, %v2246
    %v3771 = vpack.c.b16 %v2251, %v2247
    %v3772 = vpack.c.b16 %v2252, %v2248
    %v3773 = vpack.c.b16 %v2257, %v2253
    %v3774 = vpack.c.b16 %v2258, %v2254
    %v3775 = vpack.c.b16 %v2259, %v2255
    %v3776 = vpack.c.b16 %v2260, %v2256
    %v3777 = vpack.c.b16 %v2265, %v2261
    %v3778 = vpack.c.b16 %v2266, %v2262
    %v3779 = vpack.c.b16 %v2267, %v2263
    %v3780 = vpack.c.b16 %v2268, %v2264
    %v3781 = vpack.c.b16 %v2273, %v2269
    %v3782 = vpack.c.b16 %v2274, %v2270
    %v3783 = vpack.c.b16 %v2275, %v2271
    %v3784 = vpack.c.b16 %v2276, %v2272
    %v3785 = vpack.c.b16 %v2281, %v2277
    %v3786 = vpack.c.b16 %v2282, %v2278
    %v3787 = vpack.c.b16 %v2283, %v2279
    %v3788 = vpack.c.b16 %v2284, %v2280
    %v3789 = vpack.c.b16 %v2289, %v2285
    %v3790 = vpack.c.b16 %v2290, %v2286
    %v3791 = vpack.c.b16 %v2291, %v2287
    %v3792 = vpack.c.b16 %v2292, %v2288
    %v3793 = vpack.c.b16 %v2297, %v2293
    %v3794 = vpack.c.b16 %v2298, %v2294
    %v3795 = vpack.c.b16 %v2299, %v2295
    %v3796 = vpack.c.b16 %v2300, %v2296
    %v3797 = vpack.c.b16 %v2305, %v2301
    %v3798 = vpack.c.b16 %v2306, %v2302
    %v3799 = vpack.c.b16 %v2307, %v2303
    %v3800 = vpack.c.b16 %v2308, %v2304
    %v3801 = vpack.c.b16 %v2313, %v2309
    %v3802 = vpack.c.b16 %v2314, %v2310
    %v3803 = vpack.c.b16 %v2315, %v2311
    %v3804 = vpack.c.b16 %v2316, %v2312
    %v3805 = vpack.c.b16 %v2321, %v2317
    %v3806 = vpack.c.b16 %v2322, %v2318
    %v3807 = vpack.c.b16 %v2323, %v2319
    %v3808 = vpack.c.b16 %v2324, %v2320
    %v3809 = vpack.c.b16 %v2329, %v2325
    %v3810 = vpack.c.b16 %v2330, %v2326
    %v3811 = vpack.c.b16 %v2331, %v2327
    %v3812 = vpack.c.b16 %v2332, %v2328
    %v3813 = vpack.c.b16 %v2337, %v2333
    %v3814 = vpack.c.b16 %v2338, %v2334
    %v3815 = vpack.c.b16 %v2339, %v2335
    %v3816 = vpack.c.b16 %v2340, %v2336
    %v3817 = vpack.c.b16 %v2345, %v2341
    %v3818 = vpack.c.b16 %v2346, %v2342
    %v3819 = vpack.c.b16 %v2347, %v2343
    %v3820 = vpack.c.b16 %v2348, %v2344
    %v3821 = vpack.c.b16 %v2353, %v2349
    %v3822 = vpack.c.b16 %v2354, %v2350
    %v3823 = vpack.c.b16 %v2355, %v2351
    %v3824 = vpack.c.b16 %v2356, %v2352
    %v3825 = vpack.c.b16 %v2361, %v2357
    %v3826 = vpack.c.b16 %v2362, %v2358
    %v3827 = vpack.c.b16 %v2363, %v2359
    %v3828 = vpack.c.b16 %v2364, %v2360
    %v3829 = vpack.c.b16 %v2369, %v2365
    %v3830 = vpack.c.b16 %v2370, %v2366
    %v3831 = vpack.c.b16 %v2371, %v2367
    %v3832 = vpack.c.b16 %v2372, %v2368
    %v3833 = vpack.c.b16 %v2377, %v2373
    %v3834 = vpack.c.b16 %v2378, %v2374
    %v3835 = vpack.c.b16 %v2379, %v2375
    %v3836 = vpack.c.b16 %v2380, %v2376
    %v3837 = vpack.c.b16 %v2385, %v2381
    %v3838 = vpack.c.b16 %v2386, %v2382
    %v3839 = vpack.c.b16 %v2387, %v2383
    %v3840 = vpack.c.b16 %v2388, %v2384
    %v3841 = vpack.c.b16 %v2393, %v2389
    %v3842 = vpack.c.b16 %v2394, %v2390
    %v3843 = vpack.c.b16 %v2395, %v2391
    %v3844 = vpack.c.b16 %v2396, %v2392
    %v3845 = vpack.c.b16 %v2401, %v2397
    %v3846 = vpack.c.b16 %v2402, %v2398
    %v3847 = vpack.c.b16 %v2403, %v2399
    %v3848 = vpack.c.b16 %v2404, %v2400
    %v3849 = vpack.c.b16 %v2409, %v2405
    %v3850 = vpack.c.b16 %v2410, %v2406
    %v3851 = vpack.c.b16 %v2411, %v2407
    %v3852 = vpack.c.b16 %v2412, %v2408
    %v3853 = vpack.c.b16 %v2417, %v2413
    %v3854 = vpack.c.b16 %v2418, %v2414
    %v3855 = vpack.c.b16 %v2419, %v2415
    %v3856 = vpack.c.b16 %v2420, %v2416
    %v3857 = vpack.c.b16 %v2425, %v2421
    %v3858 = vpack.c.b16 %v2426, %v2422
    %v3859 = vpack.c.b16 %v2427, %v2423
    %v3860 = vpack.c.b16 %v2428, %v2424
    %v3861 = vpack.c.b16 %v2433, %v2429
    %v3862 = vpack.c.b16 %v2434, %v2430
    %v3863 = vpack.c.b16 %v2435, %v2431
    %v3864 = vpack.c.b16 %v2436, %v2432
    %v3865 = vpack.c.b16 %v2441, %v2437
    %v3866 = vpack.c.b16 %v2442, %v2438
    %v3867 = vpack.c.b16 %v2443, %v2439
    %v3868 = vpack.c.b16 %v2444, %v2440
    %v3869 = vpack.c.b16 %v2449, %v2445
    %v3870 = vpack.c.b16 %v2450, %v2446
    %v3871 = vpack.c.b16 %v2451, %v2447
    %v3872 = vpack.c.b16 %v2452, %v2448
    %v3873 = vpack.c.b16 %v2457, %v2453
    %v3874 = vpack.c.b16 %v2458, %v2454
    %v3875 = vpack.c.b16 %v2459, %v2455
    %v3876 = vpack.c.b16 %v2460, %v2456
    %v3877 = vpack.c.b16 %v2465, %v2461
    %v3878 = vpack.c.b16 %v2466, %v2462
    %v3879 = vpack.c.b16 %v2467, %v2463
    %v3880 = vpack.c.b16 %v2468, %v2464
    %v3881 = vpack.c.b16 %v2473, %v2469
    %v3882 = vpack.c.b16 %v2474, %v2470
    %v3883 = vpack.c.b16 %v2475, %v2471
    %v3884 = vpack.c.b16 %v2476, %v2472
    %v3885 = vpack.c.b16 %v2481, %v2477
    %v3886 = vpack.c.b16 %v2482, %v2478
    %v3887 = vpack.c.b16 %v2483, %v2479
    %v3888 = vpack.c.b16 %v2484, %v2480
    %v3889 = vpack.c.b16 %v2489, %v2485
    %v3890 = vpack.c.b16 %v2490, %v2486
    %v3891 = vpack.c.b16 %v2491, %v2487
    %v3892 = vpack.c.b16 %v2492, %v2488
    %v3893 = vpack.c.b16 %v2497, %v2493
    %v3894 = vpack.c.b16 %v2498, %v2494
    %v3895 = vpack.c.b16 %v2499, %v2495
    %v3896 = vpack.c.b16 %v2500, %v2496
    %v3897 = vpack.c.b16 %v2505, %v2501
    %v3898 = vpack.c.b16 %v2506, %v2502
    %v3899 = vpack.c.b16 %v2507, %v2503
    %v3900 = vpack.c.b16 %v2508, %v2504
    %v3901 = vpack.c.b16 %v2513, %v2509
    %v3902 = vpack.c.b16 %v2514, %v2510
    %v3903 = vpack.c.b16 %v2515, %v2511
    %v3904 = vpack.c.b16 %v2516, %v2512
    %v3905 = vpack.c.b16 %v2521, %v2517
    %v3906 = vpack.c.b16 %v2522, %v2518
    %v3907 = vpack.c.b16 %v2523, %v2519
    %v3908 = vpack.c.b16 %v2524, %v2520
    %v3909 = vpack.c.b16 %v2529, %v2525
    %v3910 = vpack.c.b16 %v2530, %v2526
    %v3911 = vpack.c.b16 %v2531, %v2527
    %v3912 = vpack.c.b16 %v2532, %v2528
    %v3913 = vpack.c.b16 %v2537, %v2533
    %v3914 = vpack.c.b16 %v2538, %v2534
    %v3915 = vpack.c.b16 %v2539, %v2535
    %v3916 = vpack.c.b16 %v2540, %v2536
    %v3917 = vpack.c.b16 %v2545, %v2541
    %v3918 = vpack.c.b16 %v2546, %v2542
    %v3919 = vpack.c.b16 %v2547, %v2543
    %v3920 = vpack.c.b16 %v2548, %v2544
    %v3921 = vpack.c.b16 %v2553, %v2549
    %v3922 = vpack.c.b16 %v2554, %v2550
    %v3923 = vpack.c.b16 %v2555, %v2551
    %v3924 = vpack.c.b16 %v2556, %v2552
    %v3925 = vpack.c.b16 %v2561, %v2557
    %v3926 = vpack.c.b16 %v2562, %v2558
    %v3927 = vpack.c.b16 %v2563, %v2559
    %v3928 = vpack.c.b16 %v2564, %v2560
    %v3929 = vpack.c.b16 %v2569, %v2565
    %v3930 = vpack.c.b16 %v2570, %v2566
    %v3931 = vpack.c.b16 %v2571, %v2567
    %v3932 = vpack.c.b16 %v2572, %v2568
    %v3933 = vpack.c.b16 %v2577, %v2573
    %v3934 = vpack.c.b16 %v2578, %v2574
    %v3935 = vpack.c.b16 %v2579, %v2575
    %v3936 = vpack.c.b16 %v2580, %v2576
    %v3937 = vpack.c.b16 %v2585, %v2581
    %v3938 = vpack.c.b16 %v2586, %v2582
    %v3939 = vpack.c.b16 %v2587, %v2583
    %v3940 = vpack.c.b16 %v2588, %v2584
    %v3941 = vpack.c.b16 %v2593, %v2589
    %v3942 = vpack.c.b16 %v2594, %v2590
    %v3943 = vpack.c.b16 %v2595, %v2591
    %v3944 = vpack.c.b16 %v2596, %v2592
    %v3945 = vpack.c.b16 %v2601, %v2597
    %v3946 = vpack.c.b16 %v2602, %v2598
    %v3947 = vpack.c.b16 %v2603, %v2599
    %v3948 = vpack.c.b16 %v2604, %v2600
    %v3949 = vpack.c.b16 %v2609, %v2605
    %v3950 = vpack.c.b16 %v2610, %v2606
    %v3951 = vpack.c.b16 %v2611, %v2607
    %v3952 = vpack.c.b16 %v2612, %v2608
    %v3953 = vpack.c.b16 %v2617, %v2613
    %v3954 = vpack.c.b16 %v2618, %v2614
    %v3955 = vpack.c.b16 %v2619, %v2615
    %v3956 = vpack.c.b16 %v2620, %v2616
    %v3957 = vpack.c.b16 %v2625, %v2621
    %v3958 = vpack.c.b16 %v2626, %v2622
    %v3959 = vpack.c.b16 %v2627, %v2623
    %v3960 = vpack.c.b16 %v2628, %v2624
    %v3961 = vpack.c.b16 %v2633, %v2629
    %v3962 = vpack.c.b16 %v2634, %v2630
    %v3963 = vpack.c.b16 %v2635, %v2631
    %v3964 = vpack.c.b16 %v2636, %v2632
    %v3965 = vpack.c.b16 %v2641, %v2637
    %v3966 = vpack.c.b16 %v2642, %v2638
    %v3967 = vpack.c.b16 %v2643, %v2639
    %v3968 = vpack.c.b16 %v2644, %v2640
    %v3969 = vpack.c.b16 %v2649, %v2645
    %v3970 = vpack.c.b16 %v2650, %v2646
    %v3971 = vpack.c.b16 %v2651, %v2647
    %v3972 = vpack.c.b16 %v2652, %v2648
    %v3973 = vpack.c.b16 %v2657, %v2653
    %v3974 = vpack.c.b16 %v2658, %v2654
    %v3975 = vpack.c.b16 %v2659, %v2655
    %v3976 = vpack.c.b16 %v2660, %v2656
    %v3977 = vpack.c.b16 %v2665, %v2661
    %v3978 = vpack.c.b16 %v2666, %v2662
    %v3979 = vpack.c.b16 %v2667, %v2663
    %v3980 = vpack.c.b16 %v2668, %v2664
    %v3981 = vpack.c.b16 %v2673, %v2669
    %v3982 = vpack.c.b16 %v2674, %v2670
    %v3983 = vpack.c.b16 %v2675, %v2671
    %v3984 = vpack.c.b16 %v2676, %v2672
    %v3985 = vpack.c.b16 %v2681, %v2677
    %v3986 = vpack.c.b16 %v2682, %v2678
    %v3987 = vpack.c.b16 %v2683, %v2679
    %v3988 = vpack.c.b16 %v2684, %v2680
    %v3989 = vpack.c.b16 %v2689, %v2685
    %v3990 = vpack.c.b16 %v2690, %v2686
    %v3991 = vpack.c.b16 %v2691, %v2687
    %v3992 = vpack.c.b16 %v2692, %v2688
    %v3993 = vpack.c.b16 %v2697, %v2693
    %v3994 = vpack.c.b16 %v2698, %v2694
    %v3995 = vpack.c.b16 %v2699, %v2695
    %v3996 = vpack.c.b16 %v2700, %v2696
    %v3997 = vpack.c.b16 %v2705, %v2701
    %v3998 = vpack.c.b16 %v2706, %v2702
    %v3999 = vpack.c.b16 %v2707, %v2703
    %v4000 = vpack.c.b16 %v2708, %v2704
    %v4001 = vpack.c.b16 %v2713, %v2709
    %v4002 = vpack.c.b16 %v2714, %v2710
    %v4003 = vpack.c.b16 %v2715, %v2711
    %v4004 = vpack.c.b16 %v2716, %v2712
    %v4005 = vpack.c.b16 %v2721, %v2717
    %v4006 = vpack.c.b16 %v2722, %v2718
    %v4007 = vpack.c.b16 %v2723, %v2719
    %v4008 = vpack.c.b16 %v2724, %v2720
    %v4009 = vpack.c.b16 %v2729, %v2725
    %v4010 = vpack.c.b16 %v2730, %v2726
    %v4011 = vpack.c.b16 %v2731, %v2727
    %v4012 = vpack.c.b16 %v2732, %v2728
    %v4013 = vpack.c.b16 %v2737, %v2733
    %v4014 = vpack.c.b16 %v2738, %v2734
    %v4015 = vpack.c.b16 %v2739, %v2735
    %v4016 = vpack.c.b16 %v2740, %v2736
    %v4017 = vpack.c.b16 %v2745, %v2741
    %v4018 = vpack.c.b16 %v2746, %v2742
    %v4019 = vpack.c.b16 %v2747, %v2743
    %v4020 = vpack.c.b16 %v2748, %v2744
    %v4021 = vpack.c.b16 %v2753, %v2749
    %v4022 = vpack.c.b16 %v2754, %v2750
    %v4023 = vpack.c.b16 %v2755, %v2751
    %v4024 = vpack.c.b16 %v2756, %v2752
    %v4025 = vpack.c.b16 %v2761, %v2757
    %v4026 = vpack.c.b16 %v2762, %v2758
    %v4027 = vpack.c.b16 %v2763, %v2759
    %v4028 = vpack.c.b16 %v2764, %v2760
    %v4029 = vpack.c.b16 %v2769, %v2765
    %v4030 = vpack.c.b16 %v2770, %v2766
    %v4031 = vpack.c.b16 %v2771, %v2767
    %v4032 = vpack.c.b16 %v2772, %v2768
    %v4033 = vpack.c.b16 %v2777, %v2773
    %v4034 = vpack.c.b16 %v2778, %v2774
    %v4035 = vpack.c.b16 %v2779, %v2775
    %v4036 = vpack.c.b16 %v2780, %v2776
    %v4037 = vpack.c.b16 %v2785, %v2781
    %v4038 = vpack.c.b16 %v2786, %v2782
    %v4039 = vpack.c.b16 %v2787, %v2783
    %v4040 = vpack.c.b16 %v2788, %v2784
    %v4041 = vpack.c.b16 %v2793, %v2789
    %v4042 = vpack.c.b16 %v2794, %v2790
    %v4043 = vpack.c.b16 %v2795, %v2791
    %v4044 = vpack.c.b16 %v2796, %v2792
    %v4045 = vpack.c.b16 %v2801, %v2797
    %v4046 = vpack.c.b16 %v2802, %v2798
    %v4047 = vpack.c.b16 %v2803, %v2799
    %v4048 = vpack.c.b16 %v2804, %v2800
    %v4049 = vpack.c.b16 %v2809, %v2805
    %v4050 = vpack.c.b16 %v2810, %v2806
    %v4051 = vpack.c.b16 %v2811, %v2807
    %v4052 = vpack.c.b16 %v2812, %v2808
    %v4053 = vpack.c.b16 %v2817, %v2813
    %v4054 = vpack.c.b16 %v2818, %v2814
    %v4055 = vpack.c.b16 %v2819, %v2815
    %v4056 = vpack.c.b16 %v2820, %v2816
    %v4057 = vpack.c.b16 %v2825, %v2821
    %v4058 = vpack.c.b16 %v2826, %v2822
    %v4059 = vpack.c.b16 %v2827, %v2823
    %v4060 = vpack.c.b16 %v2828, %v2824
    %v4061 = vpack.c.b16 %v2833, %v2829
    %v4062 = vpack.c.b16 %v2834, %v2830
    %v4063 = vpack.c.b16 %v2835, %v2831
    %v4064 = vpack.c.b16 %v2836, %v2832
    %v4065 = vpack.c.b16 %v2841, %v2837
    %v4066 = vpack.c.b16 %v2842, %v2838
    %v4067 = vpack.c.b16 %v2843, %v2839
    %v4068 = vpack.c.b16 %v2844, %v2840
    %v4069 = vpack.c.b16 %v2849, %v2845
    %v4070 = vpack.c.b16 %v2850, %v2846
    %v4071 = vpack.c.b16 %v2851, %v2847
    %v4072 = vpack.c.b16 %v2852, %v2848
    %v4073 = vpack.c.b16 %v2857, %v2853
    %v4074 = vpack.c.b16 %v2858, %v2854
    %v4075 = vpack.c.b16 %v2859, %v2855
    %v4076 = vpack.c.b16 %v2860, %v2856
    %v4077 = vpack.c.b16 %v2865, %v2861
    %v4078 = vpack.c.b16 %v2866, %v2862
    %v4079 = vpack.c.b16 %v2867, %v2863
    %v4080 = vpack.c.b16 %v2868, %v2864
    %v4081 = vpack.c.b16 %v2873, %v2869
    %v4082 = vpack.c.b16 %v2874, %v2870
    %v4083 = vpack.c.b16 %v2875, %v2871
    %v4084 = vpack.c.b16 %v2876, %v2872
    %v4085 = vpack.c.b16 %v2881, %v2877
    %v4086 = vpack.c.b16 %v2882, %v2878
    %v4087 = vpack.c.b16 %v2883, %v2879
    %v4088 = vpack.c.b16 %v2884, %v2880
    %v4089 = vpack.c.b16 %v2889, %v2885
    %v4090 = vpack.c.b16 %v2890, %v2886
    %v4091 = vpack.c.b16 %v2891, %v2887
    %v4092 = vpack.c.b16 %v2892, %v2888
    %v4093 = vpack.c.b16 %v2897, %v2893
    %v4094 = vpack.c.b16 %v2898, %v2894
    %v4095 = vpack.c.b16 %v2899, %v2895
    %v4096 = vpack.c.b16 %v2900, %v2896
    %v4097 = vpack.c.b16 %v2905, %v2901
    %v4098 = vpack.c.b16 %v2906, %v2902
    %v4099 = vpack.c.b16 %v2907, %v2903
    %v4100 = vpack.c.b16 %v2908, %v2904
    %v4101 = vpack.c.b16 %v2913, %v2909
    %v4102 = vpack.c.b16 %v2914, %v2910
    %v4103 = vpack.c.b16 %v2915, %v2911
    %v4104 = vpack.c.b16 %v2916, %v2912
    %v4105 = vpack.c.b16 %v2921, %v2917
    %v4106 = vpack.c.b16 %v2922, %v2918
    %v4107 = vpack.c.b16 %v2923, %v2919
    %v4108 = vpack.c.b16 %v2924, %v2920
    %v4109 = vpack.c.b16 %v2929, %v2925
    %v4110 = vpack.c.b16 %v2930, %v2926
    %v4111 = vpack.c.b16 %v2931, %v2927
    %v4112 = vpack.c.b16 %v2932, %v2928
    %v4113 = vpack.c.b16 %v2937, %v2933
    %v4114 = vpack.c.b16 %v2938, %v2934
    %v4115 = vpack.c.b16 %v2939, %v2935
    %v4116 = vpack.c.b16 %v2940, %v2936
    %v4117 = vpack.c.b16 %v2945, %v2941
    %v4118 = vpack.c.b16 %v2946, %v2942
    %v4119 = vpack.c.b16 %v2947, %v2943
    %v4120 = vpack.c.b16 %v2948, %v2944
    %v4121 = vpack.c.b16 %v2953, %v2949
    %v4122 = vpack.c.b16 %v2954, %v2950
    %v4123 = vpack.c.b16 %v2955, %v2951
    %v4124 = vpack.c.b16 %v2956, %v2952
    %v4125 = vpack.c.b16 %v2961, %v2957
    %v4126 = vpack.c.b16 %v2962, %v2958
    %v4127 = vpack.c.b16 %v2963, %v2959
    %v4128 = vpack.c.b16 %v2964, %v2960
    %v4129 = vpack.c.b16 %v2969, %v2965
    %v4130 = vpack.c.b16 %v2970, %v2966
    %v4131 = vpack.c.b16 %v2971, %v2967
    %v4132 = vpack.c.b16 %v2972, %v2968
    %v4133 = vpack.c.b16 %v2977, %v2973
    %v4134 = vpack.c.b16 %v2978, %v2974
    %v4135 = vpack.c.b16 %v2979, %v2975
    %v4136 = vpack.c.b16 %v2980, %v2976
    %v4137 = vpack.c.b16 %v2985, %v2981
    %v4138 = vpack.c.b16 %v2986, %v2982
    %v4139 = vpack.c.b16 %v2987, %v2983
    %v4140 = vpack.c.b16 %v2988, %v2984
    %v4141 = vpack.c.b16 %v2993, %v2989
    %v4142 = vpack.c.b16 %v2994, %v2990
    %v4143 = vpack.c.b16 %v2995, %v2991
    %v4144 = vpack.c.b16 %v2996, %v2992
    %v4145 = vpack.c.b16 %v3001, %v2997
    %v4146 = vpack.c.b16 %v3002, %v2998
    %v4147 = vpack.c.b16 %v3003, %v2999
    %v4148 = vpack.c.b16 %v3004, %v3000
    %v4149 = vpack.c.b16 %v3009, %v3005
    %v4150 = vpack.c.b16 %v3010, %v3006
    %v4151 = vpack.c.b16 %v3011, %v3007
    %v4152 = vpack.c.b16 %v3012, %v3008
    %v4153 = vpack.c.b16 %v3017, %v3013
    %v4154 = vpack.c.b16 %v3018, %v3014
    %v4155 = vpack.c.b16 %v3019, %v3015
    %v4156 = vpack.c.b16 %v3020, %v3016
    %v4157 = vpack.c.b16 %v3025, %v3021
    %v4158 = vpack.c.b16 %v3026, %v3022
    %v4159 = vpack.c.b16 %v3027, %v3023
    %v4160 = vpack.c.b16 %v3028, %v3024
    %v4161 = vpack.c.b16 %v3033, %v3029
    %v4162 = vpack.c.b16 %v3034, %v3030
    %v4163 = vpack.c.b16 %v3035, %v3031
    %v4164 = vpack.c.b16 %v3036, %v3032
    %v4165 = vpack.c.b16 %v3041, %v3037
    %v4166 = vpack.c.b16 %v3042, %v3038
    %v4167 = vpack.c.b16 %v3043, %v3039
    %v4168 = vpack.c.b16 %v3044, %v3040
    %v4169 = vpack.c.b16 %v3049, %v3045
    %v4170 = vpack.c.b16 %v3050, %v3046
    %v4171 = vpack.c.b16 %v3051, %v3047
    %v4172 = vpack.c.b16 %v3052, %v3048
    %v4173 = vpack.c.b16 %v3057, %v3053
    %v4174 = vpack.c.b16 %v3058, %v3054
    %v4175 = vpack.c.b16 %v3059, %v3055
    %v4176 = vpack.c.b16 %v3060, %v3056
    %v4177 = vpack.c.b16 %v3065, %v3061
    %v4178 = vpack.c.b16 %v3066, %v3062
    %v4179 = vpack.c.b16 %v3067, %v3063
    %v4180 = vpack.c.b16 %v3068, %v3064
    %v4181 = vpack.c.b16 %v3073, %v3069
    %v4182 = vpack.c.b16 %v3074, %v3070
    %v4183 = vpack.c.b16 %v3075, %v3071
    %v4184 = vpack.c.b16 %v3076, %v3072
    %v4185 = vpack.c.b16 %v3081, %v3077
    %v4186 = vpack.c.b16 %v3082, %v3078
    %v4187 = vpack.c.b16 %v3083, %v3079
    %v4188 = vpack.c.b16 %v3084, %v3080
    %v4189 = vpack.c.b16 %v3089, %v3085
    %v4190 = vpack.c.b16 %v3090, %v3086
    %v4191 = vpack.c.b16 %v3091, %v3087
    %v4192 = vpack.c.b16 %v3092, %v3088
    %v4193 = vpack.c.b16 %v3097, %v3093
    %v4194 = vpack.c.b16 %v3098, %v3094
    %v4195 = vpack.c.b16 %v3099, %v3095
    %v4196 = vpack.c.b16 %v3100, %v3096
    %v4197 = vpack.c.b16 %v3105, %v3101
    %v4198 = vpack.c.b16 %v3106, %v3102
    %v4199 = vpack.c.b16 %v3107, %v3103
    %v4200 = vpack.c.b16 %v3108, %v3104
    %v4201 = vpack.c.b16 %v3113, %v3109
    %v4202 = vpack.c.b16 %v3114, %v3110
    %v4203 = vpack.c.b16 %v3115, %v3111
    %v4204 = vpack.c.b16 %v3116, %v3112
    %v4205 = vpack.c.b16 %v3121, %v3117
    %v4206 = vpack.c.b16 %v3122, %v3118
    %v4207 = vpack.c.b16 %v3123, %v3119
    %v4208 = vpack.c.b16 %v3124, %v3120
    %v4209 = vpack.c.b16 %v3129, %v3125
    %v4210 = vpack.c.b16 %v3130, %v3126
    %v4211 = vpack.c.b16 %v3131, %v3127
    %v4212 = vpack.c.b16 %v3132, %v3128
    %v4213 = vpack.c.b16 %v3137, %v3133
    %v4214 = vpack.c.b16 %v3138, %v3134
    %v4215 = vpack.c.b16 %v3139, %v3135
    %v4216 = vpack.c.b16 %v3140, %v3136
    %v4217 = vpack.c.b16 %v3145, %v3141
    %v4218 = vpack.c.b16 %v3146, %v3142
    %v4219 = vpack.c.b16 %v3147, %v3143
    %v4220 = vpack.c.b16 %v3148, %v3144
    %v4221 = vpack.c.b16 %v3153, %v3149
    %v4222 = vpack.c.b16 %v3154, %v3150
    %v4223 = vpack.c.b16 %v3155, %v3151
    %v4224 = vpack.c.b16 %v3156, %v3152
    %v4225 = vpack.c.b16 %v3161, %v3157
    %v4226 = vpack.c.b16 %v3162, %v3158
    %v4227 = vpack.c.b16 %v3163, %v3159
    %v4228 = vpack.c.b16 %v3164, %v3160
    %v4229 = vpack.c.b16 %v3169, %v3165
    %v4230 = vpack.c.b16 %v3170, %v3166
    %v4231 = vpack.c.b16 %v3171, %v3167
    %v4232 = vpack.c.b16 %v3172, %v3168
    %v4233 = vpack.c.b16 %v3177, %v3173
    %v4234 = vpack.c.b16 %v3178, %v3174
    %v4235 = vpack.c.b16 %v3179, %v3175
    %v4236 = vpack.c.b16 %v3180, %v3176
    %v4237 = vpack.c.b16 %v3185, %v3181
    %v4238 = vpack.c.b16 %v3186, %v3182
    %v4239 = vpack.c.b16 %v3187, %v3183
    %v4240 = vpack.c.b16 %v3188, %v3184
    %v4241 = vpack.c.b16 %v3193, %v3189
    %v4242 = vpack.c.b16 %v3194, %v3190
    %v4243 = vpack.c.b16 %v3195, %v3191
    %v4244 = vpack.c.b16 %v3196, %v3192
    %v4245 = vpack.c.b16 %v3201, %v3197
    %v4246 = vpack.c.b16 %v3202, %v3198
    %v4247 = vpack.c.b16 %v3203, %v3199
    %v4248 = vpack.c.b16 %v3204, %v3200
    %v4249 = vpack.c.b16 %v3209, %v3205
    %v4250 = vpack.c.b16 %v3210, %v3206
    %v4251 = vpack.c.b16 %v3211, %v3207
    %v4252 = vpack.c.b16 %v3212, %v3208
    %v4253 = vpack.c.b16 %v3217, %v3213
    %v4254 = vpack.c.b16 %v3218, %v3214
    %v4255 = vpack.c.b16 %v3219, %v3215
    %v4256 = vpack.c.b16 %v3220, %v3216
    %v4257 = vpack.c.b16 %v3225, %v3221
    %v4258 = vpack.c.b16 %v3226, %v3222
    %v4259 = vpack.c.b16 %v3227, %v3223
    %v4260 = vpack.c.b16 %v3228, %v3224
    %v4261 = vpack.c.b16 %v3233, %v3229
    %v4262 = vpack.c.b16 %v3234, %v3230
    %v4263 = vpack.c.b16 %v3235, %v3231
    %v4264 = vpack.c.b16 %v3236, %v3232
    %v4265 = vpack.c.b16 %v3241, %v3237
    %v4266 = vpack.c.b16 %v3242, %v3238
    %v4267 = vpack.c.b16 %v3243, %v3239
    %v4268 = vpack.c.b16 %v3244, %v3240
    %v4269 = vpack.c.b16 %v3249, %v3245
    %v4270 = vpack.c.b16 %v3250, %v3246
    %v4271 = vpack.c.b16 %v3251, %v3247
    %v4272 = vpack.c.b16 %v3252, %v3248
    %v4273 = vpack.c.b16 %v3257, %v3253
    %v4274 = vpack.c.b16 %v3258, %v3254
    %v4275 = vpack.c.b16 %v3259, %v3255
    %v4276 = vpack.c.b16 %v3260, %v3256
    %v4277 = vpack.c.b16 %v3265, %v3261
    %v4278 = vpack.c.b16 %v3266, %v3262
    %v4279 = vpack.c.b16 %v3267, %v3263
    %v4280 = vpack.c.b16 %v3268, %v3264
    %v4281 = vpack.c.b16 %v3273, %v3269
    %v4282 = vpack.c.b16 %v3274, %v3270
    %v4283 = vpack.c.b16 %v3275, %v3271
    %v4284 = vpack.c.b16 %v3276, %v3272
    %v4285 = vpack.c.b16 %v3281, %v3277
    %v4286 = vpack.c.b16 %v3282, %v3278
    %v4287 = vpack.c.b16 %v3283, %v3279
    %v4288 = vpack.c.b16 %v3284, %v3280
    %v4289 = vpack.c.b16 %v3289, %v3285
    %v4290 = vpack.c.b16 %v3290, %v3286
    %v4291 = vpack.c.b16 %v3291, %v3287
    %v4292 = vpack.c.b16 %v3292, %v3288
    %v4293 = vpack.c.b16 %v3297, %v3293
    %v4294 = vpack.c.b16 %v3298, %v3294
    %v4295 = vpack.c.b16 %v3299, %v3295
    %v4296 = vpack.c.b16 %v3300, %v3296
    %v4297 = vpack.c.b16 %v3305, %v3301
    %v4298 = vpack.c.b16 %v3306, %v3302
    %v4299 = vpack.c.b16 %v3307, %v3303
    %v4300 = vpack.c.b16 %v3308, %v3304
    %v4301 = vpack.c.b16 %v3313, %v3309
    %v4302 = vpack.c.b16 %v3314, %v3310
    %v4303 = vpack.c.b16 %v3315, %v3311
    %v4304 = vpack.c.b16 %v3316, %v3312
    %v4305 = vpack.c.b16 %v3321, %v3317
    %v4306 = vpack.c.b16 %v3322, %v3318
    %v4307 = vpack.c.b16 %v3323, %v3319
    %v4308 = vpack.c.b16 %v3324, %v3320
    %v4309 = vpack.c.b16 %v3329, %v3325
    %v4310 = vpack.c.b16 %v3330, %v3326
    %v4311 = vpack.c.b16 %v3331, %v3327
    %v4312 = vpack.c.b16 %v3332, %v3328
    %v4313 = vpack.c.b16 %v3337, %v3333
    %v4314 = vpack.c.b16 %v3338, %v3334
    %v4315 = vpack.c.b16 %v3339, %v3335
    %v4316 = vpack.c.b16 %v3340, %v3336
    %v4317 = vpack.c.b16 %v3345, %v3341
    %v4318 = vpack.c.b16 %v3346, %v3342
    %v4319 = vpack.c.b16 %v3347, %v3343
    %v4320 = vpack.c.b16 %v3348, %v3344
    %v4321 = vpack.c.b16 %v3353, %v3349
    %v4322 = vpack.c.b16 %v3354, %v3350
    %v4323 = vpack.c.b16 %v3355, %v3351
    %v4324 = vpack.c.b16 %v3356, %v3352
    %v4325 = vpack.c.b16 %v3361, %v3357
    %v4326 = vpack.c.b16 %v3362, %v3358
    %v4327 = vpack.c.b16 %v3363, %v3359
    %v4328 = vpack.c.b16 %v3364, %v3360
    %v4329 = vpack.c.b16 %v3369, %v3365
    %v4330 = vpack.c.b16 %v3370, %v3366
    %v4331 = vpack.c.b16 %v3371, %v3367
    %v4332 = vpack.c.b16 %v3372, %v3368
    %v4333 = vpack.c.b16 %v3377, %v3373
    %v4334 = vpack.c.b16 %v3378, %v3374
    %v4335 = vpack.c.b16 %v3379, %v3375
    %v4336 = vpack.c.b16 %v3380, %v3376
    %v4337 = vpack.c.b16 %v3385, %v3381
    %v4338 = vpack.c.b16 %v3386, %v3382
    %v4339 = vpack.c.b16 %v3387, %v3383
    %v4340 = vpack.c.b16 %v3388, %v3384
    %v4341 = vpack.c.b16 %v3393, %v3389
    %v4342 = vpack.c.b16 %v3394, %v3390
    %v4343 = vpack.c.b16 %v3395, %v3391
    %v4344 = vpack.c.b16 %v3396, %v3392
    %v4345 = vpack.c.b16 %v3401, %v3397
    %v4346 = vpack.c.b16 %v3402, %v3398
    %v4347 = vpack.c.b16 %v3403, %v3399
    %v4348 = vpack.c.b16 %v3404, %v3400
    %v4349 = vpack.c.b16 %v3409, %v3405
    %v4350 = vpack.c.b16 %v3410, %v3406
    %v4351 = vpack.c.b16 %v3411, %v3407
    %v4352 = vpack.c.b16 %v3412, %v3408
    %v4353 = vpack.c.b16 %v3417, %v3413
    %v4354 = vpack.c.b16 %v3418, %v3414
    %v4355 = vpack.c.b16 %v3419, %v3415
    %v4356 = vpack.c.b16 %v3420, %v3416
    %v4357 = vpack.c.b16 %v3425, %v3421
    %v4358 = vpack.c.b16 %v3426, %v3422
    %v4359 = vpack.c.b16 %v3427, %v3423
    %v4360 = vpack.c.b16 %v3428, %v3424
    %v4361 = vpack.c.b16 %v3433, %v3429
    %v4362 = vpack.c.b16 %v3434, %v3430
    %v4363 = vpack.c.b16 %v3435, %v3431
    %v4364 = vpack.c.b16 %v3436, %v3432
    %v4365 = vpack.c.b16 %v3441, %v3437
    %v4366 = vpack.c.b16 %v3442, %v3438
    %v4367 = vpack.c.b16 %v3443, %v3439
    %v4368 = vpack.c.b16 %v3444, %v3440
    %v4369 = vpack.c.b16 %v3449, %v3445
    %v4370 = vpack.c.b16 %v3450, %v3446
    %v4371 = vpack.c.b16 %v3451, %v3447
    %v4372 = vpack.c.b16 %v3452, %v3448
    %v4373 = vpack.c.b16 %v3457, %v3453
    %v4374 = vpack.c.b16 %v3458, %v3454
    %v4375 = vpack.c.b16 %v3459, %v3455
    %v4376 = vpack.c.b16 %v3460, %v3456
    %v4377 = vpack.c.b16 %v3465, %v3461
    %v4378 = vpack.c.b16 %v3466, %v3462
    %v4379 = vpack.c.b16 %v3467, %v3463
    %v4380 = vpack.c.b16 %v3468, %v3464
    %v4381 = vpack.c.b16 %v3473, %v3469
    %v4382 = vpack.c.b16 %v3474, %v3470
    %v4383 = vpack.c.b16 %v3475, %v3471
    %v4384 = vpack.c.b16 %v3476, %v3472
    %v4385 = vpack.c.b16 %v3481, %v3477
    %v4386 = vpack.c.b16 %v3482, %v3478
    %v4387 = vpack.c.b16 %v3483, %v3479
    %v4388 = vpack.c.b16 %v3484, %v3480
    %v4389 = vpack.c.b16 %v3489, %v3485
    %v4390 = vpack.c.b16 %v3490, %v3486
    %v4391 = vpack.c.b16 %v3491, %v3487
    %v4392 = vpack.c.b16 %v3492, %v3488
    %v4393 = vpack.c.b16 %v3497, %v3493
    %v4394 = vpack.c.b16 %v3498, %v3494
    %v4395 = vpack.c.b16 %v3499, %v3495
    %v4396 = vpack.c.b16 %v3500, %v3496
    %v4397 = vpack.c.b16 %v3505, %v3501
    %v4398 = vpack.c.b16 %v3506, %v3502
    %v4399 = vpack.c.b16 %v3507, %v3503
    %v4400 = vpack.c.b16 %v3508, %v3504
    %v4401 = vpack.c.b16 %v3513, %v3509
    %v4402 = vpack.c.b16 %v3514, %v3510
    %v4403 = vpack.c.b16 %v3515, %v3511
    %v4404 = vpack.c.b16 %v3516, %v3512
    %v4405 = vpack.c.b16 %v3521, %v3517
    %v4406 = vpack.c.b16 %v3522, %v3518
    %v4407 = vpack.c.b16 %v3523, %v3519
    %v4408 = vpack.c.b16 %v3524, %v3520
    %v4409 = vpack.c.b16 %v3529, %v3525
    %v4410 = vpack.c.b16 %v3530, %v3526
    %v4411 = vpack.c.b16 %v3531, %v3527
    %v4412 = vpack.c.b16 %v3532, %v3528
    %v4413 = vpack.c.b16 %v3537, %v3533
    %v4414 = vpack.c.b16 %v3538, %v3534
    %v4415 = vpack.c.b16 %v3539, %v3535
    %v4416 = vpack.c.b16 %v3540, %v3536
    %v4417 = vpack.c.b16 %v3545, %v3541
    %v4418 = vpack.c.b16 %v3546, %v3542
    %v4419 = vpack.c.b16 %v3547, %v3543
    %v4420 = vpack.c.b16 %v3548, %v3544
    %v4421 = vpack.c.b16 %v3553, %v3549
    %v4422 = vpack.c.b16 %v3554, %v3550
    %v4423 = vpack.c.b16 %v3555, %v3551
    %v4424 = vpack.c.b16 %v3556, %v3552
    %v4425 = vpack.c.b16 %v3561, %v3557
    %v4426 = vpack.c.b16 %v3562, %v3558
    %v4427 = vpack.c.b16 %v3563, %v3559
    %v4428 = vpack.c.b16 %v3564, %v3560
    %v4429 = vpack.c.b16 %v3569, %v3565
    %v4430 = vpack.c.b16 %v3570, %v3566
    %v4431 = vpack.c.b16 %v3571, %v3567
    %v4432 = vpack.c.b16 %v3572, %v3568
    %v4433 = vpack.c.b16 %v3577, %v3573
    %v4434 = vpack.c.b16 %v3578, %v3574
    %v4435 = vpack.c.b16 %v3579, %v3575
    %v4436 = vpack.c.b16 %v3580, %v3576
    %v4437 = vpack.c.b16 %v3585, %v3581
    %v4438 = vpack.c.b16 %v3586, %v3582
    %v4439 = vpack.c.b16 %v3587, %v3583
    %v4440 = vpack.c.b16 %v3588, %v3584
    %v4441 = vpack.c.b16 %v3593, %v3589
    %v4442 = vpack.c.b16 %v3594, %v3590
    %v4443 = vpack.c.b16 %v3595, %v3591
    %v4444 = vpack.c.b16 %v3596, %v3592
    %v4445 = vpack.c.b16 %v3601, %v3597
    %v4446 = vpack.c.b16 %v3602, %v3598
    %v4447 = vpack.c.b16 %v3603, %v3599
    %v4448 = vpack.c.b16 %v3604, %v3600
    %v4449 = vpack.c.b16 %v3609, %v3605
    %v4450 = vpack.c.b16 %v3610, %v3606
    %v4451 = vpack.c.b16 %v3611, %v3607
    %v4452 = vpack.c.b16 %v3612, %v3608
    %v4453 = vpack.c.b16 %v3617, %v3613
    %v4454 = vpack.c.b16 %v3618, %v3614
    %v4455 = vpack.c.b16 %v3619, %v3615
    %v4456 = vpack.c.b16 %v3620, %v3616
    %v4457 = vpack.c.b16 %v3625, %v3621
    %v4458 = vpack.c.b16 %v3626, %v3622
    %v4459 = vpack.c.b16 %v3627, %v3623
    %v4460 = vpack.c.b16 %v3628, %v3624
    %v4461 = vpack.c.b16 %v3633, %v3629
    %v4462 = vpack.c.b16 %v3634, %v3630
    %v4463 = vpack.c.b16 %v3635, %v3631
    %v4464 = vpack.c.b16 %v3636, %v3632
    %v4465 = vpack.c.b16 %v3641, %v3637
    %v4466 = vpack.c.b16 %v3642, %v3638
    %v4467 = vpack.c.b16 %v3643, %v3639
    %v4468 = vpack.c.b16 %v3644, %v3640
    %v4469 = vpack.c.b16 %v3649, %v3645
    %v4470 = vpack.c.b16 %v3650, %v3646
    %v4471 = vpack.c.b16 %v3651, %v3647
    %v4472 = vpack.c.b16 %v3652, %v3648
    %v4473 = vpack.c.b16 %v3657, %v3653
    %v4474 = vpack.c.b16 %v3658, %v3654
    %v4475 = vpack.c.b16 %v3659, %v3655
    %v4476 = vpack.c.b16 %v3660, %v3656
    %v4477 = vpack.c.b16 %v3665, %v3661
    %v4478 = vpack.c.b16 %v3666, %v3662
    %v4479 = vpack.c.b16 %v3667, %v3663
    %v4480 = vpack.c.b16 %v3668, %v3664
    %v4481 = vpack.c.b16 %v3673, %v3669
    %v4482 = vpack.c.b16 %v3674, %v3670
    %v4483 = vpack.c.b16 %v3675, %v3671
    %v4484 = vpack.c.b16 %v3676, %v3672
    %v4485 = vpack.c.b16 %v3681, %v3677
    %v4486 = vpack.c.b16 %v3682, %v3678
    %v4487 = vpack.c.b16 %v3683, %v3679
    %v4488 = vpack.c.b16 %v3684, %v3680
    %v4489 = vpack.c.b16 %v3689, %v3685
    %v4490 = vpack.c.b16 %v3690, %v3686
    %v4491 = vpack.c.b16 %v3691, %v3687
    %v4492 = vpack.c.b16 %v3692, %v3688
    %v4493 = vpack.c.b16 %v3697, %v3693
    %v4494 = vpack.c.b16 %v3698, %v3694
    %v4495 = vpack.c.b16 %v3699, %v3695
    %v4496 = vpack.c.b16 %v3700, %v3696
    %v4497 = vpack.c.b16 %v3705, %v3701
    %v4498 = vpack.c.b16 %v3706, %v3702
    %v4499 = vpack.c.b16 %v3707, %v3703
    %v4500 = vpack.c.b16 %v3708, %v3704
    %v4501 = vpack.c.b16 %v3713, %v3709
    %v4502 = vpack.c.b16 %v3714, %v3710
    %v4503 = vpack.c.b16 %v3715, %v3711
    %v4504 = vpack.c.b16 %v3716, %v3712
    %v4505 = vpack.c.b16 %v3721, %v3717
    %v4506 = vpack.c.b16 %v3722, %v3718
    %v4507 = vpack.c.b16 %v3723, %v3719
    %v4508 = vpack.c.b16 %v3724, %v3720
    %vm5293 = vcmask 523264
    %v5295 = vsel %vm5293, %v1348, 0
    %5297 = vmatprep.subr.bf16.mxu0 %v3726
    %5298 = vmatpush1.bf16.msra.mxu0 %v3725
    %5299 = vmatprep.subr.bf16.mxu0 %v3730
    %5300 = vmatpush1.bf16.msra.mxu0 %v3729
    %5301 = vmatprep.subr.bf16.mxu0 %v3734
    %5302 = vmatpush1.bf16.msra.mxu0 %v3733
    %5303 = vmatprep.subr.bf16.mxu0 %v3738
    %5304 = vmatpush1.bf16.msra.mxu0 %v3737
    %5305 = vmatprep.subr.bf16.mxu0 %v3742
    %5306 = vmatpush1.bf16.msra.mxu0 %v3741
    %5307 = vmatprep.subr.bf16.mxu0 %v3746
    %5308 = vmatpush1.bf16.msra.mxu0 %v3745
    %5309 = vmatprep.subr.bf16.mxu0 %v3750
    %5310 = vmatpush1.bf16.msra.mxu0 %v3749
    %5311 = vmatprep.subr.bf16.mxu0 %v3754
    %5312 = vmatpush1.bf16.msra.mxu0 %v3753
    %5313 = vmatprep.subr.bf16.mxu0 %v3758
    %5314 = vmatpush1.bf16.msra.mxu0 %v3757
    %5315 = vmatprep.subr.bf16.mxu0 %v3762
    %5316 = vmatpush1.bf16.msra.mxu0 %v3761
    %5317 = vmatprep.subr.bf16.mxu0 %v3766
    %5318 = vmatpush1.bf16.msra.mxu0 %v3765
    %5319 = vmatprep.subr.bf16.mxu0 %v3770
    %5320 = vmatpush1.bf16.msra.mxu0 %v3769
    %5321 = vmatprep.subr.bf16.mxu0 %v3774
    %5322 = vmatpush1.bf16.msra.mxu0 %v3773
    %5323 = vmatprep.subr.bf16.mxu0 %v3778
    %5324 = vmatpush1.bf16.msra.mxu0 %v3777
    %5325 = vmatprep.subr.bf16.mxu0 %v3782
    %5326 = vmatpush1.bf16.msra.mxu0 %v3781
    %5327 = vmatprep.subr.bf16.mxu0 %v3786
    %5328 = vmatpush1.bf16.msra.mxu0 %v3785
    %5329 = vmatprep.mubr.bf16.mxu0 %v1024
    %5330 = vmatmul.mubr.bf16.gmra.mrb[0].mxu0 %v1020
    %v5331 = vpop.f32.mrb[0].mxu0
    %v5332 = vadd.f32 %v843, %v5331
    %v5333 = vpop.f32.mrb[0].mxu0
    %v5334 = vadd.f32 %v847, %v5333
    %v5335 = vpop.f32.mrb[0].mxu0
    %v5336 = vadd.f32 %v843, %v5335
    %v5337 = vpop.f32.mrb[0].mxu0
    %v5338 = vadd.f32 %v847, %v5337
    %5339 = vdwg.mxu0
    %5340 = vmatprep.subr.bf16.mxu0 %v3790
    %5341 = vmatpush1.bf16.msra.mxu0 %v3789
    %5342 = vmatprep.subr.bf16.mxu0 %v3794
    %5343 = vmatpush1.bf16.msra.mxu0 %v3793
    %5344 = vmatprep.subr.bf16.mxu0 %v3798
    %5345 = vmatpush1.bf16.msra.mxu0 %v3797
    %5346 = vmatprep.subr.bf16.mxu0 %v3802
    %5347 = vmatpush1.bf16.msra.mxu0 %v3801
    %5348 = vmatprep.subr.bf16.mxu0 %v3806
    %5349 = vmatpush1.bf16.msra.mxu0 %v3805
    %5350 = vmatprep.subr.bf16.mxu0 %v3810
    %5351 = vmatpush1.bf16.msra.mxu0 %v3809
    %5352 = vmatprep.subr.bf16.mxu0 %v3814
    %5353 = vmatpush1.bf16.msra.mxu0 %v3813
    %5354 = vmatprep.subr.bf16.mxu0 %v3818
    %5355 = vmatpush1.bf16.msra.mxu0 %v3817
    %5356 = vmatprep.subr.bf16.mxu0 %v3822
    %5357 = vmatpush1.bf16.msra.mxu0 %v3821
    %5358 = vmatprep.subr.bf16.mxu0 %v3826
    %5359 = vmatpush1.bf16.msra.mxu0 %v3825
    %5360 = vmatprep.subr.bf16.mxu0 %v3830
    %5361 = vmatpush1.bf16.msra.mxu0 %v3829
    %5362 = vmatprep.subr.bf16.mxu0 %v3834
    %5363 = vmatpush1.bf16.msra.mxu0 %v3833
    %5364 = vmatprep.subr.bf16.mxu0 %v3838
    %5365 = vmatpush1.bf16.msra.mxu0 %v3837
    %5366 = vmatprep.subr.bf16.mxu0 %v3842
    %5367 = vmatpush1.bf16.msra.mxu0 %v3841
    %5368 = vmatprep.subr.bf16.mxu0 %v3846
    %5369 = vmatpush1.bf16.msra.mxu0 %v3845
    %5370 = vmatprep.subr.bf16.mxu0 %v3850
    %5371 = vmatpush1.bf16.msra.mxu0 %v3849
    %5372 = vmatprep.mubr.bf16.mxu0 %v1025
    %5373 = vmatmul.mubr.bf16.gmra.mrb[0].mxu0 %v1021
    %v5374 = vpop.f32.mrb[0].mxu0
    %v5375 = vadd.f32 %v5332, %v5374
    %v5376 = vpop.f32.mrb[0].mxu0
    %v5377 = vadd.f32 %v5334, %v5376
    %v5378 = vpop.f32.mrb[0].mxu0
    %v5379 = vadd.f32 %v5336, %v5378
    %v5380 = vpop.f32.mrb[0].mxu0
    %v5381 = vadd.f32 %v5338, %v5380
    %5382 = vdwg.mxu0
    %5383 = vmatprep.subr.bf16.mxu0 %v3854
    %5384 = vmatpush1.bf16.msra.mxu0 %v3853
    %5385 = vmatprep.subr.bf16.mxu0 %v3858
    %5386 = vmatpush1.bf16.msra.mxu0 %v3857
    %5387 = vmatprep.subr.bf16.mxu0 %v3862
    %5388 = vmatpush1.bf16.msra.mxu0 %v3861
    %5389 = vmatprep.subr.bf16.mxu0 %v3866
    %5390 = vmatpush1.bf16.msra.mxu0 %v3865
    %5391 = vmatprep.subr.bf16.mxu0 %v3870
    %5392 = vmatpush1.bf16.msra.mxu0 %v3869
    %5393 = vmatprep.subr.bf16.mxu0 %v3874
    %5394 = vmatpush1.bf16.msra.mxu0 %v3873
    %5395 = vmatprep.subr.bf16.mxu0 %v3878
    %5396 = vmatpush1.bf16.msra.mxu0 %v3877
    %5397 = vmatprep.subr.bf16.mxu0 %v3882
    %5398 = vmatpush1.bf16.msra.mxu0 %v3881
    %5399 = vmatprep.subr.bf16.mxu0 %v3886
    %5400 = vmatpush1.bf16.msra.mxu0 %v3885
    %5401 = vmatprep.subr.bf16.mxu0 %v3890
    %5402 = vmatpush1.bf16.msra.mxu0 %v3889
    %5403 = vmatprep.subr.bf16.mxu0 %v3894
    %5404 = vmatpush1.bf16.msra.mxu0 %v3893
    %5405 = vmatprep.subr.bf16.mxu0 %v3898
    %5406 = vmatpush1.bf16.msra.mxu0 %v3897
    %5407 = vmatprep.subr.bf16.mxu0 %v3902
    %5408 = vmatpush1.bf16.msra.mxu0 %v3901
    %5409 = vmatprep.subr.bf16.mxu0 %v3906
    %5410 = vmatpush1.bf16.msra.mxu0 %v3905
    %5411 = vmatprep.subr.bf16.mxu0 %v3910
    %5412 = vmatpush1.bf16.msra.mxu0 %v3909
    %5413 = vmatprep.subr.bf16.mxu0 %v3914
    %5414 = vmatpush1.bf16.msra.mxu0 %v3913
    %5415 = vmatprep.mubr.bf16.mxu0 %v1026
    %5416 = vmatmul.mubr.bf16.gmra.mrb[0].mxu0 %v1022
    %v5417 = vpop.f32.mrb[0].mxu0
    %v5418 = vadd.f32 %v5375, %v5417
    %v5419 = vpop.f32.mrb[0].mxu0
    %v5420 = vadd.f32 %v5377, %v5419
    %v5421 = vpop.f32.mrb[0].mxu0
    %v5422 = vadd.f32 %v5379, %v5421
    %v5423 = vpop.f32.mrb[0].mxu0
    %v5424 = vadd.f32 %v5381, %v5423
    %5425 = vdwg.mxu0
    %5426 = vmatprep.subr.bf16.mxu0 %v3918
    %5427 = vmatpush1.bf16.msra.mxu0 %v3917
    %5428 = vmatprep.subr.bf16.mxu0 %v3922
    %5429 = vmatpush1.bf16.msra.mxu0 %v3921
    %5430 = vmatprep.subr.bf16.mxu0 %v3926
    %5431 = vmatpush1.bf16.msra.mxu0 %v3925
    %5432 = vmatprep.subr.bf16.mxu0 %v3930
    %5433 = vmatpush1.bf16.msra.mxu0 %v3929
    %5434 = vmatprep.subr.bf16.mxu0 %v3934
    %5435 = vmatpush1.bf16.msra.mxu0 %v3933
    %5436 = vmatprep.subr.bf16.mxu0 %v3938
    %5437 = vmatpush1.bf16.msra.mxu0 %v3937
    %5438 = vmatprep.subr.bf16.mxu0 %v3942
    %5439 = vmatpush1.bf16.msra.mxu0 %v3941
    %5440 = vmatprep.subr.bf16.mxu0 %v3946
    %5441 = vmatpush1.bf16.msra.mxu0 %v3945
    %5442 = vmatprep.subr.bf16.mxu0 %v3950
    %5443 = vmatpush1.bf16.msra.mxu0 %v3949
    %5444 = vmatprep.subr.bf16.mxu0 %v3954
    %5445 = vmatpush1.bf16.msra.mxu0 %v3953
    %5446 = vmatprep.subr.bf16.mxu0 %v3958
    %5447 = vmatpush1.bf16.msra.mxu0 %v3957
    %5448 = vmatprep.subr.bf16.mxu0 %v3962
    %5449 = vmatpush1.bf16.msra.mxu0 %v3961
    %5450 = vmatprep.subr.bf16.mxu0 %v3966
    %5451 = vmatpush1.bf16.msra.mxu0 %v3965
    %5452 = vmatprep.subr.bf16.mxu0 %v3970
    %5453 = vmatpush1.bf16.msra.mxu0 %v3969
    %5454 = vmatprep.subr.bf16.mxu0 %v3974
    %5455 = vmatpush1.bf16.msra.mxu0 %v3973
    %5456 = vmatprep.subr.bf16.mxu0 %v3978
    %5457 = vmatpush1.bf16.msra.mxu0 %v3977
    %5458 = vmatprep.mubr.bf16.mxu0 %v1027
    %5459 = vmatmul.mubr.bf16.gmra.mrb[0].mxu0 %v1023
    %v5460 = vpop.f32.mrb[0].mxu0
    %v5461 = vadd.f32 %v5418, %v5460
    %v5462 = vpop.f32.mrb[0].mxu0
    %v5463 = vadd.f32 %v5420, %v5462
    %v5464 = vpop.f32.mrb[0].mxu0
    %v5465 = vadd.f32 %v5422, %v5464
    %v5466 = vpop.f32.mrb[0].mxu0
    %v5467 = vadd.f32 %v5424, %v5466
    %5468 = vdwg.mxu0
    %5469 = vmatprep.subr.bf16.mxu0 %v3982
    %5470 = vmatpush1.bf16.msra.mxu0 %v3981
    %5471 = vmatprep.subr.bf16.mxu0 %v3986
    %5472 = vmatpush1.bf16.msra.mxu0 %v3985
    %5473 = vmatprep.subr.bf16.mxu0 %v3990
    %5474 = vmatpush1.bf16.msra.mxu0 %v3989
    %5475 = vmatprep.subr.bf16.mxu0 %v3994
    %5476 = vmatpush1.bf16.msra.mxu0 %v3993
    %5477 = vmatprep.subr.bf16.mxu0 %v3998
    %5478 = vmatpush1.bf16.msra.mxu0 %v3997
    %5479 = vmatprep.subr.bf16.mxu0 %v4002
    %5480 = vmatpush1.bf16.msra.mxu0 %v4001
    %5481 = vmatprep.subr.bf16.mxu0 %v4006
    %5482 = vmatpush1.bf16.msra.mxu0 %v4005
    %5483 = vmatprep.subr.bf16.mxu0 %v4010
    %5484 = vmatpush1.bf16.msra.mxu0 %v4009
    %5485 = vmatprep.subr.bf16.mxu0 %v4014
    %5486 = vmatpush1.bf16.msra.mxu0 %v4013
    %5487 = vmatprep.subr.bf16.mxu0 %v4018
    %5488 = vmatpush1.bf16.msra.mxu0 %v4017
    %5489 = vmatprep.subr.bf16.mxu0 %v4022
    %5490 = vmatpush1.bf16.msra.mxu0 %v4021
    %5491 = vmatprep.subr.bf16.mxu0 %v4026
    %5492 = vmatpush1.bf16.msra.mxu0 %v4025
    %5493 = vmatprep.subr.bf16.mxu0 %v4030
    %5494 = vmatpush1.bf16.msra.mxu0 %v4029
    %5495 = vmatprep.subr.bf16.mxu0 %v4034
    %5496 = vmatpush1.bf16.msra.mxu0 %v4033
    %5497 = vmatprep.subr.bf16.mxu0 %v4038
    %5498 = vmatpush1.bf16.msra.mxu0 %v4037
    %5499 = vmatprep.subr.bf16.mxu0 %v4042
    %5500 = vmatpush1.bf16.msra.mxu0 %v4041
    %5501 = vmatprep.mubr.bf16.mxu0 %v1160
    %5502 = vmatmul.mubr.bf16.gmra.mrb[0].mxu0 %v1156
    %v5503 = vpop.f32.mrb[0].mxu0
    %v5504 = vadd.f32 %v5461, %v5503
    %v5505 = vpop.f32.mrb[0].mxu0
    %v5506 = vadd.f32 %v5463, %v5505
    %v5507 = vpop.f32.mrb[0].mxu0
    %v5508 = vadd.f32 %v5465, %v5507
    %v5509 = vpop.f32.mrb[0].mxu0
    %v5510 = vadd.f32 %v5467, %v5509
    %5511 = vdwg.mxu0
    %5512 = vmatprep.subr.bf16.mxu0 %v4046
    %5513 = vmatpush1.bf16.msra.mxu0 %v4045
    %5514 = vmatprep.subr.bf16.mxu0 %v4050
    %5515 = vmatpush1.bf16.msra.mxu0 %v4049
    %5516 = vmatprep.subr.bf16.mxu0 %v4054
    %5517 = vmatpush1.bf16.msra.mxu0 %v4053
    %5518 = vmatprep.subr.bf16.mxu0 %v4058
    %5519 = vmatpush1.bf16.msra.mxu0 %v4057
    %5520 = vmatprep.subr.bf16.mxu0 %v4062
    %5521 = vmatpush1.bf16.msra.mxu0 %v4061
    %5522 = vmatprep.subr.bf16.mxu0 %v4066
    %5523 = vmatpush1.bf16.msra.mxu0 %v4065
    %5524 = vmatprep.subr.bf16.mxu0 %v4070
    %5525 = vmatpush1.bf16.msra.mxu0 %v4069
    %5526 = vmatprep.subr.bf16.mxu0 %v4074
    %5527 = vmatpush1.bf16.msra.mxu0 %v4073
    %5528 = vmatprep.subr.bf16.mxu0 %v4078
    %5529 = vmatpush1.bf16.msra.mxu0 %v4077
    %5530 = vmatprep.subr.bf16.mxu0 %v4082
    %5531 = vmatpush1.bf16.msra.mxu0 %v4081
    %5532 = vmatprep.subr.bf16.mxu0 %v4086
    %5533 = vmatpush1.bf16.msra.mxu0 %v4085
    %5534 = vmatprep.subr.bf16.mxu0 %v4090
    %5535 = vmatpush1.bf16.msra.mxu0 %v4089
    %5536 = vmatprep.subr.bf16.mxu0 %v4094
    %5537 = vmatpush1.bf16.msra.mxu0 %v4093
    %5538 = vmatprep.subr.bf16.mxu0 %v4098
    %5539 = vmatpush1.bf16.msra.mxu0 %v4097
    %5540 = vmatprep.subr.bf16.mxu0 %v4102
    %5541 = vmatpush1.bf16.msra.mxu0 %v4101
    %5542 = vmatprep.subr.bf16.mxu0 %v4106
    %5543 = vmatpush1.bf16.msra.mxu0 %v4105
    %5544 = vmatprep.mubr.bf16.mxu0 %v1161
    %5545 = vmatmul.mubr.bf16.gmra.mrb[0].mxu0 %v1157
    %v5546 = vpop.f32.mrb[0].mxu0
    %v5547 = vadd.f32 %v5504, %v5546
    %v5548 = vpop.f32.mrb[0].mxu0
    %v5549 = vadd.f32 %v5506, %v5548
    %v5550 = vpop.f32.mrb[0].mxu0
    %v5551 = vadd.f32 %v5508, %v5550
    %v5552 = vpop.f32.mrb[0].mxu0
    %v5553 = vadd.f32 %v5510, %v5552
    %5554 = vdwg.mxu0
    %5555 = vmatprep.subr.bf16.mxu0 %v4110
    %5556 = vmatpush1.bf16.msra.mxu0 %v4109
    %5557 = vmatprep.subr.bf16.mxu0 %v4114
    %5558 = vmatpush1.bf16.msra.mxu0 %v4113
    %5559 = vmatprep.subr.bf16.mxu0 %v4118
    %5560 = vmatpush1.bf16.msra.mxu0 %v4117
    %5561 = vmatprep.subr.bf16.mxu0 %v4122
    %5562 = vmatpush1.bf16.msra.mxu0 %v4121
    %5563 = vmatprep.subr.bf16.mxu0 %v4126
    %5564 = vmatpush1.bf16.msra.mxu0 %v4125
    %5565 = vmatprep.subr.bf16.mxu0 %v4130
    %5566 = vmatpush1.bf16.msra.mxu0 %v4129
    %5567 = vmatprep.subr.bf16.mxu0 %v4134
    %5568 = vmatpush1.bf16.msra.mxu0 %v4133
    %5569 = vmatprep.subr.bf16.mxu0 %v4138
    %5570 = vmatpush1.bf16.msra.mxu0 %v4137
    %5571 = vmatprep.subr.bf16.mxu0 %v4142
    %5572 = vmatpush1.bf16.msra.mxu0 %v4141
    %5573 = vmatprep.subr.bf16.mxu0 %v4146
    %5574 = vmatpush1.bf16.msra.mxu0 %v4145
    %5575 = vmatprep.subr.bf16.mxu0 %v4150
    %5576 = vmatpush1.bf16.msra.mxu0 %v4149
    %5577 = vmatprep.subr.bf16.mxu0 %v4154
    %5578 = vmatpush1.bf16.msra.mxu0 %v4153
    %5579 = vmatprep.subr.bf16.mxu0 %v4158
    %5580 = vmatpush1.bf16.msra.mxu0 %v4157
    %5581 = vmatprep.subr.bf16.mxu0 %v4162
    %5582 = vmatpush1.bf16.msra.mxu0 %v4161
    %5583 = vmatprep.subr.bf16.mxu0 %v4166
    %5584 = vmatpush1.bf16.msra.mxu0 %v4165
    %5585 = vmatprep.subr.bf16.mxu0 %v4170
    %5586 = vmatpush1.bf16.msra.mxu0 %v4169
    %5587 = vmatprep.mubr.bf16.mxu0 %v1162
    %5588 = vmatmul.mubr.bf16.gmra.mrb[0].mxu0 %v1158
    %v5589 = vpop.f32.mrb[0].mxu0
    %v5590 = vadd.f32 %v5547, %v5589
    %v5591 = vpop.f32.mrb[0].mxu0
    %v5592 = vadd.f32 %v5549, %v5591
    %v5593 = vpop.f32.mrb[0].mxu0
    %v5594 = vadd.f32 %v5551, %v5593
    %v5595 = vpop.f32.mrb[0].mxu0
    %v5596 = vadd.f32 %v5553, %v5595
    %5597 = vdwg.mxu0
    %5598 = vmatprep.subr.bf16.mxu0 %v4174
    %5599 = vmatpush1.bf16.msra.mxu0 %v4173
    %5600 = vmatprep.subr.bf16.mxu0 %v4178
    %5601 = vmatpush1.bf16.msra.mxu0 %v4177
    %5602 = vmatprep.subr.bf16.mxu0 %v4182
    %5603 = vmatpush1.bf16.msra.mxu0 %v4181
    %5604 = vmatprep.subr.bf16.mxu0 %v4186
    %5605 = vmatpush1.bf16.msra.mxu0 %v4185
    %5606 = vmatprep.subr.bf16.mxu0 %v4190
    %5607 = vmatpush1.bf16.msra.mxu0 %v4189
    %5608 = vmatprep.subr.bf16.mxu0 %v4194
    %5609 = vmatpush1.bf16.msra.mxu0 %v4193
    %5610 = vmatprep.subr.bf16.mxu0 %v4198
    %5611 = vmatpush1.bf16.msra.mxu0 %v4197
    %5612 = vmatprep.subr.bf16.mxu0 %v4202
    %5613 = vmatpush1.bf16.msra.mxu0 %v4201
    %5614 = vmatprep.subr.bf16.mxu0 %v4206
    %5615 = vmatpush1.bf16.msra.mxu0 %v4205
    %5616 = vmatprep.subr.bf16.mxu0 %v4210
    %5617 = vmatpush1.bf16.msra.mxu0 %v4209
    %5618 = vmatprep.subr.bf16.mxu0 %v4214
    %5619 = vmatpush1.bf16.msra.mxu0 %v4213
    %5620 = vmatprep.subr.bf16.mxu0 %v4218
    %5621 = vmatpush1.bf16.msra.mxu0 %v4217
    %5622 = vmatprep.subr.bf16.mxu0 %v4222
    %5623 = vmatpush1.bf16.msra.mxu0 %v4221
    %5624 = vmatprep.subr.bf16.mxu0 %v4226
    %5625 = vmatpush1.bf16.msra.mxu0 %v4225
    %5626 = vmatprep.subr.bf16.mxu0 %v4230
    %5627 = vmatpush1.bf16.msra.mxu0 %v4229
    %5628 = vmatprep.subr.bf16.mxu0 %v4234
    %5629 = vmatpush1.bf16.msra.mxu0 %v4233
    %5630 = vmatprep.mubr.bf16.mxu0 %v1163
    %5631 = vmatmul.mubr.bf16.gmra.mrb[0].mxu0 %v1159
    %v5632 = vpop.f32.mrb[0].mxu0
    %v5633 = vadd.f32 %v5590, %v5632
    %v5634 = vpop.f32.mrb[0].mxu0
    %v5635 = vadd.f32 %v5592, %v5634
    %v5636 = vpop.f32.mrb[0].mxu0
    %v5637 = vadd.f32 %v5594, %v5636
    %v5638 = vpop.f32.mrb[0].mxu0
    %v5639 = vadd.f32 %v5596, %v5638
    %5640 = vdwg.mxu0
    %5641 = vmatprep.subr.bf16.mxu0 %v4238
    %5642 = vmatpush1.bf16.msra.mxu0 %v4237
    %5643 = vmatprep.subr.bf16.mxu0 %v4242
    %5644 = vmatpush1.bf16.msra.mxu0 %v4241
    %5645 = vmatprep.subr.bf16.mxu0 %v4246
    %5646 = vmatpush1.bf16.msra.mxu0 %v4245
    %5647 = vmatprep.subr.bf16.mxu0 %v4250
    %5648 = vmatpush1.bf16.msra.mxu0 %v4249
    %5649 = vmatprep.subr.bf16.mxu0 %v4254
    %5650 = vmatpush1.bf16.msra.mxu0 %v4253
    %5651 = vmatprep.subr.bf16.mxu0 %v4258
    %5652 = vmatpush1.bf16.msra.mxu0 %v4257
    %5653 = vmatprep.subr.bf16.mxu0 %v4262
    %5654 = vmatpush1.bf16.msra.mxu0 %v4261
    %5655 = vmatprep.subr.bf16.mxu0 %v4266
    %5656 = vmatpush1.bf16.msra.mxu0 %v4265
    %5657 = vmatprep.subr.bf16.mxu0 %v4270
    %5658 = vmatpush1.bf16.msra.mxu0 %v4269
    %5659 = vmatprep.subr.bf16.mxu0 %v4274
    %5660 = vmatpush1.bf16.msra.mxu0 %v4273
    %5661 = vmatprep.subr.bf16.mxu0 %v4278
    %5662 = vmatpush1.bf16.msra.mxu0 %v4277
    %5663 = vmatprep.subr.bf16.mxu0 %v4282
    %5664 = vmatpush1.bf16.msra.mxu0 %v4281
    %5665 = vmatprep.subr.bf16.mxu0 %v4286
    %5666 = vmatpush1.bf16.msra.mxu0 %v4285
    %5667 = vmatprep.subr.bf16.mxu0 %v4290
    %5668 = vmatpush1.bf16.msra.mxu0 %v4289
    %5669 = vmatprep.subr.bf16.mxu0 %v4294
    %5670 = vmatpush1.bf16.msra.mxu0 %v4293
    %5671 = vmatprep.subr.bf16.mxu0 %v4298
    %5672 = vmatpush1.bf16.msra.mxu0 %v4297
    %5673 = vmatprep.mubr.bf16.mxu0 %v1296
    %5674 = vmatmul.mubr.bf16.gmra.mrb[0].mxu0 %v1292
    %v5675 = vpop.f32.mrb[0].mxu0
    %v5676 = vadd.f32 %v5633, %v5675
    %v5677 = vpop.f32.mrb[0].mxu0
    %v5678 = vadd.f32 %v5635, %v5677
    %v5679 = vpop.f32.mrb[0].mxu0
    %v5680 = vadd.f32 %v5637, %v5679
    %v5681 = vpop.f32.mrb[0].mxu0
    %v5682 = vadd.f32 %v5639, %v5681
    %5683 = vdwg.mxu0
    %5684 = vmatprep.subr.bf16.mxu0 %v4302
    %5685 = vmatpush1.bf16.msra.mxu0 %v4301
    %5686 = vmatprep.subr.bf16.mxu0 %v4306
    %5687 = vmatpush1.bf16.msra.mxu0 %v4305
    %5688 = vmatprep.subr.bf16.mxu0 %v4310
    %5689 = vmatpush1.bf16.msra.mxu0 %v4309
    %5690 = vmatprep.subr.bf16.mxu0 %v4314
    %5691 = vmatpush1.bf16.msra.mxu0 %v4313
    %5692 = vmatprep.subr.bf16.mxu0 %v4318
    %5693 = vmatpush1.bf16.msra.mxu0 %v4317
    %5694 = vmatprep.subr.bf16.mxu0 %v4322
    %5695 = vmatpush1.bf16.msra.mxu0 %v4321
    %5696 = vmatprep.subr.bf16.mxu0 %v4326
    %5697 = vmatpush1.bf16.msra.mxu0 %v4325
    %5698 = vmatprep.subr.bf16.mxu0 %v4330
    %5699 = vmatpush1.bf16.msra.mxu0 %v4329
    %5700 = vmatprep.subr.bf16.mxu0 %v4334
    %5701 = vmatpush1.bf16.msra.mxu0 %v4333
    %5702 = vmatprep.subr.bf16.mxu0 %v4338
    %5703 = vmatpush1.bf16.msra.mxu0 %v4337
    %5704 = vmatprep.subr.bf16.mxu0 %v4342
    %5705 = vmatpush1.bf16.msra.mxu0 %v4341
    %5706 = vmatprep.subr.bf16.mxu0 %v4346
    %5707 = vmatpush1.bf16.msra.mxu0 %v4345
    %5708 = vmatprep.subr.bf16.mxu0 %v4350
    %5709 = vmatpush1.bf16.msra.mxu0 %v4349
    %5710 = vmatprep.subr.bf16.mxu0 %v4354
    %5711 = vmatpush1.bf16.msra.mxu0 %v4353
    %5712 = vmatprep.subr.bf16.mxu0 %v4358
    %5713 = vmatpush1.bf16.msra.mxu0 %v4357
    %5714 = vmatprep.subr.bf16.mxu0 %v4362
    %5715 = vmatpush1.bf16.msra.mxu0 %v4361
    %5716 = vmatprep.mubr.bf16.mxu0 %v1297
    %5717 = vmatmul.mubr.bf16.gmra.mrb[0].mxu0 %v1293
    %v5718 = vpop.f32.mrb[0].mxu0
    %v5719 = vadd.f32 %v5676, %v5718
    %v5720 = vpop.f32.mrb[0].mxu0
    %v5721 = vadd.f32 %v5678, %v5720
    %v5722 = vpop.f32.mrb[0].mxu0
    %v5723 = vadd.f32 %v5680, %v5722
    %v5724 = vpop.f32.mrb[0].mxu0
    %v5725 = vadd.f32 %v5682, %v5724
    %5726 = vdwg.mxu0
    %5727 = vmatprep.subr.bf16.mxu0 %v4366
    %5728 = vmatpush1.bf16.msra.mxu0 %v4365
    %5729 = vmatprep.subr.bf16.mxu0 %v4370
    %5730 = vmatpush1.bf16.msra.mxu0 %v4369
    %5731 = vmatprep.subr.bf16.mxu0 %v4374
    %5732 = vmatpush1.bf16.msra.mxu0 %v4373
    %5733 = vmatprep.subr.bf16.mxu0 %v4378
    %5734 = vmatpush1.bf16.msra.mxu0 %v4377
    %5735 = vmatprep.subr.bf16.mxu0 %v4382
    %5736 = vmatpush1.bf16.msra.mxu0 %v4381
    %5737 = vmatprep.subr.bf16.mxu0 %v4386
    %5738 = vmatpush1.bf16.msra.mxu0 %v4385
    %5739 = vmatprep.subr.bf16.mxu0 %v4390
    %5740 = vmatpush1.bf16.msra.mxu0 %v4389
    %5741 = vmatprep.subr.bf16.mxu0 %v4394
    %5742 = vmatpush1.bf16.msra.mxu0 %v4393
    %5743 = vmatprep.subr.bf16.mxu0 %v4398
    %5744 = vmatpush1.bf16.msra.mxu0 %v4397
    %5745 = vmatprep.subr.bf16.mxu0 %v4402
    %5746 = vmatpush1.bf16.msra.mxu0 %v4401
    %5747 = vmatprep.subr.bf16.mxu0 %v4406
    %5748 = vmatpush1.bf16.msra.mxu0 %v4405
    %5749 = vmatprep.subr.bf16.mxu0 %v4410
    %5750 = vmatpush1.bf16.msra.mxu0 %v4409
    %5751 = vmatprep.subr.bf16.mxu0 %v4414
    %5752 = vmatpush1.bf16.msra.mxu0 %v4413
    %5753 = vmatprep.subr.bf16.mxu0 %v4418
    %5754 = vmatpush1.bf16.msra.mxu0 %v4417
    %5755 = vmatprep.subr.bf16.mxu0 %v4422
    %5756 = vmatpush1.bf16.msra.mxu0 %v4421
    %5757 = vmatprep.subr.bf16.mxu0 %v4426
    %5758 = vmatpush1.bf16.msra.mxu0 %v4425
    %5759 = vmatprep.mubr.bf16.mxu0 %v1298
    %5760 = vmatmul.mubr.bf16.gmra.mrb[0].mxu0 %v1294
    %v5761 = vpop.f32.mrb[0].mxu0
    %v5762 = vadd.f32 %v5719, %v5761
    %v5763 = vpop.f32.mrb[0].mxu0
    %v5764 = vadd.f32 %v5721, %v5763
    %v5765 = vpop.f32.mrb[0].mxu0
    %v5766 = vadd.f32 %v5723, %v5765
    %v5767 = vpop.f32.mrb[0].mxu0
    %v5768 = vadd.f32 %v5725, %v5767
    %5769 = vdwg.mxu0
    %5770 = vmatprep.subr.bf16.mxu0 %v4430
    %5771 = vmatpush1.bf16.msra.mxu0 %v4429
    %5772 = vmatprep.subr.bf16.mxu0 %v4434
    %5773 = vmatpush1.bf16.msra.mxu0 %v4433
    %5774 = vmatprep.subr.bf16.mxu0 %v4438
    %5775 = vmatpush1.bf16.msra.mxu0 %v4437
    %5776 = vmatprep.subr.bf16.mxu0 %v4442
    %5777 = vmatpush1.bf16.msra.mxu0 %v4441
    %5778 = vmatprep.subr.bf16.mxu0 %v4446
    %5779 = vmatpush1.bf16.msra.mxu0 %v4445
    %5780 = vmatprep.subr.bf16.mxu0 %v4450
    %5781 = vmatpush1.bf16.msra.mxu0 %v4449
    %5782 = vmatprep.subr.bf16.mxu0 %v4454
    %5783 = vmatpush1.bf16.msra.mxu0 %v4453
    %5784 = vmatprep.subr.bf16.mxu0 %v4458
    %5785 = vmatpush1.bf16.msra.mxu0 %v4457
    %5786 = vmatprep.subr.bf16.mxu0 %v4462
    %5787 = vmatpush1.bf16.msra.mxu0 %v4461
    %5788 = vmatprep.subr.bf16.mxu0 %v4466
    %5789 = vmatpush1.bf16.msra.mxu0 %v4465
    %5790 = vmatprep.subr.bf16.mxu0 %v4470
    %5791 = vmatpush1.bf16.msra.mxu0 %v4469
    %5792 = vmatprep.subr.bf16.mxu0 %v4474
    %5793 = vmatpush1.bf16.msra.mxu0 %v4473
    %5794 = vmatprep.subr.bf16.mxu0 %v4478
    %5795 = vmatpush1.bf16.msra.mxu0 %v4477
    %5796 = vmatprep.subr.bf16.mxu0 %v4482
    %5797 = vmatpush1.bf16.msra.mxu0 %v4481
    %5798 = vmatprep.subr.bf16.mxu0 %v4486
    %5799 = vmatpush1.bf16.msra.mxu0 %v4485
    %5800 = vmatprep.subr.bf16.mxu0 %v4490
    %5801 = vmatpush1.bf16.msra.mxu0 %v4489
    %5802 = vmatprep.mubr.bf16.mxu0 %v1299
    %5803 = vmatmul.mubr.bf16.gmra.mrb[0].mxu0 %v1295
    %v5804 = vpop.f32.mrb[0].mxu0
    %v5805 = vadd.f32 %v5762, %v5804
    %v5806 = vpop.f32.mrb[0].mxu0
    %v5807 = vadd.f32 %v5764, %v5806
    %v5808 = vpop.f32.mrb[0].mxu0
    %v5809 = vadd.f32 %v5766, %v5808
    %v5810 = vpop.f32.mrb[0].mxu0
    %v5811 = vadd.f32 %v5768, %v5810
    %5812 = vdwg.mxu0
    %5813 = vmatprep.subr.bf16.mxu0 %v4494
    %5814 = vmatpush1.bf16.msra.mxu0 %v4493
    %5815 = vmatprep.subr.bf16.mxu0 %v4498
    %5816 = vmatpush1.bf16.msra.mxu0 %v4497
    %5817 = vmatprep.subr.bf16.mxu0 %v4502
    %5818 = vmatpush1.bf16.msra.mxu0 %v4501
    %5819 = vmatprep.subr.bf16.mxu0 %v4506
    %5820 = vmatpush1.bf16.msra.mxu0 %v4505
    %5821 = vmatprep.subr.bf16.mxu0 0
    %5822 = vmatpush1.bf16.msra.mxu0 0
    %5823 = vmatprep.subr.bf16.mxu0 0
    %5824 = vmatpush1.bf16.msra.mxu0 0
    %5825 = vmatprep.subr.bf16.mxu0 0
    %5826 = vmatpush1.bf16.msra.mxu0 0
    %5827 = vmatprep.subr.bf16.mxu0 0
    %5828 = vmatpush1.bf16.msra.mxu0 0
    %5829 = vmatprep.subr.bf16.mxu0 0
    %5830 = vmatpush1.bf16.msra.mxu0 0
    %5831 = vmatprep.subr.bf16.mxu0 0
    %5832 = vmatpush1.bf16.msra.mxu0 0
    %5833 = vmatprep.subr.bf16.mxu0 0
    %5834 = vmatpush1.bf16.msra.mxu0 0
    %5835 = vmatprep.subr.bf16.mxu0 0
    %5836 = vmatpush1.bf16.msra.mxu0 0
    %5837 = vmatprep.subr.bf16.mxu0 0
    %5838 = vmatpush1.bf16.msra.mxu0 0
    %5839 = vmatprep.subr.bf16.mxu0 0
    %5840 = vmatpush1.bf16.msra.mxu0 0
    %5841 = vmatprep.subr.bf16.mxu0 0
    %5842 = vmatpush1.bf16.msra.mxu0 0
    %5843 = vmatprep.subr.bf16.mxu0 0
    %5844 = vmatpush1.bf16.msra.mxu0 0
    %5845 = vmatprep.mubr.bf16.mxu0 0
    %5846 = vmatmul.mubr.bf16.gmra.mrb[0].mxu0 %v5295
    %v5847 = vpop.f32.mrb[0].mxu0
    %v5848 = vadd.f32 %v5805, %v5847
    %v5849 = vpop.f32.mrb[0].mxu0
    %v5850 = vadd.f32 %v5807, %v5849
    %v5851 = vpop.f32.mrb[0].mxu0
    %v5852 = vadd.f32 %v5809, %v5851
    %v5853 = vpop.f32.mrb[0].mxu0
    %v5854 = vadd.f32 %v5811, %v5853
    %5855 = vdwg.mxu0
    %5856 = vmatprep.subr.bf16.mxu0 %v3728
    %5857 = vmatpush1.bf16.msra.mxu0 %v3727
    %5858 = vmatprep.subr.bf16.mxu0 %v3732
    %5859 = vmatpush1.bf16.msra.mxu0 %v3731
    %5860 = vmatprep.subr.bf16.mxu0 %v3736
    %5861 = vmatpush1.bf16.msra.mxu0 %v3735
    %5862 = vmatprep.subr.bf16.mxu0 %v3740
    %5863 = vmatpush1.bf16.msra.mxu0 %v3739
    %5864 = vmatprep.subr.bf16.mxu0 %v3744
    %5865 = vmatpush1.bf16.msra.mxu0 %v3743
    %5866 = vmatprep.subr.bf16.mxu0 %v3748
    %5867 = vmatpush1.bf16.msra.mxu0 %v3747
    %5868 = vmatprep.subr.bf16.mxu0 %v3752
    %5869 = vmatpush1.bf16.msra.mxu0 %v3751
    %5870 = vmatprep.subr.bf16.mxu0 %v3756
    %5871 = vmatpush1.bf16.msra.mxu0 %v3755
    %5872 = vmatprep.subr.bf16.mxu0 %v3760
    %5873 = vmatpush1.bf16.msra.mxu0 %v3759
    %5874 = vmatprep.subr.bf16.mxu0 %v3764
    %5875 = vmatpush1.bf16.msra.mxu0 %v3763
    %5876 = vmatprep.subr.bf16.mxu0 %v3768
    %5877 = vmatpush1.bf16.msra.mxu0 %v3767
    %5878 = vmatprep.subr.bf16.mxu0 %v3772
    %5879 = vmatpush1.bf16.msra.mxu0 %v3771
    %5880 = vmatprep.subr.bf16.mxu0 %v3776
    %5881 = vmatpush1.bf16.msra.mxu0 %v3775
    %5882 = vmatprep.subr.bf16.mxu0 %v3780
    %5883 = vmatpush1.bf16.msra.mxu0 %v3779
    %5884 = vmatprep.subr.bf16.mxu0 %v3784
    %5885 = vmatpush1.bf16.msra.mxu0 %v3783
    %5886 = vmatprep.subr.bf16.mxu0 %v3788
    %5887 = vmatpush1.bf16.msra.mxu0 %v3787
    %5888 = vmatprep.mubr.bf16.mxu0 %v1024
    %5889 = vmatmul.mubr.bf16.gmra.mrb[0].mxu0 %v1020
    %v5890 = vpop.f32.mrb[0].mxu0
    %v5891 = vadd.f32 %v851, %v5890
    %v5892 = vpop.f32.mrb[0].mxu0
    %v5893 = vadd.f32 %v855, %v5892
    %v5894 = vpop.f32.mrb[0].mxu0
    %v5895 = vadd.f32 %v851, %v5894
    %v5896 = vpop.f32.mrb[0].mxu0
    %v5897 = vadd.f32 %v855, %v5896
    %5898 = vdwg.mxu0
    %5899 = vmatprep.subr.bf16.mxu0 %v3792
    %5900 = vmatpush1.bf16.msra.mxu0 %v3791
    %5901 = vmatprep.subr.bf16.mxu0 %v3796
    %5902 = vmatpush1.bf16.msra.mxu0 %v3795
    %5903 = vmatprep.subr.bf16.mxu0 %v3800
    %5904 = vmatpush1.bf16.msra.mxu0 %v3799
    %5905 = vmatprep.subr.bf16.mxu0 %v3804
    %5906 = vmatpush1.bf16.msra.mxu0 %v3803
    %5907 = vmatprep.subr.bf16.mxu0 %v3808
    %5908 = vmatpush1.bf16.msra.mxu0 %v3807
    %5909 = vmatprep.subr.bf16.mxu0 %v3812
    %5910 = vmatpush1.bf16.msra.mxu0 %v3811
    %5911 = vmatprep.subr.bf16.mxu0 %v3816
    %5912 = vmatpush1.bf16.msra.mxu0 %v3815
    %5913 = vmatprep.subr.bf16.mxu0 %v3820
    %5914 = vmatpush1.bf16.msra.mxu0 %v3819
    %5915 = vmatprep.subr.bf16.mxu0 %v3824
    %5916 = vmatpush1.bf16.msra.mxu0 %v3823
    %5917 = vmatprep.subr.bf16.mxu0 %v3828
    %5918 = vmatpush1.bf16.msra.mxu0 %v3827
    %5919 = vmatprep.subr.bf16.mxu0 %v3832
    %5920 = vmatpush1.bf16.msra.mxu0 %v3831
    %5921 = vmatprep.subr.bf16.mxu0 %v3836
    %5922 = vmatpush1.bf16.msra.mxu0 %v3835
    %5923 = vmatprep.subr.bf16.mxu0 %v3840
    %5924 = vmatpush1.bf16.msra.mxu0 %v3839
    %5925 = vmatprep.subr.bf16.mxu0 %v3844
    %5926 = vmatpush1.bf16.msra.mxu0 %v3843
    %5927 = vmatprep.subr.bf16.mxu0 %v3848
    %5928 = vmatpush1.bf16.msra.mxu0 %v3847
    %5929 = vmatprep.subr.bf16.mxu0 %v3852
    %5930 = vmatpush1.bf16.msra.mxu0 %v3851
    %5931 = vmatprep.mubr.bf16.mxu0 %v1025
    %5932 = vmatmul.mubr.bf16.gmra.mrb[0].mxu0 %v1021
    %v5933 = vpop.f32.mrb[0].mxu0
    %v5934 = vadd.f32 %v5891, %v5933
    %v5935 = vpop.f32.mrb[0].mxu0
    %v5936 = vadd.f32 %v5893, %v5935
    %v5937 = vpop.f32.mrb[0].mxu0
    %v5938 = vadd.f32 %v5895, %v5937
    %v5939 = vpop.f32.mrb[0].mxu0
    %v5940 = vadd.f32 %v5897, %v5939
    %5941 = vdwg.mxu0
    %5942 = vmatprep.subr.bf16.mxu0 %v3856
    %5943 = vmatpush1.bf16.msra.mxu0 %v3855
    %5944 = vmatprep.subr.bf16.mxu0 %v3860
    %5945 = vmatpush1.bf16.msra.mxu0 %v3859
    %5946 = vmatprep.subr.bf16.mxu0 %v3864
    %5947 = vmatpush1.bf16.msra.mxu0 %v3863
    %5948 = vmatprep.subr.bf16.mxu0 %v3868
    %5949 = vmatpush1.bf16.msra.mxu0 %v3867
    %5950 = vmatprep.subr.bf16.mxu0 %v3872
    %5951 = vmatpush1.bf16.msra.mxu0 %v3871
    %5952 = vmatprep.subr.bf16.mxu0 %v3876
    %5953 = vmatpush1.bf16.msra.mxu0 %v3875
    %5954 = vmatprep.subr.bf16.mxu0 %v3880
    %5955 = vmatpush1.bf16.msra.mxu0 %v3879
    %5956 = vmatprep.subr.bf16.mxu0 %v3884
    %5957 = vmatpush1.bf16.msra.mxu0 %v3883
    %5958 = vmatprep.subr.bf16.mxu0 %v3888
    %5959 = vmatpush1.bf16.msra.mxu0 %v3887
    %5960 = vmatprep.subr.bf16.mxu0 %v3892
    %5961 = vmatpush1.bf16.msra.mxu0 %v3891
    %5962 = vmatprep.subr.bf16.mxu0 %v3896
    %5963 = vmatpush1.bf16.msra.mxu0 %v3895
    %5964 = vmatprep.subr.bf16.mxu0 %v3900
    %5965 = vmatpush1.bf16.msra.mxu0 %v3899
    %5966 = vmatprep.subr.bf16.mxu0 %v3904
    %5967 = vmatpush1.bf16.msra.mxu0 %v3903
    %5968 = vmatprep.subr.bf16.mxu0 %v3908
    %5969 = vmatpush1.bf16.msra.mxu0 %v3907
    %5970 = vmatprep.subr.bf16.mxu0 %v3912
    %5971 = vmatpush1.bf16.msra.mxu0 %v3911
    %5972 = vmatprep.subr.bf16.mxu0 %v3916
    %5973 = vmatpush1.bf16.msra.mxu0 %v3915
    %5974 = vmatprep.mubr.bf16.mxu0 %v1026
    %5975 = vmatmul.mubr.bf16.gmra.mrb[0].mxu0 %v1022
    %v5976 = vpop.f32.mrb[0].mxu0
    %v5977 = vadd.f32 %v5934, %v5976
    %v5978 = vpop.f32.mrb[0].mxu0
    %v5979 = vadd.f32 %v5936, %v5978
    %v5980 = vpop.f32.mrb[0].mxu0
    %v5981 = vadd.f32 %v5938, %v5980
    %v5982 = vpop.f32.mrb[0].mxu0
    %v5983 = vadd.f32 %v5940, %v5982
    %5984 = vdwg.mxu0
    %5985 = vmatprep.subr.bf16.mxu0 %v3920
    %5986 = vmatpush1.bf16.msra.mxu0 %v3919
    %5987 = vmatprep.subr.bf16.mxu0 %v3924
    %5988 = vmatpush1.bf16.msra.mxu0 %v3923
    %5989 = vmatprep.subr.bf16.mxu0 %v3928
    %5990 = vmatpush1.bf16.msra.mxu0 %v3927
    %5991 = vmatprep.subr.bf16.mxu0 %v3932
    %5992 = vmatpush1.bf16.msra.mxu0 %v3931
    %5993 = vmatprep.subr.bf16.mxu0 %v3936
    %5994 = vmatpush1.bf16.msra.mxu0 %v3935
    %5995 = vmatprep.subr.bf16.mxu0 %v3940
    %5996 = vmatpush1.bf16.msra.mxu0 %v3939
    %5997 = vmatprep.subr.bf16.mxu0 %v3944
    %5998 = vmatpush1.bf16.msra.mxu0 %v3943
    %5999 = vmatprep.subr.bf16.mxu0 %v3948
    %6000 = vmatpush1.bf16.msra.mxu0 %v3947
    %6001 = vmatprep.subr.bf16.mxu0 %v3952
    %6002 = vmatpush1.bf16.msra.mxu0 %v3951
    %6003 = vmatprep.subr.bf16.mxu0 %v3956
    %6004 = vmatpush1.bf16.msra.mxu0 %v3955
    %6005 = vmatprep.subr.bf16.mxu0 %v3960
    %6006 = vmatpush1.bf16.msra.mxu0 %v3959
    %6007 = vmatprep.subr.bf16.mxu0 %v3964
    %6008 = vmatpush1.bf16.msra.mxu0 %v3963
    %6009 = vmatprep.subr.bf16.mxu0 %v3968
    %6010 = vmatpush1.bf16.msra.mxu0 %v3967
    %6011 = vmatprep.subr.bf16.mxu0 %v3972
    %6012 = vmatpush1.bf16.msra.mxu0 %v3971
    %6013 = vmatprep.subr.bf16.mxu0 %v3976
    %6014 = vmatpush1.bf16.msra.mxu0 %v3975
    %6015 = vmatprep.subr.bf16.mxu0 %v3980
    %6016 = vmatpush1.bf16.msra.mxu0 %v3979
    %6017 = vmatprep.mubr.bf16.mxu0 %v1027
    %6018 = vmatmul.mubr.bf16.gmra.mrb[0].mxu0 %v1023
    %v6019 = vpop.f32.mrb[0].mxu0
    %v6020 = vadd.f32 %v5977, %v6019
    %v6021 = vpop.f32.mrb[0].mxu0
    %v6022 = vadd.f32 %v5979, %v6021
    %v6023 = vpop.f32.mrb[0].mxu0
    %v6024 = vadd.f32 %v5981, %v6023
    %v6025 = vpop.f32.mrb[0].mxu0
    %v6026 = vadd.f32 %v5983, %v6025
    %6027 = vdwg.mxu0
    %6028 = vmatprep.subr.bf16.mxu0 %v3984
    %6029 = vmatpush1.bf16.msra.mxu0 %v3983
    %6030 = vmatprep.subr.bf16.mxu0 %v3988
    %6031 = vmatpush1.bf16.msra.mxu0 %v3987
    %6032 = vmatprep.subr.bf16.mxu0 %v3992
    %6033 = vmatpush1.bf16.msra.mxu0 %v3991
    %6034 = vmatprep.subr.bf16.mxu0 %v3996
    %6035 = vmatpush1.bf16.msra.mxu0 %v3995
    %6036 = vmatprep.subr.bf16.mxu0 %v4000
    %6037 = vmatpush1.bf16.msra.mxu0 %v3999
    %6038 = vmatprep.subr.bf16.mxu0 %v4004
    %6039 = vmatpush1.bf16.msra.mxu0 %v4003
    %6040 = vmatprep.subr.bf16.mxu0 %v4008
    %6041 = vmatpush1.bf16.msra.mxu0 %v4007
    %6042 = vmatprep.subr.bf16.mxu0 %v4012
    %6043 = vmatpush1.bf16.msra.mxu0 %v4011
    %6044 = vmatprep.subr.bf16.mxu0 %v4016
    %6045 = vmatpush1.bf16.msra.mxu0 %v4015
    %6046 = vmatprep.subr.bf16.mxu0 %v4020
    %6047 = vmatpush1.bf16.msra.mxu0 %v4019
    %6048 = vmatprep.subr.bf16.mxu0 %v4024
    %6049 = vmatpush1.bf16.msra.mxu0 %v4023
    %6050 = vmatprep.subr.bf16.mxu0 %v4028
    %6051 = vmatpush1.bf16.msra.mxu0 %v4027
    %6052 = vmatprep.subr.bf16.mxu0 %v4032
    %6053 = vmatpush1.bf16.msra.mxu0 %v4031
    %6054 = vmatprep.subr.bf16.mxu0 %v4036
    %6055 = vmatpush1.bf16.msra.mxu0 %v4035
    %6056 = vmatprep.subr.bf16.mxu0 %v4040
    %6057 = vmatpush1.bf16.msra.mxu0 %v4039
    %6058 = vmatprep.subr.bf16.mxu0 %v4044
    %6059 = vmatpush1.bf16.msra.mxu0 %v4043
    %6060 = vmatprep.mubr.bf16.mxu0 %v1160
    %6061 = vmatmul.mubr.bf16.gmra.mrb[0].mxu0 %v1156
    %v6062 = vpop.f32.mrb[0].mxu0
    %v6063 = vadd.f32 %v6020, %v6062
    %v6064 = vpop.f32.mrb[0].mxu0
    %v6065 = vadd.f32 %v6022, %v6064
    %v6066 = vpop.f32.mrb[0].mxu0
    %v6067 = vadd.f32 %v6024, %v6066
    %v6068 = vpop.f32.mrb[0].mxu0
    %v6069 = vadd.f32 %v6026, %v6068
    %6070 = vdwg.mxu0
    %6071 = vmatprep.subr.bf16.mxu0 %v4048
    %6072 = vmatpush1.bf16.msra.mxu0 %v4047
    %6073 = vmatprep.subr.bf16.mxu0 %v4052
    %6074 = vmatpush1.bf16.msra.mxu0 %v4051
    %6075 = vmatprep.subr.bf16.mxu0 %v4056
    %6076 = vmatpush1.bf16.msra.mxu0 %v4055
    %6077 = vmatprep.subr.bf16.mxu0 %v4060
    %6078 = vmatpush1.bf16.msra.mxu0 %v4059
    %6079 = vmatprep.subr.bf16.mxu0 %v4064
    %6080 = vmatpush1.bf16.msra.mxu0 %v4063
    %6081 = vmatprep.subr.bf16.mxu0 %v4068
    %6082 = vmatpush1.bf16.msra.mxu0 %v4067
    %6083 = vmatprep.subr.bf16.mxu0 %v4072
    %6084 = vmatpush1.bf16.msra.mxu0 %v4071
    %6085 = vmatprep.subr.bf16.mxu0 %v4076
    %6086 = vmatpush1.bf16.msra.mxu0 %v4075
    %6087 = vmatprep.subr.bf16.mxu0 %v4080
    %6088 = vmatpush1.bf16.msra.mxu0 %v4079
    %6089 = vmatprep.subr.bf16.mxu0 %v4084
    %6090 = vmatpush1.bf16.msra.mxu0 %v4083
    %6091 = vmatprep.subr.bf16.mxu0 %v4088
    %6092 = vmatpush1.bf16.msra.mxu0 %v4087
    %6093 = vmatprep.subr.bf16.mxu0 %v4092
    %6094 = vmatpush1.bf16.msra.mxu0 %v4091
    %6095 = vmatprep.subr.bf16.mxu0 %v4096
    %6096 = vmatpush1.bf16.msra.mxu0 %v4095
    %6097 = vmatprep.subr.bf16.mxu0 %v4100
    %6098 = vmatpush1.bf16.msra.mxu0 %v4099
    %6099 = vmatprep.subr.bf16.mxu0 %v4104
    %6100 = vmatpush1.bf16.msra.mxu0 %v4103
    %6101 = vmatprep.subr.bf16.mxu0 %v4108
    %6102 = vmatpush1.bf16.msra.mxu0 %v4107
    %6103 = vmatprep.mubr.bf16.mxu0 %v1161
    %6104 = vmatmul.mubr.bf16.gmra.mrb[0].mxu0 %v1157
    %v6105 = vpop.f32.mrb[0].mxu0
    %v6106 = vadd.f32 %v6063, %v6105
    %v6107 = vpop.f32.mrb[0].mxu0
    %v6108 = vadd.f32 %v6065, %v6107
    %v6109 = vpop.f32.mrb[0].mxu0
    %v6110 = vadd.f32 %v6067, %v6109
    %v6111 = vpop.f32.mrb[0].mxu0
    %v6112 = vadd.f32 %v6069, %v6111
    %6113 = vdwg.mxu0
    %6114 = vmatprep.subr.bf16.mxu0 %v4112
    %6115 = vmatpush1.bf16.msra.mxu0 %v4111
    %6116 = vmatprep.subr.bf16.mxu0 %v4116
    %6117 = vmatpush1.bf16.msra.mxu0 %v4115
    %6118 = vmatprep.subr.bf16.mxu0 %v4120
    %6119 = vmatpush1.bf16.msra.mxu0 %v4119
    %6120 = vmatprep.subr.bf16.mxu0 %v4124
    %6121 = vmatpush1.bf16.msra.mxu0 %v4123
    %6122 = vmatprep.subr.bf16.mxu0 %v4128
    %6123 = vmatpush1.bf16.msra.mxu0 %v4127
    %6124 = vmatprep.subr.bf16.mxu0 %v4132
    %6125 = vmatpush1.bf16.msra.mxu0 %v4131
    %6126 = vmatprep.subr.bf16.mxu0 %v4136
    %6127 = vmatpush1.bf16.msra.mxu0 %v4135
    %6128 = vmatprep.subr.bf16.mxu0 %v4140
    %6129 = vmatpush1.bf16.msra.mxu0 %v4139
    %6130 = vmatprep.subr.bf16.mxu0 %v4144
    %6131 = vmatpush1.bf16.msra.mxu0 %v4143
    %6132 = vmatprep.subr.bf16.mxu0 %v4148
    %6133 = vmatpush1.bf16.msra.mxu0 %v4147
    %6134 = vmatprep.subr.bf16.mxu0 %v4152
    %6135 = vmatpush1.bf16.msra.mxu0 %v4151
    %6136 = vmatprep.subr.bf16.mxu0 %v4156
    %6137 = vmatpush1.bf16.msra.mxu0 %v4155
    %6138 = vmatprep.subr.bf16.mxu0 %v4160
    %6139 = vmatpush1.bf16.msra.mxu0 %v4159
    %6140 = vmatprep.subr.bf16.mxu0 %v4164
    %6141 = vmatpush1.bf16.msra.mxu0 %v4163
    %6142 = vmatprep.subr.bf16.mxu0 %v4168
    %6143 = vmatpush1.bf16.msra.mxu0 %v4167
    %6144 = vmatprep.subr.bf16.mxu0 %v4172
    %6145 = vmatpush1.bf16.msra.mxu0 %v4171
    %6146 = vmatprep.mubr.bf16.mxu0 %v1162
    %6147 = vmatmul.mubr.bf16.gmra.mrb[0].mxu0 %v1158
    %v6148 = vpop.f32.mrb[0].mxu0
    %v6149 = vadd.f32 %v6106, %v6148
    %v6150 = vpop.f32.mrb[0].mxu0
    %v6151 = vadd.f32 %v6108, %v6150
    %v6152 = vpop.f32.mrb[0].mxu0
    %v6153 = vadd.f32 %v6110, %v6152
    %v6154 = vpop.f32.mrb[0].mxu0
    %v6155 = vadd.f32 %v6112, %v6154
    %6156 = vdwg.mxu0
    %6157 = vmatprep.subr.bf16.mxu0 %v4176
    %6158 = vmatpush1.bf16.msra.mxu0 %v4175
    %6159 = vmatprep.subr.bf16.mxu0 %v4180
    %6160 = vmatpush1.bf16.msra.mxu0 %v4179
    %6161 = vmatprep.subr.bf16.mxu0 %v4184
    %6162 = vmatpush1.bf16.msra.mxu0 %v4183
    %6163 = vmatprep.subr.bf16.mxu0 %v4188
    %6164 = vmatpush1.bf16.msra.mxu0 %v4187
    %6165 = vmatprep.subr.bf16.mxu0 %v4192
    %6166 = vmatpush1.bf16.msra.mxu0 %v4191
    %6167 = vmatprep.subr.bf16.mxu0 %v4196
    %6168 = vmatpush1.bf16.msra.mxu0 %v4195
    %6169 = vmatprep.subr.bf16.mxu0 %v4200
    %6170 = vmatpush1.bf16.msra.mxu0 %v4199
    %6171 = vmatprep.subr.bf16.mxu0 %v4204
    %6172 = vmatpush1.bf16.msra.mxu0 %v4203
    %6173 = vmatprep.subr.bf16.mxu0 %v4208
    %6174 = vmatpush1.bf16.msra.mxu0 %v4207
    %6175 = vmatprep.subr.bf16.mxu0 %v4212
    %6176 = vmatpush1.bf16.msra.mxu0 %v4211
    %6177 = vmatprep.subr.bf16.mxu0 %v4216
    %6178 = vmatpush1.bf16.msra.mxu0 %v4215
    %6179 = vmatprep.subr.bf16.mxu0 %v4220
    %6180 = vmatpush1.bf16.msra.mxu0 %v4219
    %6181 = vmatprep.subr.bf16.mxu0 %v4224
    %6182 = vmatpush1.bf16.msra.mxu0 %v4223
    %6183 = vmatprep.subr.bf16.mxu0 %v4228
    %6184 = vmatpush1.bf16.msra.mxu0 %v4227
    %6185 = vmatprep.subr.bf16.mxu0 %v4232
    %6186 = vmatpush1.bf16.msra.mxu0 %v4231
    %6187 = vmatprep.subr.bf16.mxu0 %v4236
    %6188 = vmatpush1.bf16.msra.mxu0 %v4235
    %6189 = vmatprep.mubr.bf16.mxu0 %v1163
    %6190 = vmatmul.mubr.bf16.gmra.mrb[0].mxu0 %v1159
    %v6191 = vpop.f32.mrb[0].mxu0
    %v6192 = vadd.f32 %v6149, %v6191
    %v6193 = vpop.f32.mrb[0].mxu0
    %v6194 = vadd.f32 %v6151, %v6193
    %v6195 = vpop.f32.mrb[0].mxu0
    %v6196 = vadd.f32 %v6153, %v6195
    %v6197 = vpop.f32.mrb[0].mxu0
    %v6198 = vadd.f32 %v6155, %v6197
    %6199 = vdwg.mxu0
    %6200 = vmatprep.subr.bf16.mxu0 %v4240
    %6201 = vmatpush1.bf16.msra.mxu0 %v4239
    %6202 = vmatprep.subr.bf16.mxu0 %v4244
    %6203 = vmatpush1.bf16.msra.mxu0 %v4243
    %6204 = vmatprep.subr.bf16.mxu0 %v4248
    %6205 = vmatpush1.bf16.msra.mxu0 %v4247
    %6206 = vmatprep.subr.bf16.mxu0 %v4252
    %6207 = vmatpush1.bf16.msra.mxu0 %v4251
    %6208 = vmatprep.subr.bf16.mxu0 %v4256
    %6209 = vmatpush1.bf16.msra.mxu0 %v4255
    %6210 = vmatprep.subr.bf16.mxu0 %v4260
    %6211 = vmatpush1.bf16.msra.mxu0 %v4259
    %6212 = vmatprep.subr.bf16.mxu0 %v4264
    %6213 = vmatpush1.bf16.msra.mxu0 %v4263
    %6214 = vmatprep.subr.bf16.mxu0 %v4268
    %6215 = vmatpush1.bf16.msra.mxu0 %v4267
    %6216 = vmatprep.subr.bf16.mxu0 %v4272
    %6217 = vmatpush1.bf16.msra.mxu0 %v4271
    %6218 = vmatprep.subr.bf16.mxu0 %v4276
    %6219 = vmatpush1.bf16.msra.mxu0 %v4275
    %6220 = vmatprep.subr.bf16.mxu0 %v4280
    %6221 = vmatpush1.bf16.msra.mxu0 %v4279
    %6222 = vmatprep.subr.bf16.mxu0 %v4284
    %6223 = vmatpush1.bf16.msra.mxu0 %v4283
    %6224 = vmatprep.subr.bf16.mxu0 %v4288
    %6225 = vmatpush1.bf16.msra.mxu0 %v4287
    %6226 = vmatprep.subr.bf16.mxu0 %v4292
    %6227 = vmatpush1.bf16.msra.mxu0 %v4291
    %6228 = vmatprep.subr.bf16.mxu0 %v4296
    %6229 = vmatpush1.bf16.msra.mxu0 %v4295
    %6230 = vmatprep.subr.bf16.mxu0 %v4300
    %6231 = vmatpush1.bf16.msra.mxu0 %v4299
    %6232 = vmatprep.mubr.bf16.mxu0 %v1296
    %6233 = vmatmul.mubr.bf16.gmra.mrb[0].mxu0 %v1292
    %v6234 = vpop.f32.mrb[0].mxu0
    %v6235 = vadd.f32 %v6192, %v6234
    %v6236 = vpop.f32.mrb[0].mxu0
    %v6237 = vadd.f32 %v6194, %v6236
    %v6238 = vpop.f32.mrb[0].mxu0
    %v6239 = vadd.f32 %v6196, %v6238
    %v6240 = vpop.f32.mrb[0].mxu0
    %v6241 = vadd.f32 %v6198, %v6240
    %6242 = vdwg.mxu0
    %6243 = vmatprep.subr.bf16.mxu0 %v4304
    %6244 = vmatpush1.bf16.msra.mxu0 %v4303
    %6245 = vmatprep.subr.bf16.mxu0 %v4308
    %6246 = vmatpush1.bf16.msra.mxu0 %v4307
    %6247 = vmatprep.subr.bf16.mxu0 %v4312
    %6248 = vmatpush1.bf16.msra.mxu0 %v4311
    %6249 = vmatprep.subr.bf16.mxu0 %v4316
    %6250 = vmatpush1.bf16.msra.mxu0 %v4315
    %6251 = vmatprep.subr.bf16.mxu0 %v4320
    %6252 = vmatpush1.bf16.msra.mxu0 %v4319
    %6253 = vmatprep.subr.bf16.mxu0 %v4324
    %6254 = vmatpush1.bf16.msra.mxu0 %v4323
    %6255 = vmatprep.subr.bf16.mxu0 %v4328
    %6256 = vmatpush1.bf16.msra.mxu0 %v4327
    %6257 = vmatprep.subr.bf16.mxu0 %v4332
    %6258 = vmatpush1.bf16.msra.mxu0 %v4331
    %6259 = vmatprep.subr.bf16.mxu0 %v4336
    %6260 = vmatpush1.bf16.msra.mxu0 %v4335
    %6261 = vmatprep.subr.bf16.mxu0 %v4340
    %6262 = vmatpush1.bf16.msra.mxu0 %v4339
    %6263 = vmatprep.subr.bf16.mxu0 %v4344
    %6264 = vmatpush1.bf16.msra.mxu0 %v4343
    %6265 = vmatprep.subr.bf16.mxu0 %v4348
    %6266 = vmatpush1.bf16.msra.mxu0 %v4347
    %6267 = vmatprep.subr.bf16.mxu0 %v4352
    %6268 = vmatpush1.bf16.msra.mxu0 %v4351
    %6269 = vmatprep.subr.bf16.mxu0 %v4356
    %6270 = vmatpush1.bf16.msra.mxu0 %v4355
    %6271 = vmatprep.subr.bf16.mxu0 %v4360
    %6272 = vmatpush1.bf16.msra.mxu0 %v4359
    %6273 = vmatprep.subr.bf16.mxu0 %v4364
    %6274 = vmatpush1.bf16.msra.mxu0 %v4363
    %6275 = vmatprep.mubr.bf16.mxu0 %v1297
    %6276 = vmatmul.mubr.bf16.gmra.mrb[0].mxu0 %v1293
    %v6277 = vpop.f32.mrb[0].mxu0
    %v6278 = vadd.f32 %v6235, %v6277
    %v6279 = vpop.f32.mrb[0].mxu0
    %v6280 = vadd.f32 %v6237, %v6279
    %v6281 = vpop.f32.mrb[0].mxu0
    %v6282 = vadd.f32 %v6239, %v6281
    %v6283 = vpop.f32.mrb[0].mxu0
    %v6284 = vadd.f32 %v6241, %v6283
    %6285 = vdwg.mxu0
    %6286 = vmatprep.subr.bf16.mxu0 %v4368
    %6287 = vmatpush1.bf16.msra.mxu0 %v4367
    %6288 = vmatprep.subr.bf16.mxu0 %v4372
    %6289 = vmatpush1.bf16.msra.mxu0 %v4371
    %6290 = vmatprep.subr.bf16.mxu0 %v4376
    %6291 = vmatpush1.bf16.msra.mxu0 %v4375
    %6292 = vmatprep.subr.bf16.mxu0 %v4380
    %6293 = vmatpush1.bf16.msra.mxu0 %v4379
    %6294 = vmatprep.subr.bf16.mxu0 %v4384
    %6295 = vmatpush1.bf16.msra.mxu0 %v4383
    %6296 = vmatprep.subr.bf16.mxu0 %v4388
    %6297 = vmatpush1.bf16.msra.mxu0 %v4387
    %6298 = vmatprep.subr.bf16.mxu0 %v4392
    %6299 = vmatpush1.bf16.msra.mxu0 %v4391
    %6300 = vmatprep.subr.bf16.mxu0 %v4396
    %6301 = vmatpush1.bf16.msra.mxu0 %v4395
    %6302 = vmatprep.subr.bf16.mxu0 %v4400
    %6303 = vmatpush1.bf16.msra.mxu0 %v4399
    %6304 = vmatprep.subr.bf16.mxu0 %v4404
    %6305 = vmatpush1.bf16.msra.mxu0 %v4403
    %6306 = vmatprep.subr.bf16.mxu0 %v4408
    %6307 = vmatpush1.bf16.msra.mxu0 %v4407
    %6308 = vmatprep.subr.bf16.mxu0 %v4412
    %6309 = vmatpush1.bf16.msra.mxu0 %v4411
    %6310 = vmatprep.subr.bf16.mxu0 %v4416
    %6311 = vmatpush1.bf16.msra.mxu0 %v4415
    %6312 = vmatprep.subr.bf16.mxu0 %v4420
    %6313 = vmatpush1.bf16.msra.mxu0 %v4419
    %6314 = vmatprep.subr.bf16.mxu0 %v4424
    %6315 = vmatpush1.bf16.msra.mxu0 %v4423
    %6316 = vmatprep.subr.bf16.mxu0 %v4428
    %6317 = vmatpush1.bf16.msra.mxu0 %v4427
    %6318 = vmatprep.mubr.bf16.mxu0 %v1298
    %6319 = vmatmul.mubr.bf16.gmra.mrb[0].mxu0 %v1294
    %v6320 = vpop.f32.mrb[0].mxu0
    %v6321 = vadd.f32 %v6278, %v6320
    %v6322 = vpop.f32.mrb[0].mxu0
    %v6323 = vadd.f32 %v6280, %v6322
    %v6324 = vpop.f32.mrb[0].mxu0
    %v6325 = vadd.f32 %v6282, %v6324
    %v6326 = vpop.f32.mrb[0].mxu0
    %v6327 = vadd.f32 %v6284, %v6326
    %6328 = vdwg.mxu0
    %6329 = vmatprep.subr.bf16.mxu0 %v4432
    %6330 = vmatpush1.bf16.msra.mxu0 %v4431
    %6331 = vmatprep.subr.bf16.mxu0 %v4436
    %6332 = vmatpush1.bf16.msra.mxu0 %v4435
    %6333 = vmatprep.subr.bf16.mxu0 %v4440
    %6334 = vmatpush1.bf16.msra.mxu0 %v4439
    %6335 = vmatprep.subr.bf16.mxu0 %v4444
    %6336 = vmatpush1.bf16.msra.mxu0 %v4443
    %6337 = vmatprep.subr.bf16.mxu0 %v4448
    %6338 = vmatpush1.bf16.msra.mxu0 %v4447
    %6339 = vmatprep.subr.bf16.mxu0 %v4452
    %6340 = vmatpush1.bf16.msra.mxu0 %v4451
    %6341 = vmatprep.subr.bf16.mxu0 %v4456
    %6342 = vmatpush1.bf16.msra.mxu0 %v4455
    %6343 = vmatprep.subr.bf16.mxu0 %v4460
    %6344 = vmatpush1.bf16.msra.mxu0 %v4459
    %6345 = vmatprep.subr.bf16.mxu0 %v4464
    %6346 = vmatpush1.bf16.msra.mxu0 %v4463
    %6347 = vmatprep.subr.bf16.mxu0 %v4468
    %6348 = vmatpush1.bf16.msra.mxu0 %v4467
    %6349 = vmatprep.subr.bf16.mxu0 %v4472
    %6350 = vmatpush1.bf16.msra.mxu0 %v4471
    %6351 = vmatprep.subr.bf16.mxu0 %v4476
    %6352 = vmatpush1.bf16.msra.mxu0 %v4475
    %6353 = vmatprep.subr.bf16.mxu0 %v4480
    %6354 = vmatpush1.bf16.msra.mxu0 %v4479
    %6355 = vmatprep.subr.bf16.mxu0 %v4484
    %6356 = vmatpush1.bf16.msra.mxu0 %v4483
    %6357 = vmatprep.subr.bf16.mxu0 %v4488
    %6358 = vmatpush1.bf16.msra.mxu0 %v4487
    %6359 = vmatprep.subr.bf16.mxu0 %v4492
    %6360 = vmatpush1.bf16.msra.mxu0 %v4491
    %6361 = vmatprep.mubr.bf16.mxu0 %v1299
    %6362 = vmatmul.mubr.bf16.gmra.mrb[0].mxu0 %v1295
    %v6363 = vpop.f32.mrb[0].mxu0
    %v6364 = vadd.f32 %v6321, %v6363
    %v6365 = vpop.f32.mrb[0].mxu0
    %v6366 = vadd.f32 %v6323, %v6365
    %v6367 = vpop.f32.mrb[0].mxu0
    %v6368 = vadd.f32 %v6325, %v6367
    %v6369 = vpop.f32.mrb[0].mxu0
    %v6370 = vadd.f32 %v6327, %v6369
    %6371 = vdwg.mxu0
    %6372 = vmatprep.subr.bf16.mxu0 %v4496
    %6373 = vmatpush1.bf16.msra.mxu0 %v4495
    %6374 = vmatprep.subr.bf16.mxu0 %v4500
    %6375 = vmatpush1.bf16.msra.mxu0 %v4499
    %6376 = vmatprep.subr.bf16.mxu0 %v4504
    %6377 = vmatpush1.bf16.msra.mxu0 %v4503
    %6378 = vmatprep.subr.bf16.mxu0 %v4508
    %6379 = vmatpush1.bf16.msra.mxu0 %v4507
    %6380 = vmatprep.subr.bf16.mxu0 0
    %6381 = vmatpush1.bf16.msra.mxu0 0
    %6382 = vmatprep.subr.bf16.mxu0 0
    %6383 = vmatpush1.bf16.msra.mxu0 0
    %6384 = vmatprep.subr.bf16.mxu0 0
    %6385 = vmatpush1.bf16.msra.mxu0 0
    %6386 = vmatprep.subr.bf16.mxu0 0
    %6387 = vmatpush1.bf16.msra.mxu0 0
    %6388 = vmatprep.subr.bf16.mxu0 0
    %6389 = vmatpush1.bf16.msra.mxu0 0
    %6390 = vmatprep.subr.bf16.mxu0 0
    %6391 = vmatpush1.bf16.msra.mxu0 0
    %6392 = vmatprep.subr.bf16.mxu0 0
    %6393 = vmatpush1.bf16.msra.mxu0 0
    %6394 = vmatprep.subr.bf16.mxu0 0
    %6395 = vmatpush1.bf16.msra.mxu0 0
    %6396 = vmatprep.subr.bf16.mxu0 0
    %6397 = vmatpush1.bf16.msra.mxu0 0
    %6398 = vmatprep.subr.bf16.mxu0 0
    %6399 = vmatpush1.bf16.msra.mxu0 0
    %6400 = vmatprep.subr.bf16.mxu0 0
    %6401 = vmatpush1.bf16.msra.mxu0 0
    %6402 = vmatprep.subr.bf16.mxu0 0
    %6403 = vmatpush1.bf16.msra.mxu0 0
    %6404 = vmatprep.mubr.bf16.mxu0 0
    %6405 = vmatmul.mubr.bf16.gmra.mrb[0].mxu0 %v5295
    %v6406 = vpop.f32.mrb[0].mxu0
    %v6407 = vadd.f32 %v6364, %v6406
    %v6408 = vpop.f32.mrb[0].mxu0
    %v6409 = vadd.f32 %v6366, %v6408
    %v6410 = vpop.f32.mrb[0].mxu0
    %v6411 = vadd.f32 %v6368, %v6410
    %v6412 = vpop.f32.mrb[0].mxu0
    %v6413 = vadd.f32 %v6370, %v6412
    %6414 = vdwg.mxu0
    %v6415 = vmax.f32 %v5848, 0.0
    %v6416 = vmax.f32 %v5850, 0.0
    %v6417 = vmax.f32 %v6407, 0.0
    %v6418 = vmax.f32 %v6409, 0.0
    %v6419 = vmax.f32 %v5852, 0.0
    %v6420 = vmax.f32 %v5854, 0.0
    %v6421 = vmax.f32 %v6411, 0.0
    %v6422 = vmax.f32 %v6413, 0.0
    %v6423 = vpack.c.bf16 %v6419, %v6415
    %v6424 = vpack.c.bf16 %v6420, %v6416
    %v6425 = vpack.c.bf16 %v6421, %v6417
    %v6426 = vpack.c.bf16 %v6422, %v6418
    %v6427 = vld [vmem:[%s3] sm:$0xf]
    %v6428 = vld [vmem:[%s3 + $0x4] sm:$0xf]
    %v6429 = vld [vmem:[%s3 + $0x8] sm:$0xf]
    %v6430 = vld [vmem:[%s3 + $0xc] sm:$0xf]
    %v6431 = vld [vmem:[%s3 + $0x10] sm:$0xf]
    %v6432 = vld [vmem:[%s3 + $0x14] sm:$0xf]
    %v6433 = vld [vmem:[%s3 + $0x18] sm:$0xf]
    %v6434 = vld [vmem:[%s3 + $0x1c] sm:$0xf]
    %v6435 = vld [vmem:[%s3 + $0x20] sm:$0xf]
    %v6436 = vld [vmem:[%s3 + $0x24] sm:$0xf]
    %v6437 = vld [vmem:[%s3 + $0x28] sm:$0xf]
    %v6438 = vld [vmem:[%s3 + $0x2c] sm:$0xf]
    %v6439 = vld [vmem:[%s3 + $0x30] sm:$0xf]
    %v6440 = vld [vmem:[%s3 + $0x34] sm:$0xf]
    %v6441 = vld [vmem:[%s3 + $0x38] sm:$0xf]
    %v6442 = vld [vmem:[%s3 + $0x3c] sm:$0xf]
    %v6443 = vld [vmem:[%s3 + $0x40] sm:$0xf]
    %v6444 = vld [vmem:[%s3 + $0x44] sm:$0xf]
    %v6445 = vld [vmem:[%s3 + $0x48] sm:$0xf]
    %v6446 = vld [vmem:[%s3 + $0x4c] sm:$0xf]
    %v6447 = vld [vmem:[%s3 + $0x50] sm:$0xf]
    %v6448 = vld [vmem:[%s3 + $0x54] sm:$0xf]
    %v6449 = vld [vmem:[%s3 + $0x58] sm:$0xf]
    %v6450 = vld [vmem:[%s3 + $0x5c] sm:$0xf]
    %v6451 = vld [vmem:[%s3 + $0x60] sm:$0xf]
    %v6452 = vld [vmem:[%s3 + $0x64] sm:$0xf]
    %v6453 = vld [vmem:[%s3 + $0x68] sm:$0xf]
    %v6454 = vld [vmem:[%s3 + $0x6c] sm:$0xf]
    %v6455 = vld [vmem:[%s3 + $0x70] sm:$0xf]
    %v6456 = vld [vmem:[%s3 + $0x74] sm:$0xf]
    %v6457 = vld [vmem:[%s3 + $0x78] sm:$0xf]
    %v6458 = vld [vmem:[%s3 + $0x7c] sm:$0xf]
    %v6459 = vld [vmem:[%s3 + $0x80] sm:$0xf]
    %v6460 = vld [vmem:[%s3 + $0x84] sm:$0xf]
    %v6461 = vld [vmem:[%s3 + $0x88] sm:$0xf]
    %v6462 = vld [vmem:[%s3 + $0x8c] sm:$0xf]
    %v6463 = vld [vmem:[%s3 + $0x90] sm:$0xf]
    %v6464 = vld [vmem:[%s3 + $0x94] sm:$0xf]
    %v6465 = vld [vmem:[%s3 + $0x98] sm:$0xf]
    %v6466 = vld [vmem:[%s3 + $0x9c] sm:$0xf]
    %v6467 = vld [vmem:[%s3 + $0xa0] sm:$0xf]
    %v6468 = vld [vmem:[%s3 + $0xa4] sm:$0xf]
    %v6469 = vld [vmem:[%s3 + $0xa8] sm:$0xf]
    %v6470 = vld [vmem:[%s3 + $0xac] sm:$0xf]
    %v6471 = vld [vmem:[%s3 + $0xb0] sm:$0xf]
    %v6472 = vld [vmem:[%s3 + $0xb4] sm:$0xf]
    %v6473 = vld [vmem:[%s3 + $0xb8] sm:$0xf]
    %v6474 = vld [vmem:[%s3 + $0xbc] sm:$0xf]
    %v6475 = vld [vmem:[%s3 + $0xc0] sm:$0xf]
    %v6476 = vld [vmem:[%s3 + $0xc4] sm:$0xf]
    %v6477 = vld [vmem:[%s3 + $0xc8] sm:$0xf]
    %v6478 = vld [vmem:[%s3 + $0xcc] sm:$0xf]
    %v6479 = vld [vmem:[%s3 + $0xd0] sm:$0xf]
    %v6480 = vld [vmem:[%s3 + $0xd4] sm:$0xf]
    %v6481 = vld [vmem:[%s3 + $0xd8] sm:$0xf]
    %v6482 = vld [vmem:[%s3 + $0xdc] sm:$0xf]
    %v6483 = vld [vmem:[%s3 + $0xe0] sm:$0xf]
    %v6484 = vld [vmem:[%s3 + $0xe4] sm:$0xf]
    %v6485 = vld [vmem:[%s3 + $0xe8] sm:$0xf]
    %v6486 = vld [vmem:[%s3 + $0xec] sm:$0xf]
    %v6487 = vld [vmem:[%s3 + $0xf0] sm:$0xf]
    %v6488 = vld [vmem:[%s3 + $0xf4] sm:$0xf]
    %v6489 = vld [vmem:[%s3 + $0xf8] sm:$0xf]
    %v6490 = vld [vmem:[%s3 + $0xfc] sm:$0xf]
    %v6491 = vld [vmem:[%s4] sm:$0x1]
    %v6493 = vlaneseq
    %v6494 = vshrl.u32 %v6493, 7
    %v6495 = vsub.s32 0, %v6494
    %v6496 = vrot.slane %v6491, %v6495
    %v6562 = vunpack.c.l.b16 %v6427
    %v6563 = vunpack.c.l.b16 %v6428
    %v6564 = vunpack.c.l.b16 %v6429
    %v6565 = vunpack.c.l.b16 %v6430
    %v6566 = vunpack.c.l.b16 %v6431
    %v6567 = vunpack.c.l.b16 %v6432
    %v6568 = vunpack.c.l.b16 %v6433
    %v6569 = vunpack.c.l.b16 %v6434
    %v6570 = vunpack.c.l.b16 %v6435
    %v6571 = vunpack.c.l.b16 %v6436
    %v6572 = vunpack.c.l.b16 %v6437
    %v6573 = vunpack.c.l.b16 %v6438
    %v6574 = vunpack.c.l.b16 %v6439
    %v6575 = vunpack.c.l.b16 %v6440
    %v6576 = vunpack.c.l.b16 %v6441
    %v6577 = vunpack.c.l.b16 %v6442
    %v6578 = vunpack.c.l.b16 %v6443
    %v6579 = vunpack.c.l.b16 %v6444
    %v6580 = vunpack.c.l.b16 %v6445
    %v6581 = vunpack.c.l.b16 %v6446
    %v6582 = vunpack.c.l.b16 %v6447
    %v6583 = vunpack.c.l.b16 %v6448
    %v6584 = vunpack.c.l.b16 %v6449
    %v6585 = vunpack.c.l.b16 %v6450
    %v6586 = vunpack.c.l.b16 %v6451
    %v6587 = vunpack.c.l.b16 %v6452
    %v6588 = vunpack.c.l.b16 %v6453
    %v6589 = vunpack.c.l.b16 %v6454
    %v6590 = vunpack.c.l.b16 %v6455
    %v6591 = vunpack.c.l.b16 %v6456
    %v6592 = vunpack.c.l.b16 %v6457
    %v6593 = vunpack.c.l.b16 %v6458
    %v6594 = vunpack.c.l.b16 %v6459
    %v6595 = vunpack.c.l.b16 %v6460
    %v6596 = vunpack.c.l.b16 %v6461
    %v6597 = vunpack.c.l.b16 %v6462
    %v6598 = vunpack.c.l.b16 %v6463
    %v6599 = vunpack.c.l.b16 %v6464
    %v6600 = vunpack.c.l.b16 %v6465
    %v6601 = vunpack.c.l.b16 %v6466
    %v6602 = vunpack.c.l.b16 %v6467
    %v6603 = vunpack.c.l.b16 %v6468
    %v6604 = vunpack.c.l.b16 %v6469
    %v6605 = vunpack.c.l.b16 %v6470
    %v6606 = vunpack.c.l.b16 %v6471
    %v6607 = vunpack.c.l.b16 %v6472
    %v6608 = vunpack.c.l.b16 %v6473
    %v6609 = vunpack.c.l.b16 %v6474
    %v6610 = vunpack.c.l.b16 %v6475
    %v6611 = vunpack.c.l.b16 %v6476
    %v6612 = vunpack.c.l.b16 %v6477
    %v6613 = vunpack.c.l.b16 %v6478
    %v6614 = vunpack.c.l.b16 %v6479
    %v6615 = vunpack.c.l.b16 %v6480
    %v6616 = vunpack.c.l.b16 %v6481
    %v6617 = vunpack.c.l.b16 %v6482
    %v6618 = vunpack.c.l.b16 %v6483
    %v6619 = vunpack.c.l.b16 %v6484
    %v6620 = vunpack.c.l.b16 %v6485
    %v6621 = vunpack.c.l.b16 %v6486
    %v6622 = vunpack.c.l.b16 %v6487
    %v6623 = vunpack.c.l.b16 %v6488
    %v6624 = vunpack.c.l.b16 %v6489
    %v6625 = vunpack.c.l.b16 %v6490
    %v6626 = vpack.c.b16 %v6563, %v6562
    %v6627 = vpack.c.b16 %v6565, %v6564
    %v6628 = vpack.c.b16 %v6567, %v6566
    %v6629 = vpack.c.b16 %v6569, %v6568
    %v6630 = vpack.c.b16 %v6571, %v6570
    %v6631 = vpack.c.b16 %v6573, %v6572
    %v6632 = vpack.c.b16 %v6575, %v6574
    %v6633 = vpack.c.b16 %v6577, %v6576
    %v6634 = vpack.c.b16 %v6579, %v6578
    %v6635 = vpack.c.b16 %v6581, %v6580
    %v6636 = vpack.c.b16 %v6583, %v6582
    %v6637 = vpack.c.b16 %v6585, %v6584
    %v6638 = vpack.c.b16 %v6587, %v6586
    %v6639 = vpack.c.b16 %v6589, %v6588
    %v6640 = vpack.c.b16 %v6591, %v6590
    %v6641 = vpack.c.b16 %v6593, %v6592
    %v6642 = vpack.c.b16 %v6595, %v6594
    %v6643 = vpack.c.b16 %v6597, %v6596
    %v6644 = vpack.c.b16 %v6599, %v6598
    %v6645 = vpack.c.b16 %v6601, %v6600
    %v6646 = vpack.c.b16 %v6603, %v6602
    %v6647 = vpack.c.b16 %v6605, %v6604
    %v6648 = vpack.c.b16 %v6607, %v6606
    %v6649 = vpack.c.b16 %v6609, %v6608
    %v6650 = vpack.c.b16 %v6611, %v6610
    %v6651 = vpack.c.b16 %v6613, %v6612
    %v6652 = vpack.c.b16 %v6615, %v6614
    %v6653 = vpack.c.b16 %v6617, %v6616
    %v6654 = vpack.c.b16 %v6619, %v6618
    %v6655 = vpack.c.b16 %v6621, %v6620
    %v6656 = vpack.c.b16 %v6623, %v6622
    %v6657 = vpack.c.b16 %v6625, %v6624
    %6690 = vmatprep.subr.bf16.mxu0 0
    %6691 = vmatpush1.bf16.msra.mxu0 %v6626
    %6692 = vmatprep.subr.bf16.mxu0 0
    %6693 = vmatpush1.bf16.msra.mxu0 %v6627
    %6694 = vmatprep.subr.bf16.mxu0 0
    %6695 = vmatpush1.bf16.msra.mxu0 %v6628
    %6696 = vmatprep.subr.bf16.mxu0 0
    %6697 = vmatpush1.bf16.msra.mxu0 %v6629
    %6698 = vmatprep.subr.bf16.mxu0 0
    %6699 = vmatpush1.bf16.msra.mxu0 %v6630
    %6700 = vmatprep.subr.bf16.mxu0 0
    %6701 = vmatpush1.bf16.msra.mxu0 %v6631
    %6702 = vmatprep.subr.bf16.mxu0 0
    %6703 = vmatpush1.bf16.msra.mxu0 %v6632
    %6704 = vmatprep.subr.bf16.mxu0 0
    %6705 = vmatpush1.bf16.msra.mxu0 %v6633
    %6706 = vmatprep.subr.bf16.mxu0 0
    %6707 = vmatpush1.bf16.msra.mxu0 %v6634
    %6708 = vmatprep.subr.bf16.mxu0 0
    %6709 = vmatpush1.bf16.msra.mxu0 %v6635
    %6710 = vmatprep.subr.bf16.mxu0 0
    %6711 = vmatpush1.bf16.msra.mxu0 %v6636
    %6712 = vmatprep.subr.bf16.mxu0 0
    %6713 = vmatpush1.bf16.msra.mxu0 %v6637
    %6714 = vmatprep.subr.bf16.mxu0 0
    %6715 = vmatpush1.bf16.msra.mxu0 %v6638
    %6716 = vmatprep.subr.bf16.mxu0 0
    %6717 = vmatpush1.bf16.msra.mxu0 %v6639
    %6718 = vmatprep.subr.bf16.mxu0 0
    %6719 = vmatpush1.bf16.msra.mxu0 %v6640
    %6720 = vmatprep.subr.bf16.mxu0 0
    %6721 = vmatpush1.bf16.msra.mxu0 %v6641
    %6722 = vmatprep.mubr.bf16.mxu0 %v6424
    %6723 = vmatmul.mubr.bf16.gmra.mrb[0].mxu0 %v6423
    %v6724 = vpop.f32.mrb[0].mxu0
    %v6725 = vadd.f32 %v6496, %v6724
    %v6726 = vpop.f32.mrb[0].mxu0
    %v6727 = vpop.f32.mrb[0].mxu0
    %v6728 = vadd.f32 %v6496, %v6727
    %v6729 = vpop.f32.mrb[0].mxu0
    %6730 = vdwg.mxu0
    %6731 = vmatprep.subr.bf16.mxu0 0
    %6732 = vmatpush1.bf16.msra.mxu0 %v6642
    %6733 = vmatprep.subr.bf16.mxu0 0
    %6734 = vmatpush1.bf16.msra.mxu0 %v6643
    %6735 = vmatprep.subr.bf16.mxu0 0
    %6736 = vmatpush1.bf16.msra.mxu0 %v6644
    %6737 = vmatprep.subr.bf16.mxu0 0
    %6738 = vmatpush1.bf16.msra.mxu0 %v6645
    %6739 = vmatprep.subr.bf16.mxu0 0
    %6740 = vmatpush1.bf16.msra.mxu0 %v6646
    %6741 = vmatprep.subr.bf16.mxu0 0
    %6742 = vmatpush1.bf16.msra.mxu0 %v6647
    %6743 = vmatprep.subr.bf16.mxu0 0
    %6744 = vmatpush1.bf16.msra.mxu0 %v6648
    %6745 = vmatprep.subr.bf16.mxu0 0
    %6746 = vmatpush1.bf16.msra.mxu0 %v6649
    %6747 = vmatprep.subr.bf16.mxu0 0
    %6748 = vmatpush1.bf16.msra.mxu0 %v6650
    %6749 = vmatprep.subr.bf16.mxu0 0
    %6750 = vmatpush1.bf16.msra.mxu0 %v6651
    %6751 = vmatprep.subr.bf16.mxu0 0
    %6752 = vmatpush1.bf16.msra.mxu0 %v6652
    %6753 = vmatprep.subr.bf16.mxu0 0
    %6754 = vmatpush1.bf16.msra.mxu0 %v6653
    %6755 = vmatprep.subr.bf16.mxu0 0
    %6756 = vmatpush1.bf16.msra.mxu0 %v6654
    %6757 = vmatprep.subr.bf16.mxu0 0
    %6758 = vmatpush1.bf16.msra.mxu0 %v6655
    %6759 = vmatprep.subr.bf16.mxu0 0
    %6760 = vmatpush1.bf16.msra.mxu0 %v6656
    %6761 = vmatprep.subr.bf16.mxu0 0
    %6762 = vmatpush1.bf16.msra.mxu0 %v6657
    %6763 = vmatprep.mubr.bf16.mxu0 %v6426
    %6764 = vmatmul.mubr.bf16.gmra.mrb[0].mxu0 %v6425
    %v6765 = vpop.f32.mrb[0].mxu0
    %v6766 = vadd.f32 %v6725, %v6765
    %v6767 = vpop.f32.mrb[0].mxu0
    %v6768 = vpop.f32.mrb[0].mxu0
    %v6769 = vadd.f32 %v6728, %v6768
    %v6770 = vpop.f32.mrb[0].mxu0
    %6771 = vdwg.mxu0
    %6772 = vst [vmem:[#allocation2] sm:$0xff] %v6766
    %6773 = vst [vmem:[#allocation2 + $0x8] sm:$0xff] %v6769
    // Predicated region
    $region22: #{net_forward.7} parent=1 // pred_check
      _
    $region23: #{net_forward.7} parent=1 // pred_check_branch
      %6775 = sbr.rel (0) target = $region25
    $region24: #{net_forward.7} parent=1 // pred_region
      %s6777 = ssub.s32 256, 32
      %6778 = vsyncadd [#allocation3], %s6777
      %s6779 = sshll.u32 [#allocation2], 4
      %s6780 = int_to_ptr.vmem [resolvable:$true] %s6779
      %6785 = dma.vmem_to_hbm [thread:$0]  %s6780, 32, %s5, [#allocation3], 32, 32, 2
    $region25: #{net_forward.7} parent=1 // pred_fallthru
      _
    // Predicated region
    $region26: #{net_forward.7} parent=1 // pred_check
      _
    $region27: #{net_forward.7} parent=1 // pred_check_branch
      %6787 = sbr.rel (0) target = $region29
    $region28: #{net_forward.7} parent=1 // pred_region
      %6788 = dma.done [#allocation3], 256
    $region29: #{net_forward.7} parent=1 // pred_fallthru
      _
    %6789 = vsyncpa [#allocation3], 1

</llo_original>
